<compile_context>
chip_gen: v7x
topology: tpu7x:2x2x1
jax: 0.10.0
libtpu: 0.0.40
codegen_flags: <defaults>
</compile_context>

<pallas_src>
import functools

import jax
import jax.numpy as jnp
import numpy as np
from jax.experimental import pallas as pl
from jax.experimental.pallas import tpu as pltpu


# --------------------------------- helpers ---------------------------------

def _silu(x):
    return x * jax.nn.sigmoid(x)


def _round_up(v, m):
    return ((v + m - 1) // m) * m


# ---------------------- fused ResNetBlock Pallas kernel ----------------------
# One grid step = one batch element; the whole (H, W) slab stays in VMEM.
# TODO(synk): ResNetBlock stride s != 1 (strided cv2 + strided shortcut) is not
# implemented; the module default s=1 is what this kernel covers.

def _resnet_block_kernel(*refs, H, W, WP, use_ws):
    if use_ws:
        (xp_ref, w1_ref, b1_ref, w2_ref, b2_ref, w3_ref, b3_ref,
         ws_ref, bs_ref, o_ref, h1s_ref) = refs
    else:
        (xp_ref, w1_ref, b1_ref, w2_ref, b2_ref, w3_ref, b3_ref,
         o_ref, h1s_ref) = refs
        ws_ref = bs_ref = None

    C1 = xp_ref.shape[-1]
    C2 = w1_ref.shape[-1]
    C3 = w3_ref.shape[-1]

    # ---- cv1 (1x1 conv + SiLU) on every (padded) position ----
    xp = xp_ref[0]                                            # (H+2, WP, C1)
    h1 = jnp.dot(xp.reshape((H + 2) * WP, C1), w1_ref[...],
                 preferred_element_type=jnp.float32) + b1_ref[...]
    h1 = _silu(h1).reshape(H + 2, WP, C2)
    # Zero the halo so cv2 sees exact zero padding (safe for nonzero bias).
    row = jax.lax.broadcasted_iota(jnp.int32, (H + 2, WP, C2), 0)
    col = jax.lax.broadcasted_iota(jnp.int32, (H + 2, WP, C2), 1)
    interior = (row >= 1) & (row <= H) & (col >= 1) & (col <= W)
    h1s_ref[...] = jnp.where(interior, h1, 0.0)

    # ---- cv2: 3x3 conv (stride 1, pad 1) as 9 MXU tap-matmuls + SiLU ----
    acc = jnp.zeros((H * W, C2), jnp.float32)
    for kh in range(3):
        for kw in range(3):
            tap = h1s_ref[kh:kh + H, kw:kw + W, :].reshape(H * W, C2)
            acc = acc + jnp.dot(tap, w2_ref[kh * 3 + kw],
                                preferred_element_type=jnp.float32)
    h2 = _silu(acc + b2_ref[...])

    # ---- cv3 (1x1, no act) + shortcut + residual ReLU ----
    y = jnp.dot(h2, w3_ref[...], preferred_element_type=jnp.float32) + b3_ref[...]
    x_in = xp_ref[0, 1:H + 1, 1:W + 1, :].reshape(H * W, C1)
    if use_ws:
        sc = jnp.dot(x_in, ws_ref[...], preferred_element_type=jnp.float32) + bs_ref[...]
    else:
        sc = x_in                                             # identity (C1 == C3)
    out = jnp.maximum(y + sc, 0.0)
    o_ref[0] = out.reshape(H, W, C3).astype(o_ref.dtype)


def resnet_block(x_nhwc, p):
    """Fused ResNetBlock (stride 1). x: (B, H, W, c1) -> (B, H, W, e*c2)."""
    B, H, W, C1 = x_nhwc.shape
    C2 = p['w1'].shape[1]
    C3 = p['w3'].shape[1]
    use_ws = 'ws' in p
    assert W % 8 == 0, "W must be a multiple of 8 (sublane-aligned reshapes)"
    WP = _round_up(W + 2, 8)          # pad width to a multiple of 8 sublanes
    xp = jnp.pad(x_nhwc, ((0, 0), (1, 1), (1, WP - W - 1), (0, 0)))

    args = [xp, p['w1'], p['b1'].reshape(1, C2), p['w2'], p['b2'].reshape(1, C2),
            p['w3'], p['b3'].reshape(1, C3)]
    in_specs = [
        pl.BlockSpec((1, H + 2, WP, C1), lambda b: (b, 0, 0, 0)),
        pl.BlockSpec((C1, C2), lambda b: (0, 0)),
        pl.BlockSpec((1, C2), lambda b: (0, 0)),
        pl.BlockSpec((9, C2, C2), lambda b: (0, 0, 0)),
        pl.BlockSpec((1, C2), lambda b: (0, 0)),
        pl.BlockSpec((C2, C3), lambda b: (0, 0)),
        pl.BlockSpec((1, C3), lambda b: (0, 0)),
    ]
    if use_ws:
        args += [p['ws'], p['bs'].reshape(1, C3)]
        in_specs += [pl.BlockSpec((C1, C3), lambda b: (0, 0)),
                     pl.BlockSpec((1, C3), lambda b: (0, 0))]

    return pl.pallas_call(
        functools.partial(_resnet_block_kernel, H=H, W=W, WP=WP, use_ws=use_ws),
        out_shape=jax.ShapeDtypeStruct((B, H, W, C3), x_nhwc.dtype),
        grid=(B,),
        in_specs=in_specs,
        out_specs=pl.BlockSpec((1, H, W, C3), lambda b: (b, 0, 0, 0)),
        scratch_shapes=[pltpu.VMEM((H + 2, WP, C2), jnp.float32)],
        compiler_params=pltpu.CompilerParams(dimension_semantics=("parallel",)),
    )(*args)


# --------------- stem (is_first=True): 7x7/s2 conv + SiLU, maxpool ---------------
# Stride-2 gathers become unit-stride reads by pre-splitting the padded input
# into its four (row, col) parity slabs with XLA strided slices.

def _stem_conv_kernel(xs_ref, w_ref, b_ref, o_ref, *, HO, WO):
    C1 = xs_ref.shape[-1]
    C2 = w_ref.shape[-1]
    acc = jnp.zeros((HO * WO, C2), jnp.float32)
    for kh in range(7):
        for kw in range(7):
            par = (kh % 2) * 2 + (kw % 2)
            qh, qw = kh // 2, kw // 2
            tap = xs_ref[par, qh:qh + HO, qw:qw + WO, :].reshape(HO * WO, C1)
            acc = acc + jnp.dot(tap, w_ref[kh * 7 + kw],
                                preferred_element_type=jnp.float32)
    y = _silu(acc + b_ref[...])
    o_ref[0] = y.reshape(HO, WO, C2).astype(o_ref.dtype)


def stem_conv(x_nhwc, w, b):
    """7x7, stride 2, pad 3 conv + folded BN + SiLU. (B,H,W,c1) -> (B,H/2,W/2,c2)."""
    B, H, W, C1 = x_nhwc.shape
    C2 = w.shape[-1]
    assert H % 2 == 0 and W % 2 == 0 and (W // 2) % 8 == 0
    HO, WO = H // 2, W // 2
    xp = jnp.pad(x_nhwc, ((0, 0), (3, 3), (3, 3), (0, 0)))
    slabs = jnp.stack([xp[:, ph::2, pw::2, :][:, :HO + 3, :WO + 3, :]
                       for ph in range(2) for pw in range(2)], axis=1)
    slabs = slabs.reshape(B * 4, HO + 3, WO + 3, C1)
    return pl.pallas_call(
        functools.partial(_stem_conv_kernel, HO=HO, WO=WO),
        out_shape=jax.ShapeDtypeStruct((B, HO, WO, C2), x_nhwc.dtype),
        grid=(B,),
        in_specs=[pl.BlockSpec((4, HO + 3, WO + 3, C1), lambda b: (b, 0, 0, 0)),
                  pl.BlockSpec((49, C1, C2), lambda b: (0, 0, 0)),
                  pl.BlockSpec((1, C2), lambda b: (0, 0))],
        out_specs=pl.BlockSpec((1, HO, WO, C2), lambda b: (b, 0, 0, 0)),
        compiler_params=pltpu.CompilerParams(dimension_semantics=("parallel",)),
    )(slabs, w, b.reshape(1, C2))


def _maxpool3s2_kernel(hs_ref, o_ref, *, HP, WP):
    C = o_ref.shape[-1]
    r = jnp.full((HP, WP, C), -jnp.inf, jnp.float32)
    for dh in range(3):
        for dw in range(3):
            par = (dh % 2) * 2 + (dw % 2)
            qh, qw = dh // 2, dw // 2
            r = jnp.maximum(r, hs_ref[par, qh:qh + HP, qw:qw + WP, :].astype(jnp.float32))
    o_ref[0] = r.astype(o_ref.dtype)


def maxpool3s2(h_nhwc):
    """MaxPool2d(kernel=3, stride=2, padding=1). (B,H,W,C) -> (B,H/2,W/2,C)."""
    B, H, W, C = h_nhwc.shape
    assert H % 2 == 0 and W % 2 == 0
    HP, WPo = H // 2, W // 2
    hp = jnp.pad(h_nhwc, ((0, 0), (1, 1), (1, 1), (0, 0)),
                 constant_values=-jnp.inf)
    slabs = jnp.stack([hp[:, ph::2, pw::2, :][:, :HP + 1, :WPo + 1, :]
                       for ph in range(2) for pw in range(2)], axis=1)
    slabs = slabs.reshape(B * 4, HP + 1, WPo + 1, C)
    return pl.pallas_call(
        functools.partial(_maxpool3s2_kernel, HP=HP, WP=WPo),
        out_shape=jax.ShapeDtypeStruct((B, HP, WPo, C), h_nhwc.dtype),
        grid=(B,),
        in_specs=[pl.BlockSpec((4, HP + 1, WPo + 1, C), lambda b: (b, 0, 0, 0))],
        out_specs=pl.BlockSpec((1, HP, WPo, C), lambda b: (b, 0, 0, 0)),
        compiler_params=pltpu.CompilerParams(dimension_semantics=("parallel",)),
    )(slabs)


# --------------------- pure-JAX references (for checking) ---------------------

_PREC = jax.lax.Precision.HIGHEST


def _conv_ref(x_nhwc, w_hwio, b, *, stride=1, pad=0, act=True):
    y = jax.lax.conv_general_dilated(
        x_nhwc, w_hwio, (stride, stride), ((pad, pad), (pad, pad)),
        dimension_numbers=('NHWC', 'HWIO', 'NHWC'), precision=_PREC)
    y = y + b
    return _silu(y) if act else y


def _resnet_block_ref(x_nhwc, p):
    C1 = x_nhwc.shape[-1]
    C2 = p['w1'].shape[1]
    C3 = p['w3'].shape[1]
    h = _conv_ref(x_nhwc, p['w1'].reshape(1, 1, C1, C2), p['b1'], act=True)
    h = _conv_ref(h, p['w2'].reshape(3, 3, C2, C2), p['b2'], pad=1, act=True)
    h = _conv_ref(h, p['w3'].reshape(1, 1, C2, C3), p['b3'], act=False)
    if 'ws' in p:
        sc = _conv_ref(x_nhwc, p['ws'].reshape(1, 1, C1, C3), p['bs'], act=False)
    else:
        sc = x_nhwc
    return jnp.maximum(h + sc, 0.0)


def _stem_ref(x_nhwc, p):
    C1 = x_nhwc.shape[-1]
    C2 = p['w'].shape[-1]
    h = _conv_ref(x_nhwc, p['w'].reshape(7, 7, C1, C2), p['b'],
                  stride=2, pad=3, act=True)
    init = jnp.asarray(-jnp.inf, dtype=h.dtype)
    return jax.lax.reduce_window(h, init, jax.lax.max,
                                 (1, 3, 3, 1), (1, 2, 2, 1),
                                 ((0, 0), (1, 1), (1, 1), (0, 0)))


# ------------------------------- layer forward -------------------------------

def resnet_layer_forward(x_nchw, params, *, is_first=False, use_pallas=True):
    """ResNetLayer forward. x: (B, C, H, W) NCHW in, NCHW out."""
    x = jnp.transpose(x_nchw, (0, 2, 3, 1))            # channels-last internally
    if is_first:
        if use_pallas:
            x = maxpool3s2(stem_conv(x, params['stem']['w'], params['stem']['b']))
        else:
            x = _stem_ref(x, params['stem'])
    else:
        blk = resnet_block if use_pallas else _resnet_block_ref
        for bp in params['blocks']:
            x = blk(x, bp)
    return jnp.transpose(x, (0, 3, 1, 2))


# ------------------------------ parameter init ------------------------------
# Ultralytics Conv = Conv2d(bias=False) + BatchNorm2d + act; in eval mode BN
# folds into the conv as w' = w*gamma/sqrt(var+eps), b' = beta - mean*gamma/...
# We draw random folded weights AND nonzero folded biases so that the halo /
# padding handling inside the fused kernel is actually exercised.

def _w(key, shape, fan_in):
    return jax.random.normal(key, shape, jnp.float32) / np.sqrt(fan_in)


def _b(key, n):
    return 0.05 * jax.random.normal(key, (n,), jnp.float32)


def init_resnet_block_params(key, c1, c2, e=4):
    c3 = e * c2
    ks = jax.random.split(key, 8)
    p = {'w1': _w(ks[0], (c1, c2), c1), 'b1': _b(ks[1], c2),
         'w2': _w(ks[2], (9, c2, c2), 9 * c2), 'b2': _b(ks[3], c2),
         'w3': _w(ks[4], (c2, c3), c2), 'b3': _b(ks[5], c3)}
    if c1 != c3:                      # shortcut conv (stride fixed to 1 here)
        p['ws'] = _w(ks[6], (c1, c3), c1)
        p['bs'] = _b(ks[7], c3)
    return p


def init_resnet_layer_params(key, c1, c2, *, is_first=False, n=1, e=4):
    if is_first:
        k1, k2 = jax.random.split(key)
        return {'stem': {'w': _w(k1, (49, c1, c2), 49 * c1), 'b': _b(k2, c2)}}
    keys = jax.random.split(key, n)
    blocks = [init_resnet_block_params(keys[0], c1, c2, e)]
    blocks += [init_resnet_block_params(keys[i], e * c2, c2, e) for i in range(1, n)]
    return {'blocks': blocks}


# ----------------------------------- main -----------------------------------

if __name__ == "__main__":
    key = jax.random.PRNGKey(0)
    kx1, kp1, kx2, kp2 = jax.random.split(key, 4)

    # --- ResNetLayer(is_first=False): n=2 ResNetBlocks, c1=64, c2=32, e=4 ---
    B, C1, H, W = 2, 64, 16, 16
    C2, n, e = 32, 2, 4
    x1 = jax.random.normal(kx1, (B, C1, H, W), jnp.float32)
    P1 = init_resnet_layer_params(kp1, C1, C2, is_first=False, n=n, e=e)
    f1 = jax.jit(functools.partial(resnet_layer_forward, is_first=False, use_pallas=True))
    out1 = jax.block_until_ready(f1(x1, P1))
    assert out1.shape == (B, e * C2, H, W) and out1.dtype == jnp.float32
    r1 = jax.jit(functools.partial(resnet_layer_forward, is_first=False, use_pallas=False))
    ref1 = jax.block_until_ready(r1(x1, P1))
    np.testing.assert_allclose(np.asarray(out1), np.asarray(ref1), rtol=2e-2, atol=2e-2)

    # --- ResNetLayer(is_first=True): 7x7/s2 conv + SiLU, then 3x3/s2 maxpool ---
    Bs, C1s, Hs, Ws, C2s = 2, 3, 32, 32, 64
    x2 = jax.random.normal(kx2, (Bs, C1s, Hs, Ws), jnp.float32)
    P2 = init_resnet_layer_params(kp2, C1s, C2s, is_first=True)
    f2 = jax.jit(functools.partial(resnet_layer_forward, is_first=True, use_pallas=True))
    out2 = jax.block_until_ready(f2(x2, P2))
    assert out2.shape == (Bs, C2s, Hs // 4, Ws // 4) and out2.dtype == jnp.float32
    r2 = jax.jit(functools.partial(resnet_layer_forward, is_first=True, use_pallas=False))
    ref2 = jax.block_until_ready(r2(x2, P2))
    np.testing.assert_allclose(np.asarray(out2), np.asarray(ref2), rtol=2e-2, atol=2e-2)

    print("KERNEL_OK")
</pallas_src>

<mosaic_0001>
module attributes {stable_mosaic.version = 11 : i64} {
  func.func @_resnet_block_kernel(%arg0: i32, %arg1: memref<1x18x24x64xf32, #tpu.memory_space<vmem>>, %arg2: memref<64x32xf32, #tpu.memory_space<vmem>>, %arg3: memref<1x32xf32, #tpu.memory_space<vmem>>, %arg4: memref<9x32x32xf32, #tpu.memory_space<vmem>>, %arg5: memref<1x32xf32, #tpu.memory_space<vmem>>, %arg6: memref<32x128xf32, #tpu.memory_space<vmem>>, %arg7: memref<1x128xf32, #tpu.memory_space<vmem>>, %arg8: memref<64x128xf32, #tpu.memory_space<vmem>>, %arg9: memref<1x128xf32, #tpu.memory_space<vmem>>, %arg10: memref<1x16x16x128xf32, #tpu.memory_space<vmem>>, %arg11: memref<18x24x32xf32, #tpu.memory_space<vmem>>) attributes {dimension_semantics = [#tpu.dimension_semantics<parallel>], iteration_bounds = array<i64: 2>, scalar_prefetch = 0 : i64, scratch_operands = 1 : i64, tpu.core_type = #tpu.core_type<tc>, window_params = [{transform_indices = @transform_0, window_bounds = array<i64: 1, 18, 24, 64>}, {pipeline_mode = #tpu.pipeline_mode<synchronous>, transform_indices = @transform_1, window_bounds = array<i64: 64, 32>}, {pipeline_mode = #tpu.pipeline_mode<synchronous>, transform_indices = @transform_2, window_bounds = array<i64: 1, 32>}, {pipeline_mode = #tpu.pipeline_mode<synchronous>, transform_indices = @transform_3, window_bounds = array<i64: 9, 32, 32>}, {pipeline_mode = #tpu.pipeline_mode<synchronous>, transform_indices = @transform_4, window_bounds = array<i64: 1, 32>}, {pipeline_mode = #tpu.pipeline_mode<synchronous>, transform_indices = @transform_5, window_bounds = array<i64: 32, 128>}, {pipeline_mode = #tpu.pipeline_mode<synchronous>, transform_indices = @transform_6, window_bounds = array<i64: 1, 128>}, {pipeline_mode = #tpu.pipeline_mode<synchronous>, transform_indices = @transform_7, window_bounds = array<i64: 64, 128>}, {pipeline_mode = #tpu.pipeline_mode<synchronous>, transform_indices = @transform_8, window_bounds = array<i64: 1, 128>}, {transform_indices = @transform_9, window_bounds = array<i64: 1, 16, 16, 128>}]} {
    %c0 = arith.constant 0 : index
    %c0_0 = arith.constant 0 : index
    %c0_1 = arith.constant 0 : index
    %c0_2 = arith.constant 0 : index
    %0 = vector.load %arg1[%c0, %c0_0, %c0_1, %c0_2] : memref<1x18x24x64xf32, #tpu.memory_space<vmem>>, vector<1x18x24x64xf32>
    %1 = vector.shape_cast %0 : vector<1x18x24x64xf32> to vector<18x24x64xf32>
    %2 = vector.shape_cast %1 : vector<18x24x64xf32> to vector<432x64xf32>
    %c0_3 = arith.constant 0 : index
    %c0_4 = arith.constant 0 : index
    %3 = vector.load %arg2[%c0_3, %c0_4] : memref<64x32xf32, #tpu.memory_space<vmem>>, vector<64x32xf32>
    %cst = arith.constant dense<0.000000e+00> : vector<432x32xf32>
    %4 = tpu.matmul %2, %3, %cst {dimension_numbers = #tpu.dot_dimension_numbers<[1], [0], [0], [1], [0, 0, 1, 1], [], []>} : vector<432x64xf32>, vector<64x32xf32>, vector<432x32xf32> -> vector<432x32xf32>
    %c0_5 = arith.constant 0 : index
    %c0_6 = arith.constant 0 : index
    %5 = vector.load %arg3[%c0_5, %c0_6] : memref<1x32xf32, #tpu.memory_space<vmem>>, vector<1x32xf32>
    %6 = vector.broadcast %5 : vector<1x32xf32> to vector<432x32xf32>
    %7 = arith.addf %4, %6 : vector<432x32xf32>
    %8 = arith.negf %7 : vector<432x32xf32>
    %9 = math.exp %8 : vector<432x32xf32>
    %cst_7 = arith.constant 1.000000e+00 : f32
    %10 = vector.broadcast %cst_7 : f32 to vector<432x32xf32>
    %11 = arith.addf %10, %9 : vector<432x32xf32>
    %12 = arith.divf %10, %11 : vector<432x32xf32>
    %13 = arith.mulf %7, %12 : vector<432x32xf32>
    %14 = vector.shape_cast %13 : vector<432x32xf32> to vector<18x24x32xf32>
    %15 = tpu.iota {dimensions = array<i32: 0>} : vector<18x24x32xi32>
    %16 = tpu.iota {dimensions = array<i32: 1>} : vector<18x24x32xi32>
    %c1_i32 = arith.constant 1 : i32
    %17 = vector.broadcast %c1_i32 : i32 to vector<18x24x32xi32>
    %18 = arith.cmpi sge, %15, %17 : vector<18x24x32xi32>
    %c16_i32 = arith.constant 16 : i32
    %19 = vector.broadcast %c16_i32 : i32 to vector<18x24x32xi32>
    %20 = arith.cmpi sle, %15, %19 : vector<18x24x32xi32>
    %21 = arith.andi %18, %20 : vector<18x24x32xi1>
    %c1_i32_8 = arith.constant 1 : i32
    %22 = vector.broadcast %c1_i32_8 : i32 to vector<18x24x32xi32>
    %23 = arith.cmpi sge, %16, %22 : vector<18x24x32xi32>
    %24 = arith.andi %21, %23 : vector<18x24x32xi1>
    %c16_i32_9 = arith.constant 16 : i32
    %25 = vector.broadcast %c16_i32_9 : i32 to vector<18x24x32xi32>
    %26 = arith.cmpi sle, %16, %25 : vector<18x24x32xi32>
    %27 = arith.andi %24, %26 : vector<18x24x32xi1>
    %cst_10 = arith.constant 0.000000e+00 : f32
    %28 = vector.broadcast %cst_10 : f32 to vector<18x24x32xf32>
    %29 = arith.select %27, %14, %28 : vector<18x24x32xi1>, vector<18x24x32xf32>
    %c0_11 = arith.constant 0 : index
    %c0_12 = arith.constant 0 : index
    %c0_13 = arith.constant 0 : index
    %30 = vector.load %arg11[%c0_11, %c0_12, %c0_13] : memref<18x24x32xf32, #tpu.memory_space<vmem>>, vector<18x24x32xf32>
    tpu.vector_store %arg11[%c0_11, %c0_12, %c0_13], %29 {strides = array<i32>} : memref<18x24x32xf32, #tpu.memory_space<vmem>>, vector<18x24x32xf32>,
    %cst_14 = arith.constant 0.000000e+00 : f32
    %31 = vector.broadcast %cst_14 : f32 to vector<256x32xf32>
    %c0_15 = arith.constant 0 : index
    %c0_16 = arith.constant 0 : index
    %c0_17 = arith.constant 0 : index
    %32 = vector.load %arg11[%c0_15, %c0_16, %c0_17] : memref<18x24x32xf32, #tpu.memory_space<vmem>>, vector<16x16x32xf32>
    %33 = vector.shape_cast %32 : vector<16x16x32xf32> to vector<256x32xf32>
    %c0_18 = arith.constant 0 : index
    %c0_19 = arith.constant 0 : index
    %c0_20 = arith.constant 0 : index
    %34 = vector.load %arg4[%c0_18, %c0_19, %c0_20] : memref<9x32x32xf32, #tpu.memory_space<vmem>>, vector<1x32x32xf32>
    %35 = vector.shape_cast %34 : vector<1x32x32xf32> to vector<32x32xf32>
    %cst_21 = arith.constant dense<0.000000e+00> : vector<256x32xf32>
    %36 = tpu.matmul %33, %35, %cst_21 {dimension_numbers = #tpu.dot_dimension_numbers<[1], [0], [0], [1], [0, 0, 1, 1], [], []>} : vector<256x32xf32>, vector<32x32xf32>, vector<256x32xf32> -> vector<256x32xf32>
    %37 = arith.addf %31, %36 : vector<256x32xf32>
    %c0_22 = arith.constant 0 : index
    %c1 = arith.constant 1 : index
    %c0_23 = arith.constant 0 : index
    %38 = vector.load %arg11[%c0_22, %c1, %c0_23] : memref<18x24x32xf32, #tpu.memory_space<vmem>>, vector<16x16x32xf32>
    %39 = vector.shape_cast %38 : vector<16x16x32xf32> to vector<256x32xf32>
    %c1_24 = arith.constant 1 : index
    %c0_25 = arith.constant 0 : index
    %c0_26 = arith.constant 0 : index
    %40 = vector.load %arg4[%c1_24, %c0_25, %c0_26] : memref<9x32x32xf32, #tpu.memory_space<vmem>>, vector<1x32x32xf32>
    %41 = vector.shape_cast %40 : vector<1x32x32xf32> to vector<32x32xf32>
    %cst_27 = arith.constant dense<0.000000e+00> : vector<256x32xf32>
    %42 = tpu.matmul %39, %41, %cst_27 {dimension_numbers = #tpu.dot_dimension_numbers<[1], [0], [0], [1], [0, 0, 1, 1], [], []>} : vector<256x32xf32>, vector<32x32xf32>, vector<256x32xf32> -> vector<256x32xf32>
    %43 = arith.addf %37, %42 : vector<256x32xf32>
    %c0_28 = arith.constant 0 : index
    %c2 = arith.constant 2 : index
    %c0_29 = arith.constant 0 : index
    %44 = vector.load %arg11[%c0_28, %c2, %c0_29] : memref<18x24x32xf32, #tpu.memory_space<vmem>>, vector<16x16x32xf32>
    %45 = vector.shape_cast %44 : vector<16x16x32xf32> to vector<256x32xf32>
    %c2_30 = arith.constant 2 : index
    %c0_31 = arith.constant 0 : index
    %c0_32 = arith.constant 0 : index
    %46 = vector.load %arg4[%c2_30, %c0_31, %c0_32] : memref<9x32x32xf32, #tpu.memory_space<vmem>>, vector<1x32x32xf32>
    %47 = vector.shape_cast %46 : vector<1x32x32xf32> to vector<32x32xf32>
    %cst_33 = arith.constant dense<0.000000e+00> : vector<256x32xf32>
    %48 = tpu.matmul %45, %47, %cst_33 {dimension_numbers = #tpu.dot_dimension_numbers<[1], [0], [0], [1], [0, 0, 1, 1], [], []>} : vector<256x32xf32>, vector<32x32xf32>, vector<256x32xf32> -> vector<256x32xf32>
    %49 = arith.addf %43, %48 : vector<256x32xf32>
    %c1_34 = arith.constant 1 : index
    %c0_35 = arith.constant 0 : index
    %c0_36 = arith.constant 0 : index
    %50 = vector.load %arg11[%c1_34, %c0_35, %c0_36] : memref<18x24x32xf32, #tpu.memory_space<vmem>>, vector<16x16x32xf32>
    %51 = vector.shape_cast %50 : vector<16x16x32xf32> to vector<256x32xf32>
    %c3 = arith.constant 3 : index
    %c0_37 = arith.constant 0 : index
    %c0_38 = arith.constant 0 : index
    %52 = vector.load %arg4[%c3, %c0_37, %c0_38] : memref<9x32x32xf32, #tpu.memory_space<vmem>>, vector<1x32x32xf32>
    %53 = vector.shape_cast %52 : vector<1x32x32xf32> to vector<32x32xf32>
    %cst_39 = arith.constant dense<0.000000e+00> : vector<256x32xf32>
    %54 = tpu.matmul %51, %53, %cst_39 {dimension_numbers = #tpu.dot_dimension_numbers<[1], [0], [0], [1], [0, 0, 1, 1], [], []>} : vector<256x32xf32>, vector<32x32xf32>, vector<256x32xf32> -> vector<256x32xf32>
    %55 = arith.addf %49, %54 : vector<256x32xf32>
    %c1_40 = arith.constant 1 : index
    %c1_41 = arith.constant 1 : index
    %c0_42 = arith.constant 0 : index
    %56 = vector.load %arg11[%c1_40, %c1_41, %c0_42] : memref<18x24x32xf32, #tpu.memory_space<vmem>>, vector<16x16x32xf32>
    %57 = vector.shape_cast %56 : vector<16x16x32xf32> to vector<256x32xf32>
    %c4 = arith.constant 4 : index
    %c0_43 = arith.constant 0 : index
    %c0_44 = arith.constant 0 : index
    %58 = vector.load %arg4[%c4, %c0_43, %c0_44] : memref<9x32x32xf32, #tpu.memory_space<vmem>>, vector<1x32x32xf32>
    %59 = vector.shape_cast %58 : vector<1x32x32xf32> to vector<32x32xf32>
    %cst_45 = arith.constant dense<0.000000e+00> : vector<256x32xf32>
    %60 = tpu.matmul %57, %59, %cst_45 {dimension_numbers = #tpu.dot_dimension_numbers<[1], [0], [0], [1], [0, 0, 1, 1], [], []>} : vector<256x32xf32>, vector<32x32xf32>, vector<256x32xf32> -> vector<256x32xf32>
    %61 = arith.addf %55, %60 : vector<256x32xf32>
    %c1_46 = arith.constant 1 : index
    %c2_47 = arith.constant 2 : index
    %c0_48 = arith.constant 0 : index
    %62 = vector.load %arg11[%c1_46, %c2_47, %c0_48] : memref<18x24x32xf32, #tpu.memory_space<vmem>>, vector<16x16x32xf32>
    %63 = vector.shape_cast %62 : vector<16x16x32xf32> to vector<256x32xf32>
    %c5 = arith.constant 5 : index
    %c0_49 = arith.constant 0 : index
    %c0_50 = arith.constant 0 : index
    %64 = vector.load %arg4[%c5, %c0_49, %c0_50] : memref<9x32x32xf32, #tpu.memory_space<vmem>>, vector<1x32x32xf32>
    %65 = vector.shape_cast %64 : vector<1x32x32xf32> to vector<32x32xf32>
    %cst_51 = arith.constant dense<0.000000e+00> : vector<256x32xf32>
    %66 = tpu.matmul %63, %65, %cst_51 {dimension_numbers = #tpu.dot_dimension_numbers<[1], [0], [0], [1], [0, 0, 1, 1], [], []>} : vector<256x32xf32>, vector<32x32xf32>, vector<256x32xf32> -> vector<256x32xf32>
    %67 = arith.addf %61, %66 : vector<256x32xf32>
    %c2_52 = arith.constant 2 : index
    %c0_53 = arith.constant 0 : index
    %c0_54 = arith.constant 0 : index
    %68 = vector.load %arg11[%c2_52, %c0_53, %c0_54] : memref<18x24x32xf32, #tpu.memory_space<vmem>>, vector<16x16x32xf32>
    %69 = vector.shape_cast %68 : vector<16x16x32xf32> to vector<256x32xf32>
    %c6 = arith.constant 6 : index
    %c0_55 = arith.constant 0 : index
    %c0_56 = arith.constant 0 : index
    %70 = vector.load %arg4[%c6, %c0_55, %c0_56] : memref<9x32x32xf32, #tpu.memory_space<vmem>>, vector<1x32x32xf32>
    %71 = vector.shape_cast %70 : vector<1x32x32xf32> to vector<32x32xf32>
    %cst_57 = arith.constant dense<0.000000e+00> : vector<256x32xf32>
    %72 = tpu.matmul %69, %71, %cst_57 {dimension_numbers = #tpu.dot_dimension_numbers<[1], [0], [0], [1], [0, 0, 1, 1], [], []>} : vector<256x32xf32>, vector<32x32xf32>, vector<256x32xf32> -> vector<256x32xf32>
    %73 = arith.addf %67, %72 : vector<256x32xf32>
    %c2_58 = arith.constant 2 : index
    %c1_59 = arith.constant 1 : index
    %c0_60 = arith.constant 0 : index
    %74 = vector.load %arg11[%c2_58, %c1_59, %c0_60] : memref<18x24x32xf32, #tpu.memory_space<vmem>>, vector<16x16x32xf32>
    %75 = vector.shape_cast %74 : vector<16x16x32xf32> to vector<256x32xf32>
    %c7 = arith.constant 7 : index
    %c0_61 = arith.constant 0 : index
    %c0_62 = arith.constant 0 : index
    %76 = vector.load %arg4[%c7, %c0_61, %c0_62] : memref<9x32x32xf32, #tpu.memory_space<vmem>>, vector<1x32x32xf32>
    %77 = vector.shape_cast %76 : vector<1x32x32xf32> to vector<32x32xf32>
    %cst_63 = arith.constant dense<0.000000e+00> : vector<256x32xf32>
    %78 = tpu.matmul %75, %77, %cst_63 {dimension_numbers = #tpu.dot_dimension_numbers<[1], [0], [0], [1], [0, 0, 1, 1], [], []>} : vector<256x32xf32>, vector<32x32xf32>, vector<256x32xf32> -> vector<256x32xf32>
    %79 = arith.addf %73, %78 : vector<256x32xf32>
    %c2_64 = arith.constant 2 : index
    %c2_65 = arith.constant 2 : index
    %c0_66 = arith.constant 0 : index
    %80 = vector.load %arg11[%c2_64, %c2_65, %c0_66] : memref<18x24x32xf32, #tpu.memory_space<vmem>>, vector<16x16x32xf32>
    %81 = vector.shape_cast %80 : vector<16x16x32xf32> to vector<256x32xf32>
    %c8 = arith.constant 8 : index
    %c0_67 = arith.constant 0 : index
    %c0_68 = arith.constant 0 : index
    %82 = vector.load %arg4[%c8, %c0_67, %c0_68] : memref<9x32x32xf32, #tpu.memory_space<vmem>>, vector<1x32x32xf32>
    %83 = vector.shape_cast %82 : vector<1x32x32xf32> to vector<32x32xf32>
    %cst_69 = arith.constant dense<0.000000e+00> : vector<256x32xf32>
    %84 = tpu.matmul %81, %83, %cst_69 {dimension_numbers = #tpu.dot_dimension_numbers<[1], [0], [0], [1], [0, 0, 1, 1], [], []>} : vector<256x32xf32>, vector<32x32xf32>, vector<256x32xf32> -> vector<256x32xf32>
    %85 = arith.addf %79, %84 : vector<256x32xf32>
    %c0_70 = arith.constant 0 : index
    %c0_71 = arith.constant 0 : index
    %86 = vector.load %arg5[%c0_70, %c0_71] : memref<1x32xf32, #tpu.memory_space<vmem>>, vector<1x32xf32>
    %87 = vector.broadcast %86 : vector<1x32xf32> to vector<256x32xf32>
    %88 = arith.addf %85, %87 : vector<256x32xf32>
    %89 = arith.negf %88 : vector<256x32xf32>
    %90 = math.exp %89 : vector<256x32xf32>
    %cst_72 = arith.constant 1.000000e+00 : f32
    %91 = vector.broadcast %cst_72 : f32 to vector<256x32xf32>
    %92 = arith.addf %91, %90 : vector<256x32xf32>
    %93 = arith.divf %91, %92 : vector<256x32xf32>
    %94 = arith.mulf %88, %93 : vector<256x32xf32>
    %c0_73 = arith.constant 0 : index
    %c0_74 = arith.constant 0 : index
    %95 = vector.load %arg6[%c0_73, %c0_74] : memref<32x128xf32, #tpu.memory_space<vmem>>, vector<32x128xf32>
    %cst_75 = arith.constant dense<0.000000e+00> : vector<256x128xf32>
    %96 = tpu.matmul %94, %95, %cst_75 {dimension_numbers = #tpu.dot_dimension_numbers<[1], [0], [0], [1], [0, 0, 1, 1], [], []>} : vector<256x32xf32>, vector<32x128xf32>, vector<256x128xf32> -> vector<256x128xf32>
    %c0_76 = arith.constant 0 : index
    %c0_77 = arith.constant 0 : index
    %97 = vector.load %arg7[%c0_76, %c0_77] : memref<1x128xf32, #tpu.memory_space<vmem>>, vector<1x128xf32>
    %98 = vector.broadcast %97 : vector<1x128xf32> to vector<256x128xf32>
    %99 = arith.addf %96, %98 : vector<256x128xf32>
    %c0_78 = arith.constant 0 : index
    %c1_79 = arith.constant 1 : index
    %c1_80 = arith.constant 1 : index
    %c0_81 = arith.constant 0 : index
    %100 = vector.load %arg1[%c0_78, %c1_79, %c1_80, %c0_81] : memref<1x18x24x64xf32, #tpu.memory_space<vmem>>, vector<1x16x16x64xf32>
    %101 = vector.shape_cast %100 : vector<1x16x16x64xf32> to vector<16x16x64xf32>
    %102 = vector.shape_cast %101 : vector<16x16x64xf32> to vector<256x64xf32>
    %c0_82 = arith.constant 0 : index
    %c0_83 = arith.constant 0 : index
    %103 = vector.load %arg8[%c0_82, %c0_83] : memref<64x128xf32, #tpu.memory_space<vmem>>, vector<64x128xf32>
    %cst_84 = arith.constant dense<0.000000e+00> : vector<256x128xf32>
    %104 = tpu.matmul %102, %103, %cst_84 {dimension_numbers = #tpu.dot_dimension_numbers<[1], [0], [0], [1], [0, 0, 1, 1], [], []>} : vector<256x64xf32>, vector<64x128xf32>, vector<256x128xf32> -> vector<256x128xf32>
    %c0_85 = arith.constant 0 : index
    %c0_86 = arith.constant 0 : index
    %105 = vector.load %arg9[%c0_85, %c0_86] : memref<1x128xf32, #tpu.memory_space<vmem>>, vector<1x128xf32>
    %106 = vector.broadcast %105 : vector<1x128xf32> to vector<256x128xf32>
    %107 = arith.addf %104, %106 : vector<256x128xf32>
    %108 = arith.addf %99, %107 : vector<256x128xf32>
    %cst_87 = arith.constant 0.000000e+00 : f32
    %109 = vector.broadcast %cst_87 : f32 to vector<256x128xf32>
    %110 = arith.maximumf %108, %109 : vector<256x128xf32>
    %111 = vector.shape_cast %110 : vector<256x128xf32> to vector<16x16x128xf32>
    %c0_88 = arith.constant 0 : index
    %c0_89 = arith.constant 0 : index
    %c0_90 = arith.constant 0 : index
    %c0_91 = arith.constant 0 : index
    %112 = vector.load %arg10[%c0_88, %c0_89, %c0_90, %c0_91] : memref<1x16x16x128xf32, #tpu.memory_space<vmem>>, vector<1x16x16x128xf32>
    %113 = vector.shape_cast %112 : vector<1x16x16x128xf32> to vector<16x16x128xf32>
    %114 = vector.shape_cast %111 : vector<16x16x128xf32> to vector<1x16x16x128xf32>
    tpu.vector_store %arg10[%c0_88, %c0_89, %c0_90, %c0_91], %114 {strides = array<i32>} : memref<1x16x16x128xf32, #tpu.memory_space<vmem>>, vector<1x16x16x128xf32>,
    return
  }
  func.func @transform_0(%arg0: i32) -> (i32, i32, i32, i32) {
    %c0_i32 = arith.constant 0 : i32
    %c0_i32_0 = arith.constant 0 : i32
    %c0_i32_1 = arith.constant 0 : i32
    %c0_i32_2 = arith.constant 0 : i32
    return %arg0, %c0_i32, %c0_i32_0, %c0_i32_1 : i32, i32, i32, i32
  }
  func.func @transform_1(%arg0: i32) -> (i32, i32) {
    %c0_i32 = arith.constant 0 : i32
    %c0_i32_0 = arith.constant 0 : i32
    %c0_i32_1 = arith.constant 0 : i32
    return %c0_i32, %c0_i32_0 : i32, i32
  }
  func.func @transform_2(%arg0: i32) -> (i32, i32) {
    %c0_i32 = arith.constant 0 : i32
    %c0_i32_0 = arith.constant 0 : i32
    %c0_i32_1 = arith.constant 0 : i32
    return %c0_i32, %c0_i32_0 : i32, i32
  }
  func.func @transform_3(%arg0: i32) -> (i32, i32, i32) {
    %c0_i32 = arith.constant 0 : i32
    %c0_i32_0 = arith.constant 0 : i32
    %c0_i32_1 = arith.constant 0 : i32
    %c0_i32_2 = arith.constant 0 : i32
    return %c0_i32, %c0_i32_0, %c0_i32_1 : i32, i32, i32
  }
  func.func @transform_4(%arg0: i32) -> (i32, i32) {
    %c0_i32 = arith.constant 0 : i32
    %c0_i32_0 = arith.constant 0 : i32
    %c0_i32_1 = arith.constant 0 : i32
    return %c0_i32, %c0_i32_0 : i32, i32
  }
  func.func @transform_5(%arg0: i32) -> (i32, i32) {
    %c0_i32 = arith.constant 0 : i32
    %c0_i32_0 = arith.constant 0 : i32
    %c0_i32_1 = arith.constant 0 : i32
    return %c0_i32, %c0_i32_0 : i32, i32
  }
  func.func @transform_6(%arg0: i32) -> (i32, i32) {
    %c0_i32 = arith.constant 0 : i32
    %c0_i32_0 = arith.constant 0 : i32
    %c0_i32_1 = arith.constant 0 : i32
    return %c0_i32, %c0_i32_0 : i32, i32
  }
  func.func @transform_7(%arg0: i32) -> (i32, i32) {
    %c0_i32 = arith.constant 0 : i32
    %c0_i32_0 = arith.constant 0 : i32
    %c0_i32_1 = arith.constant 0 : i32
    return %c0_i32, %c0_i32_0 : i32, i32
  }
  func.func @transform_8(%arg0: i32) -> (i32, i32) {
    %c0_i32 = arith.constant 0 : i32
    %c0_i32_0 = arith.constant 0 : i32
    %c0_i32_1 = arith.constant 0 : i32
    return %c0_i32, %c0_i32_0 : i32, i32
  }
  func.func @transform_9(%arg0: i32) -> (i32, i32, i32, i32) {
    %c0_i32 = arith.constant 0 : i32
    %c0_i32_0 = arith.constant 0 : i32
    %c0_i32_1 = arith.constant 0 : i32
    %c0_i32_2 = arith.constant 0 : i32
    return %arg0, %c0_i32, %c0_i32_0, %c0_i32_1 : i32, i32, i32, i32
  }
}

module attributes {stable_mosaic.version = 11 : i64} {
  func.func @_resnet_block_kernel(%arg0: i32, %arg1: memref<1x18x24x128xf32, #tpu.memory_space<vmem>>, %arg2: memref<128x32xf32, #tpu.memory_space<vmem>>, %arg3: memref<1x32xf32, #tpu.memory_space<vmem>>, %arg4: memref<9x32x32xf32, #tpu.memory_space<vmem>>, %arg5: memref<1x32xf32, #tpu.memory_space<vmem>>, %arg6: memref<32x128xf32, #tpu.memory_space<vmem>>, %arg7: memref<1x128xf32, #tpu.memory_space<vmem>>, %arg8: memref<1x16x16x128xf32, #tpu.memory_space<vmem>>, %arg9: memref<18x24x32xf32, #tpu.memory_space<vmem>>) attributes {dimension_semantics = [#tpu.dimension_semantics<parallel>], iteration_bounds = array<i64: 2>, scalar_prefetch = 0 : i64, scratch_operands = 1 : i64, tpu.core_type = #tpu.core_type<tc>, window_params = [{transform_indices = @transform_0, window_bounds = array<i64: 1, 18, 24, 128>}, {pipeline_mode = #tpu.pipeline_mode<synchronous>, transform_indices = @transform_1, window_bounds = array<i64: 128, 32>}, {pipeline_mode = #tpu.pipeline_mode<synchronous>, transform_indices = @transform_2, window_bounds = array<i64: 1, 32>}, {pipeline_mode = #tpu.pipeline_mode<synchronous>, transform_indices = @transform_3, window_bounds = array<i64: 9, 32, 32>}, {pipeline_mode = #tpu.pipeline_mode<synchronous>, transform_indices = @transform_4, window_bounds = array<i64: 1, 32>}, {pipeline_mode = #tpu.pipeline_mode<synchronous>, transform_indices = @transform_5, window_bounds = array<i64: 32, 128>}, {pipeline_mode = #tpu.pipeline_mode<synchronous>, transform_indices = @transform_6, window_bounds = array<i64: 1, 128>}, {transform_indices = @transform_7, window_bounds = array<i64: 1, 16, 16, 128>}]} {
    %c0 = arith.constant 0 : index
    %c0_0 = arith.constant 0 : index
    %c0_1 = arith.constant 0 : index
    %c0_2 = arith.constant 0 : index
    %0 = vector.load %arg1[%c0, %c0_0, %c0_1, %c0_2] : memref<1x18x24x128xf32, #tpu.memory_space<vmem>>, vector<1x18x24x128xf32>
    %1 = vector.shape_cast %0 : vector<1x18x24x128xf32> to vector<18x24x128xf32>
    %2 = vector.shape_cast %1 : vector<18x24x128xf32> to vector<432x128xf32>
    %c0_3 = arith.constant 0 : index
    %c0_4 = arith.constant 0 : index
    %3 = vector.load %arg2[%c0_3, %c0_4] : memref<128x32xf32, #tpu.memory_space<vmem>>, vector<128x32xf32>
    %cst = arith.constant dense<0.000000e+00> : vector<432x32xf32>
    %4 = tpu.matmul %2, %3, %cst {dimension_numbers = #tpu.dot_dimension_numbers<[1], [0], [0], [1], [0, 0, 1, 1], [], []>} : vector<432x128xf32>, vector<128x32xf32>, vector<432x32xf32> -> vector<432x32xf32>
    %c0_5 = arith.constant 0 : index
    %c0_6 = arith.constant 0 : index
    %5 = vector.load %arg3[%c0_5, %c0_6] : memref<1x32xf32, #tpu.memory_space<vmem>>, vector<1x32xf32>
    %6 = vector.broadcast %5 : vector<1x32xf32> to vector<432x32xf32>
    %7 = arith.addf %4, %6 : vector<432x32xf32>
    %8 = arith.negf %7 : vector<432x32xf32>
    %9 = math.exp %8 : vector<432x32xf32>
    %cst_7 = arith.constant 1.000000e+00 : f32
    %10 = vector.broadcast %cst_7 : f32 to vector<432x32xf32>
    %11 = arith.addf %10, %9 : vector<432x32xf32>
    %12 = arith.divf %10, %11 : vector<432x32xf32>
    %13 = arith.mulf %7, %12 : vector<432x32xf32>
    %14 = vector.shape_cast %13 : vector<432x32xf32> to vector<18x24x32xf32>
    %15 = tpu.iota {dimensions = array<i32: 0>} : vector<18x24x32xi32>
    %16 = tpu.iota {dimensions = array<i32: 1>} : vector<18x24x32xi32>
    %c1_i32 = arith.constant 1 : i32
    %17 = vector.broadcast %c1_i32 : i32 to vector<18x24x32xi32>
    %18 = arith.cmpi sge, %15, %17 : vector<18x24x32xi32>
    %c16_i32 = arith.constant 16 : i32
    %19 = vector.broadcast %c16_i32 : i32 to vector<18x24x32xi32>
    %20 = arith.cmpi sle, %15, %19 : vector<18x24x32xi32>
    %21 = arith.andi %18, %20 : vector<18x24x32xi1>
    %c1_i32_8 = arith.constant 1 : i32
    %22 = vector.broadcast %c1_i32_8 : i32 to vector<18x24x32xi32>
    %23 = arith.cmpi sge, %16, %22 : vector<18x24x32xi32>
    %24 = arith.andi %21, %23 : vector<18x24x32xi1>
    %c16_i32_9 = arith.constant 16 : i32
    %25 = vector.broadcast %c16_i32_9 : i32 to vector<18x24x32xi32>
    %26 = arith.cmpi sle, %16, %25 : vector<18x24x32xi32>
    %27 = arith.andi %24, %26 : vector<18x24x32xi1>
    %cst_10 = arith.constant 0.000000e+00 : f32
    %28 = vector.broadcast %cst_10 : f32 to vector<18x24x32xf32>
    %29 = arith.select %27, %14, %28 : vector<18x24x32xi1>, vector<18x24x32xf32>
    %c0_11 = arith.constant 0 : index
    %c0_12 = arith.constant 0 : index
    %c0_13 = arith.constant 0 : index
    %30 = vector.load %arg9[%c0_11, %c0_12, %c0_13] : memref<18x24x32xf32, #tpu.memory_space<vmem>>, vector<18x24x32xf32>
    tpu.vector_store %arg9[%c0_11, %c0_12, %c0_13], %29 {strides = array<i32>} : memref<18x24x32xf32, #tpu.memory_space<vmem>>, vector<18x24x32xf32>,
    %cst_14 = arith.constant 0.000000e+00 : f32
    %31 = vector.broadcast %cst_14 : f32 to vector<256x32xf32>
    %c0_15 = arith.constant 0 : index
    %c0_16 = arith.constant 0 : index
    %c0_17 = arith.constant 0 : index
    %32 = vector.load %arg9[%c0_15, %c0_16, %c0_17] : memref<18x24x32xf32, #tpu.memory_space<vmem>>, vector<16x16x32xf32>
    %33 = vector.shape_cast %32 : vector<16x16x32xf32> to vector<256x32xf32>
    %c0_18 = arith.constant 0 : index
    %c0_19 = arith.constant 0 : index
    %c0_20 = arith.constant 0 : index
    %34 = vector.load %arg4[%c0_18, %c0_19, %c0_20] : memref<9x32x32xf32, #tpu.memory_space<vmem>>, vector<1x32x32xf32>
    %35 = vector.shape_cast %34 : vector<1x32x32xf32> to vector<32x32xf32>
    %cst_21 = arith.constant dense<0.000000e+00> : vector<256x32xf32>
    %36 = tpu.matmul %33, %35, %cst_21 {dimension_numbers = #tpu.dot_dimension_numbers<[1], [0], [0], [1], [0, 0, 1, 1], [], []>} : vector<256x32xf32>, vector<32x32xf32>, vector<256x32xf32> -> vector<256x32xf32>
    %37 = arith.addf %31, %36 : vector<256x32xf32>
    %c0_22 = arith.constant 0 : index
    %c1 = arith.constant 1 : index
    %c0_23 = arith.constant 0 : index
    %38 = vector.load %arg9[%c0_22, %c1, %c0_23] : memref<18x24x32xf32, #tpu.memory_space<vmem>>, vector<16x16x32xf32>
    %39 = vector.shape_cast %38 : vector<16x16x32xf32> to vector<256x32xf32>
    %c1_24 = arith.constant 1 : index
    %c0_25 = arith.constant 0 : index
    %c0_26 = arith.constant 0 : index
    %40 = vector.load %arg4[%c1_24, %c0_25, %c0_26] : memref<9x32x32xf32, #tpu.memory_space<vmem>>, vector<1x32x32xf32>
    %41 = vector.shape_cast %40 : vector<1x32x32xf32> to vector<32x32xf32>
    %cst_27 = arith.constant dense<0.000000e+00> : vector<256x32xf32>
    %42 = tpu.matmul %39, %41, %cst_27 {dimension_numbers = #tpu.dot_dimension_numbers<[1], [0], [0], [1], [0, 0, 1, 1], [], []>} : vector<256x32xf32>, vector<32x32xf32>, vector<256x32xf32> -> vector<256x32xf32>
    %43 = arith.addf %37, %42 : vector<256x32xf32>
    %c0_28 = arith.constant 0 : index
    %c2 = arith.constant 2 : index
    %c0_29 = arith.constant 0 : index
    %44 = vector.load %arg9[%c0_28, %c2, %c0_29] : memref<18x24x32xf32, #tpu.memory_space<vmem>>, vector<16x16x32xf32>
    %45 = vector.shape_cast %44 : vector<16x16x32xf32> to vector<256x32xf32>
    %c2_30 = arith.constant 2 : index
    %c0_31 = arith.constant 0 : index
    %c0_32 = arith.constant 0 : index
    %46 = vector.load %arg4[%c2_30, %c0_31, %c0_32] : memref<9x32x32xf32, #tpu.memory_space<vmem>>, vector<1x32x32xf32>
    %47 = vector.shape_cast %46 : vector<1x32x32xf32> to vector<32x32xf32>
    %cst_33 = arith.constant dense<0.000000e+00> : vector<256x32xf32>
    %48 = tpu.matmul %45, %47, %cst_33 {dimension_numbers = #tpu.dot_dimension_numbers<[1], [0], [0], [1], [0, 0, 1, 1], [], []>} : vector<256x32xf32>, vector<32x32xf32>, vector<256x32xf32> -> vector<256x32xf32>
    %49 = arith.addf %43, %48 : vector<256x32xf32>
    %c1_34 = arith.constant 1 : index
    %c0_35 = arith.constant 0 : index
    %c0_36 = arith.constant 0 : index
    %50 = vector.load %arg9[%c1_34, %c0_35, %c0_36] : memref<18x24x32xf32, #tpu.memory_space<vmem>>, vector<16x16x32xf32>
    %51 = vector.shape_cast %50 : vector<16x16x32xf32> to vector<256x32xf32>
    %c3 = arith.constant 3 : index
    %c0_37 = arith.constant 0 : index
    %c0_38 = arith.constant 0 : index
    %52 = vector.load %arg4[%c3, %c0_37, %c0_38] : memref<9x32x32xf32, #tpu.memory_space<vmem>>, vector<1x32x32xf32>
    %53 = vector.shape_cast %52 : vector<1x32x32xf32> to vector<32x32xf32>
    %cst_39 = arith.constant dense<0.000000e+00> : vector<256x32xf32>
    %54 = tpu.matmul %51, %53, %cst_39 {dimension_numbers = #tpu.dot_dimension_numbers<[1], [0], [0], [1], [0, 0, 1, 1], [], []>} : vector<256x32xf32>, vector<32x32xf32>, vector<256x32xf32> -> vector<256x32xf32>
    %55 = arith.addf %49, %54 : vector<256x32xf32>
    %c1_40 = arith.constant 1 : index
    %c1_41 = arith.constant 1 : index
    %c0_42 = arith.constant 0 : index
    %56 = vector.load %arg9[%c1_40, %c1_41, %c0_42] : memref<18x24x32xf32, #tpu.memory_space<vmem>>, vector<16x16x32xf32>
    %57 = vector.shape_cast %56 : vector<16x16x32xf32> to vector<256x32xf32>
    %c4 = arith.constant 4 : index
    %c0_43 = arith.constant 0 : index
    %c0_44 = arith.constant 0 : index
    %58 = vector.load %arg4[%c4, %c0_43, %c0_44] : memref<9x32x32xf32, #tpu.memory_space<vmem>>, vector<1x32x32xf32>
    %59 = vector.shape_cast %58 : vector<1x32x32xf32> to vector<32x32xf32>
    %cst_45 = arith.constant dense<0.000000e+00> : vector<256x32xf32>
    %60 = tpu.matmul %57, %59, %cst_45 {dimension_numbers = #tpu.dot_dimension_numbers<[1], [0], [0], [1], [0, 0, 1, 1], [], []>} : vector<256x32xf32>, vector<32x32xf32>, vector<256x32xf32> -> vector<256x32xf32>
    %61 = arith.addf %55, %60 : vector<256x32xf32>
    %c1_46 = arith.constant 1 : index
    %c2_47 = arith.constant 2 : index
    %c0_48 = arith.constant 0 : index
    %62 = vector.load %arg9[%c1_46, %c2_47, %c0_48] : memref<18x24x32xf32, #tpu.memory_space<vmem>>, vector<16x16x32xf32>
    %63 = vector.shape_cast %62 : vector<16x16x32xf32> to vector<256x32xf32>
    %c5 = arith.constant 5 : index
    %c0_49 = arith.constant 0 : index
    %c0_50 = arith.constant 0 : index
    %64 = vector.load %arg4[%c5, %c0_49, %c0_50] : memref<9x32x32xf32, #tpu.memory_space<vmem>>, vector<1x32x32xf32>
    %65 = vector.shape_cast %64 : vector<1x32x32xf32> to vector<32x32xf32>
    %cst_51 = arith.constant dense<0.000000e+00> : vector<256x32xf32>
    %66 = tpu.matmul %63, %65, %cst_51 {dimension_numbers = #tpu.dot_dimension_numbers<[1], [0], [0], [1], [0, 0, 1, 1], [], []>} : vector<256x32xf32>, vector<32x32xf32>, vector<256x32xf32> -> vector<256x32xf32>
    %67 = arith.addf %61, %66 : vector<256x32xf32>
    %c2_52 = arith.constant 2 : index
    %c0_53 = arith.constant 0 : index
    %c0_54 = arith.constant 0 : index
    %68 = vector.load %arg9[%c2_52, %c0_53, %c0_54] : memref<18x24x32xf32, #tpu.memory_space<vmem>>, vector<16x16x32xf32>
    %69 = vector.shape_cast %68 : vector<16x16x32xf32> to vector<256x32xf32>
    %c6 = arith.constant 6 : index
    %c0_55 = arith.constant 0 : index
    %c0_56 = arith.constant 0 : index
    %70 = vector.load %arg4[%c6, %c0_55, %c0_56] : memref<9x32x32xf32, #tpu.memory_space<vmem>>, vector<1x32x32xf32>
    %71 = vector.shape_cast %70 : vector<1x32x32xf32> to vector<32x32xf32>
    %cst_57 = arith.constant dense<0.000000e+00> : vector<256x32xf32>
    %72 = tpu.matmul %69, %71, %cst_57 {dimension_numbers = #tpu.dot_dimension_numbers<[1], [0], [0], [1], [0, 0, 1, 1], [], []>} : vector<256x32xf32>, vector<32x32xf32>, vector<256x32xf32> -> vector<256x32xf32>
    %73 = arith.addf %67, %72 : vector<256x32xf32>
    %c2_58 = arith.constant 2 : index
    %c1_59 = arith.constant 1 : index
    %c0_60 = arith.constant 0 : index
    %74 = vector.load %arg9[%c2_58, %c1_59, %c0_60] : memref<18x24x32xf32, #tpu.memory_space<vmem>>, vector<16x16x32xf32>
    %75 = vector.shape_cast %74 : vector<16x16x32xf32> to vector<256x32xf32>
    %c7 = arith.constant 7 : index
    %c0_61 = arith.constant 0 : index
    %c0_62 = arith.constant 0 : index
    %76 = vector.load %arg4[%c7, %c0_61, %c0_62] : memref<9x32x32xf32, #tpu.memory_space<vmem>>, vector<1x32x32xf32>
    %77 = vector.shape_cast %76 : vector<1x32x32xf32> to vector<32x32xf32>
    %cst_63 = arith.constant dense<0.000000e+00> : vector<256x32xf32>
    %78 = tpu.matmul %75, %77, %cst_63 {dimension_numbers = #tpu.dot_dimension_numbers<[1], [0], [0], [1], [0, 0, 1, 1], [], []>} : vector<256x32xf32>, vector<32x32xf32>, vector<256x32xf32> -> vector<256x32xf32>
    %79 = arith.addf %73, %78 : vector<256x32xf32>
    %c2_64 = arith.constant 2 : index
    %c2_65 = arith.constant 2 : index
    %c0_66 = arith.constant 0 : index
    %80 = vector.load %arg9[%c2_64, %c2_65, %c0_66] : memref<18x24x32xf32, #tpu.memory_space<vmem>>, vector<16x16x32xf32>
    %81 = vector.shape_cast %80 : vector<16x16x32xf32> to vector<256x32xf32>
    %c8 = arith.constant 8 : index
    %c0_67 = arith.constant 0 : index
    %c0_68 = arith.constant 0 : index
    %82 = vector.load %arg4[%c8, %c0_67, %c0_68] : memref<9x32x32xf32, #tpu.memory_space<vmem>>, vector<1x32x32xf32>
    %83 = vector.shape_cast %82 : vector<1x32x32xf32> to vector<32x32xf32>
    %cst_69 = arith.constant dense<0.000000e+00> : vector<256x32xf32>
    %84 = tpu.matmul %81, %83, %cst_69 {dimension_numbers = #tpu.dot_dimension_numbers<[1], [0], [0], [1], [0, 0, 1, 1], [], []>} : vector<256x32xf32>, vector<32x32xf32>, vector<256x32xf32> -> vector<256x32xf32>
    %85 = arith.addf %79, %84 : vector<256x32xf32>
    %c0_70 = arith.constant 0 : index
    %c0_71 = arith.constant 0 : index
    %86 = vector.load %arg5[%c0_70, %c0_71] : memref<1x32xf32, #tpu.memory_space<vmem>>, vector<1x32xf32>
    %87 = vector.broadcast %86 : vector<1x32xf32> to vector<256x32xf32>
    %88 = arith.addf %85, %87 : vector<256x32xf32>
    %89 = arith.negf %88 : vector<256x32xf32>
    %90 = math.exp %89 : vector<256x32xf32>
    %cst_72 = arith.constant 1.000000e+00 : f32
    %91 = vector.broadcast %cst_72 : f32 to vector<256x32xf32>
    %92 = arith.addf %91, %90 : vector<256x32xf32>
    %93 = arith.divf %91, %92 : vector<256x32xf32>
    %94 = arith.mulf %88, %93 : vector<256x32xf32>
    %c0_73 = arith.constant 0 : index
    %c0_74 = arith.constant 0 : index
    %95 = vector.load %arg6[%c0_73, %c0_74] : memref<32x128xf32, #tpu.memory_space<vmem>>, vector<32x128xf32>
    %cst_75 = arith.constant dense<0.000000e+00> : vector<256x128xf32>
    %96 = tpu.matmul %94, %95, %cst_75 {dimension_numbers = #tpu.dot_dimension_numbers<[1], [0], [0], [1], [0, 0, 1, 1], [], []>} : vector<256x32xf32>, vector<32x128xf32>, vector<256x128xf32> -> vector<256x128xf32>
    %c0_76 = arith.constant 0 : index
    %c0_77 = arith.constant 0 : index
    %97 = vector.load %arg7[%c0_76, %c0_77] : memref<1x128xf32, #tpu.memory_space<vmem>>, vector<1x128xf32>
    %98 = vector.broadcast %97 : vector<1x128xf32> to vector<256x128xf32>
    %99 = arith.addf %96, %98 : vector<256x128xf32>
    %c0_78 = arith.constant 0 : index
    %c1_79 = arith.constant 1 : index
    %c1_80 = arith.constant 1 : index
    %c0_81 = arith.constant 0 : index
    %100 = vector.load %arg1[%c0_78, %c1_79, %c1_80, %c0_81] : memref<1x18x24x128xf32, #tpu.memory_space<vmem>>, vector<1x16x16x128xf32>
    %101 = vector.shape_cast %100 : vector<1x16x16x128xf32> to vector<16x16x128xf32>
    %102 = vector.shape_cast %101 : vector<16x16x128xf32> to vector<256x128xf32>
    %103 = arith.addf %99, %102 : vector<256x128xf32>
    %cst_82 = arith.constant 0.000000e+00 : f32
    %104 = vector.broadcast %cst_82 : f32 to vector<256x128xf32>
    %105 = arith.maximumf %103, %104 : vector<256x128xf32>
    %106 = vector.shape_cast %105 : vector<256x128xf32> to vector<16x16x128xf32>
    %c0_83 = arith.constant 0 : index
    %c0_84 = arith.constant 0 : index
    %c0_85 = arith.constant 0 : index
    %c0_86 = arith.constant 0 : index
    %107 = vector.load %arg8[%c0_83, %c0_84, %c0_85, %c0_86] : memref<1x16x16x128xf32, #tpu.memory_space<vmem>>, vector<1x16x16x128xf32>
    %108 = vector.shape_cast %107 : vector<1x16x16x128xf32> to vector<16x16x128xf32>
    %109 = vector.shape_cast %106 : vector<16x16x128xf32> to vector<1x16x16x128xf32>
    tpu.vector_store %arg8[%c0_83, %c0_84, %c0_85, %c0_86], %109 {strides = array<i32>} : memref<1x16x16x128xf32, #tpu.memory_space<vmem>>, vector<1x16x16x128xf32>,
    return
  }
  func.func @transform_0(%arg0: i32) -> (i32, i32, i32, i32) {
    %c0_i32 = arith.constant 0 : i32
    %c0_i32_0 = arith.constant 0 : i32
    %c0_i32_1 = arith.constant 0 : i32
    %c0_i32_2 = arith.constant 0 : i32
    return %arg0, %c0_i32, %c0_i32_0, %c0_i32_1 : i32, i32, i32, i32
  }
  func.func @transform_1(%arg0: i32) -> (i32, i32) {
    %c0_i32 = arith.constant 0 : i32
    %c0_i32_0 = arith.constant 0 : i32
    %c0_i32_1 = arith.constant 0 : i32
    return %c0_i32, %c0_i32_0 : i32, i32
  }
  func.func @transform_2(%arg0: i32) -> (i32, i32) {
    %c0_i32 = arith.constant 0 : i32
    %c0_i32_0 = arith.constant 0 : i32
    %c0_i32_1 = arith.constant 0 : i32
    return %c0_i32, %c0_i32_0 : i32, i32
  }
  func.func @transform_3(%arg0: i32) -> (i32, i32, i32) {
    %c0_i32 = arith.constant 0 : i32
    %c0_i32_0 = arith.constant 0 : i32
    %c0_i32_1 = arith.constant 0 : i32
    %c0_i32_2 = arith.constant 0 : i32
    return %c0_i32, %c0_i32_0, %c0_i32_1 : i32, i32, i32
  }
  func.func @transform_4(%arg0: i32) -> (i32, i32) {
    %c0_i32 = arith.constant 0 : i32
    %c0_i32_0 = arith.constant 0 : i32
    %c0_i32_1 = arith.constant 0 : i32
    return %c0_i32, %c0_i32_0 : i32, i32
  }
  func.func @transform_5(%arg0: i32) -> (i32, i32) {
    %c0_i32 = arith.constant 0 : i32
    %c0_i32_0 = arith.constant 0 : i32
    %c0_i32_1 = arith.constant 0 : i32
    return %c0_i32, %c0_i32_0 : i32, i32
  }
  func.func @transform_6(%arg0: i32) -> (i32, i32) {
    %c0_i32 = arith.constant 0 : i32
    %c0_i32_0 = arith.constant 0 : i32
    %c0_i32_1 = arith.constant 0 : i32
    return %c0_i32, %c0_i32_0 : i32, i32
  }
  func.func @transform_7(%arg0: i32) -> (i32, i32, i32, i32) {
    %c0_i32 = arith.constant 0 : i32
    %c0_i32_0 = arith.constant 0 : i32
    %c0_i32_1 = arith.constant 0 : i32
    %c0_i32_2 = arith.constant 0 : i32
    return %arg0, %c0_i32, %c0_i32_0, %c0_i32_1 : i32, i32, i32, i32
  }
}

</mosaic_0001>

<llo_original>
// kernel: resnet_layer_forward.3
$region0: #{resnet_layer_forward.3}
  #allocation0 [shape = 'u32[]', space=smem, size = 0x4, offset = 0x4, fixed_abs, tag = 'smem constant byte address 0x4 - core index']
  #allocation1 [shape = 'u32[144,128]{1,0:T(1,128)}', space=vmem, size = 0x12000, scoped, tag = 'internal scratch']
  #allocation2 [shape = 'f32[18,24,32]{2,1,0:T(8,128)}', space=vmem, size = 0x36000, scoped, tag = 'scratch operand']
  %s0 = inlined_call_operand.vmem [shape: f32[2,18,24,128], index: 0, kind: input, shape index: {}]
  %s1 = inlined_call_operand.vmem [shape: f32[128,32], index: 1, kind: input, shape index: {}]
  %s2 = inlined_call_operand.vmem [shape: f32[1,32], index: 2, kind: input, shape index: {}]
  %s3 = inlined_call_operand.vmem [shape: f32[9,32,32], index: 3, kind: input, shape index: {}]
  %s4 = inlined_call_operand.vmem [shape: f32[1,32], index: 4, kind: input, shape index: {}]
  %s5 = inlined_call_operand.vmem [shape: f32[32,128], index: 5, kind: input, shape index: {}]
  %s6 = inlined_call_operand.vmem [shape: f32[1,128], index: 6, kind: input, shape index: {}]
  %s7 = inlined_call_operand.hbm [shape: f32[2,16,16,128], index: 7, kind: output, shape index: {}]
  %s8 = sld [smem:[#allocation0]]
  $region61: #{resnet_layer_forward.3} parent=0
    _
  %s10 = ssub.s32 1, %s8
  %s11 = scalar_select 0, %s10, %s8
  $region1: #{resnet_layer_forward.3} parent=0
    #allocation3 [shape = 'u8[262144]{0}', space=vmem, size = 0x40000, scoped, tag = 'output window, operand 0']
    #allocation4 [shape = 's32[2]{0}', space=sflag, size = 0x8, scoped, tag = 'scoped memory for resnet_layer_forward.3']
    %12 = vsyncpa [#allocation4], 0
    %s13 = scalar_lea.sflag [#allocation4], 1
    %14 = vsyncpa %s13, 0
    loop: start=0, step=1, limit=4
    $region2: #{resnet_layer_forward.3} parent=1 // loop_pre_header
      _
    $region3: #{resnet_layer_forward.3} parent=1 // loop_header
      %s16 = sphi 0, %s20
      %p17 = scmp.ge.s32.totalorder %s16, 4
      %s26 = sphi 0, %s28
      %s29 = sphi 0, %s26
      %s30 = sphi 0, %s29
      %s46 = sphi 0, %s30
      %s50 = sphi 0, %s50
      %s52 = sphi 0, %s50
      %s53 = sphi 0, %s52
      %s67 = sphi 0, %s53
      %s71 = sphi 0, %s71
      %s73 = sphi 0, %s71
      %s74 = sphi 0, %s73
      %s88 = sphi 0, %s74
      %s92 = sphi 0, %s92
      %s94 = sphi 0, %s92
      %s95 = sphi 0, %s94
      %s109 = sphi 0, %s95
      %s113 = sphi 0, %s113
      %s115 = sphi 0, %s113
      %s116 = sphi 0, %s115
      %s130 = sphi 0, %s116
      %s134 = sphi 0, %s134
      %s136 = sphi 0, %s134
      %s137 = sphi 0, %s136
      %s151 = sphi 0, %s137
      %s155 = sphi 0, %s155
      %s157 = sphi 0, %s155
      %s158 = sphi 0, %s157
      %s172 = sphi 0, %s158
      %s178 = sphi 0, %s180
      %s181 = sphi 0, %s178
      %s182 = sphi 0, %s181
      %s198 = sphi 0, %s182
    $region4: #{resnet_layer_forward.3} parent=1 // loop_header_branch
      %19 = sbr.rel (%p17) target = $region8
    $region5: #{resnet_layer_forward.3} parent=1 // loop_body
      %s21 = ssub.s32 %s16, 1
      %s22 = ssub.s32 %s16, 2
      %s23 = sadd.s32 %s16, 1
      %s24 = ssub.s32 %s16, %s23
      %p25 = scmp.eq.s32.totalorder %s24, 0
      %s27 = sadd.s32 %s26, 1
      %s28 = scalar_select %p25, %s26, %s27
      %p31 = pneg %p25
      %p32 = scmp.eq.s32.totalorder %s16, 1
      %p33 = por %p31, %p32
      %p34 = scmp.ne.s32.totalorder %s26, %s29
      %p35 = scmp.eq.s32.totalorder %s16, 0
      %p36 = por %p34, %p35
      %p37 = scmp.ne.s32.totalorder %s26, %s29
      %p38 = scmp.eq.s32.totalorder %s21, 1
      %p39 = por %p37, %p38
      %p40 = scmp.ne.s32.totalorder %s29, %s30
      %p41 = scmp.eq.s32.totalorder %s21, 0
      %p42 = por %p40, %p41
      %p43 = scmp.ne.s32.totalorder %s29, %s30
      %p44 = scmp.eq.s32.totalorder %s22, 1
      %p45 = por %p43, %p44
      %p47 = scmp.ne.s32.totalorder %s30, %s46
      %p48 = scmp.eq.s32.totalorder %s22, 0
      %p49 = por %p47, %p48
      %s51 = sadd.s32 %s50, 1
      %p54 = scmp.eq.s32.totalorder %s16, 1
      %p55 = scmp.ne.s32.totalorder %s50, %s52
      %p56 = scmp.eq.s32.totalorder %s16, 0
      %p57 = por %p55, %p56
      %p58 = scmp.ne.s32.totalorder %s50, %s52
      %p59 = scmp.eq.s32.totalorder %s21, 1
      %p60 = por %p58, %p59
      %p61 = scmp.ne.s32.totalorder %s52, %s53
      %p62 = scmp.eq.s32.totalorder %s21, 0
      %p63 = por %p61, %p62
      %p64 = scmp.ne.s32.totalorder %s52, %s53
      %p65 = scmp.eq.s32.totalorder %s22, 1
      %p66 = por %p64, %p65
      %p68 = scmp.ne.s32.totalorder %s53, %s67
      %p69 = scmp.eq.s32.totalorder %s22, 0
      %p70 = por %p68, %p69
      %s72 = sadd.s32 %s71, 1
      %p75 = scmp.eq.s32.totalorder %s16, 1
      %p76 = scmp.ne.s32.totalorder %s71, %s73
      %p77 = scmp.eq.s32.totalorder %s16, 0
      %p78 = por %p76, %p77
      %p79 = scmp.ne.s32.totalorder %s71, %s73
      %p80 = scmp.eq.s32.totalorder %s21, 1
      %p81 = por %p79, %p80
      %p82 = scmp.ne.s32.totalorder %s73, %s74
      %p83 = scmp.eq.s32.totalorder %s21, 0
      %p84 = por %p82, %p83
      %p85 = scmp.ne.s32.totalorder %s73, %s74
      %p86 = scmp.eq.s32.totalorder %s22, 1
      %p87 = por %p85, %p86
      %p89 = scmp.ne.s32.totalorder %s74, %s88
      %p90 = scmp.eq.s32.totalorder %s22, 0
      %p91 = por %p89, %p90
      %s93 = sadd.s32 %s92, 1
      %p96 = scmp.eq.s32.totalorder %s16, 1
      %p97 = scmp.ne.s32.totalorder %s92, %s94
      %p98 = scmp.eq.s32.totalorder %s16, 0
      %p99 = por %p97, %p98
      %p100 = scmp.ne.s32.totalorder %s92, %s94
      %p101 = scmp.eq.s32.totalorder %s21, 1
      %p102 = por %p100, %p101
      %p103 = scmp.ne.s32.totalorder %s94, %s95
      %p104 = scmp.eq.s32.totalorder %s21, 0
      %p105 = por %p103, %p104
      %p106 = scmp.ne.s32.totalorder %s94, %s95
      %p107 = scmp.eq.s32.totalorder %s22, 1
      %p108 = por %p106, %p107
      %p110 = scmp.ne.s32.totalorder %s95, %s109
      %p111 = scmp.eq.s32.totalorder %s22, 0
      %p112 = por %p110, %p111
      %s114 = sadd.s32 %s113, 1
      %p117 = scmp.eq.s32.totalorder %s16, 1
      %p118 = scmp.ne.s32.totalorder %s113, %s115
      %p119 = scmp.eq.s32.totalorder %s16, 0
      %p120 = por %p118, %p119
      %p121 = scmp.ne.s32.totalorder %s113, %s115
      %p122 = scmp.eq.s32.totalorder %s21, 1
      %p123 = por %p121, %p122
      %p124 = scmp.ne.s32.totalorder %s115, %s116
      %p125 = scmp.eq.s32.totalorder %s21, 0
      %p126 = por %p124, %p125
      %p127 = scmp.ne.s32.totalorder %s115, %s116
      %p128 = scmp.eq.s32.totalorder %s22, 1
      %p129 = por %p127, %p128
      %p131 = scmp.ne.s32.totalorder %s116, %s130
      %p132 = scmp.eq.s32.totalorder %s22, 0
      %p133 = por %p131, %p132
      %s135 = sadd.s32 %s134, 1
      %p138 = scmp.eq.s32.totalorder %s16, 1
      %p139 = scmp.ne.s32.totalorder %s134, %s136
      %p140 = scmp.eq.s32.totalorder %s16, 0
      %p141 = por %p139, %p140
      %p142 = scmp.ne.s32.totalorder %s134, %s136
      %p143 = scmp.eq.s32.totalorder %s21, 1
      %p144 = por %p142, %p143
      %p145 = scmp.ne.s32.totalorder %s136, %s137
      %p146 = scmp.eq.s32.totalorder %s21, 0
      %p147 = por %p145, %p146
      %p148 = scmp.ne.s32.totalorder %s136, %s137
      %p149 = scmp.eq.s32.totalorder %s22, 1
      %p150 = por %p148, %p149
      %p152 = scmp.ne.s32.totalorder %s137, %s151
      %p153 = scmp.eq.s32.totalorder %s22, 0
      %p154 = por %p152, %p153
      %s156 = sadd.s32 %s155, 1
      %p159 = scmp.eq.s32.totalorder %s16, 1
      %p160 = scmp.ne.s32.totalorder %s155, %s157
      %p161 = scmp.eq.s32.totalorder %s16, 0
      %p162 = por %p160, %p161
      %p163 = scmp.ne.s32.totalorder %s155, %s157
      %p164 = scmp.eq.s32.totalorder %s21, 1
      %p165 = por %p163, %p164
      %p166 = scmp.ne.s32.totalorder %s157, %s158
      %p167 = scmp.eq.s32.totalorder %s21, 0
      %p168 = por %p166, %p167
      %p169 = scmp.ne.s32.totalorder %s157, %s158
      %p170 = scmp.eq.s32.totalorder %s22, 1
      %p171 = por %p169, %p170
      %p173 = scmp.ne.s32.totalorder %s158, %s172
      %p174 = scmp.eq.s32.totalorder %s22, 0
      %p175 = por %p173, %p174
      %s176 = ssub.s32 %s16, %s23
      %p177 = scmp.eq.s32.totalorder %s176, 0
      %s179 = sadd.s32 %s178, 1
      %s180 = scalar_select %p177, %s178, %s179
      %p183 = pneg %p177
      %p184 = scmp.eq.s32.totalorder %s16, 1
      %p185 = por %p183, %p184
      %p186 = scmp.ne.s32.totalorder %s178, %s181
      %p187 = scmp.eq.s32.totalorder %s16, 0
      %p188 = por %p186, %p187
      %p189 = scmp.ne.s32.totalorder %s178, %s181
      %p190 = scmp.eq.s32.totalorder %s21, 1
      %p191 = por %p189, %p190
      %p192 = scmp.ne.s32.totalorder %s181, %s182
      %p193 = scmp.eq.s32.totalorder %s21, 0
      %p194 = por %p192, %p193
      %p195 = scmp.ne.s32.totalorder %s181, %s182
      %p196 = scmp.eq.s32.totalorder %s22, 1
      %p197 = por %p195, %p196
      %p199 = scmp.ne.s32.totalorder %s182, %s198
      %p200 = scmp.eq.s32.totalorder %s22, 0
      %p201 = por %p199, %p200
      %p202 = scmp.le.s32.totalorder 1, %s16
      %p203 = scmp.lt.s32.totalorder %s16, 3
      %p204 = pnand %p202, %p203
      %p205 = pneg %p204
      // Predicated region
      $region9: #{resnet_layer_forward.3} parent=5 // pred_check
        _
      $region10: #{resnet_layer_forward.3} parent=5 // pred_check_branch
        %207 = sbr.rel (%p204) target = $region12
      $region11: #{resnet_layer_forward.3} parent=5 // pred_region
        %s208 = ssub.s32 %s16, 1
        // Predicated region
        $region13: #{resnet_layer_forward.3} parent=11 // pred_check
          %p209 = pneg %p63
        $region14: #{resnet_layer_forward.3} parent=11 // pred_check_branch
          %211 = sbr.rel (%p209) target = $region16
        $region15: #{resnet_layer_forward.3} parent=11 // pred_region
          _
        $region16: #{resnet_layer_forward.3} parent=11 // pred_fallthru
          _
        // Predicated region
        $region17: #{resnet_layer_forward.3} parent=11 // pred_check
          %p212 = pneg %p84
        $region18: #{resnet_layer_forward.3} parent=11 // pred_check_branch
          %214 = sbr.rel (%p212) target = $region20
        $region19: #{resnet_layer_forward.3} parent=11 // pred_region
          _
        $region20: #{resnet_layer_forward.3} parent=11 // pred_fallthru
          _
        // Predicated region
        $region21: #{resnet_layer_forward.3} parent=11 // pred_check
          %p215 = pneg %p105
        $region22: #{resnet_layer_forward.3} parent=11 // pred_check_branch
          %217 = sbr.rel (%p215) target = $region24
        $region23: #{resnet_layer_forward.3} parent=11 // pred_region
          _
        $region24: #{resnet_layer_forward.3} parent=11 // pred_fallthru
          _
        // Predicated region
        $region25: #{resnet_layer_forward.3} parent=11 // pred_check
          %p218 = pneg %p126
        $region26: #{resnet_layer_forward.3} parent=11 // pred_check_branch
          %220 = sbr.rel (%p218) target = $region28
        $region27: #{resnet_layer_forward.3} parent=11 // pred_region
          _
        $region28: #{resnet_layer_forward.3} parent=11 // pred_fallthru
          _
        // Predicated region
        $region29: #{resnet_layer_forward.3} parent=11 // pred_check
          %p221 = pneg %p147
        $region30: #{resnet_layer_forward.3} parent=11 // pred_check_branch
          %223 = sbr.rel (%p221) target = $region32
        $region31: #{resnet_layer_forward.3} parent=11 // pred_region
          _
        $region32: #{resnet_layer_forward.3} parent=11 // pred_fallthru
          _
        // Predicated region
        $region33: #{resnet_layer_forward.3} parent=11 // pred_check
          %p224 = pneg %p168
        $region34: #{resnet_layer_forward.3} parent=11 // pred_check_branch
          %226 = sbr.rel (%p224) target = $region36
        $region35: #{resnet_layer_forward.3} parent=11 // pred_region
          _
        $region36: #{resnet_layer_forward.3} parent=11 // pred_fallthru
          _
      $region12: #{resnet_layer_forward.3} parent=5 // pred_fallthru
        _
      %p227 = scmp.lt.s32.totalorder %s16, 2
      // Predicated region
      $region37: #{resnet_layer_forward.3} parent=5 // pred_check
        %p228 = pneg %p227
      $region38: #{resnet_layer_forward.3} parent=5 // pred_check_branch
        %230 = sbr.rel (%p228) target = $region40
      $region39: #{resnet_layer_forward.3} parent=5 // pred_region
        // Predicated region
        $region41: #{resnet_layer_forward.3} parent=39 // pred_check
          %p231 = pneg %p36
        $region42: #{resnet_layer_forward.3} parent=39 // pred_check_branch
          %233 = sbr.rel (%p231) target = $region44
        $region43: #{resnet_layer_forward.3} parent=39 // pred_region
          %p234 = scmp.lt.s32.totalorder %s16, 1
          %s235 = scalar_select %p234, %s16, 1
          %s236 = smul.addr %s235, 54
          %s237 = smul.addr %s236, 8
          %s238 = scalar_lea.vmem %s0, %s237
        $region44: #{resnet_layer_forward.3} parent=39 // pred_fallthru
          _
      $region40: #{resnet_layer_forward.3} parent=5 // pred_fallthru
        _
      %p239 = scmp.le.s32.totalorder 1, %s16
      %p240 = scmp.lt.s32.totalorder %s16, 3
      %p241 = pnand %p239, %p240
      %p242 = pneg %p241
      // Predicated region
      $region45: #{resnet_layer_forward.3} parent=5 // pred_check
        _
      $region46: #{resnet_layer_forward.3} parent=5 // pred_check_branch
        %244 = sbr.rel (%p241) target = $region48
      $region47: #{resnet_layer_forward.3} parent=5 // pred_region
        %s245 = ssub.s32 %s16, 1
        %p246 = scmp.lt.s32.totalorder %s21, 1
        %s247 = scalar_select %p246, %s21, 1
        %s248 = smul.addr %s247, 54
        %s249 = smul.addr %s248, 8
        %s250 = scalar_lea.vmem %s0, %s249
        %p251 = pneg %p42
        %p252 = pneg %p39
        %p253 = pneg %p63
        %p254 = pneg %p60
        %p255 = pneg %p84
        %p256 = pneg %p81
        %p257 = pneg %p105
        %p258 = pneg %p102
        %p259 = pneg %p126
        %p260 = pneg %p123
        %p261 = pneg %p147
        %p262 = pneg %p144
        %p263 = pneg %p168
        %p264 = pneg %p165
        %p265 = pneg %p194
        %p266 = pneg %p191
        %s267 = sand.u32 %s181, 1
        %s268 = scalar_lea.sflag [#allocation4], %s267
        %s269 = sand.u32 %s181, 1
        %s270 = smul.addr %s269, 256
        %s271 = scalar_lea.vmem [#allocation3], %s270
        %p272 = scmp.lt.s32.totalorder %s21, 1
        %s273 = scalar_select %p272, %s21, 1
        %s274 = smul.addr %s273, 54
        %s275 = smul.addr %s274, 8
        %s276 = scalar_lea.vmem %s0, %s275
        %v277 = vld [vmem:[%s276] sm:$0xff]
        %v278 = vld [vmem:[%s276 + $0x8] sm:$0xff]
        %v279 = vld [vmem:[%s276 + $0x10] sm:$0xff]
        %v280 = vld [vmem:[%s276 + $0x18] sm:$0xff]
        %v281 = vld [vmem:[%s276 + $0x20] sm:$0xff]
        %v282 = vld [vmem:[%s276 + $0x28] sm:$0xff]
        %v283 = vld [vmem:[%s276 + $0x30] sm:$0xff]
        %v284 = vld [vmem:[%s276 + $0x38] sm:$0xff]
        %v285 = vld [vmem:[%s276 + $0x40] sm:$0xff]
        %v286 = vld [vmem:[%s276 + $0x48] sm:$0xff]
        %v287 = vld [vmem:[%s276 + $0x50] sm:$0xff]
        %v288 = vld [vmem:[%s276 + $0x58] sm:$0xff]
        %v289 = vld [vmem:[%s276 + $0x60] sm:$0xff]
        %v290 = vld [vmem:[%s276 + $0x68] sm:$0xff]
        %v291 = vld [vmem:[%s276 + $0x70] sm:$0xff]
        %v292 = vld [vmem:[%s276 + $0x78] sm:$0xff]
        %v293 = vld [vmem:[%s276 + $0x80] sm:$0xff]
        %v294 = vld [vmem:[%s276 + $0x88] sm:$0xff]
        %v295 = vld [vmem:[%s276 + $0x90] sm:$0xff]
        %v296 = vld [vmem:[%s276 + $0x98] sm:$0xff]
        %v297 = vld [vmem:[%s276 + $0xa0] sm:$0xff]
        %v298 = vld [vmem:[%s276 + $0xa8] sm:$0xff]
        %v299 = vld [vmem:[%s276 + $0xb0] sm:$0xff]
        %v300 = vld [vmem:[%s276 + $0xb8] sm:$0xff]
        %v301 = vld [vmem:[%s276 + $0xc0] sm:$0xff]
        %v302 = vld [vmem:[%s276 + $0xc8] sm:$0xff]
        %v303 = vld [vmem:[%s276 + $0xd0] sm:$0xff]
        %v304 = vld [vmem:[%s276 + $0xd8] sm:$0xff]
        %v305 = vld [vmem:[%s276 + $0xe0] sm:$0xff]
        %v306 = vld [vmem:[%s276 + $0xe8] sm:$0xff]
        %v307 = vld [vmem:[%s276 + $0xf0] sm:$0xff]
        %v308 = vld [vmem:[%s276 + $0xf8] sm:$0xff]
        %v309 = vld [vmem:[%s276 + $0x100] sm:$0xff]
        %v310 = vld [vmem:[%s276 + $0x108] sm:$0xff]
        %v311 = vld [vmem:[%s276 + $0x110] sm:$0xff]
        %v312 = vld [vmem:[%s276 + $0x118] sm:$0xff]
        %v313 = vld [vmem:[%s276 + $0x120] sm:$0xff]
        %v314 = vld [vmem:[%s276 + $0x128] sm:$0xff]
        %v315 = vld [vmem:[%s276 + $0x130] sm:$0xff]
        %v316 = vld [vmem:[%s276 + $0x138] sm:$0xff]
        %v317 = vld [vmem:[%s276 + $0x140] sm:$0xff]
        %v318 = vld [vmem:[%s276 + $0x148] sm:$0xff]
        %v319 = vld [vmem:[%s276 + $0x150] sm:$0xff]
        %v320 = vld [vmem:[%s276 + $0x158] sm:$0xff]
        %v321 = vld [vmem:[%s276 + $0x160] sm:$0xff]
        %v322 = vld [vmem:[%s276 + $0x168] sm:$0xff]
        %v323 = vld [vmem:[%s276 + $0x170] sm:$0xff]
        %v324 = vld [vmem:[%s276 + $0x178] sm:$0xff]
        %v325 = vld [vmem:[%s276 + $0x180] sm:$0xff]
        %v326 = vld [vmem:[%s276 + $0x188] sm:$0xff]
        %v327 = vld [vmem:[%s276 + $0x190] sm:$0xff]
        %v328 = vld [vmem:[%s276 + $0x198] sm:$0xff]
        %v329 = vld [vmem:[%s276 + $0x1a0] sm:$0xff]
        %v330 = vld [vmem:[%s276 + $0x1a8] sm:$0xff]
        %v331 = vld [vmem:[%s1] sm:$0xff]
        %v332 = vld [vmem:[%s1 + $0x8] sm:$0xff]
        %v333 = vld [vmem:[%s1 + $0x10] sm:$0xff]
        %v334 = vld [vmem:[%s1 + $0x18] sm:$0xff]
        %v335 = vld [vmem:[%s1 + $0x20] sm:$0xff]
        %v336 = vld [vmem:[%s1 + $0x28] sm:$0xff]
        %v337 = vld [vmem:[%s1 + $0x30] sm:$0xff]
        %v338 = vld [vmem:[%s1 + $0x38] sm:$0xff]
        %v339 = vld [vmem:[%s1 + $0x40] sm:$0xff]
        %v340 = vld [vmem:[%s1 + $0x48] sm:$0xff]
        %v341 = vld [vmem:[%s1 + $0x50] sm:$0xff]
        %v342 = vld [vmem:[%s1 + $0x58] sm:$0xff]
        %v343 = vld [vmem:[%s1 + $0x60] sm:$0xff]
        %v344 = vld [vmem:[%s1 + $0x68] sm:$0xff]
        %v345 = vld [vmem:[%s1 + $0x70] sm:$0xff]
        %v346 = vld [vmem:[%s1 + $0x78] sm:$0xff]
        %v347 = vld [vmem:[%s2] sm:$0x1]
        %v349 = vlaneseq
        %v350 = vshrl.u32 %v349, 7
        %v351 = vsub.s32 0, %v350
        %v352 = vrot.slane %v347, %v351
        %354 = vmatprep.subr.mxu0 0.0
        %355 = vmatpush1.msra.mxu0 %v331
        %356 = vmatprep.subr.mxu0 0.0
        %357 = vmatpush1.msra.mxu0 %v332
        %358 = vmatprep.subr.mxu0 0.0
        %359 = vmatpush1.msra.mxu0 %v333
        %360 = vmatprep.subr.mxu0 0.0
        %361 = vmatpush1.msra.mxu0 %v334
        %362 = vmatprep.subr.mxu0 0.0
        %363 = vmatpush1.msra.mxu0 %v335
        %364 = vmatprep.subr.mxu0 0.0
        %365 = vmatpush1.msra.mxu0 %v336
        %366 = vmatprep.subr.mxu0 0.0
        %367 = vmatpush1.msra.mxu0 %v337
        %368 = vmatprep.subr.mxu0 0.0
        %369 = vmatpush1.msra.mxu0 %v338
        %370 = vmatprep.subr.mxu0 0.0
        %371 = vmatpush1.msra.mxu0 %v339
        %372 = vmatprep.subr.mxu0 0.0
        %373 = vmatpush1.msra.mxu0 %v340
        %374 = vmatprep.subr.mxu0 0.0
        %375 = vmatpush1.msra.mxu0 %v341
        %376 = vmatprep.subr.mxu0 0.0
        %377 = vmatpush1.msra.mxu0 %v342
        %378 = vmatprep.subr.mxu0 0.0
        %379 = vmatpush1.msra.mxu0 %v343
        %380 = vmatprep.subr.mxu0 0.0
        %381 = vmatpush1.msra.mxu0 %v344
        %382 = vmatprep.subr.mxu0 0.0
        %383 = vmatpush1.msra.mxu0 %v345
        %384 = vmatprep.subr.mxu0 0.0
        %385 = vmatpush1.msra.mxu0 %v346
        %386 = vmatprep.subr.mxu0 0.0
        %387 = vmatpush1.msra.mxu0 0.0
        %388 = vmatprep.subr.mxu0 0.0
        %389 = vmatpush1.msra.mxu0 0.0
        %390 = vmatprep.subr.mxu0 0.0
        %391 = vmatpush1.msra.mxu0 0.0
        %392 = vmatprep.subr.mxu0 0.0
        %393 = vmatpush1.msra.mxu0 0.0
        %394 = vmatprep.subr.mxu0 0.0
        %395 = vmatpush1.msra.mxu0 0.0
        %396 = vmatprep.subr.mxu0 0.0
        %397 = vmatpush1.msra.mxu0 0.0
        %398 = vmatprep.subr.mxu0 0.0
        %399 = vmatpush1.msra.mxu0 0.0
        %400 = vmatprep.subr.mxu0 0.0
        %401 = vmatpush1.msra.mxu0 0.0
        %402 = vmatprep.subr.mxu0 0.0
        %403 = vmatpush1.msra.mxu0 0.0
        %404 = vmatprep.subr.mxu0 0.0
        %405 = vmatpush1.msra.mxu0 0.0
        %406 = vmatprep.subr.mxu0 0.0
        %407 = vmatpush1.msra.mxu0 0.0
        %408 = vmatprep.subr.mxu0 0.0
        %409 = vmatpush1.msra.mxu0 0.0
        %410 = vmatprep.subr.mxu0 0.0
        %411 = vmatpush1.msra.mxu0 0.0
        %412 = vmatprep.subr.mxu0 0.0
        %413 = vmatpush1.msra.mxu0 0.0
        %414 = vmatprep.subr.mxu0 0.0
        %415 = vmatpush1.msra.mxu0 0.0
        %416 = vmatprep.subr.mxu0 0.0
        %417 = vmatpush1.msra.mxu0 0.0
        %418 = vmatprep.mubr.f32.mxu0 0.0
        %419 = vmatmul.mubr.f32.gmra.mrb[0].mxu0 %v277
        %v420 = vpop.f32.mrb[0].mxu0
        %v421 = vadd.f32 %v352, %v420
        %v422 = vpop.f32.mrb[0].mxu0
        %423 = vmatprep.mubr.f32.mxu0 0.0
        %424 = vmatmul.mubr.f32.gmra.mrb[0].mxu0 %v278
        %v425 = vpop.f32.mrb[0].mxu0
        %v426 = vadd.f32 %v352, %v425
        %v427 = vpop.f32.mrb[0].mxu0
        %428 = vmatprep.mubr.f32.mxu0 0.0
        %429 = vmatmul.mubr.f32.gmra.mrb[0].mxu0 %v279
        %v430 = vpop.f32.mrb[0].mxu0
        %v431 = vadd.f32 %v352, %v430
        %v432 = vpop.f32.mrb[0].mxu0
        %433 = vmatprep.mubr.f32.mxu0 0.0
        %434 = vmatmul.mubr.f32.gmra.mrb[0].mxu0 %v280
        %v435 = vpop.f32.mrb[0].mxu0
        %v436 = vadd.f32 %v352, %v435
        %v437 = vpop.f32.mrb[0].mxu0
        %438 = vmatprep.mubr.f32.mxu0 0.0
        %439 = vmatmul.mubr.f32.gmra.mrb[0].mxu0 %v281
        %v440 = vpop.f32.mrb[0].mxu0
        %v441 = vadd.f32 %v352, %v440
        %v442 = vpop.f32.mrb[0].mxu0
        %443 = vmatprep.mubr.f32.mxu0 0.0
        %444 = vmatmul.mubr.f32.gmra.mrb[0].mxu0 %v282
        %v445 = vpop.f32.mrb[0].mxu0
        %v446 = vadd.f32 %v352, %v445
        %v447 = vpop.f32.mrb[0].mxu0
        %448 = vmatprep.mubr.f32.mxu0 0.0
        %449 = vmatmul.mubr.f32.gmra.mrb[0].mxu0 %v283
        %v450 = vpop.f32.mrb[0].mxu0
        %v451 = vadd.f32 %v352, %v450
        %v452 = vpop.f32.mrb[0].mxu0
        %453 = vmatprep.mubr.f32.mxu0 0.0
        %454 = vmatmul.mubr.f32.gmra.mrb[0].mxu0 %v284
        %v455 = vpop.f32.mrb[0].mxu0
        %v456 = vadd.f32 %v352, %v455
        %v457 = vpop.f32.mrb[0].mxu0
        %458 = vmatprep.mubr.f32.mxu0 0.0
        %459 = vmatmul.mubr.f32.gmra.mrb[0].mxu0 %v285
        %v460 = vpop.f32.mrb[0].mxu0
        %v461 = vadd.f32 %v352, %v460
        %v462 = vpop.f32.mrb[0].mxu0
        %463 = vmatprep.mubr.f32.mxu0 0.0
        %464 = vmatmul.mubr.f32.gmra.mrb[0].mxu0 %v286
        %v465 = vpop.f32.mrb[0].mxu0
        %v466 = vadd.f32 %v352, %v465
        %v467 = vpop.f32.mrb[0].mxu0
        %468 = vmatprep.mubr.f32.mxu0 0.0
        %469 = vmatmul.mubr.f32.gmra.mrb[0].mxu0 %v287
        %v470 = vpop.f32.mrb[0].mxu0
        %v471 = vadd.f32 %v352, %v470
        %v472 = vpop.f32.mrb[0].mxu0
        %473 = vmatprep.mubr.f32.mxu0 0.0
        %474 = vmatmul.mubr.f32.gmra.mrb[0].mxu0 %v288
        %v475 = vpop.f32.mrb[0].mxu0
        %v476 = vadd.f32 %v352, %v475
        %v477 = vpop.f32.mrb[0].mxu0
        %478 = vmatprep.mubr.f32.mxu0 0.0
        %479 = vmatmul.mubr.f32.gmra.mrb[0].mxu0 %v289
        %v480 = vpop.f32.mrb[0].mxu0
        %v481 = vadd.f32 %v352, %v480
        %v482 = vpop.f32.mrb[0].mxu0
        %483 = vmatprep.mubr.f32.mxu0 0.0
        %484 = vmatmul.mubr.f32.gmra.mrb[0].mxu0 %v290
        %v485 = vpop.f32.mrb[0].mxu0
        %v486 = vadd.f32 %v352, %v485
        %v487 = vpop.f32.mrb[0].mxu0
        %488 = vmatprep.mubr.f32.mxu0 0.0
        %489 = vmatmul.mubr.f32.gmra.mrb[0].mxu0 %v291
        %v490 = vpop.f32.mrb[0].mxu0
        %v491 = vadd.f32 %v352, %v490
        %v492 = vpop.f32.mrb[0].mxu0
        %493 = vmatprep.mubr.f32.mxu0 0.0
        %494 = vmatmul.mubr.f32.gmra.mrb[0].mxu0 %v292
        %v495 = vpop.f32.mrb[0].mxu0
        %v496 = vadd.f32 %v352, %v495
        %v497 = vpop.f32.mrb[0].mxu0
        %498 = vmatprep.mubr.f32.mxu0 0.0
        %499 = vmatmul.mubr.f32.gmra.mrb[0].mxu0 %v293
        %v500 = vpop.f32.mrb[0].mxu0
        %v501 = vadd.f32 %v352, %v500
        %v502 = vpop.f32.mrb[0].mxu0
        %503 = vmatprep.mubr.f32.mxu0 0.0
        %504 = vmatmul.mubr.f32.gmra.mrb[0].mxu0 %v294
        %v505 = vpop.f32.mrb[0].mxu0
        %v506 = vadd.f32 %v352, %v505
        %v507 = vpop.f32.mrb[0].mxu0
        %508 = vmatprep.mubr.f32.mxu0 0.0
        %509 = vmatmul.mubr.f32.gmra.mrb[0].mxu0 %v295
        %v510 = vpop.f32.mrb[0].mxu0
        %v511 = vadd.f32 %v352, %v510
        %v512 = vpop.f32.mrb[0].mxu0
        %513 = vmatprep.mubr.f32.mxu0 0.0
        %514 = vmatmul.mubr.f32.gmra.mrb[0].mxu0 %v296
        %v515 = vpop.f32.mrb[0].mxu0
        %v516 = vadd.f32 %v352, %v515
        %v517 = vpop.f32.mrb[0].mxu0
        %518 = vmatprep.mubr.f32.mxu0 0.0
        %519 = vmatmul.mubr.f32.gmra.mrb[0].mxu0 %v297
        %v520 = vpop.f32.mrb[0].mxu0
        %v521 = vadd.f32 %v352, %v520
        %v522 = vpop.f32.mrb[0].mxu0
        %523 = vmatprep.mubr.f32.mxu0 0.0
        %524 = vmatmul.mubr.f32.gmra.mrb[0].mxu0 %v298
        %v525 = vpop.f32.mrb[0].mxu0
        %v526 = vadd.f32 %v352, %v525
        %v527 = vpop.f32.mrb[0].mxu0
        %528 = vmatprep.mubr.f32.mxu0 0.0
        %529 = vmatmul.mubr.f32.gmra.mrb[0].mxu0 %v299
        %v530 = vpop.f32.mrb[0].mxu0
        %v531 = vadd.f32 %v352, %v530
        %v532 = vpop.f32.mrb[0].mxu0
        %533 = vmatprep.mubr.f32.mxu0 0.0
        %534 = vmatmul.mubr.f32.gmra.mrb[0].mxu0 %v300
        %v535 = vpop.f32.mrb[0].mxu0
        %v536 = vadd.f32 %v352, %v535
        %v537 = vpop.f32.mrb[0].mxu0
        %538 = vmatprep.mubr.f32.mxu0 0.0
        %539 = vmatmul.mubr.f32.gmra.mrb[0].mxu0 %v301
        %v540 = vpop.f32.mrb[0].mxu0
        %v541 = vadd.f32 %v352, %v540
        %v542 = vpop.f32.mrb[0].mxu0
        %543 = vmatprep.mubr.f32.mxu0 0.0
        %544 = vmatmul.mubr.f32.gmra.mrb[0].mxu0 %v302
        %v545 = vpop.f32.mrb[0].mxu0
        %v546 = vadd.f32 %v352, %v545
        %v547 = vpop.f32.mrb[0].mxu0
        %548 = vmatprep.mubr.f32.mxu0 0.0
        %549 = vmatmul.mubr.f32.gmra.mrb[0].mxu0 %v303
        %v550 = vpop.f32.mrb[0].mxu0
        %v551 = vadd.f32 %v352, %v550
        %v552 = vpop.f32.mrb[0].mxu0
        %553 = vmatprep.mubr.f32.mxu0 0.0
        %554 = vmatmul.mubr.f32.gmra.mrb[0].mxu0 %v304
        %v555 = vpop.f32.mrb[0].mxu0
        %v556 = vadd.f32 %v352, %v555
        %v557 = vpop.f32.mrb[0].mxu0
        %558 = vmatprep.mubr.f32.mxu0 0.0
        %559 = vmatmul.mubr.f32.gmra.mrb[0].mxu0 %v305
        %v560 = vpop.f32.mrb[0].mxu0
        %v561 = vadd.f32 %v352, %v560
        %v562 = vpop.f32.mrb[0].mxu0
        %563 = vmatprep.mubr.f32.mxu0 0.0
        %564 = vmatmul.mubr.f32.gmra.mrb[0].mxu0 %v306
        %v565 = vpop.f32.mrb[0].mxu0
        %v566 = vadd.f32 %v352, %v565
        %v567 = vpop.f32.mrb[0].mxu0
        %568 = vmatprep.mubr.f32.mxu0 0.0
        %569 = vmatmul.mubr.f32.gmra.mrb[0].mxu0 %v307
        %v570 = vpop.f32.mrb[0].mxu0
        %v571 = vadd.f32 %v352, %v570
        %v572 = vpop.f32.mrb[0].mxu0
        %573 = vmatprep.mubr.f32.mxu0 0.0
        %574 = vmatmul.mubr.f32.gmra.mrb[0].mxu0 %v308
        %v575 = vpop.f32.mrb[0].mxu0
        %v576 = vadd.f32 %v352, %v575
        %v577 = vpop.f32.mrb[0].mxu0
        %578 = vmatprep.mubr.f32.mxu0 0.0
        %579 = vmatmul.mubr.f32.gmra.mrb[0].mxu0 %v309
        %v580 = vpop.f32.mrb[0].mxu0
        %v581 = vadd.f32 %v352, %v580
        %v582 = vpop.f32.mrb[0].mxu0
        %583 = vmatprep.mubr.f32.mxu0 0.0
        %584 = vmatmul.mubr.f32.gmra.mrb[0].mxu0 %v310
        %v585 = vpop.f32.mrb[0].mxu0
        %v586 = vadd.f32 %v352, %v585
        %v587 = vpop.f32.mrb[0].mxu0
        %588 = vmatprep.mubr.f32.mxu0 0.0
        %589 = vmatmul.mubr.f32.gmra.mrb[0].mxu0 %v311
        %v590 = vpop.f32.mrb[0].mxu0
        %v591 = vadd.f32 %v352, %v590
        %v592 = vpop.f32.mrb[0].mxu0
        %593 = vmatprep.mubr.f32.mxu0 0.0
        %594 = vmatmul.mubr.f32.gmra.mrb[0].mxu0 %v312
        %v595 = vpop.f32.mrb[0].mxu0
        %v596 = vadd.f32 %v352, %v595
        %v597 = vpop.f32.mrb[0].mxu0
        %598 = vmatprep.mubr.f32.mxu0 0.0
        %599 = vmatmul.mubr.f32.gmra.mrb[0].mxu0 %v313
        %v600 = vpop.f32.mrb[0].mxu0
        %v601 = vadd.f32 %v352, %v600
        %v602 = vpop.f32.mrb[0].mxu0
        %603 = vmatprep.mubr.f32.mxu0 0.0
        %604 = vmatmul.mubr.f32.gmra.mrb[0].mxu0 %v314
        %v605 = vpop.f32.mrb[0].mxu0
        %v606 = vadd.f32 %v352, %v605
        %v607 = vpop.f32.mrb[0].mxu0
        %608 = vmatprep.mubr.f32.mxu0 0.0
        %609 = vmatmul.mubr.f32.gmra.mrb[0].mxu0 %v315
        %v610 = vpop.f32.mrb[0].mxu0
        %v611 = vadd.f32 %v352, %v610
        %v612 = vpop.f32.mrb[0].mxu0
        %613 = vmatprep.mubr.f32.mxu0 0.0
        %614 = vmatmul.mubr.f32.gmra.mrb[0].mxu0 %v316
        %v615 = vpop.f32.mrb[0].mxu0
        %v616 = vadd.f32 %v352, %v615
        %v617 = vpop.f32.mrb[0].mxu0
        %618 = vmatprep.mubr.f32.mxu0 0.0
        %619 = vmatmul.mubr.f32.gmra.mrb[0].mxu0 %v317
        %v620 = vpop.f32.mrb[0].mxu0
        %v621 = vadd.f32 %v352, %v620
        %v622 = vpop.f32.mrb[0].mxu0
        %623 = vmatprep.mubr.f32.mxu0 0.0
        %624 = vmatmul.mubr.f32.gmra.mrb[0].mxu0 %v318
        %v625 = vpop.f32.mrb[0].mxu0
        %v626 = vadd.f32 %v352, %v625
        %v627 = vpop.f32.mrb[0].mxu0
        %628 = vmatprep.mubr.f32.mxu0 0.0
        %629 = vmatmul.mubr.f32.gmra.mrb[0].mxu0 %v319
        %v630 = vpop.f32.mrb[0].mxu0
        %v631 = vadd.f32 %v352, %v630
        %v632 = vpop.f32.mrb[0].mxu0
        %633 = vmatprep.mubr.f32.mxu0 0.0
        %634 = vmatmul.mubr.f32.gmra.mrb[0].mxu0 %v320
        %v635 = vpop.f32.mrb[0].mxu0
        %v636 = vadd.f32 %v352, %v635
        %v637 = vpop.f32.mrb[0].mxu0
        %638 = vmatprep.mubr.f32.mxu0 0.0
        %639 = vmatmul.mubr.f32.gmra.mrb[0].mxu0 %v321
        %v640 = vpop.f32.mrb[0].mxu0
        %v641 = vadd.f32 %v352, %v640
        %v642 = vpop.f32.mrb[0].mxu0
        %643 = vmatprep.mubr.f32.mxu0 0.0
        %644 = vmatmul.mubr.f32.gmra.mrb[0].mxu0 %v322
        %v645 = vpop.f32.mrb[0].mxu0
        %v646 = vadd.f32 %v352, %v645
        %v647 = vpop.f32.mrb[0].mxu0
        %648 = vmatprep.mubr.f32.mxu0 0.0
        %649 = vmatmul.mubr.f32.gmra.mrb[0].mxu0 %v323
        %v650 = vpop.f32.mrb[0].mxu0
        %v651 = vadd.f32 %v352, %v650
        %v652 = vpop.f32.mrb[0].mxu0
        %653 = vmatprep.mubr.f32.mxu0 0.0
        %654 = vmatmul.mubr.f32.gmra.mrb[0].mxu0 %v324
        %v655 = vpop.f32.mrb[0].mxu0
        %v656 = vadd.f32 %v352, %v655
        %v657 = vpop.f32.mrb[0].mxu0
        %658 = vmatprep.mubr.f32.mxu0 0.0
        %659 = vmatmul.mubr.f32.gmra.mrb[0].mxu0 %v325
        %v660 = vpop.f32.mrb[0].mxu0
        %v661 = vadd.f32 %v352, %v660
        %v662 = vpop.f32.mrb[0].mxu0
        %663 = vmatprep.mubr.f32.mxu0 0.0
        %664 = vmatmul.mubr.f32.gmra.mrb[0].mxu0 %v326
        %v665 = vpop.f32.mrb[0].mxu0
        %v666 = vadd.f32 %v352, %v665
        %v667 = vpop.f32.mrb[0].mxu0
        %668 = vmatprep.mubr.f32.mxu0 0.0
        %669 = vmatmul.mubr.f32.gmra.mrb[0].mxu0 %v327
        %v670 = vpop.f32.mrb[0].mxu0
        %v671 = vadd.f32 %v352, %v670
        %v672 = vpop.f32.mrb[0].mxu0
        %673 = vmatprep.mubr.f32.mxu0 0.0
        %674 = vmatmul.mubr.f32.gmra.mrb[0].mxu0 %v328
        %v675 = vpop.f32.mrb[0].mxu0
        %v676 = vadd.f32 %v352, %v675
        %v677 = vpop.f32.mrb[0].mxu0
        %678 = vmatprep.mubr.f32.mxu0 0.0
        %679 = vmatmul.mubr.f32.gmra.mrb[0].mxu0 %v329
        %v680 = vpop.f32.mrb[0].mxu0
        %v681 = vadd.f32 %v352, %v680
        %v682 = vpop.f32.mrb[0].mxu0
        %683 = vmatprep.mubr.f32.mxu0 0.0
        %684 = vmatmul.mubr.f32.gmra.mrb[0].mxu0 %v330
        %v685 = vpop.f32.mrb[0].mxu0
        %v686 = vadd.f32 %v352, %v685
        %v687 = vpop.f32.mrb[0].mxu0
        %688 = vdwg.mxu0
        %v689 = vxor.u32 %v421, 2147483648
        %v690 = vxor.u32 %v426, 2147483648
        %v691 = vxor.u32 %v431, 2147483648
        %v692 = vxor.u32 %v436, 2147483648
        %v693 = vxor.u32 %v441, 2147483648
        %v694 = vxor.u32 %v446, 2147483648
        %v695 = vxor.u32 %v451, 2147483648
        %v696 = vxor.u32 %v456, 2147483648
        %v697 = vxor.u32 %v461, 2147483648
        %v698 = vxor.u32 %v466, 2147483648
        %v699 = vxor.u32 %v471, 2147483648
        %v700 = vxor.u32 %v476, 2147483648
        %v701 = vxor.u32 %v481, 2147483648
        %v702 = vxor.u32 %v486, 2147483648
        %v703 = vxor.u32 %v491, 2147483648
        %v704 = vxor.u32 %v496, 2147483648
        %v705 = vxor.u32 %v501, 2147483648
        %v706 = vxor.u32 %v506, 2147483648
        %v707 = vxor.u32 %v511, 2147483648
        %v708 = vxor.u32 %v516, 2147483648
        %v709 = vxor.u32 %v521, 2147483648
        %v710 = vxor.u32 %v526, 2147483648
        %v711 = vxor.u32 %v531, 2147483648
        %v712 = vxor.u32 %v536, 2147483648
        %v713 = vxor.u32 %v541, 2147483648
        %v714 = vxor.u32 %v546, 2147483648
        %v715 = vxor.u32 %v551, 2147483648
        %v716 = vxor.u32 %v556, 2147483648
        %v717 = vxor.u32 %v561, 2147483648
        %v718 = vxor.u32 %v566, 2147483648
        %v719 = vxor.u32 %v571, 2147483648
        %v720 = vxor.u32 %v576, 2147483648
        %v721 = vxor.u32 %v581, 2147483648
        %v722 = vxor.u32 %v586, 2147483648
        %v723 = vxor.u32 %v591, 2147483648
        %v724 = vxor.u32 %v596, 2147483648
        %v725 = vxor.u32 %v601, 2147483648
        %v726 = vxor.u32 %v606, 2147483648
        %v727 = vxor.u32 %v611, 2147483648
        %v728 = vxor.u32 %v616, 2147483648
        %v729 = vxor.u32 %v621, 2147483648
        %v730 = vxor.u32 %v626, 2147483648
        %v731 = vxor.u32 %v631, 2147483648
        %v732 = vxor.u32 %v636, 2147483648
        %v733 = vxor.u32 %v641, 2147483648
        %v734 = vxor.u32 %v646, 2147483648
        %v735 = vxor.u32 %v651, 2147483648
        %v736 = vxor.u32 %v656, 2147483648
        %v737 = vxor.u32 %v661, 2147483648
        %v738 = vxor.u32 %v666, 2147483648
        %v739 = vxor.u32 %v671, 2147483648
        %v740 = vxor.u32 %v676, 2147483648
        %v741 = vxor.u32 %v681, 2147483648
        %v742 = vxor.u32 %v686, 2147483648
        %v743 = vmul.f32 %v689, 1.442695
        %v744 = vpow.pop %v743
        %v745 = vmul.f32 %v690, 1.442695
        %v746 = vpow.pop %v745
        %v747 = vmul.f32 %v691, 1.442695
        %v748 = vpow.pop %v747
        %v749 = vmul.f32 %v692, 1.442695
        %v750 = vpow.pop %v749
        %v751 = vmul.f32 %v693, 1.442695
        %v752 = vpow.pop %v751
        %v753 = vmul.f32 %v694, 1.442695
        %v754 = vpow.pop %v753
        %v755 = vmul.f32 %v695, 1.442695
        %v756 = vpow.pop %v755
        %v757 = vmul.f32 %v696, 1.442695
        %v758 = vpow.pop %v757
        %v759 = vmul.f32 %v697, 1.442695
        %v760 = vpow.pop %v759
        %v761 = vmul.f32 %v698, 1.442695
        %v762 = vpow.pop %v761
        %v763 = vmul.f32 %v699, 1.442695
        %v764 = vpow.pop %v763
        %v765 = vmul.f32 %v700, 1.442695
        %v766 = vpow.pop %v765
        %v767 = vmul.f32 %v701, 1.442695
        %v768 = vpow.pop %v767
        %v769 = vmul.f32 %v702, 1.442695
        %v770 = vpow.pop %v769
        %v771 = vmul.f32 %v703, 1.442695
        %v772 = vpow.pop %v771
        %v773 = vmul.f32 %v704, 1.442695
        %v774 = vpow.pop %v773
        %v775 = vmul.f32 %v705, 1.442695
        %v776 = vpow.pop %v775
        %v777 = vmul.f32 %v706, 1.442695
        %v778 = vpow.pop %v777
        %v779 = vmul.f32 %v707, 1.442695
        %v780 = vpow.pop %v779
        %v781 = vmul.f32 %v708, 1.442695
        %v782 = vpow.pop %v781
        %v783 = vmul.f32 %v709, 1.442695
        %v784 = vpow.pop %v783
        %v785 = vmul.f32 %v710, 1.442695
        %v786 = vpow.pop %v785
        %v787 = vmul.f32 %v711, 1.442695
        %v788 = vpow.pop %v787
        %v789 = vmul.f32 %v712, 1.442695
        %v790 = vpow.pop %v789
        %v791 = vmul.f32 %v713, 1.442695
        %v792 = vpow.pop %v791
        %v793 = vmul.f32 %v714, 1.442695
        %v794 = vpow.pop %v793
        %v795 = vmul.f32 %v715, 1.442695
        %v796 = vpow.pop %v795
        %v797 = vmul.f32 %v716, 1.442695
        %v798 = vpow.pop %v797
        %v799 = vmul.f32 %v717, 1.442695
        %v800 = vpow.pop %v799
        %v801 = vmul.f32 %v718, 1.442695
        %v802 = vpow.pop %v801
        %v803 = vmul.f32 %v719, 1.442695
        %v804 = vpow.pop %v803
        %v805 = vmul.f32 %v720, 1.442695
        %v806 = vpow.pop %v805
        %v807 = vmul.f32 %v721, 1.442695
        %v808 = vpow.pop %v807
        %v809 = vmul.f32 %v722, 1.442695
        %v810 = vpow.pop %v809
        %v811 = vmul.f32 %v723, 1.442695
        %v812 = vpow.pop %v811
        %v813 = vmul.f32 %v724, 1.442695
        %v814 = vpow.pop %v813
        %v815 = vmul.f32 %v725, 1.442695
        %v816 = vpow.pop %v815
        %v817 = vmul.f32 %v726, 1.442695
        %v818 = vpow.pop %v817
        %v819 = vmul.f32 %v727, 1.442695
        %v820 = vpow.pop %v819
        %v821 = vmul.f32 %v728, 1.442695
        %v822 = vpow.pop %v821
        %v823 = vmul.f32 %v729, 1.442695
        %v824 = vpow.pop %v823
        %v825 = vmul.f32 %v730, 1.442695
        %v826 = vpow.pop %v825
        %v827 = vmul.f32 %v731, 1.442695
        %v828 = vpow.pop %v827
        %v829 = vmul.f32 %v732, 1.442695
        %v830 = vpow.pop %v829
        %v831 = vmul.f32 %v733, 1.442695
        %v832 = vpow.pop %v831
        %v833 = vmul.f32 %v734, 1.442695
        %v834 = vpow.pop %v833
        %v835 = vmul.f32 %v735, 1.442695
        %v836 = vpow.pop %v835
        %v837 = vmul.f32 %v736, 1.442695
        %v838 = vpow.pop %v837
        %v839 = vmul.f32 %v737, 1.442695
        %v840 = vpow.pop %v839
        %v841 = vmul.f32 %v738, 1.442695
        %v842 = vpow.pop %v841
        %v843 = vmul.f32 %v739, 1.442695
        %v844 = vpow.pop %v843
        %v845 = vmul.f32 %v740, 1.442695
        %v846 = vpow.pop %v845
        %v847 = vmul.f32 %v741, 1.442695
        %v848 = vpow.pop %v847
        %v849 = vmul.f32 %v742, 1.442695
        %v850 = vpow.pop %v849
        %v851 = vadd.f32 %v744, 1.0
        %v852 = vadd.f32 %v746, 1.0
        %v853 = vadd.f32 %v748, 1.0
        %v854 = vadd.f32 %v750, 1.0
        %v855 = vadd.f32 %v752, 1.0
        %v856 = vadd.f32 %v754, 1.0
        %v857 = vadd.f32 %v756, 1.0
        %v858 = vadd.f32 %v758, 1.0
        %v859 = vadd.f32 %v760, 1.0
        %v860 = vadd.f32 %v762, 1.0
        %v861 = vadd.f32 %v764, 1.0
        %v862 = vadd.f32 %v766, 1.0
        %v863 = vadd.f32 %v768, 1.0
        %v864 = vadd.f32 %v770, 1.0
        %v865 = vadd.f32 %v772, 1.0
        %v866 = vadd.f32 %v774, 1.0
        %v867 = vadd.f32 %v776, 1.0
        %v868 = vadd.f32 %v778, 1.0
        %v869 = vadd.f32 %v780, 1.0
        %v870 = vadd.f32 %v782, 1.0
        %v871 = vadd.f32 %v784, 1.0
        %v872 = vadd.f32 %v786, 1.0
        %v873 = vadd.f32 %v788, 1.0
        %v874 = vadd.f32 %v790, 1.0
        %v875 = vadd.f32 %v792, 1.0
        %v876 = vadd.f32 %v794, 1.0
        %v877 = vadd.f32 %v796, 1.0
        %v878 = vadd.f32 %v798, 1.0
        %v879 = vadd.f32 %v800, 1.0
        %v880 = vadd.f32 %v802, 1.0
        %v881 = vadd.f32 %v804, 1.0
        %v882 = vadd.f32 %v806, 1.0
        %v883 = vadd.f32 %v808, 1.0
        %v884 = vadd.f32 %v810, 1.0
        %v885 = vadd.f32 %v812, 1.0
        %v886 = vadd.f32 %v814, 1.0
        %v887 = vadd.f32 %v816, 1.0
        %v888 = vadd.f32 %v818, 1.0
        %v889 = vadd.f32 %v820, 1.0
        %v890 = vadd.f32 %v822, 1.0
        %v891 = vadd.f32 %v824, 1.0
        %v892 = vadd.f32 %v826, 1.0
        %v893 = vadd.f32 %v828, 1.0
        %v894 = vadd.f32 %v830, 1.0
        %v895 = vadd.f32 %v832, 1.0
        %v896 = vadd.f32 %v834, 1.0
        %v897 = vadd.f32 %v836, 1.0
        %v898 = vadd.f32 %v838, 1.0
        %v899 = vadd.f32 %v840, 1.0
        %v900 = vadd.f32 %v842, 1.0
        %v901 = vadd.f32 %v844, 1.0
        %v902 = vadd.f32 %v846, 1.0
        %v903 = vadd.f32 %v848, 1.0
        %v904 = vadd.f32 %v850, 1.0
        %v905 = vrcp.pop %v851
        %v906 = vmul.f32 1.0, %v905
        %v907 = vrcp.pop %v852
        %v908 = vmul.f32 1.0, %v907
        %v909 = vrcp.pop %v853
        %v910 = vmul.f32 1.0, %v909
        %v911 = vrcp.pop %v854
        %v912 = vmul.f32 1.0, %v911
        %v913 = vrcp.pop %v855
        %v914 = vmul.f32 1.0, %v913
        %v915 = vrcp.pop %v856
        %v916 = vmul.f32 1.0, %v915
        %v917 = vrcp.pop %v857
        %v918 = vmul.f32 1.0, %v917
        %v919 = vrcp.pop %v858
        %v920 = vmul.f32 1.0, %v919
        %v921 = vrcp.pop %v859
        %v922 = vmul.f32 1.0, %v921
        %v923 = vrcp.pop %v860
        %v924 = vmul.f32 1.0, %v923
        %v925 = vrcp.pop %v861
        %v926 = vmul.f32 1.0, %v925
        %v927 = vrcp.pop %v862
        %v928 = vmul.f32 1.0, %v927
        %v929 = vrcp.pop %v863
        %v930 = vmul.f32 1.0, %v929
        %v931 = vrcp.pop %v864
        %v932 = vmul.f32 1.0, %v931
        %v933 = vrcp.pop %v865
        %v934 = vmul.f32 1.0, %v933
        %v935 = vrcp.pop %v866
        %v936 = vmul.f32 1.0, %v935
        %v937 = vrcp.pop %v867
        %v938 = vmul.f32 1.0, %v937
        %v939 = vrcp.pop %v868
        %v940 = vmul.f32 1.0, %v939
        %v941 = vrcp.pop %v869
        %v942 = vmul.f32 1.0, %v941
        %v943 = vrcp.pop %v870
        %v944 = vmul.f32 1.0, %v943
        %v945 = vrcp.pop %v871
        %v946 = vmul.f32 1.0, %v945
        %v947 = vrcp.pop %v872
        %v948 = vmul.f32 1.0, %v947
        %v949 = vrcp.pop %v873
        %v950 = vmul.f32 1.0, %v949
        %v951 = vrcp.pop %v874
        %v952 = vmul.f32 1.0, %v951
        %v953 = vrcp.pop %v875
        %v954 = vmul.f32 1.0, %v953
        %v955 = vrcp.pop %v876
        %v956 = vmul.f32 1.0, %v955
        %v957 = vrcp.pop %v877
        %v958 = vmul.f32 1.0, %v957
        %v959 = vrcp.pop %v878
        %v960 = vmul.f32 1.0, %v959
        %v961 = vrcp.pop %v879
        %v962 = vmul.f32 1.0, %v961
        %v963 = vrcp.pop %v880
        %v964 = vmul.f32 1.0, %v963
        %v965 = vrcp.pop %v881
        %v966 = vmul.f32 1.0, %v965
        %v967 = vrcp.pop %v882
        %v968 = vmul.f32 1.0, %v967
        %v969 = vrcp.pop %v883
        %v970 = vmul.f32 1.0, %v969
        %v971 = vrcp.pop %v884
        %v972 = vmul.f32 1.0, %v971
        %v973 = vrcp.pop %v885
        %v974 = vmul.f32 1.0, %v973
        %v975 = vrcp.pop %v886
        %v976 = vmul.f32 1.0, %v975
        %v977 = vrcp.pop %v887
        %v978 = vmul.f32 1.0, %v977
        %v979 = vrcp.pop %v888
        %v980 = vmul.f32 1.0, %v979
        %v981 = vrcp.pop %v889
        %v982 = vmul.f32 1.0, %v981
        %v983 = vrcp.pop %v890
        %v984 = vmul.f32 1.0, %v983
        %v985 = vrcp.pop %v891
        %v986 = vmul.f32 1.0, %v985
        %v987 = vrcp.pop %v892
        %v988 = vmul.f32 1.0, %v987
        %v989 = vrcp.pop %v893
        %v990 = vmul.f32 1.0, %v989
        %v991 = vrcp.pop %v894
        %v992 = vmul.f32 1.0, %v991
        %v993 = vrcp.pop %v895
        %v994 = vmul.f32 1.0, %v993
        %v995 = vrcp.pop %v896
        %v996 = vmul.f32 1.0, %v995
        %v997 = vrcp.pop %v897
        %v998 = vmul.f32 1.0, %v997
        %v999 = vrcp.pop %v898
        %v1000 = vmul.f32 1.0, %v999
        %v1001 = vrcp.pop %v899
        %v1002 = vmul.f32 1.0, %v1001
        %v1003 = vrcp.pop %v900
        %v1004 = vmul.f32 1.0, %v1003
        %v1005 = vrcp.pop %v901
        %v1006 = vmul.f32 1.0, %v1005
        %v1007 = vrcp.pop %v902
        %v1008 = vmul.f32 1.0, %v1007
        %v1009 = vrcp.pop %v903
        %v1010 = vmul.f32 1.0, %v1009
        %v1011 = vrcp.pop %v904
        %v1012 = vmul.f32 1.0, %v1011
        %v1013 = vmul.f32 %v421, %v906
        %v1014 = vmul.f32 %v426, %v908
        %v1015 = vmul.f32 %v431, %v910
        %v1016 = vmul.f32 %v436, %v912
        %v1017 = vmul.f32 %v441, %v914
        %v1018 = vmul.f32 %v446, %v916
        %v1019 = vmul.f32 %v451, %v918
        %v1020 = vmul.f32 %v456, %v920
        %v1021 = vmul.f32 %v461, %v922
        %v1022 = vmul.f32 %v466, %v924
        %v1023 = vmul.f32 %v471, %v926
        %v1024 = vmul.f32 %v476, %v928
        %v1025 = vmul.f32 %v481, %v930
        %v1026 = vmul.f32 %v486, %v932
        %v1027 = vmul.f32 %v491, %v934
        %v1028 = vmul.f32 %v496, %v936
        %v1029 = vmul.f32 %v501, %v938
        %v1030 = vmul.f32 %v506, %v940
        %v1031 = vmul.f32 %v511, %v942
        %v1032 = vmul.f32 %v516, %v944
        %v1033 = vmul.f32 %v521, %v946
        %v1034 = vmul.f32 %v526, %v948
        %v1035 = vmul.f32 %v531, %v950
        %v1036 = vmul.f32 %v536, %v952
        %v1037 = vmul.f32 %v541, %v954
        %v1038 = vmul.f32 %v546, %v956
        %v1039 = vmul.f32 %v551, %v958
        %v1040 = vmul.f32 %v556, %v960
        %v1041 = vmul.f32 %v561, %v962
        %v1042 = vmul.f32 %v566, %v964
        %v1043 = vmul.f32 %v571, %v966
        %v1044 = vmul.f32 %v576, %v968
        %v1045 = vmul.f32 %v581, %v970
        %v1046 = vmul.f32 %v586, %v972
        %v1047 = vmul.f32 %v591, %v974
        %v1048 = vmul.f32 %v596, %v976
        %v1049 = vmul.f32 %v601, %v978
        %v1050 = vmul.f32 %v606, %v980
        %v1051 = vmul.f32 %v611, %v982
        %v1052 = vmul.f32 %v616, %v984
        %v1053 = vmul.f32 %v621, %v986
        %v1054 = vmul.f32 %v626, %v988
        %v1055 = vmul.f32 %v631, %v990
        %v1056 = vmul.f32 %v636, %v992
        %v1057 = vmul.f32 %v641, %v994
        %v1058 = vmul.f32 %v646, %v996
        %v1059 = vmul.f32 %v651, %v998
        %v1060 = vmul.f32 %v656, %v1000
        %v1061 = vmul.f32 %v661, %v1002
        %v1062 = vmul.f32 %v666, %v1004
        %v1063 = vmul.f32 %v671, %v1006
        %v1064 = vmul.f32 %v676, %v1008
        %v1065 = vmul.f32 %v681, %v1010
        %v1066 = vmul.f32 %v686, %v1012
        %v1067 = vlaneseq
        %v1068 = vshrl.u32 %v1067, 7
        %v1069 = vadd.s32 %v1068, 8
        %v1070 = vadd.s32 %v1068, 16
        %vm1071 = vcmp.ge.s32.totalorder %v1068, 1
        %vm1072 = vcmp.ge.s32.totalorder %v1069, 1
        %vm1073 = vcmp.ge.s32.totalorder %v1070, 1
        %vm1074 = vmand 0, %vm1071
        %vm1075 = vmand 0, %vm1072
        %vm1076 = vmand 0, %vm1073
        %vm1077 = vmand 1, %vm1071
        %vm1078 = vmand 1, %vm1072
        %vm1079 = vmand 1, %vm1073
        %vm1080 = vcmp.le.s32.totalorder %v1068, 16
        %vm1081 = vcmp.le.s32.totalorder %v1069, 16
        %vm1082 = vcmp.le.s32.totalorder %v1070, 16
        %vm1083 = vmand %vm1074, %vm1080
        %vm1084 = vmand %vm1075, %vm1081
        %vm1085 = vmand %vm1076, %vm1082
        %vm1086 = vmand %vm1077, %vm1080
        %vm1087 = vmand %vm1078, %vm1081
        %vm1088 = vmand %vm1079, %vm1082
        %v1089 = vsel %vm1083, %v1013, 0.0
        %v1090 = vsel %vm1084, %v1014, 0.0
        %v1091 = vsel %vm1085, %v1015, 0.0
        %v1092 = vsel %vm1086, %v1016, 0.0
        %v1093 = vsel %vm1087, %v1017, 0.0
        %v1094 = vsel %vm1088, %v1018, 0.0
        %v1095 = vsel %vm1086, %v1019, 0.0
        %v1096 = vsel %vm1087, %v1020, 0.0
        %v1097 = vsel %vm1088, %v1021, 0.0
        %v1098 = vsel %vm1086, %v1022, 0.0
        %v1099 = vsel %vm1087, %v1023, 0.0
        %v1100 = vsel %vm1088, %v1024, 0.0
        %v1101 = vsel %vm1086, %v1025, 0.0
        %v1102 = vsel %vm1087, %v1026, 0.0
        %v1103 = vsel %vm1088, %v1027, 0.0
        %v1104 = vsel %vm1086, %v1028, 0.0
        %v1105 = vsel %vm1087, %v1029, 0.0
        %v1106 = vsel %vm1088, %v1030, 0.0
        %v1107 = vsel %vm1086, %v1031, 0.0
        %v1108 = vsel %vm1087, %v1032, 0.0
        %v1109 = vsel %vm1088, %v1033, 0.0
        %v1110 = vsel %vm1086, %v1034, 0.0
        %v1111 = vsel %vm1087, %v1035, 0.0
        %v1112 = vsel %vm1088, %v1036, 0.0
        %v1113 = vsel %vm1086, %v1037, 0.0
        %v1114 = vsel %vm1087, %v1038, 0.0
        %v1115 = vsel %vm1088, %v1039, 0.0
        %v1116 = vsel %vm1086, %v1040, 0.0
        %v1117 = vsel %vm1087, %v1041, 0.0
        %v1118 = vsel %vm1088, %v1042, 0.0
        %v1119 = vsel %vm1086, %v1043, 0.0
        %v1120 = vsel %vm1087, %v1044, 0.0
        %v1121 = vsel %vm1088, %v1045, 0.0
        %v1122 = vsel %vm1086, %v1046, 0.0
        %v1123 = vsel %vm1087, %v1047, 0.0
        %v1124 = vsel %vm1088, %v1048, 0.0
        %v1125 = vsel %vm1086, %v1049, 0.0
        %v1126 = vsel %vm1087, %v1050, 0.0
        %v1127 = vsel %vm1088, %v1051, 0.0
        %v1128 = vsel %vm1086, %v1052, 0.0
        %v1129 = vsel %vm1087, %v1053, 0.0
        %v1130 = vsel %vm1088, %v1054, 0.0
        %v1131 = vsel %vm1086, %v1055, 0.0
        %v1132 = vsel %vm1087, %v1056, 0.0
        %v1133 = vsel %vm1088, %v1057, 0.0
        %v1134 = vsel %vm1086, %v1058, 0.0
        %v1135 = vsel %vm1087, %v1059, 0.0
        %v1136 = vsel %vm1088, %v1060, 0.0
        %v1137 = vsel %vm1086, %v1061, 0.0
        %v1138 = vsel %vm1087, %v1062, 0.0
        %v1139 = vsel %vm1088, %v1063, 0.0
        %v1140 = vsel %vm1083, %v1064, 0.0
        %v1141 = vsel %vm1084, %v1065, 0.0
        %v1142 = vsel %vm1085, %v1066, 0.0
        %vm1143 = vcmask 261120
        %1144 = vst.msk [vmem:[#allocation2] sm:$0xff] %vm1143, %v1089
        %1145 = vst.msk [vmem:[#allocation2 + $0x8] sm:$0xff] %vm1143, %v1090
        %1146 = vst.msk [vmem:[#allocation2 + $0x10] sm:$0xff] %vm1143, %v1091
        %1147 = vst.msk [vmem:[#allocation2 + $0x18] sm:$0xff] %vm1143, %v1092
        %1148 = vst.msk [vmem:[#allocation2 + $0x20] sm:$0xff] %vm1143, %v1093
        %1149 = vst.msk [vmem:[#allocation2 + $0x28] sm:$0xff] %vm1143, %v1094
        %1150 = vst.msk [vmem:[#allocation2 + $0x30] sm:$0xff] %vm1143, %v1095
        %1151 = vst.msk [vmem:[#allocation2 + $0x38] sm:$0xff] %vm1143, %v1096
        %1152 = vst.msk [vmem:[#allocation2 + $0x40] sm:$0xff] %vm1143, %v1097
        %1153 = vst.msk [vmem:[#allocation2 + $0x48] sm:$0xff] %vm1143, %v1098
        %1154 = vst.msk [vmem:[#allocation2 + $0x50] sm:$0xff] %vm1143, %v1099
        %1155 = vst.msk [vmem:[#allocation2 + $0x58] sm:$0xff] %vm1143, %v1100
        %1156 = vst.msk [vmem:[#allocation2 + $0x60] sm:$0xff] %vm1143, %v1101
        %1157 = vst.msk [vmem:[#allocation2 + $0x68] sm:$0xff] %vm1143, %v1102
        %1158 = vst.msk [vmem:[#allocation2 + $0x70] sm:$0xff] %vm1143, %v1103
        %1159 = vst.msk [vmem:[#allocation2 + $0x78] sm:$0xff] %vm1143, %v1104
        %1160 = vst.msk [vmem:[#allocation2 + $0x80] sm:$0xff] %vm1143, %v1105
        %1161 = vst.msk [vmem:[#allocation2 + $0x88] sm:$0xff] %vm1143, %v1106
        %1162 = vst.msk [vmem:[#allocation2 + $0x90] sm:$0xff] %vm1143, %v1107
        %1163 = vst.msk [vmem:[#allocation2 + $0x98] sm:$0xff] %vm1143, %v1108
        %1164 = vst.msk [vmem:[#allocation2 + $0xa0] sm:$0xff] %vm1143, %v1109
        %1165 = vst.msk [vmem:[#allocation2 + $0xa8] sm:$0xff] %vm1143, %v1110
        %1166 = vst.msk [vmem:[#allocation2 + $0xb0] sm:$0xff] %vm1143, %v1111
        %1167 = vst.msk [vmem:[#allocation2 + $0xb8] sm:$0xff] %vm1143, %v1112
        %1168 = vst.msk [vmem:[#allocation2 + $0xc0] sm:$0xff] %vm1143, %v1113
        %1169 = vst.msk [vmem:[#allocation2 + $0xc8] sm:$0xff] %vm1143, %v1114
        %1170 = vst.msk [vmem:[#allocation2 + $0xd0] sm:$0xff] %vm1143, %v1115
        %1171 = vst.msk [vmem:[#allocation2 + $0xd8] sm:$0xff] %vm1143, %v1116
        %1172 = vst.msk [vmem:[#allocation2 + $0xe0] sm:$0xff] %vm1143, %v1117
        %1173 = vst.msk [vmem:[#allocation2 + $0xe8] sm:$0xff] %vm1143, %v1118
        %1174 = vst.msk [vmem:[#allocation2 + $0xf0] sm:$0xff] %vm1143, %v1119
        %1175 = vst.msk [vmem:[#allocation2 + $0xf8] sm:$0xff] %vm1143, %v1120
        %1176 = vst.msk [vmem:[#allocation2 + $0x100] sm:$0xff] %vm1143, %v1121
        %1177 = vst.msk [vmem:[#allocation2 + $0x108] sm:$0xff] %vm1143, %v1122
        %1178 = vst.msk [vmem:[#allocation2 + $0x110] sm:$0xff] %vm1143, %v1123
        %1179 = vst.msk [vmem:[#allocation2 + $0x118] sm:$0xff] %vm1143, %v1124
        %1180 = vst.msk [vmem:[#allocation2 + $0x120] sm:$0xff] %vm1143, %v1125
        %1181 = vst.msk [vmem:[#allocation2 + $0x128] sm:$0xff] %vm1143, %v1126
        %1182 = vst.msk [vmem:[#allocation2 + $0x130] sm:$0xff] %vm1143, %v1127
        %1183 = vst.msk [vmem:[#allocation2 + $0x138] sm:$0xff] %vm1143, %v1128
        %1184 = vst.msk [vmem:[#allocation2 + $0x140] sm:$0xff] %vm1143, %v1129
        %1185 = vst.msk [vmem:[#allocation2 + $0x148] sm:$0xff] %vm1143, %v1130
        %1186 = vst.msk [vmem:[#allocation2 + $0x150] sm:$0xff] %vm1143, %v1131
        %1187 = vst.msk [vmem:[#allocation2 + $0x158] sm:$0xff] %vm1143, %v1132
        %1188 = vst.msk [vmem:[#allocation2 + $0x160] sm:$0xff] %vm1143, %v1133
        %1189 = vst.msk [vmem:[#allocation2 + $0x168] sm:$0xff] %vm1143, %v1134
        %1190 = vst.msk [vmem:[#allocation2 + $0x170] sm:$0xff] %vm1143, %v1135
        %1191 = vst.msk [vmem:[#allocation2 + $0x178] sm:$0xff] %vm1143, %v1136
        %1192 = vst.msk [vmem:[#allocation2 + $0x180] sm:$0xff] %vm1143, %v1137
        %1193 = vst.msk [vmem:[#allocation2 + $0x188] sm:$0xff] %vm1143, %v1138
        %1194 = vst.msk [vmem:[#allocation2 + $0x190] sm:$0xff] %vm1143, %v1139
        %1195 = vst.msk [vmem:[#allocation2 + $0x198] sm:$0xff] %vm1143, %v1140
        %1196 = vst.msk [vmem:[#allocation2 + $0x1a0] sm:$0xff] %vm1143, %v1141
        %1197 = vst.msk [vmem:[#allocation2 + $0x1a8] sm:$0xff] %vm1143, %v1142
        %v1198 = vld [vmem:[#allocation2] sm:$0xff]
        %v1199 = vld [vmem:[#allocation2 + $0x8] sm:$0xff]
        %v1200 = vld [vmem:[#allocation2 + $0x18] sm:$0xff]
        %v1201 = vld [vmem:[#allocation2 + $0x20] sm:$0xff]
        %v1202 = vld [vmem:[#allocation2 + $0x30] sm:$0xff]
        %v1203 = vld [vmem:[#allocation2 + $0x38] sm:$0xff]
        %v1204 = vld [vmem:[#allocation2 + $0x48] sm:$0xff]
        %v1205 = vld [vmem:[#allocation2 + $0x50] sm:$0xff]
        %v1206 = vld [vmem:[#allocation2 + $0x60] sm:$0xff]
        %v1207 = vld [vmem:[#allocation2 + $0x68] sm:$0xff]
        %v1208 = vld [vmem:[#allocation2 + $0x78] sm:$0xff]
        %v1209 = vld [vmem:[#allocation2 + $0x80] sm:$0xff]
        %v1210 = vld [vmem:[#allocation2 + $0x90] sm:$0xff]
        %v1211 = vld [vmem:[#allocation2 + $0x98] sm:$0xff]
        %v1212 = vld [vmem:[#allocation2 + $0xa8] sm:$0xff]
        %v1213 = vld [vmem:[#allocation2 + $0xb0] sm:$0xff]
        %v1214 = vld [vmem:[#allocation2 + $0xc0] sm:$0xff]
        %v1215 = vld [vmem:[#allocation2 + $0xc8] sm:$0xff]
        %v1216 = vld [vmem:[#allocation2 + $0xd8] sm:$0xff]
        %v1217 = vld [vmem:[#allocation2 + $0xe0] sm:$0xff]
        %v1218 = vld [vmem:[#allocation2 + $0xf0] sm:$0xff]
        %v1219 = vld [vmem:[#allocation2 + $0xf8] sm:$0xff]
        %v1220 = vld [vmem:[#allocation2 + $0x108] sm:$0xff]
        %v1221 = vld [vmem:[#allocation2 + $0x110] sm:$0xff]
        %v1222 = vld [vmem:[#allocation2 + $0x120] sm:$0xff]
        %v1223 = vld [vmem:[#allocation2 + $0x128] sm:$0xff]
        %v1224 = vld [vmem:[#allocation2 + $0x138] sm:$0xff]
        %v1225 = vld [vmem:[#allocation2 + $0x140] sm:$0xff]
        %v1226 = vld [vmem:[#allocation2 + $0x150] sm:$0xff]
        %v1227 = vld [vmem:[#allocation2 + $0x158] sm:$0xff]
        %v1228 = vld [vmem:[#allocation2 + $0x168] sm:$0xff]
        %v1229 = vld [vmem:[#allocation2 + $0x170] sm:$0xff]
        %v1230 = vld [vmem:[%s3] sm:$0xff]
        %v1231 = vld [vmem:[%s3 + $0x8] sm:$0xff]
        %v1232 = vld [vmem:[%s3 + $0x10] sm:$0xff]
        %v1233 = vld [vmem:[%s3 + $0x18] sm:$0xff]
        %v1234 = vld [vmem:[#allocation2 + $0x1] sm:$0xff]
        %v1235 = vld [vmem:[#allocation2 + $0x9] sm:$0xff]
        %v1236 = vld [vmem:[#allocation2 + $0x19] sm:$0xff]
        %v1237 = vld [vmem:[#allocation2 + $0x21] sm:$0xff]
        %v1238 = vld [vmem:[#allocation2 + $0x31] sm:$0xff]
        %v1239 = vld [vmem:[#allocation2 + $0x39] sm:$0xff]
        %v1240 = vld [vmem:[#allocation2 + $0x49] sm:$0xff]
        %v1241 = vld [vmem:[#allocation2 + $0x51] sm:$0xff]
        %v1242 = vld [vmem:[#allocation2 + $0x61] sm:$0xff]
        %v1243 = vld [vmem:[#allocation2 + $0x69] sm:$0xff]
        %v1244 = vld [vmem:[#allocation2 + $0x79] sm:$0xff]
        %v1245 = vld [vmem:[#allocation2 + $0x81] sm:$0xff]
        %v1246 = vld [vmem:[#allocation2 + $0x91] sm:$0xff]
        %v1247 = vld [vmem:[#allocation2 + $0x99] sm:$0xff]
        %v1248 = vld [vmem:[#allocation2 + $0xa9] sm:$0xff]
        %v1249 = vld [vmem:[#allocation2 + $0xb1] sm:$0xff]
        %v1250 = vld [vmem:[#allocation2 + $0xc1] sm:$0xff]
        %v1251 = vld [vmem:[#allocation2 + $0xc9] sm:$0xff]
        %v1252 = vld [vmem:[#allocation2 + $0xd9] sm:$0xff]
        %v1253 = vld [vmem:[#allocation2 + $0xe1] sm:$0xff]
        %v1254 = vld [vmem:[#allocation2 + $0xf1] sm:$0xff]
        %v1255 = vld [vmem:[#allocation2 + $0xf9] sm:$0xff]
        %v1256 = vld [vmem:[#allocation2 + $0x109] sm:$0xff]
        %v1257 = vld [vmem:[#allocation2 + $0x111] sm:$0xff]
        %v1258 = vld [vmem:[#allocation2 + $0x121] sm:$0xff]
        %v1259 = vld [vmem:[#allocation2 + $0x129] sm:$0xff]
        %v1260 = vld [vmem:[#allocation2 + $0x139] sm:$0xff]
        %v1261 = vld [vmem:[#allocation2 + $0x141] sm:$0xff]
        %v1262 = vld [vmem:[#allocation2 + $0x151] sm:$0xff]
        %v1263 = vld [vmem:[#allocation2 + $0x159] sm:$0xff]
        %v1264 = vld [vmem:[#allocation2 + $0x169] sm:$0xff]
        %v1265 = vld [vmem:[#allocation2 + $0x171] sm:$0xff]
        %s1266 = scalar_lea.vmem %s3, 32
        %v1267 = vld [vmem:[%s1266] sm:$0xff]
        %v1268 = vld [vmem:[%s1266 + $0x8] sm:$0xff]
        %v1269 = vld [vmem:[%s1266 + $0x10] sm:$0xff]
        %v1270 = vld [vmem:[%s1266 + $0x18] sm:$0xff]
        %v1272 = vsel %vm1143, %v1234, 0
        %v1275 = vsel %vm1143, %v1235, 0
        %v1278 = vsel %vm1143, %v1236, 0
        %v1281 = vsel %vm1143, %v1237, 0
        %v1284 = vsel %vm1143, %v1238, 0
        %v1287 = vsel %vm1143, %v1239, 0
        %v1290 = vsel %vm1143, %v1240, 0
        %v1293 = vsel %vm1143, %v1241, 0
        %v1296 = vsel %vm1143, %v1242, 0
        %v1299 = vsel %vm1143, %v1243, 0
        %v1302 = vsel %vm1143, %v1244, 0
        %v1305 = vsel %vm1143, %v1245, 0
        %v1308 = vsel %vm1143, %v1246, 0
        %v1311 = vsel %vm1143, %v1247, 0
        %v1314 = vsel %vm1143, %v1248, 0
        %v1317 = vsel %vm1143, %v1249, 0
        %v1320 = vsel %vm1143, %v1250, 0
        %v1323 = vsel %vm1143, %v1251, 0
        %v1326 = vsel %vm1143, %v1252, 0
        %v1329 = vsel %vm1143, %v1253, 0
        %v1332 = vsel %vm1143, %v1254, 0
        %v1335 = vsel %vm1143, %v1255, 0
        %v1338 = vsel %vm1143, %v1256, 0
        %v1341 = vsel %vm1143, %v1257, 0
        %v1344 = vsel %vm1143, %v1258, 0
        %v1347 = vsel %vm1143, %v1259, 0
        %v1350 = vsel %vm1143, %v1260, 0
        %v1353 = vsel %vm1143, %v1261, 0
        %v1356 = vsel %vm1143, %v1262, 0
        %v1359 = vsel %vm1143, %v1263, 0
        %v1362 = vsel %vm1143, %v1264, 0
        %v1365 = vsel %vm1143, %v1265, 0
        %1367 = vmatprep.subr.mxu0 0.0
        %1368 = vmatpush1.msra.mxu0 %v1267
        %1369 = vmatprep.subr.mxu0 0.0
        %1370 = vmatpush1.msra.mxu0 %v1268
        %1371 = vmatprep.subr.mxu0 0.0
        %1372 = vmatpush1.msra.mxu0 %v1269
        %1373 = vmatprep.subr.mxu0 0.0
        %1374 = vmatpush1.msra.mxu0 %v1270
        %1375 = vmatprep.subr.mxu0 0.0
        %1376 = vmatpush1.msra.mxu0 0.0
        %1377 = vmatprep.subr.mxu0 0.0
        %1378 = vmatpush1.msra.mxu0 0.0
        %1379 = vmatprep.subr.mxu0 0.0
        %1380 = vmatpush1.msra.mxu0 0.0
        %1381 = vmatprep.subr.mxu0 0.0
        %1382 = vmatpush1.msra.mxu0 0.0
        %1383 = vmatprep.subr.mxu0 0.0
        %1384 = vmatpush1.msra.mxu0 0.0
        %1385 = vmatprep.subr.mxu0 0.0
        %1386 = vmatpush1.msra.mxu0 0.0
        %1387 = vmatprep.subr.mxu0 0.0
        %1388 = vmatpush1.msra.mxu0 0.0
        %1389 = vmatprep.subr.mxu0 0.0
        %1390 = vmatpush1.msra.mxu0 0.0
        %1391 = vmatprep.subr.mxu0 0.0
        %1392 = vmatpush1.msra.mxu0 0.0
        %1393 = vmatprep.subr.mxu0 0.0
        %1394 = vmatpush1.msra.mxu0 0.0
        %1395 = vmatprep.subr.mxu0 0.0
        %1396 = vmatpush1.msra.mxu0 0.0
        %1397 = vmatprep.subr.mxu0 0.0
        %1398 = vmatpush1.msra.mxu0 0.0
        %1399 = vmatprep.subr.mxu0 0.0
        %1400 = vmatpush1.msra.mxu0 0.0
        %1401 = vmatprep.subr.mxu0 0.0
        %1402 = vmatpush1.msra.mxu0 0.0
        %1403 = vmatprep.subr.mxu0 0.0
        %1404 = vmatpush1.msra.mxu0 0.0
        %1405 = vmatprep.subr.mxu0 0.0
        %1406 = vmatpush1.msra.mxu0 0.0
        %1407 = vmatprep.subr.mxu0 0.0
        %1408 = vmatpush1.msra.mxu0 0.0
        %1409 = vmatprep.subr.mxu0 0.0
        %1410 = vmatpush1.msra.mxu0 0.0
        %1411 = vmatprep.subr.mxu0 0.0
        %1412 = vmatpush1.msra.mxu0 0.0
        %1413 = vmatprep.subr.mxu0 0.0
        %1414 = vmatpush1.msra.mxu0 0.0
        %1415 = vmatprep.subr.mxu0 0.0
        %1416 = vmatpush1.msra.mxu0 0.0
        %1417 = vmatprep.subr.mxu0 0.0
        %1418 = vmatpush1.msra.mxu0 0.0
        %1419 = vmatprep.subr.mxu0 0.0
        %1420 = vmatpush1.msra.mxu0 0.0
        %1421 = vmatprep.subr.mxu0 0.0
        %1422 = vmatpush1.msra.mxu0 0.0
        %1423 = vmatprep.subr.mxu0 0.0
        %1424 = vmatpush1.msra.mxu0 0.0
        %1425 = vmatprep.subr.mxu0 0.0
        %1426 = vmatpush1.msra.mxu0 0.0
        %1427 = vmatprep.subr.mxu0 0.0
        %1428 = vmatpush1.msra.mxu0 0.0
        %1429 = vmatprep.subr.mxu0 0.0
        %1430 = vmatpush1.msra.mxu0 0.0
        %1431 = vmatprep.mubr.f32.mxu0 0.0
        %1432 = vmatmul.mubr.f32.gmra.mrb[0].mxu0 %v1272
        %v1433 = vpop.f32.mrb[0].mxu0
        %v1434 = vadd.f32 0.0, %v1433
        %v1435 = vpop.f32.mrb[0].mxu0
        %1436 = vmatprep.mubr.f32.mxu0 0.0
        %1437 = vmatmul.mubr.f32.gmra.mrb[0].mxu0 %v1275
        %v1438 = vpop.f32.mrb[0].mxu0
        %v1439 = vadd.f32 0.0, %v1438
        %v1440 = vpop.f32.mrb[0].mxu0
        %1441 = vmatprep.mubr.f32.mxu0 0.0
        %1442 = vmatmul.mubr.f32.gmra.mrb[0].mxu0 %v1278
        %v1443 = vpop.f32.mrb[0].mxu0
        %v1444 = vadd.f32 0.0, %v1443
        %v1445 = vpop.f32.mrb[0].mxu0
        %1446 = vmatprep.mubr.f32.mxu0 0.0
        %1447 = vmatmul.mubr.f32.gmra.mrb[0].mxu0 %v1281
        %v1448 = vpop.f32.mrb[0].mxu0
        %v1449 = vadd.f32 0.0, %v1448
        %v1450 = vpop.f32.mrb[0].mxu0
        %1451 = vmatprep.mubr.f32.mxu0 0.0
        %1452 = vmatmul.mubr.f32.gmra.mrb[0].mxu0 %v1284
        %v1453 = vpop.f32.mrb[0].mxu0
        %v1454 = vadd.f32 0.0, %v1453
        %v1455 = vpop.f32.mrb[0].mxu0
        %1456 = vmatprep.mubr.f32.mxu0 0.0
        %1457 = vmatmul.mubr.f32.gmra.mrb[0].mxu0 %v1287
        %v1458 = vpop.f32.mrb[0].mxu0
        %v1459 = vadd.f32 0.0, %v1458
        %v1460 = vpop.f32.mrb[0].mxu0
        %1461 = vmatprep.mubr.f32.mxu0 0.0
        %1462 = vmatmul.mubr.f32.gmra.mrb[0].mxu0 %v1290
        %v1463 = vpop.f32.mrb[0].mxu0
        %v1464 = vadd.f32 0.0, %v1463
        %v1465 = vpop.f32.mrb[0].mxu0
        %1466 = vmatprep.mubr.f32.mxu0 0.0
        %1467 = vmatmul.mubr.f32.gmra.mrb[0].mxu0 %v1293
        %v1468 = vpop.f32.mrb[0].mxu0
        %v1469 = vadd.f32 0.0, %v1468
        %v1470 = vpop.f32.mrb[0].mxu0
        %1471 = vmatprep.mubr.f32.mxu0 0.0
        %1472 = vmatmul.mubr.f32.gmra.mrb[0].mxu0 %v1296
        %v1473 = vpop.f32.mrb[0].mxu0
        %v1474 = vadd.f32 0.0, %v1473
        %v1475 = vpop.f32.mrb[0].mxu0
        %1476 = vmatprep.mubr.f32.mxu0 0.0
        %1477 = vmatmul.mubr.f32.gmra.mrb[0].mxu0 %v1299
        %v1478 = vpop.f32.mrb[0].mxu0
        %v1479 = vadd.f32 0.0, %v1478
        %v1480 = vpop.f32.mrb[0].mxu0
        %1481 = vmatprep.mubr.f32.mxu0 0.0
        %1482 = vmatmul.mubr.f32.gmra.mrb[0].mxu0 %v1302
        %v1483 = vpop.f32.mrb[0].mxu0
        %v1484 = vadd.f32 0.0, %v1483
        %v1485 = vpop.f32.mrb[0].mxu0
        %1486 = vmatprep.mubr.f32.mxu0 0.0
        %1487 = vmatmul.mubr.f32.gmra.mrb[0].mxu0 %v1305
        %v1488 = vpop.f32.mrb[0].mxu0
        %v1489 = vadd.f32 0.0, %v1488
        %v1490 = vpop.f32.mrb[0].mxu0
        %1491 = vmatprep.mubr.f32.mxu0 0.0
        %1492 = vmatmul.mubr.f32.gmra.mrb[0].mxu0 %v1308
        %v1493 = vpop.f32.mrb[0].mxu0
        %v1494 = vadd.f32 0.0, %v1493
        %v1495 = vpop.f32.mrb[0].mxu0
        %1496 = vmatprep.mubr.f32.mxu0 0.0
        %1497 = vmatmul.mubr.f32.gmra.mrb[0].mxu0 %v1311
        %v1498 = vpop.f32.mrb[0].mxu0
        %v1499 = vadd.f32 0.0, %v1498
        %v1500 = vpop.f32.mrb[0].mxu0
        %1501 = vmatprep.mubr.f32.mxu0 0.0
        %1502 = vmatmul.mubr.f32.gmra.mrb[0].mxu0 %v1314
        %v1503 = vpop.f32.mrb[0].mxu0
        %v1504 = vadd.f32 0.0, %v1503
        %v1505 = vpop.f32.mrb[0].mxu0
        %1506 = vmatprep.mubr.f32.mxu0 0.0
        %1507 = vmatmul.mubr.f32.gmra.mrb[0].mxu0 %v1317
        %v1508 = vpop.f32.mrb[0].mxu0
        %v1509 = vadd.f32 0.0, %v1508
        %v1510 = vpop.f32.mrb[0].mxu0
        %1511 = vmatprep.mubr.f32.mxu0 0.0
        %1512 = vmatmul.mubr.f32.gmra.mrb[0].mxu0 %v1320
        %v1513 = vpop.f32.mrb[0].mxu0
        %v1514 = vadd.f32 0.0, %v1513
        %v1515 = vpop.f32.mrb[0].mxu0
        %1516 = vmatprep.mubr.f32.mxu0 0.0
        %1517 = vmatmul.mubr.f32.gmra.mrb[0].mxu0 %v1323
        %v1518 = vpop.f32.mrb[0].mxu0
        %v1519 = vadd.f32 0.0, %v1518
        %v1520 = vpop.f32.mrb[0].mxu0
        %1521 = vmatprep.mubr.f32.mxu0 0.0
        %1522 = vmatmul.mubr.f32.gmra.mrb[0].mxu0 %v1326
        %v1523 = vpop.f32.mrb[0].mxu0
        %v1524 = vadd.f32 0.0, %v1523
        %v1525 = vpop.f32.mrb[0].mxu0
        %1526 = vmatprep.mubr.f32.mxu0 0.0
        %1527 = vmatmul.mubr.f32.gmra.mrb[0].mxu0 %v1329
        %v1528 = vpop.f32.mrb[0].mxu0
        %v1529 = vadd.f32 0.0, %v1528
        %v1530 = vpop.f32.mrb[0].mxu0
        %1531 = vmatprep.mubr.f32.mxu0 0.0
        %1532 = vmatmul.mubr.f32.gmra.mrb[0].mxu0 %v1332
        %v1533 = vpop.f32.mrb[0].mxu0
        %v1534 = vadd.f32 0.0, %v1533
        %v1535 = vpop.f32.mrb[0].mxu0
        %1536 = vmatprep.mubr.f32.mxu0 0.0
        %1537 = vmatmul.mubr.f32.gmra.mrb[0].mxu0 %v1335
        %v1538 = vpop.f32.mrb[0].mxu0
        %v1539 = vadd.f32 0.0, %v1538
        %v1540 = vpop.f32.mrb[0].mxu0
        %1541 = vmatprep.mubr.f32.mxu0 0.0
        %1542 = vmatmul.mubr.f32.gmra.mrb[0].mxu0 %v1338
        %v1543 = vpop.f32.mrb[0].mxu0
        %v1544 = vadd.f32 0.0, %v1543
        %v1545 = vpop.f32.mrb[0].mxu0
        %1546 = vmatprep.mubr.f32.mxu0 0.0
        %1547 = vmatmul.mubr.f32.gmra.mrb[0].mxu0 %v1341
        %v1548 = vpop.f32.mrb[0].mxu0
        %v1549 = vadd.f32 0.0, %v1548
        %v1550 = vpop.f32.mrb[0].mxu0
        %1551 = vmatprep.mubr.f32.mxu0 0.0
        %1552 = vmatmul.mubr.f32.gmra.mrb[0].mxu0 %v1344
        %v1553 = vpop.f32.mrb[0].mxu0
        %v1554 = vadd.f32 0.0, %v1553
        %v1555 = vpop.f32.mrb[0].mxu0
        %1556 = vmatprep.mubr.f32.mxu0 0.0
        %1557 = vmatmul.mubr.f32.gmra.mrb[0].mxu0 %v1347
        %v1558 = vpop.f32.mrb[0].mxu0
        %v1559 = vadd.f32 0.0, %v1558
        %v1560 = vpop.f32.mrb[0].mxu0
        %1561 = vmatprep.mubr.f32.mxu0 0.0
        %1562 = vmatmul.mubr.f32.gmra.mrb[0].mxu0 %v1350
        %v1563 = vpop.f32.mrb[0].mxu0
        %v1564 = vadd.f32 0.0, %v1563
        %v1565 = vpop.f32.mrb[0].mxu0
        %1566 = vmatprep.mubr.f32.mxu0 0.0
        %1567 = vmatmul.mubr.f32.gmra.mrb[0].mxu0 %v1353
        %v1568 = vpop.f32.mrb[0].mxu0
        %v1569 = vadd.f32 0.0, %v1568
        %v1570 = vpop.f32.mrb[0].mxu0
        %1571 = vmatprep.mubr.f32.mxu0 0.0
        %1572 = vmatmul.mubr.f32.gmra.mrb[0].mxu0 %v1356
        %v1573 = vpop.f32.mrb[0].mxu0
        %v1574 = vadd.f32 0.0, %v1573
        %v1575 = vpop.f32.mrb[0].mxu0
        %1576 = vmatprep.mubr.f32.mxu0 0.0
        %1577 = vmatmul.mubr.f32.gmra.mrb[0].mxu0 %v1359
        %v1578 = vpop.f32.mrb[0].mxu0
        %v1579 = vadd.f32 0.0, %v1578
        %v1580 = vpop.f32.mrb[0].mxu0
        %1581 = vmatprep.mubr.f32.mxu0 0.0
        %1582 = vmatmul.mubr.f32.gmra.mrb[0].mxu0 %v1362
        %v1583 = vpop.f32.mrb[0].mxu0
        %v1584 = vadd.f32 0.0, %v1583
        %v1585 = vpop.f32.mrb[0].mxu0
        %1586 = vmatprep.mubr.f32.mxu0 0.0
        %1587 = vmatmul.mubr.f32.gmra.mrb[0].mxu0 %v1365
        %v1588 = vpop.f32.mrb[0].mxu0
        %v1589 = vadd.f32 0.0, %v1588
        %v1590 = vpop.f32.mrb[0].mxu0
        %1591 = vdwg.mxu0
        %v1593 = vsel %vm1143, %v1198, 0
        %v1596 = vsel %vm1143, %v1199, 0
        %v1599 = vsel %vm1143, %v1200, 0
        %v1602 = vsel %vm1143, %v1201, 0
        %v1605 = vsel %vm1143, %v1202, 0
        %v1608 = vsel %vm1143, %v1203, 0
        %v1611 = vsel %vm1143, %v1204, 0
        %v1614 = vsel %vm1143, %v1205, 0
        %v1617 = vsel %vm1143, %v1206, 0
        %v1620 = vsel %vm1143, %v1207, 0
        %v1623 = vsel %vm1143, %v1208, 0
        %v1626 = vsel %vm1143, %v1209, 0
        %v1629 = vsel %vm1143, %v1210, 0
        %v1632 = vsel %vm1143, %v1211, 0
        %v1635 = vsel %vm1143, %v1212, 0
        %v1638 = vsel %vm1143, %v1213, 0
        %v1641 = vsel %vm1143, %v1214, 0
        %v1644 = vsel %vm1143, %v1215, 0
        %v1647 = vsel %vm1143, %v1216, 0
        %v1650 = vsel %vm1143, %v1217, 0
        %v1653 = vsel %vm1143, %v1218, 0
        %v1656 = vsel %vm1143, %v1219, 0
        %v1659 = vsel %vm1143, %v1220, 0
        %v1662 = vsel %vm1143, %v1221, 0
        %v1665 = vsel %vm1143, %v1222, 0
        %v1668 = vsel %vm1143, %v1223, 0
        %v1671 = vsel %vm1143, %v1224, 0
        %v1674 = vsel %vm1143, %v1225, 0
        %v1677 = vsel %vm1143, %v1226, 0
        %v1680 = vsel %vm1143, %v1227, 0
        %v1683 = vsel %vm1143, %v1228, 0
        %v1686 = vsel %vm1143, %v1229, 0
        %1688 = vmatprep.subr.mxu0 0.0
        %1689 = vmatpush1.msra.mxu0 %v1230
        %1690 = vmatprep.subr.mxu0 0.0
        %1691 = vmatpush1.msra.mxu0 %v1231
        %1692 = vmatprep.subr.mxu0 0.0
        %1693 = vmatpush1.msra.mxu0 %v1232
        %1694 = vmatprep.subr.mxu0 0.0
        %1695 = vmatpush1.msra.mxu0 %v1233
        %1696 = vmatprep.subr.mxu0 0.0
        %1697 = vmatpush1.msra.mxu0 0.0
        %1698 = vmatprep.subr.mxu0 0.0
        %1699 = vmatpush1.msra.mxu0 0.0
        %1700 = vmatprep.subr.mxu0 0.0
        %1701 = vmatpush1.msra.mxu0 0.0
        %1702 = vmatprep.subr.mxu0 0.0
        %1703 = vmatpush1.msra.mxu0 0.0
        %1704 = vmatprep.subr.mxu0 0.0
        %1705 = vmatpush1.msra.mxu0 0.0
        %1706 = vmatprep.subr.mxu0 0.0
        %1707 = vmatpush1.msra.mxu0 0.0
        %1708 = vmatprep.subr.mxu0 0.0
        %1709 = vmatpush1.msra.mxu0 0.0
        %1710 = vmatprep.subr.mxu0 0.0
        %1711 = vmatpush1.msra.mxu0 0.0
        %1712 = vmatprep.subr.mxu0 0.0
        %1713 = vmatpush1.msra.mxu0 0.0
        %1714 = vmatprep.subr.mxu0 0.0
        %1715 = vmatpush1.msra.mxu0 0.0
        %1716 = vmatprep.subr.mxu0 0.0
        %1717 = vmatpush1.msra.mxu0 0.0
        %1718 = vmatprep.subr.mxu0 0.0
        %1719 = vmatpush1.msra.mxu0 0.0
        %1720 = vmatprep.subr.mxu0 0.0
        %1721 = vmatpush1.msra.mxu0 0.0
        %1722 = vmatprep.subr.mxu0 0.0
        %1723 = vmatpush1.msra.mxu0 0.0
        %1724 = vmatprep.subr.mxu0 0.0
        %1725 = vmatpush1.msra.mxu0 0.0
        %1726 = vmatprep.subr.mxu0 0.0
        %1727 = vmatpush1.msra.mxu0 0.0
        %1728 = vmatprep.subr.mxu0 0.0
        %1729 = vmatpush1.msra.mxu0 0.0
        %1730 = vmatprep.subr.mxu0 0.0
        %1731 = vmatpush1.msra.mxu0 0.0
        %1732 = vmatprep.subr.mxu0 0.0
        %1733 = vmatpush1.msra.mxu0 0.0
        %1734 = vmatprep.subr.mxu0 0.0
        %1735 = vmatpush1.msra.mxu0 0.0
        %1736 = vmatprep.subr.mxu0 0.0
        %1737 = vmatpush1.msra.mxu0 0.0
        %1738 = vmatprep.subr.mxu0 0.0
        %1739 = vmatpush1.msra.mxu0 0.0
        %1740 = vmatprep.subr.mxu0 0.0
        %1741 = vmatpush1.msra.mxu0 0.0
        %1742 = vmatprep.subr.mxu0 0.0
        %1743 = vmatpush1.msra.mxu0 0.0
        %1744 = vmatprep.subr.mxu0 0.0
        %1745 = vmatpush1.msra.mxu0 0.0
        %1746 = vmatprep.subr.mxu0 0.0
        %1747 = vmatpush1.msra.mxu0 0.0
        %1748 = vmatprep.subr.mxu0 0.0
        %1749 = vmatpush1.msra.mxu0 0.0
        %1750 = vmatprep.subr.mxu0 0.0
        %1751 = vmatpush1.msra.mxu0 0.0
        %1752 = vmatprep.mubr.f32.mxu0 0.0
        %1753 = vmatmul.mubr.f32.gmra.mrb[0].mxu0 %v1593
        %v1754 = vpop.f32.mrb[0].mxu0
        %v1755 = vadd.f32 %v1434, %v1754
        %v1756 = vpop.f32.mrb[0].mxu0
        %1757 = vmatprep.mubr.f32.mxu0 0.0
        %1758 = vmatmul.mubr.f32.gmra.mrb[0].mxu0 %v1596
        %v1759 = vpop.f32.mrb[0].mxu0
        %v1760 = vadd.f32 %v1439, %v1759
        %v1761 = vpop.f32.mrb[0].mxu0
        %1762 = vmatprep.mubr.f32.mxu0 0.0
        %1763 = vmatmul.mubr.f32.gmra.mrb[0].mxu0 %v1599
        %v1764 = vpop.f32.mrb[0].mxu0
        %v1765 = vadd.f32 %v1444, %v1764
        %v1766 = vpop.f32.mrb[0].mxu0
        %1767 = vmatprep.mubr.f32.mxu0 0.0
        %1768 = vmatmul.mubr.f32.gmra.mrb[0].mxu0 %v1602
        %v1769 = vpop.f32.mrb[0].mxu0
        %v1770 = vadd.f32 %v1449, %v1769
        %v1771 = vpop.f32.mrb[0].mxu0
        %1772 = vmatprep.mubr.f32.mxu0 0.0
        %1773 = vmatmul.mubr.f32.gmra.mrb[0].mxu0 %v1605
        %v1774 = vpop.f32.mrb[0].mxu0
        %v1775 = vadd.f32 %v1454, %v1774
        %v1776 = vpop.f32.mrb[0].mxu0
        %1777 = vmatprep.mubr.f32.mxu0 0.0
        %1778 = vmatmul.mubr.f32.gmra.mrb[0].mxu0 %v1608
        %v1779 = vpop.f32.mrb[0].mxu0
        %v1780 = vadd.f32 %v1459, %v1779
        %v1781 = vpop.f32.mrb[0].mxu0
        %1782 = vmatprep.mubr.f32.mxu0 0.0
        %1783 = vmatmul.mubr.f32.gmra.mrb[0].mxu0 %v1611
        %v1784 = vpop.f32.mrb[0].mxu0
        %v1785 = vadd.f32 %v1464, %v1784
        %v1786 = vpop.f32.mrb[0].mxu0
        %1787 = vmatprep.mubr.f32.mxu0 0.0
        %1788 = vmatmul.mubr.f32.gmra.mrb[0].mxu0 %v1614
        %v1789 = vpop.f32.mrb[0].mxu0
        %v1790 = vadd.f32 %v1469, %v1789
        %v1791 = vpop.f32.mrb[0].mxu0
        %1792 = vmatprep.mubr.f32.mxu0 0.0
        %1793 = vmatmul.mubr.f32.gmra.mrb[0].mxu0 %v1617
        %v1794 = vpop.f32.mrb[0].mxu0
        %v1795 = vadd.f32 %v1474, %v1794
        %v1796 = vpop.f32.mrb[0].mxu0
        %1797 = vmatprep.mubr.f32.mxu0 0.0
        %1798 = vmatmul.mubr.f32.gmra.mrb[0].mxu0 %v1620
        %v1799 = vpop.f32.mrb[0].mxu0
        %v1800 = vadd.f32 %v1479, %v1799
        %v1801 = vpop.f32.mrb[0].mxu0
        %1802 = vmatprep.mubr.f32.mxu0 0.0
        %1803 = vmatmul.mubr.f32.gmra.mrb[0].mxu0 %v1623
        %v1804 = vpop.f32.mrb[0].mxu0
        %v1805 = vadd.f32 %v1484, %v1804
        %v1806 = vpop.f32.mrb[0].mxu0
        %1807 = vmatprep.mubr.f32.mxu0 0.0
        %1808 = vmatmul.mubr.f32.gmra.mrb[0].mxu0 %v1626
        %v1809 = vpop.f32.mrb[0].mxu0
        %v1810 = vadd.f32 %v1489, %v1809
        %v1811 = vpop.f32.mrb[0].mxu0
        %1812 = vmatprep.mubr.f32.mxu0 0.0
        %1813 = vmatmul.mubr.f32.gmra.mrb[0].mxu0 %v1629
        %v1814 = vpop.f32.mrb[0].mxu0
        %v1815 = vadd.f32 %v1494, %v1814
        %v1816 = vpop.f32.mrb[0].mxu0
        %1817 = vmatprep.mubr.f32.mxu0 0.0
        %1818 = vmatmul.mubr.f32.gmra.mrb[0].mxu0 %v1632
        %v1819 = vpop.f32.mrb[0].mxu0
        %v1820 = vadd.f32 %v1499, %v1819
        %v1821 = vpop.f32.mrb[0].mxu0
        %1822 = vmatprep.mubr.f32.mxu0 0.0
        %1823 = vmatmul.mubr.f32.gmra.mrb[0].mxu0 %v1635
        %v1824 = vpop.f32.mrb[0].mxu0
        %v1825 = vadd.f32 %v1504, %v1824
        %v1826 = vpop.f32.mrb[0].mxu0
        %1827 = vmatprep.mubr.f32.mxu0 0.0
        %1828 = vmatmul.mubr.f32.gmra.mrb[0].mxu0 %v1638
        %v1829 = vpop.f32.mrb[0].mxu0
        %v1830 = vadd.f32 %v1509, %v1829
        %v1831 = vpop.f32.mrb[0].mxu0
        %1832 = vmatprep.mubr.f32.mxu0 0.0
        %1833 = vmatmul.mubr.f32.gmra.mrb[0].mxu0 %v1641
        %v1834 = vpop.f32.mrb[0].mxu0
        %v1835 = vadd.f32 %v1514, %v1834
        %v1836 = vpop.f32.mrb[0].mxu0
        %1837 = vmatprep.mubr.f32.mxu0 0.0
        %1838 = vmatmul.mubr.f32.gmra.mrb[0].mxu0 %v1644
        %v1839 = vpop.f32.mrb[0].mxu0
        %v1840 = vadd.f32 %v1519, %v1839
        %v1841 = vpop.f32.mrb[0].mxu0
        %1842 = vmatprep.mubr.f32.mxu0 0.0
        %1843 = vmatmul.mubr.f32.gmra.mrb[0].mxu0 %v1647
        %v1844 = vpop.f32.mrb[0].mxu0
        %v1845 = vadd.f32 %v1524, %v1844
        %v1846 = vpop.f32.mrb[0].mxu0
        %1847 = vmatprep.mubr.f32.mxu0 0.0
        %1848 = vmatmul.mubr.f32.gmra.mrb[0].mxu0 %v1650
        %v1849 = vpop.f32.mrb[0].mxu0
        %v1850 = vadd.f32 %v1529, %v1849
        %v1851 = vpop.f32.mrb[0].mxu0
        %1852 = vmatprep.mubr.f32.mxu0 0.0
        %1853 = vmatmul.mubr.f32.gmra.mrb[0].mxu0 %v1653
        %v1854 = vpop.f32.mrb[0].mxu0
        %v1855 = vadd.f32 %v1534, %v1854
        %v1856 = vpop.f32.mrb[0].mxu0
        %1857 = vmatprep.mubr.f32.mxu0 0.0
        %1858 = vmatmul.mubr.f32.gmra.mrb[0].mxu0 %v1656
        %v1859 = vpop.f32.mrb[0].mxu0
        %v1860 = vadd.f32 %v1539, %v1859
        %v1861 = vpop.f32.mrb[0].mxu0
        %1862 = vmatprep.mubr.f32.mxu0 0.0
        %1863 = vmatmul.mubr.f32.gmra.mrb[0].mxu0 %v1659
        %v1864 = vpop.f32.mrb[0].mxu0
        %v1865 = vadd.f32 %v1544, %v1864
        %v1866 = vpop.f32.mrb[0].mxu0
        %1867 = vmatprep.mubr.f32.mxu0 0.0
        %1868 = vmatmul.mubr.f32.gmra.mrb[0].mxu0 %v1662
        %v1869 = vpop.f32.mrb[0].mxu0
        %v1870 = vadd.f32 %v1549, %v1869
        %v1871 = vpop.f32.mrb[0].mxu0
        %1872 = vmatprep.mubr.f32.mxu0 0.0
        %1873 = vmatmul.mubr.f32.gmra.mrb[0].mxu0 %v1665
        %v1874 = vpop.f32.mrb[0].mxu0
        %v1875 = vadd.f32 %v1554, %v1874
        %v1876 = vpop.f32.mrb[0].mxu0
        %1877 = vmatprep.mubr.f32.mxu0 0.0
        %1878 = vmatmul.mubr.f32.gmra.mrb[0].mxu0 %v1668
        %v1879 = vpop.f32.mrb[0].mxu0
        %v1880 = vadd.f32 %v1559, %v1879
        %v1881 = vpop.f32.mrb[0].mxu0
        %1882 = vmatprep.mubr.f32.mxu0 0.0
        %1883 = vmatmul.mubr.f32.gmra.mrb[0].mxu0 %v1671
        %v1884 = vpop.f32.mrb[0].mxu0
        %v1885 = vadd.f32 %v1564, %v1884
        %v1886 = vpop.f32.mrb[0].mxu0
        %1887 = vmatprep.mubr.f32.mxu0 0.0
        %1888 = vmatmul.mubr.f32.gmra.mrb[0].mxu0 %v1674
        %v1889 = vpop.f32.mrb[0].mxu0
        %v1890 = vadd.f32 %v1569, %v1889
        %v1891 = vpop.f32.mrb[0].mxu0
        %1892 = vmatprep.mubr.f32.mxu0 0.0
        %1893 = vmatmul.mubr.f32.gmra.mrb[0].mxu0 %v1677
        %v1894 = vpop.f32.mrb[0].mxu0
        %v1895 = vadd.f32 %v1574, %v1894
        %v1896 = vpop.f32.mrb[0].mxu0
        %1897 = vmatprep.mubr.f32.mxu0 0.0
        %1898 = vmatmul.mubr.f32.gmra.mrb[0].mxu0 %v1680
        %v1899 = vpop.f32.mrb[0].mxu0
        %v1900 = vadd.f32 %v1579, %v1899
        %v1901 = vpop.f32.mrb[0].mxu0
        %1902 = vmatprep.mubr.f32.mxu0 0.0
        %1903 = vmatmul.mubr.f32.gmra.mrb[0].mxu0 %v1683
        %v1904 = vpop.f32.mrb[0].mxu0
        %v1905 = vadd.f32 %v1584, %v1904
        %v1906 = vpop.f32.mrb[0].mxu0
        %1907 = vmatprep.mubr.f32.mxu0 0.0
        %1908 = vmatmul.mubr.f32.gmra.mrb[0].mxu0 %v1686
        %v1909 = vpop.f32.mrb[0].mxu0
        %v1910 = vadd.f32 %v1589, %v1909
        %v1911 = vpop.f32.mrb[0].mxu0
        %1912 = vdwg.mxu0
        %v1913 = vld [vmem:[#allocation2 + $0x2] sm:$0xff]
        %v1914 = vld [vmem:[#allocation2 + $0xa] sm:$0xff]
        %v1915 = vld [vmem:[#allocation2 + $0x1a] sm:$0xff]
        %v1916 = vld [vmem:[#allocation2 + $0x22] sm:$0xff]
        %v1917 = vld [vmem:[#allocation2 + $0x32] sm:$0xff]
        %v1918 = vld [vmem:[#allocation2 + $0x3a] sm:$0xff]
        %v1919 = vld [vmem:[#allocation2 + $0x4a] sm:$0xff]
        %v1920 = vld [vmem:[#allocation2 + $0x52] sm:$0xff]
        %v1921 = vld [vmem:[#allocation2 + $0x62] sm:$0xff]
        %v1922 = vld [vmem:[#allocation2 + $0x6a] sm:$0xff]
        %v1923 = vld [vmem:[#allocation2 + $0x7a] sm:$0xff]
        %v1924 = vld [vmem:[#allocation2 + $0x82] sm:$0xff]
        %v1925 = vld [vmem:[#allocation2 + $0x92] sm:$0xff]
        %v1926 = vld [vmem:[#allocation2 + $0x9a] sm:$0xff]
        %v1927 = vld [vmem:[#allocation2 + $0xaa] sm:$0xff]
        %v1928 = vld [vmem:[#allocation2 + $0xb2] sm:$0xff]
        %v1929 = vld [vmem:[#allocation2 + $0xc2] sm:$0xff]
        %v1930 = vld [vmem:[#allocation2 + $0xca] sm:$0xff]
        %v1931 = vld [vmem:[#allocation2 + $0xda] sm:$0xff]
        %v1932 = vld [vmem:[#allocation2 + $0xe2] sm:$0xff]
        %v1933 = vld [vmem:[#allocation2 + $0xf2] sm:$0xff]
        %v1934 = vld [vmem:[#allocation2 + $0xfa] sm:$0xff]
        %v1935 = vld [vmem:[#allocation2 + $0x10a] sm:$0xff]
        %v1936 = vld [vmem:[#allocation2 + $0x112] sm:$0xff]
        %v1937 = vld [vmem:[#allocation2 + $0x122] sm:$0xff]
        %v1938 = vld [vmem:[#allocation2 + $0x12a] sm:$0xff]
        %v1939 = vld [vmem:[#allocation2 + $0x13a] sm:$0xff]
        %v1940 = vld [vmem:[#allocation2 + $0x142] sm:$0xff]
        %v1941 = vld [vmem:[#allocation2 + $0x152] sm:$0xff]
        %v1942 = vld [vmem:[#allocation2 + $0x15a] sm:$0xff]
        %v1943 = vld [vmem:[#allocation2 + $0x16a] sm:$0xff]
        %v1944 = vld [vmem:[#allocation2 + $0x172] sm:$0xff]
        %s1945 = scalar_lea.vmem %s3, 64
        %v1946 = vld [vmem:[%s1945] sm:$0xff]
        %v1947 = vld [vmem:[%s1945 + $0x8] sm:$0xff]
        %v1948 = vld [vmem:[%s1945 + $0x10] sm:$0xff]
        %v1949 = vld [vmem:[%s1945 + $0x18] sm:$0xff]
        %v1951 = vsel %vm1143, %v1913, 0
        %v1954 = vsel %vm1143, %v1914, 0
        %v1957 = vsel %vm1143, %v1915, 0
        %v1960 = vsel %vm1143, %v1916, 0
        %v1963 = vsel %vm1143, %v1917, 0
        %v1966 = vsel %vm1143, %v1918, 0
        %v1969 = vsel %vm1143, %v1919, 0
        %v1972 = vsel %vm1143, %v1920, 0
        %v1975 = vsel %vm1143, %v1921, 0
        %v1978 = vsel %vm1143, %v1922, 0
        %v1981 = vsel %vm1143, %v1923, 0
        %v1984 = vsel %vm1143, %v1924, 0
        %v1987 = vsel %vm1143, %v1925, 0
        %v1990 = vsel %vm1143, %v1926, 0
        %v1993 = vsel %vm1143, %v1927, 0
        %v1996 = vsel %vm1143, %v1928, 0
        %v1999 = vsel %vm1143, %v1929, 0
        %v2002 = vsel %vm1143, %v1930, 0
        %v2005 = vsel %vm1143, %v1931, 0
        %v2008 = vsel %vm1143, %v1932, 0
        %v2011 = vsel %vm1143, %v1933, 0
        %v2014 = vsel %vm1143, %v1934, 0
        %v2017 = vsel %vm1143, %v1935, 0
        %v2020 = vsel %vm1143, %v1936, 0
        %v2023 = vsel %vm1143, %v1937, 0
        %v2026 = vsel %vm1143, %v1938, 0
        %v2029 = vsel %vm1143, %v1939, 0
        %v2032 = vsel %vm1143, %v1940, 0
        %v2035 = vsel %vm1143, %v1941, 0
        %v2038 = vsel %vm1143, %v1942, 0
        %v2041 = vsel %vm1143, %v1943, 0
        %v2044 = vsel %vm1143, %v1944, 0
        %2046 = vmatprep.subr.mxu0 0.0
        %2047 = vmatpush1.msra.mxu0 %v1946
        %2048 = vmatprep.subr.mxu0 0.0
        %2049 = vmatpush1.msra.mxu0 %v1947
        %2050 = vmatprep.subr.mxu0 0.0
        %2051 = vmatpush1.msra.mxu0 %v1948
        %2052 = vmatprep.subr.mxu0 0.0
        %2053 = vmatpush1.msra.mxu0 %v1949
        %2054 = vmatprep.subr.mxu0 0.0
        %2055 = vmatpush1.msra.mxu0 0.0
        %2056 = vmatprep.subr.mxu0 0.0
        %2057 = vmatpush1.msra.mxu0 0.0
        %2058 = vmatprep.subr.mxu0 0.0
        %2059 = vmatpush1.msra.mxu0 0.0
        %2060 = vmatprep.subr.mxu0 0.0
        %2061 = vmatpush1.msra.mxu0 0.0
        %2062 = vmatprep.subr.mxu0 0.0
        %2063 = vmatpush1.msra.mxu0 0.0
        %2064 = vmatprep.subr.mxu0 0.0
        %2065 = vmatpush1.msra.mxu0 0.0
        %2066 = vmatprep.subr.mxu0 0.0
        %2067 = vmatpush1.msra.mxu0 0.0
        %2068 = vmatprep.subr.mxu0 0.0
        %2069 = vmatpush1.msra.mxu0 0.0
        %2070 = vmatprep.subr.mxu0 0.0
        %2071 = vmatpush1.msra.mxu0 0.0
        %2072 = vmatprep.subr.mxu0 0.0
        %2073 = vmatpush1.msra.mxu0 0.0
        %2074 = vmatprep.subr.mxu0 0.0
        %2075 = vmatpush1.msra.mxu0 0.0
        %2076 = vmatprep.subr.mxu0 0.0
        %2077 = vmatpush1.msra.mxu0 0.0
        %2078 = vmatprep.subr.mxu0 0.0
        %2079 = vmatpush1.msra.mxu0 0.0
        %2080 = vmatprep.subr.mxu0 0.0
        %2081 = vmatpush1.msra.mxu0 0.0
        %2082 = vmatprep.subr.mxu0 0.0
        %2083 = vmatpush1.msra.mxu0 0.0
        %2084 = vmatprep.subr.mxu0 0.0
        %2085 = vmatpush1.msra.mxu0 0.0
        %2086 = vmatprep.subr.mxu0 0.0
        %2087 = vmatpush1.msra.mxu0 0.0
        %2088 = vmatprep.subr.mxu0 0.0
        %2089 = vmatpush1.msra.mxu0 0.0
        %2090 = vmatprep.subr.mxu0 0.0
        %2091 = vmatpush1.msra.mxu0 0.0
        %2092 = vmatprep.subr.mxu0 0.0
        %2093 = vmatpush1.msra.mxu0 0.0
        %2094 = vmatprep.subr.mxu0 0.0
        %2095 = vmatpush1.msra.mxu0 0.0
        %2096 = vmatprep.subr.mxu0 0.0
        %2097 = vmatpush1.msra.mxu0 0.0
        %2098 = vmatprep.subr.mxu0 0.0
        %2099 = vmatpush1.msra.mxu0 0.0
        %2100 = vmatprep.subr.mxu0 0.0
        %2101 = vmatpush1.msra.mxu0 0.0
        %2102 = vmatprep.subr.mxu0 0.0
        %2103 = vmatpush1.msra.mxu0 0.0
        %2104 = vmatprep.subr.mxu0 0.0
        %2105 = vmatpush1.msra.mxu0 0.0
        %2106 = vmatprep.subr.mxu0 0.0
        %2107 = vmatpush1.msra.mxu0 0.0
        %2108 = vmatprep.subr.mxu0 0.0
        %2109 = vmatpush1.msra.mxu0 0.0
        %2110 = vmatprep.mubr.f32.mxu0 0.0
        %2111 = vmatmul.mubr.f32.gmra.mrb[0].mxu0 %v1951
        %v2112 = vpop.f32.mrb[0].mxu0
        %v2113 = vadd.f32 0.0, %v2112
        %v2114 = vpop.f32.mrb[0].mxu0
        %2115 = vmatprep.mubr.f32.mxu0 0.0
        %2116 = vmatmul.mubr.f32.gmra.mrb[0].mxu0 %v1954
        %v2117 = vpop.f32.mrb[0].mxu0
        %v2118 = vadd.f32 0.0, %v2117
        %v2119 = vpop.f32.mrb[0].mxu0
        %2120 = vmatprep.mubr.f32.mxu0 0.0
        %2121 = vmatmul.mubr.f32.gmra.mrb[0].mxu0 %v1957
        %v2122 = vpop.f32.mrb[0].mxu0
        %v2123 = vadd.f32 0.0, %v2122
        %v2124 = vpop.f32.mrb[0].mxu0
        %2125 = vmatprep.mubr.f32.mxu0 0.0
        %2126 = vmatmul.mubr.f32.gmra.mrb[0].mxu0 %v1960
        %v2127 = vpop.f32.mrb[0].mxu0
        %v2128 = vadd.f32 0.0, %v2127
        %v2129 = vpop.f32.mrb[0].mxu0
        %2130 = vmatprep.mubr.f32.mxu0 0.0
        %2131 = vmatmul.mubr.f32.gmra.mrb[0].mxu0 %v1963
        %v2132 = vpop.f32.mrb[0].mxu0
        %v2133 = vadd.f32 0.0, %v2132
        %v2134 = vpop.f32.mrb[0].mxu0
        %2135 = vmatprep.mubr.f32.mxu0 0.0
        %2136 = vmatmul.mubr.f32.gmra.mrb[0].mxu0 %v1966
        %v2137 = vpop.f32.mrb[0].mxu0
        %v2138 = vadd.f32 0.0, %v2137
        %v2139 = vpop.f32.mrb[0].mxu0
        %2140 = vmatprep.mubr.f32.mxu0 0.0
        %2141 = vmatmul.mubr.f32.gmra.mrb[0].mxu0 %v1969
        %v2142 = vpop.f32.mrb[0].mxu0
        %v2143 = vadd.f32 0.0, %v2142
        %v2144 = vpop.f32.mrb[0].mxu0
        %2145 = vmatprep.mubr.f32.mxu0 0.0
        %2146 = vmatmul.mubr.f32.gmra.mrb[0].mxu0 %v1972
        %v2147 = vpop.f32.mrb[0].mxu0
        %v2148 = vadd.f32 0.0, %v2147
        %v2149 = vpop.f32.mrb[0].mxu0
        %2150 = vmatprep.mubr.f32.mxu0 0.0
        %2151 = vmatmul.mubr.f32.gmra.mrb[0].mxu0 %v1975
        %v2152 = vpop.f32.mrb[0].mxu0
        %v2153 = vadd.f32 0.0, %v2152
        %v2154 = vpop.f32.mrb[0].mxu0
        %2155 = vmatprep.mubr.f32.mxu0 0.0
        %2156 = vmatmul.mubr.f32.gmra.mrb[0].mxu0 %v1978
        %v2157 = vpop.f32.mrb[0].mxu0
        %v2158 = vadd.f32 0.0, %v2157
        %v2159 = vpop.f32.mrb[0].mxu0
        %2160 = vmatprep.mubr.f32.mxu0 0.0
        %2161 = vmatmul.mubr.f32.gmra.mrb[0].mxu0 %v1981
        %v2162 = vpop.f32.mrb[0].mxu0
        %v2163 = vadd.f32 0.0, %v2162
        %v2164 = vpop.f32.mrb[0].mxu0
        %2165 = vmatprep.mubr.f32.mxu0 0.0
        %2166 = vmatmul.mubr.f32.gmra.mrb[0].mxu0 %v1984
        %v2167 = vpop.f32.mrb[0].mxu0
        %v2168 = vadd.f32 0.0, %v2167
        %v2169 = vpop.f32.mrb[0].mxu0
        %2170 = vmatprep.mubr.f32.mxu0 0.0
        %2171 = vmatmul.mubr.f32.gmra.mrb[0].mxu0 %v1987
        %v2172 = vpop.f32.mrb[0].mxu0
        %v2173 = vadd.f32 0.0, %v2172
        %v2174 = vpop.f32.mrb[0].mxu0
        %2175 = vmatprep.mubr.f32.mxu0 0.0
        %2176 = vmatmul.mubr.f32.gmra.mrb[0].mxu0 %v1990
        %v2177 = vpop.f32.mrb[0].mxu0
        %v2178 = vadd.f32 0.0, %v2177
        %v2179 = vpop.f32.mrb[0].mxu0
        %2180 = vmatprep.mubr.f32.mxu0 0.0
        %2181 = vmatmul.mubr.f32.gmra.mrb[0].mxu0 %v1993
        %v2182 = vpop.f32.mrb[0].mxu0
        %v2183 = vadd.f32 0.0, %v2182
        %v2184 = vpop.f32.mrb[0].mxu0
        %2185 = vmatprep.mubr.f32.mxu0 0.0
        %2186 = vmatmul.mubr.f32.gmra.mrb[0].mxu0 %v1996
        %v2187 = vpop.f32.mrb[0].mxu0
        %v2188 = vadd.f32 0.0, %v2187
        %v2189 = vpop.f32.mrb[0].mxu0
        %2190 = vmatprep.mubr.f32.mxu0 0.0
        %2191 = vmatmul.mubr.f32.gmra.mrb[0].mxu0 %v1999
        %v2192 = vpop.f32.mrb[0].mxu0
        %v2193 = vadd.f32 0.0, %v2192
        %v2194 = vpop.f32.mrb[0].mxu0
        %2195 = vmatprep.mubr.f32.mxu0 0.0
        %2196 = vmatmul.mubr.f32.gmra.mrb[0].mxu0 %v2002
        %v2197 = vpop.f32.mrb[0].mxu0
        %v2198 = vadd.f32 0.0, %v2197
        %v2199 = vpop.f32.mrb[0].mxu0
        %2200 = vmatprep.mubr.f32.mxu0 0.0
        %2201 = vmatmul.mubr.f32.gmra.mrb[0].mxu0 %v2005
        %v2202 = vpop.f32.mrb[0].mxu0
        %v2203 = vadd.f32 0.0, %v2202
        %v2204 = vpop.f32.mrb[0].mxu0
        %2205 = vmatprep.mubr.f32.mxu0 0.0
        %2206 = vmatmul.mubr.f32.gmra.mrb[0].mxu0 %v2008
        %v2207 = vpop.f32.mrb[0].mxu0
        %v2208 = vadd.f32 0.0, %v2207
        %v2209 = vpop.f32.mrb[0].mxu0
        %2210 = vmatprep.mubr.f32.mxu0 0.0
        %2211 = vmatmul.mubr.f32.gmra.mrb[0].mxu0 %v2011
        %v2212 = vpop.f32.mrb[0].mxu0
        %v2213 = vadd.f32 0.0, %v2212
        %v2214 = vpop.f32.mrb[0].mxu0
        %2215 = vmatprep.mubr.f32.mxu0 0.0
        %2216 = vmatmul.mubr.f32.gmra.mrb[0].mxu0 %v2014
        %v2217 = vpop.f32.mrb[0].mxu0
        %v2218 = vadd.f32 0.0, %v2217
        %v2219 = vpop.f32.mrb[0].mxu0
        %2220 = vmatprep.mubr.f32.mxu0 0.0
        %2221 = vmatmul.mubr.f32.gmra.mrb[0].mxu0 %v2017
        %v2222 = vpop.f32.mrb[0].mxu0
        %v2223 = vadd.f32 0.0, %v2222
        %v2224 = vpop.f32.mrb[0].mxu0
        %2225 = vmatprep.mubr.f32.mxu0 0.0
        %2226 = vmatmul.mubr.f32.gmra.mrb[0].mxu0 %v2020
        %v2227 = vpop.f32.mrb[0].mxu0
        %v2228 = vadd.f32 0.0, %v2227
        %v2229 = vpop.f32.mrb[0].mxu0
        %2230 = vmatprep.mubr.f32.mxu0 0.0
        %2231 = vmatmul.mubr.f32.gmra.mrb[0].mxu0 %v2023
        %v2232 = vpop.f32.mrb[0].mxu0
        %v2233 = vadd.f32 0.0, %v2232
        %v2234 = vpop.f32.mrb[0].mxu0
        %2235 = vmatprep.mubr.f32.mxu0 0.0
        %2236 = vmatmul.mubr.f32.gmra.mrb[0].mxu0 %v2026
        %v2237 = vpop.f32.mrb[0].mxu0
        %v2238 = vadd.f32 0.0, %v2237
        %v2239 = vpop.f32.mrb[0].mxu0
        %2240 = vmatprep.mubr.f32.mxu0 0.0
        %2241 = vmatmul.mubr.f32.gmra.mrb[0].mxu0 %v2029
        %v2242 = vpop.f32.mrb[0].mxu0
        %v2243 = vadd.f32 0.0, %v2242
        %v2244 = vpop.f32.mrb[0].mxu0
        %2245 = vmatprep.mubr.f32.mxu0 0.0
        %2246 = vmatmul.mubr.f32.gmra.mrb[0].mxu0 %v2032
        %v2247 = vpop.f32.mrb[0].mxu0
        %v2248 = vadd.f32 0.0, %v2247
        %v2249 = vpop.f32.mrb[0].mxu0
        %2250 = vmatprep.mubr.f32.mxu0 0.0
        %2251 = vmatmul.mubr.f32.gmra.mrb[0].mxu0 %v2035
        %v2252 = vpop.f32.mrb[0].mxu0
        %v2253 = vadd.f32 0.0, %v2252
        %v2254 = vpop.f32.mrb[0].mxu0
        %2255 = vmatprep.mubr.f32.mxu0 0.0
        %2256 = vmatmul.mubr.f32.gmra.mrb[0].mxu0 %v2038
        %v2257 = vpop.f32.mrb[0].mxu0
        %v2258 = vadd.f32 0.0, %v2257
        %v2259 = vpop.f32.mrb[0].mxu0
        %2260 = vmatprep.mubr.f32.mxu0 0.0
        %2261 = vmatmul.mubr.f32.gmra.mrb[0].mxu0 %v2041
        %v2262 = vpop.f32.mrb[0].mxu0
        %v2263 = vadd.f32 0.0, %v2262
        %v2264 = vpop.f32.mrb[0].mxu0
        %2265 = vmatprep.mubr.f32.mxu0 0.0
        %2266 = vmatmul.mubr.f32.gmra.mrb[0].mxu0 %v2044
        %v2267 = vpop.f32.mrb[0].mxu0
        %v2268 = vadd.f32 0.0, %v2267
        %v2269 = vpop.f32.mrb[0].mxu0
        %2270 = vdwg.mxu0
        %v2271 = vadd.f32 %v1755, %v2113
        %v2272 = vadd.f32 %v1760, %v2118
        %v2273 = vadd.f32 %v1765, %v2123
        %v2274 = vadd.f32 %v1770, %v2128
        %v2275 = vadd.f32 %v1775, %v2133
        %v2276 = vadd.f32 %v1780, %v2138
        %v2277 = vadd.f32 %v1785, %v2143
        %v2278 = vadd.f32 %v1790, %v2148
        %v2279 = vadd.f32 %v1795, %v2153
        %v2280 = vadd.f32 %v1800, %v2158
        %v2281 = vadd.f32 %v1805, %v2163
        %v2282 = vadd.f32 %v1810, %v2168
        %v2283 = vadd.f32 %v1815, %v2173
        %v2284 = vadd.f32 %v1820, %v2178
        %v2285 = vadd.f32 %v1825, %v2183
        %v2286 = vadd.f32 %v1830, %v2188
        %v2287 = vadd.f32 %v1835, %v2193
        %v2288 = vadd.f32 %v1840, %v2198
        %v2289 = vadd.f32 %v1845, %v2203
        %v2290 = vadd.f32 %v1850, %v2208
        %v2291 = vadd.f32 %v1855, %v2213
        %v2292 = vadd.f32 %v1860, %v2218
        %v2293 = vadd.f32 %v1865, %v2223
        %v2294 = vadd.f32 %v1870, %v2228
        %v2295 = vadd.f32 %v1875, %v2233
        %v2296 = vadd.f32 %v1880, %v2238
        %v2297 = vadd.f32 %v1885, %v2243
        %v2298 = vadd.f32 %v1890, %v2248
        %v2299 = vadd.f32 %v1895, %v2253
        %v2300 = vadd.f32 %v1900, %v2258
        %v2301 = vadd.f32 %v1905, %v2263
        %v2302 = vadd.f32 %v1910, %v2268
        %s2303 = scalar_lea.vmem [#allocation2], 24
        %v2304 = vld [vmem:[%s2303] sm:$0xff]
        %v2305 = vld [vmem:[%s2303 + $0x8] sm:$0xff]
        %v2306 = vld [vmem:[%s2303 + $0x18] sm:$0xff]
        %v2307 = vld [vmem:[%s2303 + $0x20] sm:$0xff]
        %v2308 = vld [vmem:[%s2303 + $0x30] sm:$0xff]
        %v2309 = vld [vmem:[%s2303 + $0x38] sm:$0xff]
        %v2310 = vld [vmem:[%s2303 + $0x48] sm:$0xff]
        %v2311 = vld [vmem:[%s2303 + $0x50] sm:$0xff]
        %v2312 = vld [vmem:[%s2303 + $0x60] sm:$0xff]
        %v2313 = vld [vmem:[%s2303 + $0x68] sm:$0xff]
        %v2314 = vld [vmem:[%s2303 + $0x78] sm:$0xff]
        %v2315 = vld [vmem:[%s2303 + $0x80] sm:$0xff]
        %v2316 = vld [vmem:[%s2303 + $0x90] sm:$0xff]
        %v2317 = vld [vmem:[%s2303 + $0x98] sm:$0xff]
        %v2318 = vld [vmem:[%s2303 + $0xa8] sm:$0xff]
        %v2319 = vld [vmem:[%s2303 + $0xb0] sm:$0xff]
        %v2320 = vld [vmem:[%s2303 + $0xc0] sm:$0xff]
        %v2321 = vld [vmem:[%s2303 + $0xc8] sm:$0xff]
        %v2322 = vld [vmem:[%s2303 + $0xd8] sm:$0xff]
        %v2323 = vld [vmem:[%s2303 + $0xe0] sm:$0xff]
        %v2324 = vld [vmem:[%s2303 + $0xf0] sm:$0xff]
        %v2325 = vld [vmem:[%s2303 + $0xf8] sm:$0xff]
        %v2326 = vld [vmem:[%s2303 + $0x108] sm:$0xff]
        %v2327 = vld [vmem:[%s2303 + $0x110] sm:$0xff]
        %v2328 = vld [vmem:[%s2303 + $0x120] sm:$0xff]
        %v2329 = vld [vmem:[%s2303 + $0x128] sm:$0xff]
        %v2330 = vld [vmem:[%s2303 + $0x138] sm:$0xff]
        %v2331 = vld [vmem:[%s2303 + $0x140] sm:$0xff]
        %v2332 = vld [vmem:[%s2303 + $0x150] sm:$0xff]
        %v2333 = vld [vmem:[%s2303 + $0x158] sm:$0xff]
        %v2334 = vld [vmem:[%s2303 + $0x168] sm:$0xff]
        %v2335 = vld [vmem:[%s2303 + $0x170] sm:$0xff]
        %s2336 = scalar_lea.vmem %s3, 96
        %v2337 = vld [vmem:[%s2336] sm:$0xff]
        %v2338 = vld [vmem:[%s2336 + $0x8] sm:$0xff]
        %v2339 = vld [vmem:[%s2336 + $0x10] sm:$0xff]
        %v2340 = vld [vmem:[%s2336 + $0x18] sm:$0xff]
        %v2342 = vsel %vm1143, %v2304, 0
        %v2345 = vsel %vm1143, %v2305, 0
        %v2348 = vsel %vm1143, %v2306, 0
        %v2351 = vsel %vm1143, %v2307, 0
        %v2354 = vsel %vm1143, %v2308, 0
        %v2357 = vsel %vm1143, %v2309, 0
        %v2360 = vsel %vm1143, %v2310, 0
        %v2363 = vsel %vm1143, %v2311, 0
        %v2366 = vsel %vm1143, %v2312, 0
        %v2369 = vsel %vm1143, %v2313, 0
        %v2372 = vsel %vm1143, %v2314, 0
        %v2375 = vsel %vm1143, %v2315, 0
        %v2378 = vsel %vm1143, %v2316, 0
        %v2381 = vsel %vm1143, %v2317, 0
        %v2384 = vsel %vm1143, %v2318, 0
        %v2387 = vsel %vm1143, %v2319, 0
        %v2390 = vsel %vm1143, %v2320, 0
        %v2393 = vsel %vm1143, %v2321, 0
        %v2396 = vsel %vm1143, %v2322, 0
        %v2399 = vsel %vm1143, %v2323, 0
        %v2402 = vsel %vm1143, %v2324, 0
        %v2405 = vsel %vm1143, %v2325, 0
        %v2408 = vsel %vm1143, %v2326, 0
        %v2411 = vsel %vm1143, %v2327, 0
        %v2414 = vsel %vm1143, %v2328, 0
        %v2417 = vsel %vm1143, %v2329, 0
        %v2420 = vsel %vm1143, %v2330, 0
        %v2423 = vsel %vm1143, %v2331, 0
        %v2426 = vsel %vm1143, %v2332, 0
        %v2429 = vsel %vm1143, %v2333, 0
        %v2432 = vsel %vm1143, %v2334, 0
        %v2435 = vsel %vm1143, %v2335, 0
        %2437 = vmatprep.subr.mxu0 0.0
        %2438 = vmatpush1.msra.mxu0 %v2337
        %2439 = vmatprep.subr.mxu0 0.0
        %2440 = vmatpush1.msra.mxu0 %v2338
        %2441 = vmatprep.subr.mxu0 0.0
        %2442 = vmatpush1.msra.mxu0 %v2339
        %2443 = vmatprep.subr.mxu0 0.0
        %2444 = vmatpush1.msra.mxu0 %v2340
        %2445 = vmatprep.subr.mxu0 0.0
        %2446 = vmatpush1.msra.mxu0 0.0
        %2447 = vmatprep.subr.mxu0 0.0
        %2448 = vmatpush1.msra.mxu0 0.0
        %2449 = vmatprep.subr.mxu0 0.0
        %2450 = vmatpush1.msra.mxu0 0.0
        %2451 = vmatprep.subr.mxu0 0.0
        %2452 = vmatpush1.msra.mxu0 0.0
        %2453 = vmatprep.subr.mxu0 0.0
        %2454 = vmatpush1.msra.mxu0 0.0
        %2455 = vmatprep.subr.mxu0 0.0
        %2456 = vmatpush1.msra.mxu0 0.0
        %2457 = vmatprep.subr.mxu0 0.0
        %2458 = vmatpush1.msra.mxu0 0.0
        %2459 = vmatprep.subr.mxu0 0.0
        %2460 = vmatpush1.msra.mxu0 0.0
        %2461 = vmatprep.subr.mxu0 0.0
        %2462 = vmatpush1.msra.mxu0 0.0
        %2463 = vmatprep.subr.mxu0 0.0
        %2464 = vmatpush1.msra.mxu0 0.0
        %2465 = vmatprep.subr.mxu0 0.0
        %2466 = vmatpush1.msra.mxu0 0.0
        %2467 = vmatprep.subr.mxu0 0.0
        %2468 = vmatpush1.msra.mxu0 0.0
        %2469 = vmatprep.subr.mxu0 0.0
        %2470 = vmatpush1.msra.mxu0 0.0
        %2471 = vmatprep.subr.mxu0 0.0
        %2472 = vmatpush1.msra.mxu0 0.0
        %2473 = vmatprep.subr.mxu0 0.0
        %2474 = vmatpush1.msra.mxu0 0.0
        %2475 = vmatprep.subr.mxu0 0.0
        %2476 = vmatpush1.msra.mxu0 0.0
        %2477 = vmatprep.subr.mxu0 0.0
        %2478 = vmatpush1.msra.mxu0 0.0
        %2479 = vmatprep.subr.mxu0 0.0
        %2480 = vmatpush1.msra.mxu0 0.0
        %2481 = vmatprep.subr.mxu0 0.0
        %2482 = vmatpush1.msra.mxu0 0.0
        %2483 = vmatprep.subr.mxu0 0.0
        %2484 = vmatpush1.msra.mxu0 0.0
        %2485 = vmatprep.subr.mxu0 0.0
        %2486 = vmatpush1.msra.mxu0 0.0
        %2487 = vmatprep.subr.mxu0 0.0
        %2488 = vmatpush1.msra.mxu0 0.0
        %2489 = vmatprep.subr.mxu0 0.0
        %2490 = vmatpush1.msra.mxu0 0.0
        %2491 = vmatprep.subr.mxu0 0.0
        %2492 = vmatpush1.msra.mxu0 0.0
        %2493 = vmatprep.subr.mxu0 0.0
        %2494 = vmatpush1.msra.mxu0 0.0
        %2495 = vmatprep.subr.mxu0 0.0
        %2496 = vmatpush1.msra.mxu0 0.0
        %2497 = vmatprep.subr.mxu0 0.0
        %2498 = vmatpush1.msra.mxu0 0.0
        %2499 = vmatprep.subr.mxu0 0.0
        %2500 = vmatpush1.msra.mxu0 0.0
        %2501 = vmatprep.mubr.f32.mxu0 0.0
        %2502 = vmatmul.mubr.f32.gmra.mrb[0].mxu0 %v2342
        %v2503 = vpop.f32.mrb[0].mxu0
        %v2504 = vadd.f32 0.0, %v2503
        %v2505 = vpop.f32.mrb[0].mxu0
        %2506 = vmatprep.mubr.f32.mxu0 0.0
        %2507 = vmatmul.mubr.f32.gmra.mrb[0].mxu0 %v2345
        %v2508 = vpop.f32.mrb[0].mxu0
        %v2509 = vadd.f32 0.0, %v2508
        %v2510 = vpop.f32.mrb[0].mxu0
        %2511 = vmatprep.mubr.f32.mxu0 0.0
        %2512 = vmatmul.mubr.f32.gmra.mrb[0].mxu0 %v2348
        %v2513 = vpop.f32.mrb[0].mxu0
        %v2514 = vadd.f32 0.0, %v2513
        %v2515 = vpop.f32.mrb[0].mxu0
        %2516 = vmatprep.mubr.f32.mxu0 0.0
        %2517 = vmatmul.mubr.f32.gmra.mrb[0].mxu0 %v2351
        %v2518 = vpop.f32.mrb[0].mxu0
        %v2519 = vadd.f32 0.0, %v2518
        %v2520 = vpop.f32.mrb[0].mxu0
        %2521 = vmatprep.mubr.f32.mxu0 0.0
        %2522 = vmatmul.mubr.f32.gmra.mrb[0].mxu0 %v2354
        %v2523 = vpop.f32.mrb[0].mxu0
        %v2524 = vadd.f32 0.0, %v2523
        %v2525 = vpop.f32.mrb[0].mxu0
        %2526 = vmatprep.mubr.f32.mxu0 0.0
        %2527 = vmatmul.mubr.f32.gmra.mrb[0].mxu0 %v2357
        %v2528 = vpop.f32.mrb[0].mxu0
        %v2529 = vadd.f32 0.0, %v2528
        %v2530 = vpop.f32.mrb[0].mxu0
        %2531 = vmatprep.mubr.f32.mxu0 0.0
        %2532 = vmatmul.mubr.f32.gmra.mrb[0].mxu0 %v2360
        %v2533 = vpop.f32.mrb[0].mxu0
        %v2534 = vadd.f32 0.0, %v2533
        %v2535 = vpop.f32.mrb[0].mxu0
        %2536 = vmatprep.mubr.f32.mxu0 0.0
        %2537 = vmatmul.mubr.f32.gmra.mrb[0].mxu0 %v2363
        %v2538 = vpop.f32.mrb[0].mxu0
        %v2539 = vadd.f32 0.0, %v2538
        %v2540 = vpop.f32.mrb[0].mxu0
        %2541 = vmatprep.mubr.f32.mxu0 0.0
        %2542 = vmatmul.mubr.f32.gmra.mrb[0].mxu0 %v2366
        %v2543 = vpop.f32.mrb[0].mxu0
        %v2544 = vadd.f32 0.0, %v2543
        %v2545 = vpop.f32.mrb[0].mxu0
        %2546 = vmatprep.mubr.f32.mxu0 0.0
        %2547 = vmatmul.mubr.f32.gmra.mrb[0].mxu0 %v2369
        %v2548 = vpop.f32.mrb[0].mxu0
        %v2549 = vadd.f32 0.0, %v2548
        %v2550 = vpop.f32.mrb[0].mxu0
        %2551 = vmatprep.mubr.f32.mxu0 0.0
        %2552 = vmatmul.mubr.f32.gmra.mrb[0].mxu0 %v2372
        %v2553 = vpop.f32.mrb[0].mxu0
        %v2554 = vadd.f32 0.0, %v2553
        %v2555 = vpop.f32.mrb[0].mxu0
        %2556 = vmatprep.mubr.f32.mxu0 0.0
        %2557 = vmatmul.mubr.f32.gmra.mrb[0].mxu0 %v2375
        %v2558 = vpop.f32.mrb[0].mxu0
        %v2559 = vadd.f32 0.0, %v2558
        %v2560 = vpop.f32.mrb[0].mxu0
        %2561 = vmatprep.mubr.f32.mxu0 0.0
        %2562 = vmatmul.mubr.f32.gmra.mrb[0].mxu0 %v2378
        %v2563 = vpop.f32.mrb[0].mxu0
        %v2564 = vadd.f32 0.0, %v2563
        %v2565 = vpop.f32.mrb[0].mxu0
        %2566 = vmatprep.mubr.f32.mxu0 0.0
        %2567 = vmatmul.mubr.f32.gmra.mrb[0].mxu0 %v2381
        %v2568 = vpop.f32.mrb[0].mxu0
        %v2569 = vadd.f32 0.0, %v2568
        %v2570 = vpop.f32.mrb[0].mxu0
        %2571 = vmatprep.mubr.f32.mxu0 0.0
        %2572 = vmatmul.mubr.f32.gmra.mrb[0].mxu0 %v2384
        %v2573 = vpop.f32.mrb[0].mxu0
        %v2574 = vadd.f32 0.0, %v2573
        %v2575 = vpop.f32.mrb[0].mxu0
        %2576 = vmatprep.mubr.f32.mxu0 0.0
        %2577 = vmatmul.mubr.f32.gmra.mrb[0].mxu0 %v2387
        %v2578 = vpop.f32.mrb[0].mxu0
        %v2579 = vadd.f32 0.0, %v2578
        %v2580 = vpop.f32.mrb[0].mxu0
        %2581 = vmatprep.mubr.f32.mxu0 0.0
        %2582 = vmatmul.mubr.f32.gmra.mrb[0].mxu0 %v2390
        %v2583 = vpop.f32.mrb[0].mxu0
        %v2584 = vadd.f32 0.0, %v2583
        %v2585 = vpop.f32.mrb[0].mxu0
        %2586 = vmatprep.mubr.f32.mxu0 0.0
        %2587 = vmatmul.mubr.f32.gmra.mrb[0].mxu0 %v2393
        %v2588 = vpop.f32.mrb[0].mxu0
        %v2589 = vadd.f32 0.0, %v2588
        %v2590 = vpop.f32.mrb[0].mxu0
        %2591 = vmatprep.mubr.f32.mxu0 0.0
        %2592 = vmatmul.mubr.f32.gmra.mrb[0].mxu0 %v2396
        %v2593 = vpop.f32.mrb[0].mxu0
        %v2594 = vadd.f32 0.0, %v2593
        %v2595 = vpop.f32.mrb[0].mxu0
        %2596 = vmatprep.mubr.f32.mxu0 0.0
        %2597 = vmatmul.mubr.f32.gmra.mrb[0].mxu0 %v2399
        %v2598 = vpop.f32.mrb[0].mxu0
        %v2599 = vadd.f32 0.0, %v2598
        %v2600 = vpop.f32.mrb[0].mxu0
        %2601 = vmatprep.mubr.f32.mxu0 0.0
        %2602 = vmatmul.mubr.f32.gmra.mrb[0].mxu0 %v2402
        %v2603 = vpop.f32.mrb[0].mxu0
        %v2604 = vadd.f32 0.0, %v2603
        %v2605 = vpop.f32.mrb[0].mxu0
        %2606 = vmatprep.mubr.f32.mxu0 0.0
        %2607 = vmatmul.mubr.f32.gmra.mrb[0].mxu0 %v2405
        %v2608 = vpop.f32.mrb[0].mxu0
        %v2609 = vadd.f32 0.0, %v2608
        %v2610 = vpop.f32.mrb[0].mxu0
        %2611 = vmatprep.mubr.f32.mxu0 0.0
        %2612 = vmatmul.mubr.f32.gmra.mrb[0].mxu0 %v2408
        %v2613 = vpop.f32.mrb[0].mxu0
        %v2614 = vadd.f32 0.0, %v2613
        %v2615 = vpop.f32.mrb[0].mxu0
        %2616 = vmatprep.mubr.f32.mxu0 0.0
        %2617 = vmatmul.mubr.f32.gmra.mrb[0].mxu0 %v2411
        %v2618 = vpop.f32.mrb[0].mxu0
        %v2619 = vadd.f32 0.0, %v2618
        %v2620 = vpop.f32.mrb[0].mxu0
        %2621 = vmatprep.mubr.f32.mxu0 0.0
        %2622 = vmatmul.mubr.f32.gmra.mrb[0].mxu0 %v2414
        %v2623 = vpop.f32.mrb[0].mxu0
        %v2624 = vadd.f32 0.0, %v2623
        %v2625 = vpop.f32.mrb[0].mxu0
        %2626 = vmatprep.mubr.f32.mxu0 0.0
        %2627 = vmatmul.mubr.f32.gmra.mrb[0].mxu0 %v2417
        %v2628 = vpop.f32.mrb[0].mxu0
        %v2629 = vadd.f32 0.0, %v2628
        %v2630 = vpop.f32.mrb[0].mxu0
        %2631 = vmatprep.mubr.f32.mxu0 0.0
        %2632 = vmatmul.mubr.f32.gmra.mrb[0].mxu0 %v2420
        %v2633 = vpop.f32.mrb[0].mxu0
        %v2634 = vadd.f32 0.0, %v2633
        %v2635 = vpop.f32.mrb[0].mxu0
        %2636 = vmatprep.mubr.f32.mxu0 0.0
        %2637 = vmatmul.mubr.f32.gmra.mrb[0].mxu0 %v2423
        %v2638 = vpop.f32.mrb[0].mxu0
        %v2639 = vadd.f32 0.0, %v2638
        %v2640 = vpop.f32.mrb[0].mxu0
        %2641 = vmatprep.mubr.f32.mxu0 0.0
        %2642 = vmatmul.mubr.f32.gmra.mrb[0].mxu0 %v2426
        %v2643 = vpop.f32.mrb[0].mxu0
        %v2644 = vadd.f32 0.0, %v2643
        %v2645 = vpop.f32.mrb[0].mxu0
        %2646 = vmatprep.mubr.f32.mxu0 0.0
        %2647 = vmatmul.mubr.f32.gmra.mrb[0].mxu0 %v2429
        %v2648 = vpop.f32.mrb[0].mxu0
        %v2649 = vadd.f32 0.0, %v2648
        %v2650 = vpop.f32.mrb[0].mxu0
        %2651 = vmatprep.mubr.f32.mxu0 0.0
        %2652 = vmatmul.mubr.f32.gmra.mrb[0].mxu0 %v2432
        %v2653 = vpop.f32.mrb[0].mxu0
        %v2654 = vadd.f32 0.0, %v2653
        %v2655 = vpop.f32.mrb[0].mxu0
        %2656 = vmatprep.mubr.f32.mxu0 0.0
        %2657 = vmatmul.mubr.f32.gmra.mrb[0].mxu0 %v2435
        %v2658 = vpop.f32.mrb[0].mxu0
        %v2659 = vadd.f32 0.0, %v2658
        %v2660 = vpop.f32.mrb[0].mxu0
        %2661 = vdwg.mxu0
        %v2662 = vadd.f32 %v2271, %v2504
        %v2663 = vadd.f32 %v2272, %v2509
        %v2664 = vadd.f32 %v2273, %v2514
        %v2665 = vadd.f32 %v2274, %v2519
        %v2666 = vadd.f32 %v2275, %v2524
        %v2667 = vadd.f32 %v2276, %v2529
        %v2668 = vadd.f32 %v2277, %v2534
        %v2669 = vadd.f32 %v2278, %v2539
        %v2670 = vadd.f32 %v2279, %v2544
        %v2671 = vadd.f32 %v2280, %v2549
        %v2672 = vadd.f32 %v2281, %v2554
        %v2673 = vadd.f32 %v2282, %v2559
        %v2674 = vadd.f32 %v2283, %v2564
        %v2675 = vadd.f32 %v2284, %v2569
        %v2676 = vadd.f32 %v2285, %v2574
        %v2677 = vadd.f32 %v2286, %v2579
        %v2678 = vadd.f32 %v2287, %v2584
        %v2679 = vadd.f32 %v2288, %v2589
        %v2680 = vadd.f32 %v2289, %v2594
        %v2681 = vadd.f32 %v2290, %v2599
        %v2682 = vadd.f32 %v2291, %v2604
        %v2683 = vadd.f32 %v2292, %v2609
        %v2684 = vadd.f32 %v2293, %v2614
        %v2685 = vadd.f32 %v2294, %v2619
        %v2686 = vadd.f32 %v2295, %v2624
        %v2687 = vadd.f32 %v2296, %v2629
        %v2688 = vadd.f32 %v2297, %v2634
        %v2689 = vadd.f32 %v2298, %v2639
        %v2690 = vadd.f32 %v2299, %v2644
        %v2691 = vadd.f32 %v2300, %v2649
        %v2692 = vadd.f32 %v2301, %v2654
        %v2693 = vadd.f32 %v2302, %v2659
        %v2694 = vld [vmem:[%s2303 + $0x1] sm:$0xff]
        %v2695 = vld [vmem:[%s2303 + $0x9] sm:$0xff]
        %v2696 = vld [vmem:[%s2303 + $0x19] sm:$0xff]
        %v2697 = vld [vmem:[%s2303 + $0x21] sm:$0xff]
        %v2698 = vld [vmem:[%s2303 + $0x31] sm:$0xff]
        %v2699 = vld [vmem:[%s2303 + $0x39] sm:$0xff]
        %v2700 = vld [vmem:[%s2303 + $0x49] sm:$0xff]
        %v2701 = vld [vmem:[%s2303 + $0x51] sm:$0xff]
        %v2702 = vld [vmem:[%s2303 + $0x61] sm:$0xff]
        %v2703 = vld [vmem:[%s2303 + $0x69] sm:$0xff]
        %v2704 = vld [vmem:[%s2303 + $0x79] sm:$0xff]
        %v2705 = vld [vmem:[%s2303 + $0x81] sm:$0xff]
        %v2706 = vld [vmem:[%s2303 + $0x91] sm:$0xff]
        %v2707 = vld [vmem:[%s2303 + $0x99] sm:$0xff]
        %v2708 = vld [vmem:[%s2303 + $0xa9] sm:$0xff]
        %v2709 = vld [vmem:[%s2303 + $0xb1] sm:$0xff]
        %v2710 = vld [vmem:[%s2303 + $0xc1] sm:$0xff]
        %v2711 = vld [vmem:[%s2303 + $0xc9] sm:$0xff]
        %v2712 = vld [vmem:[%s2303 + $0xd9] sm:$0xff]
        %v2713 = vld [vmem:[%s2303 + $0xe1] sm:$0xff]
        %v2714 = vld [vmem:[%s2303 + $0xf1] sm:$0xff]
        %v2715 = vld [vmem:[%s2303 + $0xf9] sm:$0xff]
        %v2716 = vld [vmem:[%s2303 + $0x109] sm:$0xff]
        %v2717 = vld [vmem:[%s2303 + $0x111] sm:$0xff]
        %v2718 = vld [vmem:[%s2303 + $0x121] sm:$0xff]
        %v2719 = vld [vmem:[%s2303 + $0x129] sm:$0xff]
        %v2720 = vld [vmem:[%s2303 + $0x139] sm:$0xff]
        %v2721 = vld [vmem:[%s2303 + $0x141] sm:$0xff]
        %v2722 = vld [vmem:[%s2303 + $0x151] sm:$0xff]
        %v2723 = vld [vmem:[%s2303 + $0x159] sm:$0xff]
        %v2724 = vld [vmem:[%s2303 + $0x169] sm:$0xff]
        %v2725 = vld [vmem:[%s2303 + $0x171] sm:$0xff]
        %s2726 = scalar_lea.vmem %s3, 128
        %v2727 = vld [vmem:[%s2726] sm:$0xff]
        %v2728 = vld [vmem:[%s2726 + $0x8] sm:$0xff]
        %v2729 = vld [vmem:[%s2726 + $0x10] sm:$0xff]
        %v2730 = vld [vmem:[%s2726 + $0x18] sm:$0xff]
        %v2732 = vsel %vm1143, %v2694, 0
        %v2735 = vsel %vm1143, %v2695, 0
        %v2738 = vsel %vm1143, %v2696, 0
        %v2741 = vsel %vm1143, %v2697, 0
        %v2744 = vsel %vm1143, %v2698, 0
        %v2747 = vsel %vm1143, %v2699, 0
        %v2750 = vsel %vm1143, %v2700, 0
        %v2753 = vsel %vm1143, %v2701, 0
        %v2756 = vsel %vm1143, %v2702, 0
        %v2759 = vsel %vm1143, %v2703, 0
        %v2762 = vsel %vm1143, %v2704, 0
        %v2765 = vsel %vm1143, %v2705, 0
        %v2768 = vsel %vm1143, %v2706, 0
        %v2771 = vsel %vm1143, %v2707, 0
        %v2774 = vsel %vm1143, %v2708, 0
        %v2777 = vsel %vm1143, %v2709, 0
        %v2780 = vsel %vm1143, %v2710, 0
        %v2783 = vsel %vm1143, %v2711, 0
        %v2786 = vsel %vm1143, %v2712, 0
        %v2789 = vsel %vm1143, %v2713, 0
        %v2792 = vsel %vm1143, %v2714, 0
        %v2795 = vsel %vm1143, %v2715, 0
        %v2798 = vsel %vm1143, %v2716, 0
        %v2801 = vsel %vm1143, %v2717, 0
        %v2804 = vsel %vm1143, %v2718, 0
        %v2807 = vsel %vm1143, %v2719, 0
        %v2810 = vsel %vm1143, %v2720, 0
        %v2813 = vsel %vm1143, %v2721, 0
        %v2816 = vsel %vm1143, %v2722, 0
        %v2819 = vsel %vm1143, %v2723, 0
        %v2822 = vsel %vm1143, %v2724, 0
        %v2825 = vsel %vm1143, %v2725, 0
        %2827 = vmatprep.subr.mxu0 0.0
        %2828 = vmatpush1.msra.mxu0 %v2727
        %2829 = vmatprep.subr.mxu0 0.0
        %2830 = vmatpush1.msra.mxu0 %v2728
        %2831 = vmatprep.subr.mxu0 0.0
        %2832 = vmatpush1.msra.mxu0 %v2729
        %2833 = vmatprep.subr.mxu0 0.0
        %2834 = vmatpush1.msra.mxu0 %v2730
        %2835 = vmatprep.subr.mxu0 0.0
        %2836 = vmatpush1.msra.mxu0 0.0
        %2837 = vmatprep.subr.mxu0 0.0
        %2838 = vmatpush1.msra.mxu0 0.0
        %2839 = vmatprep.subr.mxu0 0.0
        %2840 = vmatpush1.msra.mxu0 0.0
        %2841 = vmatprep.subr.mxu0 0.0
        %2842 = vmatpush1.msra.mxu0 0.0
        %2843 = vmatprep.subr.mxu0 0.0
        %2844 = vmatpush1.msra.mxu0 0.0
        %2845 = vmatprep.subr.mxu0 0.0
        %2846 = vmatpush1.msra.mxu0 0.0
        %2847 = vmatprep.subr.mxu0 0.0
        %2848 = vmatpush1.msra.mxu0 0.0
        %2849 = vmatprep.subr.mxu0 0.0
        %2850 = vmatpush1.msra.mxu0 0.0
        %2851 = vmatprep.subr.mxu0 0.0
        %2852 = vmatpush1.msra.mxu0 0.0
        %2853 = vmatprep.subr.mxu0 0.0
        %2854 = vmatpush1.msra.mxu0 0.0
        %2855 = vmatprep.subr.mxu0 0.0
        %2856 = vmatpush1.msra.mxu0 0.0
        %2857 = vmatprep.subr.mxu0 0.0
        %2858 = vmatpush1.msra.mxu0 0.0
        %2859 = vmatprep.subr.mxu0 0.0
        %2860 = vmatpush1.msra.mxu0 0.0
        %2861 = vmatprep.subr.mxu0 0.0
        %2862 = vmatpush1.msra.mxu0 0.0
        %2863 = vmatprep.subr.mxu0 0.0
        %2864 = vmatpush1.msra.mxu0 0.0
        %2865 = vmatprep.subr.mxu0 0.0
        %2866 = vmatpush1.msra.mxu0 0.0
        %2867 = vmatprep.subr.mxu0 0.0
        %2868 = vmatpush1.msra.mxu0 0.0
        %2869 = vmatprep.subr.mxu0 0.0
        %2870 = vmatpush1.msra.mxu0 0.0
        %2871 = vmatprep.subr.mxu0 0.0
        %2872 = vmatpush1.msra.mxu0 0.0
        %2873 = vmatprep.subr.mxu0 0.0
        %2874 = vmatpush1.msra.mxu0 0.0
        %2875 = vmatprep.subr.mxu0 0.0
        %2876 = vmatpush1.msra.mxu0 0.0
        %2877 = vmatprep.subr.mxu0 0.0
        %2878 = vmatpush1.msra.mxu0 0.0
        %2879 = vmatprep.subr.mxu0 0.0
        %2880 = vmatpush1.msra.mxu0 0.0
        %2881 = vmatprep.subr.mxu0 0.0
        %2882 = vmatpush1.msra.mxu0 0.0
        %2883 = vmatprep.subr.mxu0 0.0
        %2884 = vmatpush1.msra.mxu0 0.0
        %2885 = vmatprep.subr.mxu0 0.0
        %2886 = vmatpush1.msra.mxu0 0.0
        %2887 = vmatprep.subr.mxu0 0.0
        %2888 = vmatpush1.msra.mxu0 0.0
        %2889 = vmatprep.subr.mxu0 0.0
        %2890 = vmatpush1.msra.mxu0 0.0
        %2891 = vmatprep.mubr.f32.mxu0 0.0
        %2892 = vmatmul.mubr.f32.gmra.mrb[0].mxu0 %v2732
        %v2893 = vpop.f32.mrb[0].mxu0
        %v2894 = vadd.f32 0.0, %v2893
        %v2895 = vpop.f32.mrb[0].mxu0
        %2896 = vmatprep.mubr.f32.mxu0 0.0
        %2897 = vmatmul.mubr.f32.gmra.mrb[0].mxu0 %v2735
        %v2898 = vpop.f32.mrb[0].mxu0
        %v2899 = vadd.f32 0.0, %v2898
        %v2900 = vpop.f32.mrb[0].mxu0
        %2901 = vmatprep.mubr.f32.mxu0 0.0
        %2902 = vmatmul.mubr.f32.gmra.mrb[0].mxu0 %v2738
        %v2903 = vpop.f32.mrb[0].mxu0
        %v2904 = vadd.f32 0.0, %v2903
        %v2905 = vpop.f32.mrb[0].mxu0
        %2906 = vmatprep.mubr.f32.mxu0 0.0
        %2907 = vmatmul.mubr.f32.gmra.mrb[0].mxu0 %v2741
        %v2908 = vpop.f32.mrb[0].mxu0
        %v2909 = vadd.f32 0.0, %v2908
        %v2910 = vpop.f32.mrb[0].mxu0
        %2911 = vmatprep.mubr.f32.mxu0 0.0
        %2912 = vmatmul.mubr.f32.gmra.mrb[0].mxu0 %v2744
        %v2913 = vpop.f32.mrb[0].mxu0
        %v2914 = vadd.f32 0.0, %v2913
        %v2915 = vpop.f32.mrb[0].mxu0
        %2916 = vmatprep.mubr.f32.mxu0 0.0
        %2917 = vmatmul.mubr.f32.gmra.mrb[0].mxu0 %v2747
        %v2918 = vpop.f32.mrb[0].mxu0
        %v2919 = vadd.f32 0.0, %v2918
        %v2920 = vpop.f32.mrb[0].mxu0
        %2921 = vmatprep.mubr.f32.mxu0 0.0
        %2922 = vmatmul.mubr.f32.gmra.mrb[0].mxu0 %v2750
        %v2923 = vpop.f32.mrb[0].mxu0
        %v2924 = vadd.f32 0.0, %v2923
        %v2925 = vpop.f32.mrb[0].mxu0
        %2926 = vmatprep.mubr.f32.mxu0 0.0
        %2927 = vmatmul.mubr.f32.gmra.mrb[0].mxu0 %v2753
        %v2928 = vpop.f32.mrb[0].mxu0
        %v2929 = vadd.f32 0.0, %v2928
        %v2930 = vpop.f32.mrb[0].mxu0
        %2931 = vmatprep.mubr.f32.mxu0 0.0
        %2932 = vmatmul.mubr.f32.gmra.mrb[0].mxu0 %v2756
        %v2933 = vpop.f32.mrb[0].mxu0
        %v2934 = vadd.f32 0.0, %v2933
        %v2935 = vpop.f32.mrb[0].mxu0
        %2936 = vmatprep.mubr.f32.mxu0 0.0
        %2937 = vmatmul.mubr.f32.gmra.mrb[0].mxu0 %v2759
        %v2938 = vpop.f32.mrb[0].mxu0
        %v2939 = vadd.f32 0.0, %v2938
        %v2940 = vpop.f32.mrb[0].mxu0
        %2941 = vmatprep.mubr.f32.mxu0 0.0
        %2942 = vmatmul.mubr.f32.gmra.mrb[0].mxu0 %v2762
        %v2943 = vpop.f32.mrb[0].mxu0
        %v2944 = vadd.f32 0.0, %v2943
        %v2945 = vpop.f32.mrb[0].mxu0
        %2946 = vmatprep.mubr.f32.mxu0 0.0
        %2947 = vmatmul.mubr.f32.gmra.mrb[0].mxu0 %v2765
        %v2948 = vpop.f32.mrb[0].mxu0
        %v2949 = vadd.f32 0.0, %v2948
        %v2950 = vpop.f32.mrb[0].mxu0
        %2951 = vmatprep.mubr.f32.mxu0 0.0
        %2952 = vmatmul.mubr.f32.gmra.mrb[0].mxu0 %v2768
        %v2953 = vpop.f32.mrb[0].mxu0
        %v2954 = vadd.f32 0.0, %v2953
        %v2955 = vpop.f32.mrb[0].mxu0
        %2956 = vmatprep.mubr.f32.mxu0 0.0
        %2957 = vmatmul.mubr.f32.gmra.mrb[0].mxu0 %v2771
        %v2958 = vpop.f32.mrb[0].mxu0
        %v2959 = vadd.f32 0.0, %v2958
        %v2960 = vpop.f32.mrb[0].mxu0
        %2961 = vmatprep.mubr.f32.mxu0 0.0
        %2962 = vmatmul.mubr.f32.gmra.mrb[0].mxu0 %v2774
        %v2963 = vpop.f32.mrb[0].mxu0
        %v2964 = vadd.f32 0.0, %v2963
        %v2965 = vpop.f32.mrb[0].mxu0
        %2966 = vmatprep.mubr.f32.mxu0 0.0
        %2967 = vmatmul.mubr.f32.gmra.mrb[0].mxu0 %v2777
        %v2968 = vpop.f32.mrb[0].mxu0
        %v2969 = vadd.f32 0.0, %v2968
        %v2970 = vpop.f32.mrb[0].mxu0
        %2971 = vmatprep.mubr.f32.mxu0 0.0
        %2972 = vmatmul.mubr.f32.gmra.mrb[0].mxu0 %v2780
        %v2973 = vpop.f32.mrb[0].mxu0
        %v2974 = vadd.f32 0.0, %v2973
        %v2975 = vpop.f32.mrb[0].mxu0
        %2976 = vmatprep.mubr.f32.mxu0 0.0
        %2977 = vmatmul.mubr.f32.gmra.mrb[0].mxu0 %v2783
        %v2978 = vpop.f32.mrb[0].mxu0
        %v2979 = vadd.f32 0.0, %v2978
        %v2980 = vpop.f32.mrb[0].mxu0
        %2981 = vmatprep.mubr.f32.mxu0 0.0
        %2982 = vmatmul.mubr.f32.gmra.mrb[0].mxu0 %v2786
        %v2983 = vpop.f32.mrb[0].mxu0
        %v2984 = vadd.f32 0.0, %v2983
        %v2985 = vpop.f32.mrb[0].mxu0
        %2986 = vmatprep.mubr.f32.mxu0 0.0
        %2987 = vmatmul.mubr.f32.gmra.mrb[0].mxu0 %v2789
        %v2988 = vpop.f32.mrb[0].mxu0
        %v2989 = vadd.f32 0.0, %v2988
        %v2990 = vpop.f32.mrb[0].mxu0
        %2991 = vmatprep.mubr.f32.mxu0 0.0
        %2992 = vmatmul.mubr.f32.gmra.mrb[0].mxu0 %v2792
        %v2993 = vpop.f32.mrb[0].mxu0
        %v2994 = vadd.f32 0.0, %v2993
        %v2995 = vpop.f32.mrb[0].mxu0
        %2996 = vmatprep.mubr.f32.mxu0 0.0
        %2997 = vmatmul.mubr.f32.gmra.mrb[0].mxu0 %v2795
        %v2998 = vpop.f32.mrb[0].mxu0
        %v2999 = vadd.f32 0.0, %v2998
        %v3000 = vpop.f32.mrb[0].mxu0
        %3001 = vmatprep.mubr.f32.mxu0 0.0
        %3002 = vmatmul.mubr.f32.gmra.mrb[0].mxu0 %v2798
        %v3003 = vpop.f32.mrb[0].mxu0
        %v3004 = vadd.f32 0.0, %v3003
        %v3005 = vpop.f32.mrb[0].mxu0
        %3006 = vmatprep.mubr.f32.mxu0 0.0
        %3007 = vmatmul.mubr.f32.gmra.mrb[0].mxu0 %v2801
        %v3008 = vpop.f32.mrb[0].mxu0
        %v3009 = vadd.f32 0.0, %v3008
        %v3010 = vpop.f32.mrb[0].mxu0
        %3011 = vmatprep.mubr.f32.mxu0 0.0
        %3012 = vmatmul.mubr.f32.gmra.mrb[0].mxu0 %v2804
        %v3013 = vpop.f32.mrb[0].mxu0
        %v3014 = vadd.f32 0.0, %v3013
        %v3015 = vpop.f32.mrb[0].mxu0
        %3016 = vmatprep.mubr.f32.mxu0 0.0
        %3017 = vmatmul.mubr.f32.gmra.mrb[0].mxu0 %v2807
        %v3018 = vpop.f32.mrb[0].mxu0
        %v3019 = vadd.f32 0.0, %v3018
        %v3020 = vpop.f32.mrb[0].mxu0
        %3021 = vmatprep.mubr.f32.mxu0 0.0
        %3022 = vmatmul.mubr.f32.gmra.mrb[0].mxu0 %v2810
        %v3023 = vpop.f32.mrb[0].mxu0
        %v3024 = vadd.f32 0.0, %v3023
        %v3025 = vpop.f32.mrb[0].mxu0
        %3026 = vmatprep.mubr.f32.mxu0 0.0
        %3027 = vmatmul.mubr.f32.gmra.mrb[0].mxu0 %v2813
        %v3028 = vpop.f32.mrb[0].mxu0
        %v3029 = vadd.f32 0.0, %v3028
        %v3030 = vpop.f32.mrb[0].mxu0
        %3031 = vmatprep.mubr.f32.mxu0 0.0
        %3032 = vmatmul.mubr.f32.gmra.mrb[0].mxu0 %v2816
        %v3033 = vpop.f32.mrb[0].mxu0
        %v3034 = vadd.f32 0.0, %v3033
        %v3035 = vpop.f32.mrb[0].mxu0
        %3036 = vmatprep.mubr.f32.mxu0 0.0
        %3037 = vmatmul.mubr.f32.gmra.mrb[0].mxu0 %v2819
        %v3038 = vpop.f32.mrb[0].mxu0
        %v3039 = vadd.f32 0.0, %v3038
        %v3040 = vpop.f32.mrb[0].mxu0
        %3041 = vmatprep.mubr.f32.mxu0 0.0
        %3042 = vmatmul.mubr.f32.gmra.mrb[0].mxu0 %v2822
        %v3043 = vpop.f32.mrb[0].mxu0
        %v3044 = vadd.f32 0.0, %v3043
        %v3045 = vpop.f32.mrb[0].mxu0
        %3046 = vmatprep.mubr.f32.mxu0 0.0
        %3047 = vmatmul.mubr.f32.gmra.mrb[0].mxu0 %v2825
        %v3048 = vpop.f32.mrb[0].mxu0
        %v3049 = vadd.f32 0.0, %v3048
        %v3050 = vpop.f32.mrb[0].mxu0
        %3051 = vdwg.mxu0
        %v3052 = vadd.f32 %v2662, %v2894
        %v3053 = vadd.f32 %v2663, %v2899
        %v3054 = vadd.f32 %v2664, %v2904
        %v3055 = vadd.f32 %v2665, %v2909
        %v3056 = vadd.f32 %v2666, %v2914
        %v3057 = vadd.f32 %v2667, %v2919
        %v3058 = vadd.f32 %v2668, %v2924
        %v3059 = vadd.f32 %v2669, %v2929
        %v3060 = vadd.f32 %v2670, %v2934
        %v3061 = vadd.f32 %v2671, %v2939
        %v3062 = vadd.f32 %v2672, %v2944
        %v3063 = vadd.f32 %v2673, %v2949
        %v3064 = vadd.f32 %v2674, %v2954
        %v3065 = vadd.f32 %v2675, %v2959
        %v3066 = vadd.f32 %v2676, %v2964
        %v3067 = vadd.f32 %v2677, %v2969
        %v3068 = vadd.f32 %v2678, %v2974
        %v3069 = vadd.f32 %v2679, %v2979
        %v3070 = vadd.f32 %v2680, %v2984
        %v3071 = vadd.f32 %v2681, %v2989
        %v3072 = vadd.f32 %v2682, %v2994
        %v3073 = vadd.f32 %v2683, %v2999
        %v3074 = vadd.f32 %v2684, %v3004
        %v3075 = vadd.f32 %v2685, %v3009
        %v3076 = vadd.f32 %v2686, %v3014
        %v3077 = vadd.f32 %v2687, %v3019
        %v3078 = vadd.f32 %v2688, %v3024
        %v3079 = vadd.f32 %v2689, %v3029
        %v3080 = vadd.f32 %v2690, %v3034
        %v3081 = vadd.f32 %v2691, %v3039
        %v3082 = vadd.f32 %v2692, %v3044
        %v3083 = vadd.f32 %v2693, %v3049
        %v3084 = vld [vmem:[%s2303 + $0x2] sm:$0xff]
        %v3085 = vld [vmem:[%s2303 + $0xa] sm:$0xff]
        %v3086 = vld [vmem:[%s2303 + $0x1a] sm:$0xff]
        %v3087 = vld [vmem:[%s2303 + $0x22] sm:$0xff]
        %v3088 = vld [vmem:[%s2303 + $0x32] sm:$0xff]
        %v3089 = vld [vmem:[%s2303 + $0x3a] sm:$0xff]
        %v3090 = vld [vmem:[%s2303 + $0x4a] sm:$0xff]
        %v3091 = vld [vmem:[%s2303 + $0x52] sm:$0xff]
        %v3092 = vld [vmem:[%s2303 + $0x62] sm:$0xff]
        %v3093 = vld [vmem:[%s2303 + $0x6a] sm:$0xff]
        %v3094 = vld [vmem:[%s2303 + $0x7a] sm:$0xff]
        %v3095 = vld [vmem:[%s2303 + $0x82] sm:$0xff]
        %v3096 = vld [vmem:[%s2303 + $0x92] sm:$0xff]
        %v3097 = vld [vmem:[%s2303 + $0x9a] sm:$0xff]
        %v3098 = vld [vmem:[%s2303 + $0xaa] sm:$0xff]
        %v3099 = vld [vmem:[%s2303 + $0xb2] sm:$0xff]
        %v3100 = vld [vmem:[%s2303 + $0xc2] sm:$0xff]
        %v3101 = vld [vmem:[%s2303 + $0xca] sm:$0xff]
        %v3102 = vld [vmem:[%s2303 + $0xda] sm:$0xff]
        %v3103 = vld [vmem:[%s2303 + $0xe2] sm:$0xff]
        %v3104 = vld [vmem:[%s2303 + $0xf2] sm:$0xff]
        %v3105 = vld [vmem:[%s2303 + $0xfa] sm:$0xff]
        %v3106 = vld [vmem:[%s2303 + $0x10a] sm:$0xff]
        %v3107 = vld [vmem:[%s2303 + $0x112] sm:$0xff]
        %v3108 = vld [vmem:[%s2303 + $0x122] sm:$0xff]
        %v3109 = vld [vmem:[%s2303 + $0x12a] sm:$0xff]
        %v3110 = vld [vmem:[%s2303 + $0x13a] sm:$0xff]
        %v3111 = vld [vmem:[%s2303 + $0x142] sm:$0xff]
        %v3112 = vld [vmem:[%s2303 + $0x152] sm:$0xff]
        %v3113 = vld [vmem:[%s2303 + $0x15a] sm:$0xff]
        %v3114 = vld [vmem:[%s2303 + $0x16a] sm:$0xff]
        %v3115 = vld [vmem:[%s2303 + $0x172] sm:$0xff]
        %s3116 = scalar_lea.vmem %s3, 160
        %v3117 = vld [vmem:[%s3116] sm:$0xff]
        %v3118 = vld [vmem:[%s3116 + $0x8] sm:$0xff]
        %v3119 = vld [vmem:[%s3116 + $0x10] sm:$0xff]
        %v3120 = vld [vmem:[%s3116 + $0x18] sm:$0xff]
        %v3122 = vsel %vm1143, %v3084, 0
        %v3125 = vsel %vm1143, %v3085, 0
        %v3128 = vsel %vm1143, %v3086, 0
        %v3131 = vsel %vm1143, %v3087, 0
        %v3134 = vsel %vm1143, %v3088, 0
        %v3137 = vsel %vm1143, %v3089, 0
        %v3140 = vsel %vm1143, %v3090, 0
        %v3143 = vsel %vm1143, %v3091, 0
        %v3146 = vsel %vm1143, %v3092, 0
        %v3149 = vsel %vm1143, %v3093, 0
        %v3152 = vsel %vm1143, %v3094, 0
        %v3155 = vsel %vm1143, %v3095, 0
        %v3158 = vsel %vm1143, %v3096, 0
        %v3161 = vsel %vm1143, %v3097, 0
        %v3164 = vsel %vm1143, %v3098, 0
        %v3167 = vsel %vm1143, %v3099, 0
        %v3170 = vsel %vm1143, %v3100, 0
        %v3173 = vsel %vm1143, %v3101, 0
        %v3176 = vsel %vm1143, %v3102, 0
        %v3179 = vsel %vm1143, %v3103, 0
        %v3182 = vsel %vm1143, %v3104, 0
        %v3185 = vsel %vm1143, %v3105, 0
        %v3188 = vsel %vm1143, %v3106, 0
        %v3191 = vsel %vm1143, %v3107, 0
        %v3194 = vsel %vm1143, %v3108, 0
        %v3197 = vsel %vm1143, %v3109, 0
        %v3200 = vsel %vm1143, %v3110, 0
        %v3203 = vsel %vm1143, %v3111, 0
        %v3206 = vsel %vm1143, %v3112, 0
        %v3209 = vsel %vm1143, %v3113, 0
        %v3212 = vsel %vm1143, %v3114, 0
        %v3215 = vsel %vm1143, %v3115, 0
        %3217 = vmatprep.subr.mxu0 0.0
        %3218 = vmatpush1.msra.mxu0 %v3117
        %3219 = vmatprep.subr.mxu0 0.0
        %3220 = vmatpush1.msra.mxu0 %v3118
        %3221 = vmatprep.subr.mxu0 0.0
        %3222 = vmatpush1.msra.mxu0 %v3119
        %3223 = vmatprep.subr.mxu0 0.0
        %3224 = vmatpush1.msra.mxu0 %v3120
        %3225 = vmatprep.subr.mxu0 0.0
        %3226 = vmatpush1.msra.mxu0 0.0
        %3227 = vmatprep.subr.mxu0 0.0
        %3228 = vmatpush1.msra.mxu0 0.0
        %3229 = vmatprep.subr.mxu0 0.0
        %3230 = vmatpush1.msra.mxu0 0.0
        %3231 = vmatprep.subr.mxu0 0.0
        %3232 = vmatpush1.msra.mxu0 0.0
        %3233 = vmatprep.subr.mxu0 0.0
        %3234 = vmatpush1.msra.mxu0 0.0
        %3235 = vmatprep.subr.mxu0 0.0
        %3236 = vmatpush1.msra.mxu0 0.0
        %3237 = vmatprep.subr.mxu0 0.0
        %3238 = vmatpush1.msra.mxu0 0.0
        %3239 = vmatprep.subr.mxu0 0.0
        %3240 = vmatpush1.msra.mxu0 0.0
        %3241 = vmatprep.subr.mxu0 0.0
        %3242 = vmatpush1.msra.mxu0 0.0
        %3243 = vmatprep.subr.mxu0 0.0
        %3244 = vmatpush1.msra.mxu0 0.0
        %3245 = vmatprep.subr.mxu0 0.0
        %3246 = vmatpush1.msra.mxu0 0.0
        %3247 = vmatprep.subr.mxu0 0.0
        %3248 = vmatpush1.msra.mxu0 0.0
        %3249 = vmatprep.subr.mxu0 0.0
        %3250 = vmatpush1.msra.mxu0 0.0
        %3251 = vmatprep.subr.mxu0 0.0
        %3252 = vmatpush1.msra.mxu0 0.0
        %3253 = vmatprep.subr.mxu0 0.0
        %3254 = vmatpush1.msra.mxu0 0.0
        %3255 = vmatprep.subr.mxu0 0.0
        %3256 = vmatpush1.msra.mxu0 0.0
        %3257 = vmatprep.subr.mxu0 0.0
        %3258 = vmatpush1.msra.mxu0 0.0
        %3259 = vmatprep.subr.mxu0 0.0
        %3260 = vmatpush1.msra.mxu0 0.0
        %3261 = vmatprep.subr.mxu0 0.0
        %3262 = vmatpush1.msra.mxu0 0.0
        %3263 = vmatprep.subr.mxu0 0.0
        %3264 = vmatpush1.msra.mxu0 0.0
        %3265 = vmatprep.subr.mxu0 0.0
        %3266 = vmatpush1.msra.mxu0 0.0
        %3267 = vmatprep.subr.mxu0 0.0
        %3268 = vmatpush1.msra.mxu0 0.0
        %3269 = vmatprep.subr.mxu0 0.0
        %3270 = vmatpush1.msra.mxu0 0.0
        %3271 = vmatprep.subr.mxu0 0.0
        %3272 = vmatpush1.msra.mxu0 0.0
        %3273 = vmatprep.subr.mxu0 0.0
        %3274 = vmatpush1.msra.mxu0 0.0
        %3275 = vmatprep.subr.mxu0 0.0
        %3276 = vmatpush1.msra.mxu0 0.0
        %3277 = vmatprep.subr.mxu0 0.0
        %3278 = vmatpush1.msra.mxu0 0.0
        %3279 = vmatprep.subr.mxu0 0.0
        %3280 = vmatpush1.msra.mxu0 0.0
        %3281 = vmatprep.mubr.f32.mxu0 0.0
        %3282 = vmatmul.mubr.f32.gmra.mrb[0].mxu0 %v3122
        %v3283 = vpop.f32.mrb[0].mxu0
        %v3284 = vadd.f32 0.0, %v3283
        %v3285 = vpop.f32.mrb[0].mxu0
        %3286 = vmatprep.mubr.f32.mxu0 0.0
        %3287 = vmatmul.mubr.f32.gmra.mrb[0].mxu0 %v3125
        %v3288 = vpop.f32.mrb[0].mxu0
        %v3289 = vadd.f32 0.0, %v3288
        %v3290 = vpop.f32.mrb[0].mxu0
        %3291 = vmatprep.mubr.f32.mxu0 0.0
        %3292 = vmatmul.mubr.f32.gmra.mrb[0].mxu0 %v3128
        %v3293 = vpop.f32.mrb[0].mxu0
        %v3294 = vadd.f32 0.0, %v3293
        %v3295 = vpop.f32.mrb[0].mxu0
        %3296 = vmatprep.mubr.f32.mxu0 0.0
        %3297 = vmatmul.mubr.f32.gmra.mrb[0].mxu0 %v3131
        %v3298 = vpop.f32.mrb[0].mxu0
        %v3299 = vadd.f32 0.0, %v3298
        %v3300 = vpop.f32.mrb[0].mxu0
        %3301 = vmatprep.mubr.f32.mxu0 0.0
        %3302 = vmatmul.mubr.f32.gmra.mrb[0].mxu0 %v3134
        %v3303 = vpop.f32.mrb[0].mxu0
        %v3304 = vadd.f32 0.0, %v3303
        %v3305 = vpop.f32.mrb[0].mxu0
        %3306 = vmatprep.mubr.f32.mxu0 0.0
        %3307 = vmatmul.mubr.f32.gmra.mrb[0].mxu0 %v3137
        %v3308 = vpop.f32.mrb[0].mxu0
        %v3309 = vadd.f32 0.0, %v3308
        %v3310 = vpop.f32.mrb[0].mxu0
        %3311 = vmatprep.mubr.f32.mxu0 0.0
        %3312 = vmatmul.mubr.f32.gmra.mrb[0].mxu0 %v3140
        %v3313 = vpop.f32.mrb[0].mxu0
        %v3314 = vadd.f32 0.0, %v3313
        %v3315 = vpop.f32.mrb[0].mxu0
        %3316 = vmatprep.mubr.f32.mxu0 0.0
        %3317 = vmatmul.mubr.f32.gmra.mrb[0].mxu0 %v3143
        %v3318 = vpop.f32.mrb[0].mxu0
        %v3319 = vadd.f32 0.0, %v3318
        %v3320 = vpop.f32.mrb[0].mxu0
        %3321 = vmatprep.mubr.f32.mxu0 0.0
        %3322 = vmatmul.mubr.f32.gmra.mrb[0].mxu0 %v3146
        %v3323 = vpop.f32.mrb[0].mxu0
        %v3324 = vadd.f32 0.0, %v3323
        %v3325 = vpop.f32.mrb[0].mxu0
        %3326 = vmatprep.mubr.f32.mxu0 0.0
        %3327 = vmatmul.mubr.f32.gmra.mrb[0].mxu0 %v3149
        %v3328 = vpop.f32.mrb[0].mxu0
        %v3329 = vadd.f32 0.0, %v3328
        %v3330 = vpop.f32.mrb[0].mxu0
        %3331 = vmatprep.mubr.f32.mxu0 0.0
        %3332 = vmatmul.mubr.f32.gmra.mrb[0].mxu0 %v3152
        %v3333 = vpop.f32.mrb[0].mxu0
        %v3334 = vadd.f32 0.0, %v3333
        %v3335 = vpop.f32.mrb[0].mxu0
        %3336 = vmatprep.mubr.f32.mxu0 0.0
        %3337 = vmatmul.mubr.f32.gmra.mrb[0].mxu0 %v3155
        %v3338 = vpop.f32.mrb[0].mxu0
        %v3339 = vadd.f32 0.0, %v3338
        %v3340 = vpop.f32.mrb[0].mxu0
        %3341 = vmatprep.mubr.f32.mxu0 0.0
        %3342 = vmatmul.mubr.f32.gmra.mrb[0].mxu0 %v3158
        %v3343 = vpop.f32.mrb[0].mxu0
        %v3344 = vadd.f32 0.0, %v3343
        %v3345 = vpop.f32.mrb[0].mxu0
        %3346 = vmatprep.mubr.f32.mxu0 0.0
        %3347 = vmatmul.mubr.f32.gmra.mrb[0].mxu0 %v3161
        %v3348 = vpop.f32.mrb[0].mxu0
        %v3349 = vadd.f32 0.0, %v3348
        %v3350 = vpop.f32.mrb[0].mxu0
        %3351 = vmatprep.mubr.f32.mxu0 0.0
        %3352 = vmatmul.mubr.f32.gmra.mrb[0].mxu0 %v3164
        %v3353 = vpop.f32.mrb[0].mxu0
        %v3354 = vadd.f32 0.0, %v3353
        %v3355 = vpop.f32.mrb[0].mxu0
        %3356 = vmatprep.mubr.f32.mxu0 0.0
        %3357 = vmatmul.mubr.f32.gmra.mrb[0].mxu0 %v3167
        %v3358 = vpop.f32.mrb[0].mxu0
        %v3359 = vadd.f32 0.0, %v3358
        %v3360 = vpop.f32.mrb[0].mxu0
        %3361 = vmatprep.mubr.f32.mxu0 0.0
        %3362 = vmatmul.mubr.f32.gmra.mrb[0].mxu0 %v3170
        %v3363 = vpop.f32.mrb[0].mxu0
        %v3364 = vadd.f32 0.0, %v3363
        %v3365 = vpop.f32.mrb[0].mxu0
        %3366 = vmatprep.mubr.f32.mxu0 0.0
        %3367 = vmatmul.mubr.f32.gmra.mrb[0].mxu0 %v3173
        %v3368 = vpop.f32.mrb[0].mxu0
        %v3369 = vadd.f32 0.0, %v3368
        %v3370 = vpop.f32.mrb[0].mxu0
        %3371 = vmatprep.mubr.f32.mxu0 0.0
        %3372 = vmatmul.mubr.f32.gmra.mrb[0].mxu0 %v3176
        %v3373 = vpop.f32.mrb[0].mxu0
        %v3374 = vadd.f32 0.0, %v3373
        %v3375 = vpop.f32.mrb[0].mxu0
        %3376 = vmatprep.mubr.f32.mxu0 0.0
        %3377 = vmatmul.mubr.f32.gmra.mrb[0].mxu0 %v3179
        %v3378 = vpop.f32.mrb[0].mxu0
        %v3379 = vadd.f32 0.0, %v3378
        %v3380 = vpop.f32.mrb[0].mxu0
        %3381 = vmatprep.mubr.f32.mxu0 0.0
        %3382 = vmatmul.mubr.f32.gmra.mrb[0].mxu0 %v3182
        %v3383 = vpop.f32.mrb[0].mxu0
        %v3384 = vadd.f32 0.0, %v3383
        %v3385 = vpop.f32.mrb[0].mxu0
        %3386 = vmatprep.mubr.f32.mxu0 0.0
        %3387 = vmatmul.mubr.f32.gmra.mrb[0].mxu0 %v3185
        %v3388 = vpop.f32.mrb[0].mxu0
        %v3389 = vadd.f32 0.0, %v3388
        %v3390 = vpop.f32.mrb[0].mxu0
        %3391 = vmatprep.mubr.f32.mxu0 0.0
        %3392 = vmatmul.mubr.f32.gmra.mrb[0].mxu0 %v3188
        %v3393 = vpop.f32.mrb[0].mxu0
        %v3394 = vadd.f32 0.0, %v3393
        %v3395 = vpop.f32.mrb[0].mxu0
        %3396 = vmatprep.mubr.f32.mxu0 0.0
        %3397 = vmatmul.mubr.f32.gmra.mrb[0].mxu0 %v3191
        %v3398 = vpop.f32.mrb[0].mxu0
        %v3399 = vadd.f32 0.0, %v3398
        %v3400 = vpop.f32.mrb[0].mxu0
        %3401 = vmatprep.mubr.f32.mxu0 0.0
        %3402 = vmatmul.mubr.f32.gmra.mrb[0].mxu0 %v3194
        %v3403 = vpop.f32.mrb[0].mxu0
        %v3404 = vadd.f32 0.0, %v3403
        %v3405 = vpop.f32.mrb[0].mxu0
        %3406 = vmatprep.mubr.f32.mxu0 0.0
        %3407 = vmatmul.mubr.f32.gmra.mrb[0].mxu0 %v3197
        %v3408 = vpop.f32.mrb[0].mxu0
        %v3409 = vadd.f32 0.0, %v3408
        %v3410 = vpop.f32.mrb[0].mxu0
        %3411 = vmatprep.mubr.f32.mxu0 0.0
        %3412 = vmatmul.mubr.f32.gmra.mrb[0].mxu0 %v3200
        %v3413 = vpop.f32.mrb[0].mxu0
        %v3414 = vadd.f32 0.0, %v3413
        %v3415 = vpop.f32.mrb[0].mxu0
        %3416 = vmatprep.mubr.f32.mxu0 0.0
        %3417 = vmatmul.mubr.f32.gmra.mrb[0].mxu0 %v3203
        %v3418 = vpop.f32.mrb[0].mxu0
        %v3419 = vadd.f32 0.0, %v3418
        %v3420 = vpop.f32.mrb[0].mxu0
        %3421 = vmatprep.mubr.f32.mxu0 0.0
        %3422 = vmatmul.mubr.f32.gmra.mrb[0].mxu0 %v3206
        %v3423 = vpop.f32.mrb[0].mxu0
        %v3424 = vadd.f32 0.0, %v3423
        %v3425 = vpop.f32.mrb[0].mxu0
        %3426 = vmatprep.mubr.f32.mxu0 0.0
        %3427 = vmatmul.mubr.f32.gmra.mrb[0].mxu0 %v3209
        %v3428 = vpop.f32.mrb[0].mxu0
        %v3429 = vadd.f32 0.0, %v3428
        %v3430 = vpop.f32.mrb[0].mxu0
        %3431 = vmatprep.mubr.f32.mxu0 0.0
        %3432 = vmatmul.mubr.f32.gmra.mrb[0].mxu0 %v3212
        %v3433 = vpop.f32.mrb[0].mxu0
        %v3434 = vadd.f32 0.0, %v3433
        %v3435 = vpop.f32.mrb[0].mxu0
        %3436 = vmatprep.mubr.f32.mxu0 0.0
        %3437 = vmatmul.mubr.f32.gmra.mrb[0].mxu0 %v3215
        %v3438 = vpop.f32.mrb[0].mxu0
        %v3439 = vadd.f32 0.0, %v3438
        %v3440 = vpop.f32.mrb[0].mxu0
        %3441 = vdwg.mxu0
        %v3442 = vadd.f32 %v3052, %v3284
        %v3443 = vadd.f32 %v3053, %v3289
        %v3444 = vadd.f32 %v3054, %v3294
        %v3445 = vadd.f32 %v3055, %v3299
        %v3446 = vadd.f32 %v3056, %v3304
        %v3447 = vadd.f32 %v3057, %v3309
        %v3448 = vadd.f32 %v3058, %v3314
        %v3449 = vadd.f32 %v3059, %v3319
        %v3450 = vadd.f32 %v3060, %v3324
        %v3451 = vadd.f32 %v3061, %v3329
        %v3452 = vadd.f32 %v3062, %v3334
        %v3453 = vadd.f32 %v3063, %v3339
        %v3454 = vadd.f32 %v3064, %v3344
        %v3455 = vadd.f32 %v3065, %v3349
        %v3456 = vadd.f32 %v3066, %v3354
        %v3457 = vadd.f32 %v3067, %v3359
        %v3458 = vadd.f32 %v3068, %v3364
        %v3459 = vadd.f32 %v3069, %v3369
        %v3460 = vadd.f32 %v3070, %v3374
        %v3461 = vadd.f32 %v3071, %v3379
        %v3462 = vadd.f32 %v3072, %v3384
        %v3463 = vadd.f32 %v3073, %v3389
        %v3464 = vadd.f32 %v3074, %v3394
        %v3465 = vadd.f32 %v3075, %v3399
        %v3466 = vadd.f32 %v3076, %v3404
        %v3467 = vadd.f32 %v3077, %v3409
        %v3468 = vadd.f32 %v3078, %v3414
        %v3469 = vadd.f32 %v3079, %v3419
        %v3470 = vadd.f32 %v3080, %v3424
        %v3471 = vadd.f32 %v3081, %v3429
        %v3472 = vadd.f32 %v3082, %v3434
        %v3473 = vadd.f32 %v3083, %v3439
        %s3474 = scalar_lea.vmem [#allocation2], 48
        %v3475 = vld [vmem:[%s3474] sm:$0xff]
        %v3476 = vld [vmem:[%s3474 + $0x8] sm:$0xff]
        %v3477 = vld [vmem:[%s3474 + $0x18] sm:$0xff]
        %v3478 = vld [vmem:[%s3474 + $0x20] sm:$0xff]
        %v3479 = vld [vmem:[%s3474 + $0x30] sm:$0xff]
        %v3480 = vld [vmem:[%s3474 + $0x38] sm:$0xff]
        %v3481 = vld [vmem:[%s3474 + $0x48] sm:$0xff]
        %v3482 = vld [vmem:[%s3474 + $0x50] sm:$0xff]
        %v3483 = vld [vmem:[%s3474 + $0x60] sm:$0xff]
        %v3484 = vld [vmem:[%s3474 + $0x68] sm:$0xff]
        %v3485 = vld [vmem:[%s3474 + $0x78] sm:$0xff]
        %v3486 = vld [vmem:[%s3474 + $0x80] sm:$0xff]
        %v3487 = vld [vmem:[%s3474 + $0x90] sm:$0xff]
        %v3488 = vld [vmem:[%s3474 + $0x98] sm:$0xff]
        %v3489 = vld [vmem:[%s3474 + $0xa8] sm:$0xff]
        %v3490 = vld [vmem:[%s3474 + $0xb0] sm:$0xff]
        %v3491 = vld [vmem:[%s3474 + $0xc0] sm:$0xff]
        %v3492 = vld [vmem:[%s3474 + $0xc8] sm:$0xff]
        %v3493 = vld [vmem:[%s3474 + $0xd8] sm:$0xff]
        %v3494 = vld [vmem:[%s3474 + $0xe0] sm:$0xff]
        %v3495 = vld [vmem:[%s3474 + $0xf0] sm:$0xff]
        %v3496 = vld [vmem:[%s3474 + $0xf8] sm:$0xff]
        %v3497 = vld [vmem:[%s3474 + $0x108] sm:$0xff]
        %v3498 = vld [vmem:[%s3474 + $0x110] sm:$0xff]
        %v3499 = vld [vmem:[%s3474 + $0x120] sm:$0xff]
        %v3500 = vld [vmem:[%s3474 + $0x128] sm:$0xff]
        %v3501 = vld [vmem:[%s3474 + $0x138] sm:$0xff]
        %v3502 = vld [vmem:[%s3474 + $0x140] sm:$0xff]
        %v3503 = vld [vmem:[%s3474 + $0x150] sm:$0xff]
        %v3504 = vld [vmem:[%s3474 + $0x158] sm:$0xff]
        %v3505 = vld [vmem:[%s3474 + $0x168] sm:$0xff]
        %v3506 = vld [vmem:[%s3474 + $0x170] sm:$0xff]
        %s3507 = scalar_lea.vmem %s3, 192
        %v3508 = vld [vmem:[%s3507] sm:$0xff]
        %v3509 = vld [vmem:[%s3507 + $0x8] sm:$0xff]
        %v3510 = vld [vmem:[%s3507 + $0x10] sm:$0xff]
        %v3511 = vld [vmem:[%s3507 + $0x18] sm:$0xff]
        %v3513 = vsel %vm1143, %v3475, 0
        %v3516 = vsel %vm1143, %v3476, 0
        %v3519 = vsel %vm1143, %v3477, 0
        %v3522 = vsel %vm1143, %v3478, 0
        %v3525 = vsel %vm1143, %v3479, 0
        %v3528 = vsel %vm1143, %v3480, 0
        %v3531 = vsel %vm1143, %v3481, 0
        %v3534 = vsel %vm1143, %v3482, 0
        %v3537 = vsel %vm1143, %v3483, 0
        %v3540 = vsel %vm1143, %v3484, 0
        %v3543 = vsel %vm1143, %v3485, 0
        %v3546 = vsel %vm1143, %v3486, 0
        %v3549 = vsel %vm1143, %v3487, 0
        %v3552 = vsel %vm1143, %v3488, 0
        %v3555 = vsel %vm1143, %v3489, 0
        %v3558 = vsel %vm1143, %v3490, 0
        %v3561 = vsel %vm1143, %v3491, 0
        %v3564 = vsel %vm1143, %v3492, 0
        %v3567 = vsel %vm1143, %v3493, 0
        %v3570 = vsel %vm1143, %v3494, 0
        %v3573 = vsel %vm1143, %v3495, 0
        %v3576 = vsel %vm1143, %v3496, 0
        %v3579 = vsel %vm1143, %v3497, 0
        %v3582 = vsel %vm1143, %v3498, 0
        %v3585 = vsel %vm1143, %v3499, 0
        %v3588 = vsel %vm1143, %v3500, 0
        %v3591 = vsel %vm1143, %v3501, 0
        %v3594 = vsel %vm1143, %v3502, 0
        %v3597 = vsel %vm1143, %v3503, 0
        %v3600 = vsel %vm1143, %v3504, 0
        %v3603 = vsel %vm1143, %v3505, 0
        %v3606 = vsel %vm1143, %v3506, 0
        %3608 = vmatprep.subr.mxu0 0.0
        %3609 = vmatpush1.msra.mxu0 %v3508
        %3610 = vmatprep.subr.mxu0 0.0
        %3611 = vmatpush1.msra.mxu0 %v3509
        %3612 = vmatprep.subr.mxu0 0.0
        %3613 = vmatpush1.msra.mxu0 %v3510
        %3614 = vmatprep.subr.mxu0 0.0
        %3615 = vmatpush1.msra.mxu0 %v3511
        %3616 = vmatprep.subr.mxu0 0.0
        %3617 = vmatpush1.msra.mxu0 0.0
        %3618 = vmatprep.subr.mxu0 0.0
        %3619 = vmatpush1.msra.mxu0 0.0
        %3620 = vmatprep.subr.mxu0 0.0
        %3621 = vmatpush1.msra.mxu0 0.0
        %3622 = vmatprep.subr.mxu0 0.0
        %3623 = vmatpush1.msra.mxu0 0.0
        %3624 = vmatprep.subr.mxu0 0.0
        %3625 = vmatpush1.msra.mxu0 0.0
        %3626 = vmatprep.subr.mxu0 0.0
        %3627 = vmatpush1.msra.mxu0 0.0
        %3628 = vmatprep.subr.mxu0 0.0
        %3629 = vmatpush1.msra.mxu0 0.0
        %3630 = vmatprep.subr.mxu0 0.0
        %3631 = vmatpush1.msra.mxu0 0.0
        %3632 = vmatprep.subr.mxu0 0.0
        %3633 = vmatpush1.msra.mxu0 0.0
        %3634 = vmatprep.subr.mxu0 0.0
        %3635 = vmatpush1.msra.mxu0 0.0
        %3636 = vmatprep.subr.mxu0 0.0
        %3637 = vmatpush1.msra.mxu0 0.0
        %3638 = vmatprep.subr.mxu0 0.0
        %3639 = vmatpush1.msra.mxu0 0.0
        %3640 = vmatprep.subr.mxu0 0.0
        %3641 = vmatpush1.msra.mxu0 0.0
        %3642 = vmatprep.subr.mxu0 0.0
        %3643 = vmatpush1.msra.mxu0 0.0
        %3644 = vmatprep.subr.mxu0 0.0
        %3645 = vmatpush1.msra.mxu0 0.0
        %3646 = vmatprep.subr.mxu0 0.0
        %3647 = vmatpush1.msra.mxu0 0.0
        %3648 = vmatprep.subr.mxu0 0.0
        %3649 = vmatpush1.msra.mxu0 0.0
        %3650 = vmatprep.subr.mxu0 0.0
        %3651 = vmatpush1.msra.mxu0 0.0
        %3652 = vmatprep.subr.mxu0 0.0
        %3653 = vmatpush1.msra.mxu0 0.0
        %3654 = vmatprep.subr.mxu0 0.0
        %3655 = vmatpush1.msra.mxu0 0.0
        %3656 = vmatprep.subr.mxu0 0.0
        %3657 = vmatpush1.msra.mxu0 0.0
        %3658 = vmatprep.subr.mxu0 0.0
        %3659 = vmatpush1.msra.mxu0 0.0
        %3660 = vmatprep.subr.mxu0 0.0
        %3661 = vmatpush1.msra.mxu0 0.0
        %3662 = vmatprep.subr.mxu0 0.0
        %3663 = vmatpush1.msra.mxu0 0.0
        %3664 = vmatprep.subr.mxu0 0.0
        %3665 = vmatpush1.msra.mxu0 0.0
        %3666 = vmatprep.subr.mxu0 0.0
        %3667 = vmatpush1.msra.mxu0 0.0
        %3668 = vmatprep.subr.mxu0 0.0
        %3669 = vmatpush1.msra.mxu0 0.0
        %3670 = vmatprep.subr.mxu0 0.0
        %3671 = vmatpush1.msra.mxu0 0.0
        %3672 = vmatprep.mubr.f32.mxu0 0.0
        %3673 = vmatmul.mubr.f32.gmra.mrb[0].mxu0 %v3513
        %v3674 = vpop.f32.mrb[0].mxu0
        %v3675 = vadd.f32 0.0, %v3674
        %v3676 = vpop.f32.mrb[0].mxu0
        %3677 = vmatprep.mubr.f32.mxu0 0.0
        %3678 = vmatmul.mubr.f32.gmra.mrb[0].mxu0 %v3516
        %v3679 = vpop.f32.mrb[0].mxu0
        %v3680 = vadd.f32 0.0, %v3679
        %v3681 = vpop.f32.mrb[0].mxu0
        %3682 = vmatprep.mubr.f32.mxu0 0.0
        %3683 = vmatmul.mubr.f32.gmra.mrb[0].mxu0 %v3519
        %v3684 = vpop.f32.mrb[0].mxu0
        %v3685 = vadd.f32 0.0, %v3684
        %v3686 = vpop.f32.mrb[0].mxu0
        %3687 = vmatprep.mubr.f32.mxu0 0.0
        %3688 = vmatmul.mubr.f32.gmra.mrb[0].mxu0 %v3522
        %v3689 = vpop.f32.mrb[0].mxu0
        %v3690 = vadd.f32 0.0, %v3689
        %v3691 = vpop.f32.mrb[0].mxu0
        %3692 = vmatprep.mubr.f32.mxu0 0.0
        %3693 = vmatmul.mubr.f32.gmra.mrb[0].mxu0 %v3525
        %v3694 = vpop.f32.mrb[0].mxu0
        %v3695 = vadd.f32 0.0, %v3694
        %v3696 = vpop.f32.mrb[0].mxu0
        %3697 = vmatprep.mubr.f32.mxu0 0.0
        %3698 = vmatmul.mubr.f32.gmra.mrb[0].mxu0 %v3528
        %v3699 = vpop.f32.mrb[0].mxu0
        %v3700 = vadd.f32 0.0, %v3699
        %v3701 = vpop.f32.mrb[0].mxu0
        %3702 = vmatprep.mubr.f32.mxu0 0.0
        %3703 = vmatmul.mubr.f32.gmra.mrb[0].mxu0 %v3531
        %v3704 = vpop.f32.mrb[0].mxu0
        %v3705 = vadd.f32 0.0, %v3704
        %v3706 = vpop.f32.mrb[0].mxu0
        %3707 = vmatprep.mubr.f32.mxu0 0.0
        %3708 = vmatmul.mubr.f32.gmra.mrb[0].mxu0 %v3534
        %v3709 = vpop.f32.mrb[0].mxu0
        %v3710 = vadd.f32 0.0, %v3709
        %v3711 = vpop.f32.mrb[0].mxu0
        %3712 = vmatprep.mubr.f32.mxu0 0.0
        %3713 = vmatmul.mubr.f32.gmra.mrb[0].mxu0 %v3537
        %v3714 = vpop.f32.mrb[0].mxu0
        %v3715 = vadd.f32 0.0, %v3714
        %v3716 = vpop.f32.mrb[0].mxu0
        %3717 = vmatprep.mubr.f32.mxu0 0.0
        %3718 = vmatmul.mubr.f32.gmra.mrb[0].mxu0 %v3540
        %v3719 = vpop.f32.mrb[0].mxu0
        %v3720 = vadd.f32 0.0, %v3719
        %v3721 = vpop.f32.mrb[0].mxu0
        %3722 = vmatprep.mubr.f32.mxu0 0.0
        %3723 = vmatmul.mubr.f32.gmra.mrb[0].mxu0 %v3543
        %v3724 = vpop.f32.mrb[0].mxu0
        %v3725 = vadd.f32 0.0, %v3724
        %v3726 = vpop.f32.mrb[0].mxu0
        %3727 = vmatprep.mubr.f32.mxu0 0.0
        %3728 = vmatmul.mubr.f32.gmra.mrb[0].mxu0 %v3546
        %v3729 = vpop.f32.mrb[0].mxu0
        %v3730 = vadd.f32 0.0, %v3729
        %v3731 = vpop.f32.mrb[0].mxu0
        %3732 = vmatprep.mubr.f32.mxu0 0.0
        %3733 = vmatmul.mubr.f32.gmra.mrb[0].mxu0 %v3549
        %v3734 = vpop.f32.mrb[0].mxu0
        %v3735 = vadd.f32 0.0, %v3734
        %v3736 = vpop.f32.mrb[0].mxu0
        %3737 = vmatprep.mubr.f32.mxu0 0.0
        %3738 = vmatmul.mubr.f32.gmra.mrb[0].mxu0 %v3552
        %v3739 = vpop.f32.mrb[0].mxu0
        %v3740 = vadd.f32 0.0, %v3739
        %v3741 = vpop.f32.mrb[0].mxu0
        %3742 = vmatprep.mubr.f32.mxu0 0.0
        %3743 = vmatmul.mubr.f32.gmra.mrb[0].mxu0 %v3555
        %v3744 = vpop.f32.mrb[0].mxu0
        %v3745 = vadd.f32 0.0, %v3744
        %v3746 = vpop.f32.mrb[0].mxu0
        %3747 = vmatprep.mubr.f32.mxu0 0.0
        %3748 = vmatmul.mubr.f32.gmra.mrb[0].mxu0 %v3558
        %v3749 = vpop.f32.mrb[0].mxu0
        %v3750 = vadd.f32 0.0, %v3749
        %v3751 = vpop.f32.mrb[0].mxu0
        %3752 = vmatprep.mubr.f32.mxu0 0.0
        %3753 = vmatmul.mubr.f32.gmra.mrb[0].mxu0 %v3561
        %v3754 = vpop.f32.mrb[0].mxu0
        %v3755 = vadd.f32 0.0, %v3754
        %v3756 = vpop.f32.mrb[0].mxu0
        %3757 = vmatprep.mubr.f32.mxu0 0.0
        %3758 = vmatmul.mubr.f32.gmra.mrb[0].mxu0 %v3564
        %v3759 = vpop.f32.mrb[0].mxu0
        %v3760 = vadd.f32 0.0, %v3759
        %v3761 = vpop.f32.mrb[0].mxu0
        %3762 = vmatprep.mubr.f32.mxu0 0.0
        %3763 = vmatmul.mubr.f32.gmra.mrb[0].mxu0 %v3567
        %v3764 = vpop.f32.mrb[0].mxu0
        %v3765 = vadd.f32 0.0, %v3764
        %v3766 = vpop.f32.mrb[0].mxu0
        %3767 = vmatprep.mubr.f32.mxu0 0.0
        %3768 = vmatmul.mubr.f32.gmra.mrb[0].mxu0 %v3570
        %v3769 = vpop.f32.mrb[0].mxu0
        %v3770 = vadd.f32 0.0, %v3769
        %v3771 = vpop.f32.mrb[0].mxu0
        %3772 = vmatprep.mubr.f32.mxu0 0.0
        %3773 = vmatmul.mubr.f32.gmra.mrb[0].mxu0 %v3573
        %v3774 = vpop.f32.mrb[0].mxu0
        %v3775 = vadd.f32 0.0, %v3774
        %v3776 = vpop.f32.mrb[0].mxu0
        %3777 = vmatprep.mubr.f32.mxu0 0.0
        %3778 = vmatmul.mubr.f32.gmra.mrb[0].mxu0 %v3576
        %v3779 = vpop.f32.mrb[0].mxu0
        %v3780 = vadd.f32 0.0, %v3779
        %v3781 = vpop.f32.mrb[0].mxu0
        %3782 = vmatprep.mubr.f32.mxu0 0.0
        %3783 = vmatmul.mubr.f32.gmra.mrb[0].mxu0 %v3579
        %v3784 = vpop.f32.mrb[0].mxu0
        %v3785 = vadd.f32 0.0, %v3784
        %v3786 = vpop.f32.mrb[0].mxu0
        %3787 = vmatprep.mubr.f32.mxu0 0.0
        %3788 = vmatmul.mubr.f32.gmra.mrb[0].mxu0 %v3582
        %v3789 = vpop.f32.mrb[0].mxu0
        %v3790 = vadd.f32 0.0, %v3789
        %v3791 = vpop.f32.mrb[0].mxu0
        %3792 = vmatprep.mubr.f32.mxu0 0.0
        %3793 = vmatmul.mubr.f32.gmra.mrb[0].mxu0 %v3585
        %v3794 = vpop.f32.mrb[0].mxu0
        %v3795 = vadd.f32 0.0, %v3794
        %v3796 = vpop.f32.mrb[0].mxu0
        %3797 = vmatprep.mubr.f32.mxu0 0.0
        %3798 = vmatmul.mubr.f32.gmra.mrb[0].mxu0 %v3588
        %v3799 = vpop.f32.mrb[0].mxu0
        %v3800 = vadd.f32 0.0, %v3799
        %v3801 = vpop.f32.mrb[0].mxu0
        %3802 = vmatprep.mubr.f32.mxu0 0.0
        %3803 = vmatmul.mubr.f32.gmra.mrb[0].mxu0 %v3591
        %v3804 = vpop.f32.mrb[0].mxu0
        %v3805 = vadd.f32 0.0, %v3804
        %v3806 = vpop.f32.mrb[0].mxu0
        %3807 = vmatprep.mubr.f32.mxu0 0.0
        %3808 = vmatmul.mubr.f32.gmra.mrb[0].mxu0 %v3594
        %v3809 = vpop.f32.mrb[0].mxu0
        %v3810 = vadd.f32 0.0, %v3809
        %v3811 = vpop.f32.mrb[0].mxu0
        %3812 = vmatprep.mubr.f32.mxu0 0.0
        %3813 = vmatmul.mubr.f32.gmra.mrb[0].mxu0 %v3597
        %v3814 = vpop.f32.mrb[0].mxu0
        %v3815 = vadd.f32 0.0, %v3814
        %v3816 = vpop.f32.mrb[0].mxu0
        %3817 = vmatprep.mubr.f32.mxu0 0.0
        %3818 = vmatmul.mubr.f32.gmra.mrb[0].mxu0 %v3600
        %v3819 = vpop.f32.mrb[0].mxu0
        %v3820 = vadd.f32 0.0, %v3819
        %v3821 = vpop.f32.mrb[0].mxu0
        %3822 = vmatprep.mubr.f32.mxu0 0.0
        %3823 = vmatmul.mubr.f32.gmra.mrb[0].mxu0 %v3603
        %v3824 = vpop.f32.mrb[0].mxu0
        %v3825 = vadd.f32 0.0, %v3824
        %v3826 = vpop.f32.mrb[0].mxu0
        %3827 = vmatprep.mubr.f32.mxu0 0.0
        %3828 = vmatmul.mubr.f32.gmra.mrb[0].mxu0 %v3606
        %v3829 = vpop.f32.mrb[0].mxu0
        %v3830 = vadd.f32 0.0, %v3829
        %v3831 = vpop.f32.mrb[0].mxu0
        %3832 = vdwg.mxu0
        %v3833 = vadd.f32 %v3442, %v3675
        %v3834 = vadd.f32 %v3443, %v3680
        %v3835 = vadd.f32 %v3444, %v3685
        %v3836 = vadd.f32 %v3445, %v3690
        %v3837 = vadd.f32 %v3446, %v3695
        %v3838 = vadd.f32 %v3447, %v3700
        %v3839 = vadd.f32 %v3448, %v3705
        %v3840 = vadd.f32 %v3449, %v3710
        %v3841 = vadd.f32 %v3450, %v3715
        %v3842 = vadd.f32 %v3451, %v3720
        %v3843 = vadd.f32 %v3452, %v3725
        %v3844 = vadd.f32 %v3453, %v3730
        %v3845 = vadd.f32 %v3454, %v3735
        %v3846 = vadd.f32 %v3455, %v3740
        %v3847 = vadd.f32 %v3456, %v3745
        %v3848 = vadd.f32 %v3457, %v3750
        %v3849 = vadd.f32 %v3458, %v3755
        %v3850 = vadd.f32 %v3459, %v3760
        %v3851 = vadd.f32 %v3460, %v3765
        %v3852 = vadd.f32 %v3461, %v3770
        %v3853 = vadd.f32 %v3462, %v3775
        %v3854 = vadd.f32 %v3463, %v3780
        %v3855 = vadd.f32 %v3464, %v3785
        %v3856 = vadd.f32 %v3465, %v3790
        %v3857 = vadd.f32 %v3466, %v3795
        %v3858 = vadd.f32 %v3467, %v3800
        %v3859 = vadd.f32 %v3468, %v3805
        %v3860 = vadd.f32 %v3469, %v3810
        %v3861 = vadd.f32 %v3470, %v3815
        %v3862 = vadd.f32 %v3471, %v3820
        %v3863 = vadd.f32 %v3472, %v3825
        %v3864 = vadd.f32 %v3473, %v3830
        %v3865 = vld [vmem:[%s3474 + $0x1] sm:$0xff]
        %v3866 = vld [vmem:[%s3474 + $0x9] sm:$0xff]
        %v3867 = vld [vmem:[%s3474 + $0x19] sm:$0xff]
        %v3868 = vld [vmem:[%s3474 + $0x21] sm:$0xff]
        %v3869 = vld [vmem:[%s3474 + $0x31] sm:$0xff]
        %v3870 = vld [vmem:[%s3474 + $0x39] sm:$0xff]
        %v3871 = vld [vmem:[%s3474 + $0x49] sm:$0xff]
        %v3872 = vld [vmem:[%s3474 + $0x51] sm:$0xff]
        %v3873 = vld [vmem:[%s3474 + $0x61] sm:$0xff]
        %v3874 = vld [vmem:[%s3474 + $0x69] sm:$0xff]
        %v3875 = vld [vmem:[%s3474 + $0x79] sm:$0xff]
        %v3876 = vld [vmem:[%s3474 + $0x81] sm:$0xff]
        %v3877 = vld [vmem:[%s3474 + $0x91] sm:$0xff]
        %v3878 = vld [vmem:[%s3474 + $0x99] sm:$0xff]
        %v3879 = vld [vmem:[%s3474 + $0xa9] sm:$0xff]
        %v3880 = vld [vmem:[%s3474 + $0xb1] sm:$0xff]
        %v3881 = vld [vmem:[%s3474 + $0xc1] sm:$0xff]
        %v3882 = vld [vmem:[%s3474 + $0xc9] sm:$0xff]
        %v3883 = vld [vmem:[%s3474 + $0xd9] sm:$0xff]
        %v3884 = vld [vmem:[%s3474 + $0xe1] sm:$0xff]
        %v3885 = vld [vmem:[%s3474 + $0xf1] sm:$0xff]
        %v3886 = vld [vmem:[%s3474 + $0xf9] sm:$0xff]
        %v3887 = vld [vmem:[%s3474 + $0x109] sm:$0xff]
        %v3888 = vld [vmem:[%s3474 + $0x111] sm:$0xff]
        %v3889 = vld [vmem:[%s3474 + $0x121] sm:$0xff]
        %v3890 = vld [vmem:[%s3474 + $0x129] sm:$0xff]
        %v3891 = vld [vmem:[%s3474 + $0x139] sm:$0xff]
        %v3892 = vld [vmem:[%s3474 + $0x141] sm:$0xff]
        %v3893 = vld [vmem:[%s3474 + $0x151] sm:$0xff]
        %v3894 = vld [vmem:[%s3474 + $0x159] sm:$0xff]
        %v3895 = vld [vmem:[%s3474 + $0x169] sm:$0xff]
        %v3896 = vld [vmem:[%s3474 + $0x171] sm:$0xff]
        %s3897 = scalar_lea.vmem %s3, 224
        %v3898 = vld [vmem:[%s3897] sm:$0xff]
        %v3899 = vld [vmem:[%s3897 + $0x8] sm:$0xff]
        %v3900 = vld [vmem:[%s3897 + $0x10] sm:$0xff]
        %v3901 = vld [vmem:[%s3897 + $0x18] sm:$0xff]
        %v3903 = vsel %vm1143, %v3865, 0
        %v3906 = vsel %vm1143, %v3866, 0
        %v3909 = vsel %vm1143, %v3867, 0
        %v3912 = vsel %vm1143, %v3868, 0
        %v3915 = vsel %vm1143, %v3869, 0
        %v3918 = vsel %vm1143, %v3870, 0
        %v3921 = vsel %vm1143, %v3871, 0
        %v3924 = vsel %vm1143, %v3872, 0
        %v3927 = vsel %vm1143, %v3873, 0
        %v3930 = vsel %vm1143, %v3874, 0
        %v3933 = vsel %vm1143, %v3875, 0
        %v3936 = vsel %vm1143, %v3876, 0
        %v3939 = vsel %vm1143, %v3877, 0
        %v3942 = vsel %vm1143, %v3878, 0
        %v3945 = vsel %vm1143, %v3879, 0
        %v3948 = vsel %vm1143, %v3880, 0
        %v3951 = vsel %vm1143, %v3881, 0
        %v3954 = vsel %vm1143, %v3882, 0
        %v3957 = vsel %vm1143, %v3883, 0
        %v3960 = vsel %vm1143, %v3884, 0
        %v3963 = vsel %vm1143, %v3885, 0
        %v3966 = vsel %vm1143, %v3886, 0
        %v3969 = vsel %vm1143, %v3887, 0
        %v3972 = vsel %vm1143, %v3888, 0
        %v3975 = vsel %vm1143, %v3889, 0
        %v3978 = vsel %vm1143, %v3890, 0
        %v3981 = vsel %vm1143, %v3891, 0
        %v3984 = vsel %vm1143, %v3892, 0
        %v3987 = vsel %vm1143, %v3893, 0
        %v3990 = vsel %vm1143, %v3894, 0
        %v3993 = vsel %vm1143, %v3895, 0
        %v3996 = vsel %vm1143, %v3896, 0
        %3998 = vmatprep.subr.mxu0 0.0
        %3999 = vmatpush1.msra.mxu0 %v3898
        %4000 = vmatprep.subr.mxu0 0.0
        %4001 = vmatpush1.msra.mxu0 %v3899
        %4002 = vmatprep.subr.mxu0 0.0
        %4003 = vmatpush1.msra.mxu0 %v3900
        %4004 = vmatprep.subr.mxu0 0.0
        %4005 = vmatpush1.msra.mxu0 %v3901
        %4006 = vmatprep.subr.mxu0 0.0
        %4007 = vmatpush1.msra.mxu0 0.0
        %4008 = vmatprep.subr.mxu0 0.0
        %4009 = vmatpush1.msra.mxu0 0.0
        %4010 = vmatprep.subr.mxu0 0.0
        %4011 = vmatpush1.msra.mxu0 0.0
        %4012 = vmatprep.subr.mxu0 0.0
        %4013 = vmatpush1.msra.mxu0 0.0
        %4014 = vmatprep.subr.mxu0 0.0
        %4015 = vmatpush1.msra.mxu0 0.0
        %4016 = vmatprep.subr.mxu0 0.0
        %4017 = vmatpush1.msra.mxu0 0.0
        %4018 = vmatprep.subr.mxu0 0.0
        %4019 = vmatpush1.msra.mxu0 0.0
        %4020 = vmatprep.subr.mxu0 0.0
        %4021 = vmatpush1.msra.mxu0 0.0
        %4022 = vmatprep.subr.mxu0 0.0
        %4023 = vmatpush1.msra.mxu0 0.0
        %4024 = vmatprep.subr.mxu0 0.0
        %4025 = vmatpush1.msra.mxu0 0.0
        %4026 = vmatprep.subr.mxu0 0.0
        %4027 = vmatpush1.msra.mxu0 0.0
        %4028 = vmatprep.subr.mxu0 0.0
        %4029 = vmatpush1.msra.mxu0 0.0
        %4030 = vmatprep.subr.mxu0 0.0
        %4031 = vmatpush1.msra.mxu0 0.0
        %4032 = vmatprep.subr.mxu0 0.0
        %4033 = vmatpush1.msra.mxu0 0.0
        %4034 = vmatprep.subr.mxu0 0.0
        %4035 = vmatpush1.msra.mxu0 0.0
        %4036 = vmatprep.subr.mxu0 0.0
        %4037 = vmatpush1.msra.mxu0 0.0
        %4038 = vmatprep.subr.mxu0 0.0
        %4039 = vmatpush1.msra.mxu0 0.0
        %4040 = vmatprep.subr.mxu0 0.0
        %4041 = vmatpush1.msra.mxu0 0.0
        %4042 = vmatprep.subr.mxu0 0.0
        %4043 = vmatpush1.msra.mxu0 0.0
        %4044 = vmatprep.subr.mxu0 0.0
        %4045 = vmatpush1.msra.mxu0 0.0
        %4046 = vmatprep.subr.mxu0 0.0
        %4047 = vmatpush1.msra.mxu0 0.0
        %4048 = vmatprep.subr.mxu0 0.0
        %4049 = vmatpush1.msra.mxu0 0.0
        %4050 = vmatprep.subr.mxu0 0.0
        %4051 = vmatpush1.msra.mxu0 0.0
        %4052 = vmatprep.subr.mxu0 0.0
        %4053 = vmatpush1.msra.mxu0 0.0
        %4054 = vmatprep.subr.mxu0 0.0
        %4055 = vmatpush1.msra.mxu0 0.0
        %4056 = vmatprep.subr.mxu0 0.0
        %4057 = vmatpush1.msra.mxu0 0.0
        %4058 = vmatprep.subr.mxu0 0.0
        %4059 = vmatpush1.msra.mxu0 0.0
        %4060 = vmatprep.subr.mxu0 0.0
        %4061 = vmatpush1.msra.mxu0 0.0
        %4062 = vmatprep.mubr.f32.mxu0 0.0
        %4063 = vmatmul.mubr.f32.gmra.mrb[0].mxu0 %v3903
        %v4064 = vpop.f32.mrb[0].mxu0
        %v4065 = vadd.f32 0.0, %v4064
        %v4066 = vpop.f32.mrb[0].mxu0
        %4067 = vmatprep.mubr.f32.mxu0 0.0
        %4068 = vmatmul.mubr.f32.gmra.mrb[0].mxu0 %v3906
        %v4069 = vpop.f32.mrb[0].mxu0
        %v4070 = vadd.f32 0.0, %v4069
        %v4071 = vpop.f32.mrb[0].mxu0
        %4072 = vmatprep.mubr.f32.mxu0 0.0
        %4073 = vmatmul.mubr.f32.gmra.mrb[0].mxu0 %v3909
        %v4074 = vpop.f32.mrb[0].mxu0
        %v4075 = vadd.f32 0.0, %v4074
        %v4076 = vpop.f32.mrb[0].mxu0
        %4077 = vmatprep.mubr.f32.mxu0 0.0
        %4078 = vmatmul.mubr.f32.gmra.mrb[0].mxu0 %v3912
        %v4079 = vpop.f32.mrb[0].mxu0
        %v4080 = vadd.f32 0.0, %v4079
        %v4081 = vpop.f32.mrb[0].mxu0
        %4082 = vmatprep.mubr.f32.mxu0 0.0
        %4083 = vmatmul.mubr.f32.gmra.mrb[0].mxu0 %v3915
        %v4084 = vpop.f32.mrb[0].mxu0
        %v4085 = vadd.f32 0.0, %v4084
        %v4086 = vpop.f32.mrb[0].mxu0
        %4087 = vmatprep.mubr.f32.mxu0 0.0
        %4088 = vmatmul.mubr.f32.gmra.mrb[0].mxu0 %v3918
        %v4089 = vpop.f32.mrb[0].mxu0
        %v4090 = vadd.f32 0.0, %v4089
        %v4091 = vpop.f32.mrb[0].mxu0
        %4092 = vmatprep.mubr.f32.mxu0 0.0
        %4093 = vmatmul.mubr.f32.gmra.mrb[0].mxu0 %v3921
        %v4094 = vpop.f32.mrb[0].mxu0
        %v4095 = vadd.f32 0.0, %v4094
        %v4096 = vpop.f32.mrb[0].mxu0
        %4097 = vmatprep.mubr.f32.mxu0 0.0
        %4098 = vmatmul.mubr.f32.gmra.mrb[0].mxu0 %v3924
        %v4099 = vpop.f32.mrb[0].mxu0
        %v4100 = vadd.f32 0.0, %v4099
        %v4101 = vpop.f32.mrb[0].mxu0
        %4102 = vmatprep.mubr.f32.mxu0 0.0
        %4103 = vmatmul.mubr.f32.gmra.mrb[0].mxu0 %v3927
        %v4104 = vpop.f32.mrb[0].mxu0
        %v4105 = vadd.f32 0.0, %v4104
        %v4106 = vpop.f32.mrb[0].mxu0
        %4107 = vmatprep.mubr.f32.mxu0 0.0
        %4108 = vmatmul.mubr.f32.gmra.mrb[0].mxu0 %v3930
        %v4109 = vpop.f32.mrb[0].mxu0
        %v4110 = vadd.f32 0.0, %v4109
        %v4111 = vpop.f32.mrb[0].mxu0
        %4112 = vmatprep.mubr.f32.mxu0 0.0
        %4113 = vmatmul.mubr.f32.gmra.mrb[0].mxu0 %v3933
        %v4114 = vpop.f32.mrb[0].mxu0
        %v4115 = vadd.f32 0.0, %v4114
        %v4116 = vpop.f32.mrb[0].mxu0
        %4117 = vmatprep.mubr.f32.mxu0 0.0
        %4118 = vmatmul.mubr.f32.gmra.mrb[0].mxu0 %v3936
        %v4119 = vpop.f32.mrb[0].mxu0
        %v4120 = vadd.f32 0.0, %v4119
        %v4121 = vpop.f32.mrb[0].mxu0
        %4122 = vmatprep.mubr.f32.mxu0 0.0
        %4123 = vmatmul.mubr.f32.gmra.mrb[0].mxu0 %v3939
        %v4124 = vpop.f32.mrb[0].mxu0
        %v4125 = vadd.f32 0.0, %v4124
        %v4126 = vpop.f32.mrb[0].mxu0
        %4127 = vmatprep.mubr.f32.mxu0 0.0
        %4128 = vmatmul.mubr.f32.gmra.mrb[0].mxu0 %v3942
        %v4129 = vpop.f32.mrb[0].mxu0
        %v4130 = vadd.f32 0.0, %v4129
        %v4131 = vpop.f32.mrb[0].mxu0
        %4132 = vmatprep.mubr.f32.mxu0 0.0
        %4133 = vmatmul.mubr.f32.gmra.mrb[0].mxu0 %v3945
        %v4134 = vpop.f32.mrb[0].mxu0
        %v4135 = vadd.f32 0.0, %v4134
        %v4136 = vpop.f32.mrb[0].mxu0
        %4137 = vmatprep.mubr.f32.mxu0 0.0
        %4138 = vmatmul.mubr.f32.gmra.mrb[0].mxu0 %v3948
        %v4139 = vpop.f32.mrb[0].mxu0
        %v4140 = vadd.f32 0.0, %v4139
        %v4141 = vpop.f32.mrb[0].mxu0
        %4142 = vmatprep.mubr.f32.mxu0 0.0
        %4143 = vmatmul.mubr.f32.gmra.mrb[0].mxu0 %v3951
        %v4144 = vpop.f32.mrb[0].mxu0
        %v4145 = vadd.f32 0.0, %v4144
        %v4146 = vpop.f32.mrb[0].mxu0
        %4147 = vmatprep.mubr.f32.mxu0 0.0
        %4148 = vmatmul.mubr.f32.gmra.mrb[0].mxu0 %v3954
        %v4149 = vpop.f32.mrb[0].mxu0
        %v4150 = vadd.f32 0.0, %v4149
        %v4151 = vpop.f32.mrb[0].mxu0
        %4152 = vmatprep.mubr.f32.mxu0 0.0
        %4153 = vmatmul.mubr.f32.gmra.mrb[0].mxu0 %v3957
        %v4154 = vpop.f32.mrb[0].mxu0
        %v4155 = vadd.f32 0.0, %v4154
        %v4156 = vpop.f32.mrb[0].mxu0
        %4157 = vmatprep.mubr.f32.mxu0 0.0
        %4158 = vmatmul.mubr.f32.gmra.mrb[0].mxu0 %v3960
        %v4159 = vpop.f32.mrb[0].mxu0
        %v4160 = vadd.f32 0.0, %v4159
        %v4161 = vpop.f32.mrb[0].mxu0
        %4162 = vmatprep.mubr.f32.mxu0 0.0
        %4163 = vmatmul.mubr.f32.gmra.mrb[0].mxu0 %v3963
        %v4164 = vpop.f32.mrb[0].mxu0
        %v4165 = vadd.f32 0.0, %v4164
        %v4166 = vpop.f32.mrb[0].mxu0
        %4167 = vmatprep.mubr.f32.mxu0 0.0
        %4168 = vmatmul.mubr.f32.gmra.mrb[0].mxu0 %v3966
        %v4169 = vpop.f32.mrb[0].mxu0
        %v4170 = vadd.f32 0.0, %v4169
        %v4171 = vpop.f32.mrb[0].mxu0
        %4172 = vmatprep.mubr.f32.mxu0 0.0
        %4173 = vmatmul.mubr.f32.gmra.mrb[0].mxu0 %v3969
        %v4174 = vpop.f32.mrb[0].mxu0
        %v4175 = vadd.f32 0.0, %v4174
        %v4176 = vpop.f32.mrb[0].mxu0
        %4177 = vmatprep.mubr.f32.mxu0 0.0
        %4178 = vmatmul.mubr.f32.gmra.mrb[0].mxu0 %v3972
        %v4179 = vpop.f32.mrb[0].mxu0
        %v4180 = vadd.f32 0.0, %v4179
        %v4181 = vpop.f32.mrb[0].mxu0
        %4182 = vmatprep.mubr.f32.mxu0 0.0
        %4183 = vmatmul.mubr.f32.gmra.mrb[0].mxu0 %v3975
        %v4184 = vpop.f32.mrb[0].mxu0
        %v4185 = vadd.f32 0.0, %v4184
        %v4186 = vpop.f32.mrb[0].mxu0
        %4187 = vmatprep.mubr.f32.mxu0 0.0
        %4188 = vmatmul.mubr.f32.gmra.mrb[0].mxu0 %v3978
        %v4189 = vpop.f32.mrb[0].mxu0
        %v4190 = vadd.f32 0.0, %v4189
        %v4191 = vpop.f32.mrb[0].mxu0
        %4192 = vmatprep.mubr.f32.mxu0 0.0
        %4193 = vmatmul.mubr.f32.gmra.mrb[0].mxu0 %v3981
        %v4194 = vpop.f32.mrb[0].mxu0
        %v4195 = vadd.f32 0.0, %v4194
        %v4196 = vpop.f32.mrb[0].mxu0
        %4197 = vmatprep.mubr.f32.mxu0 0.0
        %4198 = vmatmul.mubr.f32.gmra.mrb[0].mxu0 %v3984
        %v4199 = vpop.f32.mrb[0].mxu0
        %v4200 = vadd.f32 0.0, %v4199
        %v4201 = vpop.f32.mrb[0].mxu0
        %4202 = vmatprep.mubr.f32.mxu0 0.0
        %4203 = vmatmul.mubr.f32.gmra.mrb[0].mxu0 %v3987
        %v4204 = vpop.f32.mrb[0].mxu0
        %v4205 = vadd.f32 0.0, %v4204
        %v4206 = vpop.f32.mrb[0].mxu0
        %4207 = vmatprep.mubr.f32.mxu0 0.0
        %4208 = vmatmul.mubr.f32.gmra.mrb[0].mxu0 %v3990
        %v4209 = vpop.f32.mrb[0].mxu0
        %v4210 = vadd.f32 0.0, %v4209
        %v4211 = vpop.f32.mrb[0].mxu0
        %4212 = vmatprep.mubr.f32.mxu0 0.0
        %4213 = vmatmul.mubr.f32.gmra.mrb[0].mxu0 %v3993
        %v4214 = vpop.f32.mrb[0].mxu0
        %v4215 = vadd.f32 0.0, %v4214
        %v4216 = vpop.f32.mrb[0].mxu0
        %4217 = vmatprep.mubr.f32.mxu0 0.0
        %4218 = vmatmul.mubr.f32.gmra.mrb[0].mxu0 %v3996
        %v4219 = vpop.f32.mrb[0].mxu0
        %v4220 = vadd.f32 0.0, %v4219
        %v4221 = vpop.f32.mrb[0].mxu0
        %4222 = vdwg.mxu0
        %v4223 = vadd.f32 %v3833, %v4065
        %v4224 = vadd.f32 %v3834, %v4070
        %v4225 = vadd.f32 %v3835, %v4075
        %v4226 = vadd.f32 %v3836, %v4080
        %v4227 = vadd.f32 %v3837, %v4085
        %v4228 = vadd.f32 %v3838, %v4090
        %v4229 = vadd.f32 %v3839, %v4095
        %v4230 = vadd.f32 %v3840, %v4100
        %v4231 = vadd.f32 %v3841, %v4105
        %v4232 = vadd.f32 %v3842, %v4110
        %v4233 = vadd.f32 %v3843, %v4115
        %v4234 = vadd.f32 %v3844, %v4120
        %v4235 = vadd.f32 %v3845, %v4125
        %v4236 = vadd.f32 %v3846, %v4130
        %v4237 = vadd.f32 %v3847, %v4135
        %v4238 = vadd.f32 %v3848, %v4140
        %v4239 = vadd.f32 %v3849, %v4145
        %v4240 = vadd.f32 %v3850, %v4150
        %v4241 = vadd.f32 %v3851, %v4155
        %v4242 = vadd.f32 %v3852, %v4160
        %v4243 = vadd.f32 %v3853, %v4165
        %v4244 = vadd.f32 %v3854, %v4170
        %v4245 = vadd.f32 %v3855, %v4175
        %v4246 = vadd.f32 %v3856, %v4180
        %v4247 = vadd.f32 %v3857, %v4185
        %v4248 = vadd.f32 %v3858, %v4190
        %v4249 = vadd.f32 %v3859, %v4195
        %v4250 = vadd.f32 %v3860, %v4200
        %v4251 = vadd.f32 %v3861, %v4205
        %v4252 = vadd.f32 %v3862, %v4210
        %v4253 = vadd.f32 %v3863, %v4215
        %v4254 = vadd.f32 %v3864, %v4220
        %v4255 = vld [vmem:[%s3474 + $0x2] sm:$0xff]
        %v4256 = vld [vmem:[%s3474 + $0xa] sm:$0xff]
        %v4257 = vld [vmem:[%s3474 + $0x1a] sm:$0xff]
        %v4258 = vld [vmem:[%s3474 + $0x22] sm:$0xff]
        %v4259 = vld [vmem:[%s3474 + $0x32] sm:$0xff]
        %v4260 = vld [vmem:[%s3474 + $0x3a] sm:$0xff]
        %v4261 = vld [vmem:[%s3474 + $0x4a] sm:$0xff]
        %v4262 = vld [vmem:[%s3474 + $0x52] sm:$0xff]
        %v4263 = vld [vmem:[%s3474 + $0x62] sm:$0xff]
        %v4264 = vld [vmem:[%s3474 + $0x6a] sm:$0xff]
        %v4265 = vld [vmem:[%s3474 + $0x7a] sm:$0xff]
        %v4266 = vld [vmem:[%s3474 + $0x82] sm:$0xff]
        %v4267 = vld [vmem:[%s3474 + $0x92] sm:$0xff]
        %v4268 = vld [vmem:[%s3474 + $0x9a] sm:$0xff]
        %v4269 = vld [vmem:[%s3474 + $0xaa] sm:$0xff]
        %v4270 = vld [vmem:[%s3474 + $0xb2] sm:$0xff]
        %v4271 = vld [vmem:[%s3474 + $0xc2] sm:$0xff]
        %v4272 = vld [vmem:[%s3474 + $0xca] sm:$0xff]
        %v4273 = vld [vmem:[%s3474 + $0xda] sm:$0xff]
        %v4274 = vld [vmem:[%s3474 + $0xe2] sm:$0xff]
        %v4275 = vld [vmem:[%s3474 + $0xf2] sm:$0xff]
        %v4276 = vld [vmem:[%s3474 + $0xfa] sm:$0xff]
        %v4277 = vld [vmem:[%s3474 + $0x10a] sm:$0xff]
        %v4278 = vld [vmem:[%s3474 + $0x112] sm:$0xff]
        %v4279 = vld [vmem:[%s3474 + $0x122] sm:$0xff]
        %v4280 = vld [vmem:[%s3474 + $0x12a] sm:$0xff]
        %v4281 = vld [vmem:[%s3474 + $0x13a] sm:$0xff]
        %v4282 = vld [vmem:[%s3474 + $0x142] sm:$0xff]
        %v4283 = vld [vmem:[%s3474 + $0x152] sm:$0xff]
        %v4284 = vld [vmem:[%s3474 + $0x15a] sm:$0xff]
        %v4285 = vld [vmem:[%s3474 + $0x16a] sm:$0xff]
        %v4286 = vld [vmem:[%s3474 + $0x172] sm:$0xff]
        %s4287 = scalar_lea.vmem %s3, 256
        %v4288 = vld [vmem:[%s4287] sm:$0xff]
        %v4289 = vld [vmem:[%s4287 + $0x8] sm:$0xff]
        %v4290 = vld [vmem:[%s4287 + $0x10] sm:$0xff]
        %v4291 = vld [vmem:[%s4287 + $0x18] sm:$0xff]
        %v4293 = vsel %vm1143, %v4255, 0
        %v4296 = vsel %vm1143, %v4256, 0
        %v4299 = vsel %vm1143, %v4257, 0
        %v4302 = vsel %vm1143, %v4258, 0
        %v4305 = vsel %vm1143, %v4259, 0
        %v4308 = vsel %vm1143, %v4260, 0
        %v4311 = vsel %vm1143, %v4261, 0
        %v4314 = vsel %vm1143, %v4262, 0
        %v4317 = vsel %vm1143, %v4263, 0
        %v4320 = vsel %vm1143, %v4264, 0
        %v4323 = vsel %vm1143, %v4265, 0
        %v4326 = vsel %vm1143, %v4266, 0
        %v4329 = vsel %vm1143, %v4267, 0
        %v4332 = vsel %vm1143, %v4268, 0
        %v4335 = vsel %vm1143, %v4269, 0
        %v4338 = vsel %vm1143, %v4270, 0
        %v4341 = vsel %vm1143, %v4271, 0
        %v4344 = vsel %vm1143, %v4272, 0
        %v4347 = vsel %vm1143, %v4273, 0
        %v4350 = vsel %vm1143, %v4274, 0
        %v4353 = vsel %vm1143, %v4275, 0
        %v4356 = vsel %vm1143, %v4276, 0
        %v4359 = vsel %vm1143, %v4277, 0
        %v4362 = vsel %vm1143, %v4278, 0
        %v4365 = vsel %vm1143, %v4279, 0
        %v4368 = vsel %vm1143, %v4280, 0
        %v4371 = vsel %vm1143, %v4281, 0
        %v4374 = vsel %vm1143, %v4282, 0
        %v4377 = vsel %vm1143, %v4283, 0
        %v4380 = vsel %vm1143, %v4284, 0
        %v4383 = vsel %vm1143, %v4285, 0
        %v4386 = vsel %vm1143, %v4286, 0
        %4388 = vmatprep.subr.mxu0 0.0
        %4389 = vmatpush1.msra.mxu0 %v4288
        %4390 = vmatprep.subr.mxu0 0.0
        %4391 = vmatpush1.msra.mxu0 %v4289
        %4392 = vmatprep.subr.mxu0 0.0
        %4393 = vmatpush1.msra.mxu0 %v4290
        %4394 = vmatprep.subr.mxu0 0.0
        %4395 = vmatpush1.msra.mxu0 %v4291
        %4396 = vmatprep.subr.mxu0 0.0
        %4397 = vmatpush1.msra.mxu0 0.0
        %4398 = vmatprep.subr.mxu0 0.0
        %4399 = vmatpush1.msra.mxu0 0.0
        %4400 = vmatprep.subr.mxu0 0.0
        %4401 = vmatpush1.msra.mxu0 0.0
        %4402 = vmatprep.subr.mxu0 0.0
        %4403 = vmatpush1.msra.mxu0 0.0
        %4404 = vmatprep.subr.mxu0 0.0
        %4405 = vmatpush1.msra.mxu0 0.0
        %4406 = vmatprep.subr.mxu0 0.0
        %4407 = vmatpush1.msra.mxu0 0.0
        %4408 = vmatprep.subr.mxu0 0.0
        %4409 = vmatpush1.msra.mxu0 0.0
        %4410 = vmatprep.subr.mxu0 0.0
        %4411 = vmatpush1.msra.mxu0 0.0
        %4412 = vmatprep.subr.mxu0 0.0
        %4413 = vmatpush1.msra.mxu0 0.0
        %4414 = vmatprep.subr.mxu0 0.0
        %4415 = vmatpush1.msra.mxu0 0.0
        %4416 = vmatprep.subr.mxu0 0.0
        %4417 = vmatpush1.msra.mxu0 0.0
        %4418 = vmatprep.subr.mxu0 0.0
        %4419 = vmatpush1.msra.mxu0 0.0
        %4420 = vmatprep.subr.mxu0 0.0
        %4421 = vmatpush1.msra.mxu0 0.0
        %4422 = vmatprep.subr.mxu0 0.0
        %4423 = vmatpush1.msra.mxu0 0.0
        %4424 = vmatprep.subr.mxu0 0.0
        %4425 = vmatpush1.msra.mxu0 0.0
        %4426 = vmatprep.subr.mxu0 0.0
        %4427 = vmatpush1.msra.mxu0 0.0
        %4428 = vmatprep.subr.mxu0 0.0
        %4429 = vmatpush1.msra.mxu0 0.0
        %4430 = vmatprep.subr.mxu0 0.0
        %4431 = vmatpush1.msra.mxu0 0.0
        %4432 = vmatprep.subr.mxu0 0.0
        %4433 = vmatpush1.msra.mxu0 0.0
        %4434 = vmatprep.subr.mxu0 0.0
        %4435 = vmatpush1.msra.mxu0 0.0
        %4436 = vmatprep.subr.mxu0 0.0
        %4437 = vmatpush1.msra.mxu0 0.0
        %4438 = vmatprep.subr.mxu0 0.0
        %4439 = vmatpush1.msra.mxu0 0.0
        %4440 = vmatprep.subr.mxu0 0.0
        %4441 = vmatpush1.msra.mxu0 0.0
        %4442 = vmatprep.subr.mxu0 0.0
        %4443 = vmatpush1.msra.mxu0 0.0
        %4444 = vmatprep.subr.mxu0 0.0
        %4445 = vmatpush1.msra.mxu0 0.0
        %4446 = vmatprep.subr.mxu0 0.0
        %4447 = vmatpush1.msra.mxu0 0.0
        %4448 = vmatprep.subr.mxu0 0.0
        %4449 = vmatpush1.msra.mxu0 0.0
        %4450 = vmatprep.subr.mxu0 0.0
        %4451 = vmatpush1.msra.mxu0 0.0
        %4452 = vmatprep.mubr.f32.mxu0 0.0
        %4453 = vmatmul.mubr.f32.gmra.mrb[0].mxu0 %v4293
        %v4454 = vpop.f32.mrb[0].mxu0
        %v4455 = vadd.f32 0.0, %v4454
        %v4456 = vpop.f32.mrb[0].mxu0
        %4457 = vmatprep.mubr.f32.mxu0 0.0
        %4458 = vmatmul.mubr.f32.gmra.mrb[0].mxu0 %v4296
        %v4459 = vpop.f32.mrb[0].mxu0
        %v4460 = vadd.f32 0.0, %v4459
        %v4461 = vpop.f32.mrb[0].mxu0
        %4462 = vmatprep.mubr.f32.mxu0 0.0
        %4463 = vmatmul.mubr.f32.gmra.mrb[0].mxu0 %v4299
        %v4464 = vpop.f32.mrb[0].mxu0
        %v4465 = vadd.f32 0.0, %v4464
        %v4466 = vpop.f32.mrb[0].mxu0
        %4467 = vmatprep.mubr.f32.mxu0 0.0
        %4468 = vmatmul.mubr.f32.gmra.mrb[0].mxu0 %v4302
        %v4469 = vpop.f32.mrb[0].mxu0
        %v4470 = vadd.f32 0.0, %v4469
        %v4471 = vpop.f32.mrb[0].mxu0
        %4472 = vmatprep.mubr.f32.mxu0 0.0
        %4473 = vmatmul.mubr.f32.gmra.mrb[0].mxu0 %v4305
        %v4474 = vpop.f32.mrb[0].mxu0
        %v4475 = vadd.f32 0.0, %v4474
        %v4476 = vpop.f32.mrb[0].mxu0
        %4477 = vmatprep.mubr.f32.mxu0 0.0
        %4478 = vmatmul.mubr.f32.gmra.mrb[0].mxu0 %v4308
        %v4479 = vpop.f32.mrb[0].mxu0
        %v4480 = vadd.f32 0.0, %v4479
        %v4481 = vpop.f32.mrb[0].mxu0
        %4482 = vmatprep.mubr.f32.mxu0 0.0
        %4483 = vmatmul.mubr.f32.gmra.mrb[0].mxu0 %v4311
        %v4484 = vpop.f32.mrb[0].mxu0
        %v4485 = vadd.f32 0.0, %v4484
        %v4486 = vpop.f32.mrb[0].mxu0
        %4487 = vmatprep.mubr.f32.mxu0 0.0
        %4488 = vmatmul.mubr.f32.gmra.mrb[0].mxu0 %v4314
        %v4489 = vpop.f32.mrb[0].mxu0
        %v4490 = vadd.f32 0.0, %v4489
        %v4491 = vpop.f32.mrb[0].mxu0
        %4492 = vmatprep.mubr.f32.mxu0 0.0
        %4493 = vmatmul.mubr.f32.gmra.mrb[0].mxu0 %v4317
        %v4494 = vpop.f32.mrb[0].mxu0
        %v4495 = vadd.f32 0.0, %v4494
        %v4496 = vpop.f32.mrb[0].mxu0
        %4497 = vmatprep.mubr.f32.mxu0 0.0
        %4498 = vmatmul.mubr.f32.gmra.mrb[0].mxu0 %v4320
        %v4499 = vpop.f32.mrb[0].mxu0
        %v4500 = vadd.f32 0.0, %v4499
        %v4501 = vpop.f32.mrb[0].mxu0
        %4502 = vmatprep.mubr.f32.mxu0 0.0
        %4503 = vmatmul.mubr.f32.gmra.mrb[0].mxu0 %v4323
        %v4504 = vpop.f32.mrb[0].mxu0
        %v4505 = vadd.f32 0.0, %v4504
        %v4506 = vpop.f32.mrb[0].mxu0
        %4507 = vmatprep.mubr.f32.mxu0 0.0
        %4508 = vmatmul.mubr.f32.gmra.mrb[0].mxu0 %v4326
        %v4509 = vpop.f32.mrb[0].mxu0
        %v4510 = vadd.f32 0.0, %v4509
        %v4511 = vpop.f32.mrb[0].mxu0
        %4512 = vmatprep.mubr.f32.mxu0 0.0
        %4513 = vmatmul.mubr.f32.gmra.mrb[0].mxu0 %v4329
        %v4514 = vpop.f32.mrb[0].mxu0
        %v4515 = vadd.f32 0.0, %v4514
        %v4516 = vpop.f32.mrb[0].mxu0
        %4517 = vmatprep.mubr.f32.mxu0 0.0
        %4518 = vmatmul.mubr.f32.gmra.mrb[0].mxu0 %v4332
        %v4519 = vpop.f32.mrb[0].mxu0
        %v4520 = vadd.f32 0.0, %v4519
        %v4521 = vpop.f32.mrb[0].mxu0
        %4522 = vmatprep.mubr.f32.mxu0 0.0
        %4523 = vmatmul.mubr.f32.gmra.mrb[0].mxu0 %v4335
        %v4524 = vpop.f32.mrb[0].mxu0
        %v4525 = vadd.f32 0.0, %v4524
        %v4526 = vpop.f32.mrb[0].mxu0
        %4527 = vmatprep.mubr.f32.mxu0 0.0
        %4528 = vmatmul.mubr.f32.gmra.mrb[0].mxu0 %v4338
        %v4529 = vpop.f32.mrb[0].mxu0
        %v4530 = vadd.f32 0.0, %v4529
        %v4531 = vpop.f32.mrb[0].mxu0
        %4532 = vmatprep.mubr.f32.mxu0 0.0
        %4533 = vmatmul.mubr.f32.gmra.mrb[0].mxu0 %v4341
        %v4534 = vpop.f32.mrb[0].mxu0
        %v4535 = vadd.f32 0.0, %v4534
        %v4536 = vpop.f32.mrb[0].mxu0
        %4537 = vmatprep.mubr.f32.mxu0 0.0
        %4538 = vmatmul.mubr.f32.gmra.mrb[0].mxu0 %v4344
        %v4539 = vpop.f32.mrb[0].mxu0
        %v4540 = vadd.f32 0.0, %v4539
        %v4541 = vpop.f32.mrb[0].mxu0
        %4542 = vmatprep.mubr.f32.mxu0 0.0
        %4543 = vmatmul.mubr.f32.gmra.mrb[0].mxu0 %v4347
        %v4544 = vpop.f32.mrb[0].mxu0
        %v4545 = vadd.f32 0.0, %v4544
        %v4546 = vpop.f32.mrb[0].mxu0
        %4547 = vmatprep.mubr.f32.mxu0 0.0
        %4548 = vmatmul.mubr.f32.gmra.mrb[0].mxu0 %v4350
        %v4549 = vpop.f32.mrb[0].mxu0
        %v4550 = vadd.f32 0.0, %v4549
        %v4551 = vpop.f32.mrb[0].mxu0
        %4552 = vmatprep.mubr.f32.mxu0 0.0
        %4553 = vmatmul.mubr.f32.gmra.mrb[0].mxu0 %v4353
        %v4554 = vpop.f32.mrb[0].mxu0
        %v4555 = vadd.f32 0.0, %v4554
        %v4556 = vpop.f32.mrb[0].mxu0
        %4557 = vmatprep.mubr.f32.mxu0 0.0
        %4558 = vmatmul.mubr.f32.gmra.mrb[0].mxu0 %v4356
        %v4559 = vpop.f32.mrb[0].mxu0
        %v4560 = vadd.f32 0.0, %v4559
        %v4561 = vpop.f32.mrb[0].mxu0
        %4562 = vmatprep.mubr.f32.mxu0 0.0
        %4563 = vmatmul.mubr.f32.gmra.mrb[0].mxu0 %v4359
        %v4564 = vpop.f32.mrb[0].mxu0
        %v4565 = vadd.f32 0.0, %v4564
        %v4566 = vpop.f32.mrb[0].mxu0
        %4567 = vmatprep.mubr.f32.mxu0 0.0
        %4568 = vmatmul.mubr.f32.gmra.mrb[0].mxu0 %v4362
        %v4569 = vpop.f32.mrb[0].mxu0
        %v4570 = vadd.f32 0.0, %v4569
        %v4571 = vpop.f32.mrb[0].mxu0
        %4572 = vmatprep.mubr.f32.mxu0 0.0
        %4573 = vmatmul.mubr.f32.gmra.mrb[0].mxu0 %v4365
        %v4574 = vpop.f32.mrb[0].mxu0
        %v4575 = vadd.f32 0.0, %v4574
        %v4576 = vpop.f32.mrb[0].mxu0
        %4577 = vmatprep.mubr.f32.mxu0 0.0
        %4578 = vmatmul.mubr.f32.gmra.mrb[0].mxu0 %v4368
        %v4579 = vpop.f32.mrb[0].mxu0
        %v4580 = vadd.f32 0.0, %v4579
        %v4581 = vpop.f32.mrb[0].mxu0
        %4582 = vmatprep.mubr.f32.mxu0 0.0
        %4583 = vmatmul.mubr.f32.gmra.mrb[0].mxu0 %v4371
        %v4584 = vpop.f32.mrb[0].mxu0
        %v4585 = vadd.f32 0.0, %v4584
        %v4586 = vpop.f32.mrb[0].mxu0
        %4587 = vmatprep.mubr.f32.mxu0 0.0
        %4588 = vmatmul.mubr.f32.gmra.mrb[0].mxu0 %v4374
        %v4589 = vpop.f32.mrb[0].mxu0
        %v4590 = vadd.f32 0.0, %v4589
        %v4591 = vpop.f32.mrb[0].mxu0
        %4592 = vmatprep.mubr.f32.mxu0 0.0
        %4593 = vmatmul.mubr.f32.gmra.mrb[0].mxu0 %v4377
        %v4594 = vpop.f32.mrb[0].mxu0
        %v4595 = vadd.f32 0.0, %v4594
        %v4596 = vpop.f32.mrb[0].mxu0
        %4597 = vmatprep.mubr.f32.mxu0 0.0
        %4598 = vmatmul.mubr.f32.gmra.mrb[0].mxu0 %v4380
        %v4599 = vpop.f32.mrb[0].mxu0
        %v4600 = vadd.f32 0.0, %v4599
        %v4601 = vpop.f32.mrb[0].mxu0
        %4602 = vmatprep.mubr.f32.mxu0 0.0
        %4603 = vmatmul.mubr.f32.gmra.mrb[0].mxu0 %v4383
        %v4604 = vpop.f32.mrb[0].mxu0
        %v4605 = vadd.f32 0.0, %v4604
        %v4606 = vpop.f32.mrb[0].mxu0
        %4607 = vmatprep.mubr.f32.mxu0 0.0
        %4608 = vmatmul.mubr.f32.gmra.mrb[0].mxu0 %v4386
        %v4609 = vpop.f32.mrb[0].mxu0
        %v4610 = vadd.f32 0.0, %v4609
        %v4611 = vpop.f32.mrb[0].mxu0
        %4612 = vdwg.mxu0
        %v4613 = vadd.f32 %v4223, %v4455
        %v4614 = vadd.f32 %v4224, %v4460
        %v4615 = vadd.f32 %v4225, %v4465
        %v4616 = vadd.f32 %v4226, %v4470
        %v4617 = vadd.f32 %v4227, %v4475
        %v4618 = vadd.f32 %v4228, %v4480
        %v4619 = vadd.f32 %v4229, %v4485
        %v4620 = vadd.f32 %v4230, %v4490
        %v4621 = vadd.f32 %v4231, %v4495
        %v4622 = vadd.f32 %v4232, %v4500
        %v4623 = vadd.f32 %v4233, %v4505
        %v4624 = vadd.f32 %v4234, %v4510
        %v4625 = vadd.f32 %v4235, %v4515
        %v4626 = vadd.f32 %v4236, %v4520
        %v4627 = vadd.f32 %v4237, %v4525
        %v4628 = vadd.f32 %v4238, %v4530
        %v4629 = vadd.f32 %v4239, %v4535
        %v4630 = vadd.f32 %v4240, %v4540
        %v4631 = vadd.f32 %v4241, %v4545
        %v4632 = vadd.f32 %v4242, %v4550
        %v4633 = vadd.f32 %v4243, %v4555
        %v4634 = vadd.f32 %v4244, %v4560
        %v4635 = vadd.f32 %v4245, %v4565
        %v4636 = vadd.f32 %v4246, %v4570
        %v4637 = vadd.f32 %v4247, %v4575
        %v4638 = vadd.f32 %v4248, %v4580
        %v4639 = vadd.f32 %v4249, %v4585
        %v4640 = vadd.f32 %v4250, %v4590
        %v4641 = vadd.f32 %v4251, %v4595
        %v4642 = vadd.f32 %v4252, %v4600
        %v4643 = vadd.f32 %v4253, %v4605
        %v4644 = vadd.f32 %v4254, %v4610
        %v4645 = vld [vmem:[%s4] sm:$0x1]
        %v4647 = vlaneseq
        %v4648 = vshrl.u32 %v4647, 7
        %v4649 = vsub.s32 0, %v4648
        %v4650 = vrot.slane %v4645, %v4649
        %v4652 = vadd.f32 %v4613, %v4650
        %v4653 = vadd.f32 %v4614, %v4650
        %v4654 = vadd.f32 %v4615, %v4650
        %v4655 = vadd.f32 %v4616, %v4650
        %v4656 = vadd.f32 %v4617, %v4650
        %v4657 = vadd.f32 %v4618, %v4650
        %v4658 = vadd.f32 %v4619, %v4650
        %v4659 = vadd.f32 %v4620, %v4650
        %v4660 = vadd.f32 %v4621, %v4650
        %v4661 = vadd.f32 %v4622, %v4650
        %v4662 = vadd.f32 %v4623, %v4650
        %v4663 = vadd.f32 %v4624, %v4650
        %v4664 = vadd.f32 %v4625, %v4650
        %v4665 = vadd.f32 %v4626, %v4650
        %v4666 = vadd.f32 %v4627, %v4650
        %v4667 = vadd.f32 %v4628, %v4650
        %v4668 = vadd.f32 %v4629, %v4650
        %v4669 = vadd.f32 %v4630, %v4650
        %v4670 = vadd.f32 %v4631, %v4650
        %v4671 = vadd.f32 %v4632, %v4650
        %v4672 = vadd.f32 %v4633, %v4650
        %v4673 = vadd.f32 %v4634, %v4650
        %v4674 = vadd.f32 %v4635, %v4650
        %v4675 = vadd.f32 %v4636, %v4650
        %v4676 = vadd.f32 %v4637, %v4650
        %v4677 = vadd.f32 %v4638, %v4650
        %v4678 = vadd.f32 %v4639, %v4650
        %v4679 = vadd.f32 %v4640, %v4650
        %v4680 = vadd.f32 %v4641, %v4650
        %v4681 = vadd.f32 %v4642, %v4650
        %v4682 = vadd.f32 %v4643, %v4650
        %v4683 = vadd.f32 %v4644, %v4650
        %v4684 = vxor.u32 %v4652, 2147483648
        %v4685 = vxor.u32 %v4653, 2147483648
        %v4686 = vxor.u32 %v4654, 2147483648
        %v4687 = vxor.u32 %v4655, 2147483648
        %v4688 = vxor.u32 %v4656, 2147483648
        %v4689 = vxor.u32 %v4657, 2147483648
        %v4690 = vxor.u32 %v4658, 2147483648
        %v4691 = vxor.u32 %v4659, 2147483648
        %v4692 = vxor.u32 %v4660, 2147483648
        %v4693 = vxor.u32 %v4661, 2147483648
        %v4694 = vxor.u32 %v4662, 2147483648
        %v4695 = vxor.u32 %v4663, 2147483648
        %v4696 = vxor.u32 %v4664, 2147483648
        %v4697 = vxor.u32 %v4665, 2147483648
        %v4698 = vxor.u32 %v4666, 2147483648
        %v4699 = vxor.u32 %v4667, 2147483648
        %v4700 = vxor.u32 %v4668, 2147483648
        %v4701 = vxor.u32 %v4669, 2147483648
        %v4702 = vxor.u32 %v4670, 2147483648
        %v4703 = vxor.u32 %v4671, 2147483648
        %v4704 = vxor.u32 %v4672, 2147483648
        %v4705 = vxor.u32 %v4673, 2147483648
        %v4706 = vxor.u32 %v4674, 2147483648
        %v4707 = vxor.u32 %v4675, 2147483648
        %v4708 = vxor.u32 %v4676, 2147483648
        %v4709 = vxor.u32 %v4677, 2147483648
        %v4710 = vxor.u32 %v4678, 2147483648
        %v4711 = vxor.u32 %v4679, 2147483648
        %v4712 = vxor.u32 %v4680, 2147483648
        %v4713 = vxor.u32 %v4681, 2147483648
        %v4714 = vxor.u32 %v4682, 2147483648
        %v4715 = vxor.u32 %v4683, 2147483648
        %v4716 = vmul.f32 %v4684, 1.442695
        %v4717 = vpow.pop %v4716
        %v4718 = vmul.f32 %v4685, 1.442695
        %v4719 = vpow.pop %v4718
        %v4720 = vmul.f32 %v4686, 1.442695
        %v4721 = vpow.pop %v4720
        %v4722 = vmul.f32 %v4687, 1.442695
        %v4723 = vpow.pop %v4722
        %v4724 = vmul.f32 %v4688, 1.442695
        %v4725 = vpow.pop %v4724
        %v4726 = vmul.f32 %v4689, 1.442695
        %v4727 = vpow.pop %v4726
        %v4728 = vmul.f32 %v4690, 1.442695
        %v4729 = vpow.pop %v4728
        %v4730 = vmul.f32 %v4691, 1.442695
        %v4731 = vpow.pop %v4730
        %v4732 = vmul.f32 %v4692, 1.442695
        %v4733 = vpow.pop %v4732
        %v4734 = vmul.f32 %v4693, 1.442695
        %v4735 = vpow.pop %v4734
        %v4736 = vmul.f32 %v4694, 1.442695
        %v4737 = vpow.pop %v4736
        %v4738 = vmul.f32 %v4695, 1.442695
        %v4739 = vpow.pop %v4738
        %v4740 = vmul.f32 %v4696, 1.442695
        %v4741 = vpow.pop %v4740
        %v4742 = vmul.f32 %v4697, 1.442695
        %v4743 = vpow.pop %v4742
        %v4744 = vmul.f32 %v4698, 1.442695
        %v4745 = vpow.pop %v4744
        %v4746 = vmul.f32 %v4699, 1.442695
        %v4747 = vpow.pop %v4746
        %v4748 = vmul.f32 %v4700, 1.442695
        %v4749 = vpow.pop %v4748
        %v4750 = vmul.f32 %v4701, 1.442695
        %v4751 = vpow.pop %v4750
        %v4752 = vmul.f32 %v4702, 1.442695
        %v4753 = vpow.pop %v4752
        %v4754 = vmul.f32 %v4703, 1.442695
        %v4755 = vpow.pop %v4754
        %v4756 = vmul.f32 %v4704, 1.442695
        %v4757 = vpow.pop %v4756
        %v4758 = vmul.f32 %v4705, 1.442695
        %v4759 = vpow.pop %v4758
        %v4760 = vmul.f32 %v4706, 1.442695
        %v4761 = vpow.pop %v4760
        %v4762 = vmul.f32 %v4707, 1.442695
        %v4763 = vpow.pop %v4762
        %v4764 = vmul.f32 %v4708, 1.442695
        %v4765 = vpow.pop %v4764
        %v4766 = vmul.f32 %v4709, 1.442695
        %v4767 = vpow.pop %v4766
        %v4768 = vmul.f32 %v4710, 1.442695
        %v4769 = vpow.pop %v4768
        %v4770 = vmul.f32 %v4711, 1.442695
        %v4771 = vpow.pop %v4770
        %v4772 = vmul.f32 %v4712, 1.442695
        %v4773 = vpow.pop %v4772
        %v4774 = vmul.f32 %v4713, 1.442695
        %v4775 = vpow.pop %v4774
        %v4776 = vmul.f32 %v4714, 1.442695
        %v4777 = vpow.pop %v4776
        %v4778 = vmul.f32 %v4715, 1.442695
        %v4779 = vpow.pop %v4778
        %v4780 = vadd.f32 %v4717, 1.0
        %v4781 = vadd.f32 %v4719, 1.0
        %v4782 = vadd.f32 %v4721, 1.0
        %v4783 = vadd.f32 %v4723, 1.0
        %v4784 = vadd.f32 %v4725, 1.0
        %v4785 = vadd.f32 %v4727, 1.0
        %v4786 = vadd.f32 %v4729, 1.0
        %v4787 = vadd.f32 %v4731, 1.0
        %v4788 = vadd.f32 %v4733, 1.0
        %v4789 = vadd.f32 %v4735, 1.0
        %v4790 = vadd.f32 %v4737, 1.0
        %v4791 = vadd.f32 %v4739, 1.0
        %v4792 = vadd.f32 %v4741, 1.0
        %v4793 = vadd.f32 %v4743, 1.0
        %v4794 = vadd.f32 %v4745, 1.0
        %v4795 = vadd.f32 %v4747, 1.0
        %v4796 = vadd.f32 %v4749, 1.0
        %v4797 = vadd.f32 %v4751, 1.0
        %v4798 = vadd.f32 %v4753, 1.0
        %v4799 = vadd.f32 %v4755, 1.0
        %v4800 = vadd.f32 %v4757, 1.0
        %v4801 = vadd.f32 %v4759, 1.0
        %v4802 = vadd.f32 %v4761, 1.0
        %v4803 = vadd.f32 %v4763, 1.0
        %v4804 = vadd.f32 %v4765, 1.0
        %v4805 = vadd.f32 %v4767, 1.0
        %v4806 = vadd.f32 %v4769, 1.0
        %v4807 = vadd.f32 %v4771, 1.0
        %v4808 = vadd.f32 %v4773, 1.0
        %v4809 = vadd.f32 %v4775, 1.0
        %v4810 = vadd.f32 %v4777, 1.0
        %v4811 = vadd.f32 %v4779, 1.0
        %v4812 = vrcp.pop %v4780
        %v4813 = vmul.f32 1.0, %v4812
        %v4814 = vrcp.pop %v4781
        %v4815 = vmul.f32 1.0, %v4814
        %v4816 = vrcp.pop %v4782
        %v4817 = vmul.f32 1.0, %v4816
        %v4818 = vrcp.pop %v4783
        %v4819 = vmul.f32 1.0, %v4818
        %v4820 = vrcp.pop %v4784
        %v4821 = vmul.f32 1.0, %v4820
        %v4822 = vrcp.pop %v4785
        %v4823 = vmul.f32 1.0, %v4822
        %v4824 = vrcp.pop %v4786
        %v4825 = vmul.f32 1.0, %v4824
        %v4826 = vrcp.pop %v4787
        %v4827 = vmul.f32 1.0, %v4826
        %v4828 = vrcp.pop %v4788
        %v4829 = vmul.f32 1.0, %v4828
        %v4830 = vrcp.pop %v4789
        %v4831 = vmul.f32 1.0, %v4830
        %v4832 = vrcp.pop %v4790
        %v4833 = vmul.f32 1.0, %v4832
        %v4834 = vrcp.pop %v4791
        %v4835 = vmul.f32 1.0, %v4834
        %v4836 = vrcp.pop %v4792
        %v4837 = vmul.f32 1.0, %v4836
        %v4838 = vrcp.pop %v4793
        %v4839 = vmul.f32 1.0, %v4838
        %v4840 = vrcp.pop %v4794
        %v4841 = vmul.f32 1.0, %v4840
        %v4842 = vrcp.pop %v4795
        %v4843 = vmul.f32 1.0, %v4842
        %v4844 = vrcp.pop %v4796
        %v4845 = vmul.f32 1.0, %v4844
        %v4846 = vrcp.pop %v4797
        %v4847 = vmul.f32 1.0, %v4846
        %v4848 = vrcp.pop %v4798
        %v4849 = vmul.f32 1.0, %v4848
        %v4850 = vrcp.pop %v4799
        %v4851 = vmul.f32 1.0, %v4850
        %v4852 = vrcp.pop %v4800
        %v4853 = vmul.f32 1.0, %v4852
        %v4854 = vrcp.pop %v4801
        %v4855 = vmul.f32 1.0, %v4854
        %v4856 = vrcp.pop %v4802
        %v4857 = vmul.f32 1.0, %v4856
        %v4858 = vrcp.pop %v4803
        %v4859 = vmul.f32 1.0, %v4858
        %v4860 = vrcp.pop %v4804
        %v4861 = vmul.f32 1.0, %v4860
        %v4862 = vrcp.pop %v4805
        %v4863 = vmul.f32 1.0, %v4862
        %v4864 = vrcp.pop %v4806
        %v4865 = vmul.f32 1.0, %v4864
        %v4866 = vrcp.pop %v4807
        %v4867 = vmul.f32 1.0, %v4866
        %v4868 = vrcp.pop %v4808
        %v4869 = vmul.f32 1.0, %v4868
        %v4870 = vrcp.pop %v4809
        %v4871 = vmul.f32 1.0, %v4870
        %v4872 = vrcp.pop %v4810
        %v4873 = vmul.f32 1.0, %v4872
        %v4874 = vrcp.pop %v4811
        %v4875 = vmul.f32 1.0, %v4874
        %v4876 = vmul.f32 %v4652, %v4813
        %v4877 = vmul.f32 %v4653, %v4815
        %v4878 = vmul.f32 %v4654, %v4817
        %v4879 = vmul.f32 %v4655, %v4819
        %v4880 = vmul.f32 %v4656, %v4821
        %v4881 = vmul.f32 %v4657, %v4823
        %v4882 = vmul.f32 %v4658, %v4825
        %v4883 = vmul.f32 %v4659, %v4827
        %v4884 = vmul.f32 %v4660, %v4829
        %v4885 = vmul.f32 %v4661, %v4831
        %v4886 = vmul.f32 %v4662, %v4833
        %v4887 = vmul.f32 %v4663, %v4835
        %v4888 = vmul.f32 %v4664, %v4837
        %v4889 = vmul.f32 %v4665, %v4839
        %v4890 = vmul.f32 %v4666, %v4841
        %v4891 = vmul.f32 %v4667, %v4843
        %v4892 = vmul.f32 %v4668, %v4845
        %v4893 = vmul.f32 %v4669, %v4847
        %v4894 = vmul.f32 %v4670, %v4849
        %v4895 = vmul.f32 %v4671, %v4851
        %v4896 = vmul.f32 %v4672, %v4853
        %v4897 = vmul.f32 %v4673, %v4855
        %v4898 = vmul.f32 %v4674, %v4857
        %v4899 = vmul.f32 %v4675, %v4859
        %v4900 = vmul.f32 %v4676, %v4861
        %v4901 = vmul.f32 %v4677, %v4863
        %v4902 = vmul.f32 %v4678, %v4865
        %v4903 = vmul.f32 %v4679, %v4867
        %v4904 = vmul.f32 %v4680, %v4869
        %v4905 = vmul.f32 %v4681, %v4871
        %v4906 = vmul.f32 %v4682, %v4873
        %v4907 = vmul.f32 %v4683, %v4875
        %v4908 = vld [vmem:[%s5] sm:$0xff]
        %v4909 = vld [vmem:[%s5 + $0x8] sm:$0xff]
        %v4910 = vld [vmem:[%s5 + $0x10] sm:$0xff]
        %v4911 = vld [vmem:[%s5 + $0x18] sm:$0xff]
        %v4912 = vld [vmem:[%s6] sm:$0x1]
        %v4914 = vlaneseq
        %v4915 = vshrl.u32 %v4914, 7
        %v4916 = vsub.s32 0, %v4915
        %v4917 = vrot.slane %v4912, %v4916
        %v4920 = vsel %vm1143, %v4876, 0
        %v4923 = vsel %vm1143, %v4877, 0
        %v4926 = vsel %vm1143, %v4878, 0
        %v4929 = vsel %vm1143, %v4879, 0
        %v4932 = vsel %vm1143, %v4880, 0
        %v4935 = vsel %vm1143, %v4881, 0
        %v4938 = vsel %vm1143, %v4882, 0
        %v4941 = vsel %vm1143, %v4883, 0
        %v4944 = vsel %vm1143, %v4884, 0
        %v4947 = vsel %vm1143, %v4885, 0
        %v4950 = vsel %vm1143, %v4886, 0
        %v4953 = vsel %vm1143, %v4887, 0
        %v4956 = vsel %vm1143, %v4888, 0
        %v4959 = vsel %vm1143, %v4889, 0
        %v4962 = vsel %vm1143, %v4890, 0
        %v4965 = vsel %vm1143, %v4891, 0
        %v4968 = vsel %vm1143, %v4892, 0
        %v4971 = vsel %vm1143, %v4893, 0
        %v4974 = vsel %vm1143, %v4894, 0
        %v4977 = vsel %vm1143, %v4895, 0
        %v4980 = vsel %vm1143, %v4896, 0
        %v4983 = vsel %vm1143, %v4897, 0
        %v4986 = vsel %vm1143, %v4898, 0
        %v4989 = vsel %vm1143, %v4899, 0
        %v4992 = vsel %vm1143, %v4900, 0
        %v4995 = vsel %vm1143, %v4901, 0
        %v4998 = vsel %vm1143, %v4902, 0
        %v5001 = vsel %vm1143, %v4903, 0
        %v5004 = vsel %vm1143, %v4904, 0
        %v5007 = vsel %vm1143, %v4905, 0
        %v5010 = vsel %vm1143, %v4906, 0
        %v5013 = vsel %vm1143, %v4907, 0
        %5015 = vmatprep.subr.mxu0 0.0
        %5016 = vmatpush1.msra.mxu0 %v4908
        %5017 = vmatprep.subr.mxu0 0.0
        %5018 = vmatpush1.msra.mxu0 %v4909
        %5019 = vmatprep.subr.mxu0 0.0
        %5020 = vmatpush1.msra.mxu0 %v4910
        %5021 = vmatprep.subr.mxu0 0.0
        %5022 = vmatpush1.msra.mxu0 %v4911
        %5023 = vmatprep.subr.mxu0 0.0
        %5024 = vmatpush1.msra.mxu0 0.0
        %5025 = vmatprep.subr.mxu0 0.0
        %5026 = vmatpush1.msra.mxu0 0.0
        %5027 = vmatprep.subr.mxu0 0.0
        %5028 = vmatpush1.msra.mxu0 0.0
        %5029 = vmatprep.subr.mxu0 0.0
        %5030 = vmatpush1.msra.mxu0 0.0
        %5031 = vmatprep.subr.mxu0 0.0
        %5032 = vmatpush1.msra.mxu0 0.0
        %5033 = vmatprep.subr.mxu0 0.0
        %5034 = vmatpush1.msra.mxu0 0.0
        %5035 = vmatprep.subr.mxu0 0.0
        %5036 = vmatpush1.msra.mxu0 0.0
        %5037 = vmatprep.subr.mxu0 0.0
        %5038 = vmatpush1.msra.mxu0 0.0
        %5039 = vmatprep.subr.mxu0 0.0
        %5040 = vmatpush1.msra.mxu0 0.0
        %5041 = vmatprep.subr.mxu0 0.0
        %5042 = vmatpush1.msra.mxu0 0.0
        %5043 = vmatprep.subr.mxu0 0.0
        %5044 = vmatpush1.msra.mxu0 0.0
        %5045 = vmatprep.subr.mxu0 0.0
        %5046 = vmatpush1.msra.mxu0 0.0
        %5047 = vmatprep.subr.mxu0 0.0
        %5048 = vmatpush1.msra.mxu0 0.0
        %5049 = vmatprep.subr.mxu0 0.0
        %5050 = vmatpush1.msra.mxu0 0.0
        %5051 = vmatprep.subr.mxu0 0.0
        %5052 = vmatpush1.msra.mxu0 0.0
        %5053 = vmatprep.subr.mxu0 0.0
        %5054 = vmatpush1.msra.mxu0 0.0
        %5055 = vmatprep.subr.mxu0 0.0
        %5056 = vmatpush1.msra.mxu0 0.0
        %5057 = vmatprep.subr.mxu0 0.0
        %5058 = vmatpush1.msra.mxu0 0.0
        %5059 = vmatprep.subr.mxu0 0.0
        %5060 = vmatpush1.msra.mxu0 0.0
        %5061 = vmatprep.subr.mxu0 0.0
        %5062 = vmatpush1.msra.mxu0 0.0
        %5063 = vmatprep.subr.mxu0 0.0
        %5064 = vmatpush1.msra.mxu0 0.0
        %5065 = vmatprep.subr.mxu0 0.0
        %5066 = vmatpush1.msra.mxu0 0.0
        %5067 = vmatprep.subr.mxu0 0.0
        %5068 = vmatpush1.msra.mxu0 0.0
        %5069 = vmatprep.subr.mxu0 0.0
        %5070 = vmatpush1.msra.mxu0 0.0
        %5071 = vmatprep.subr.mxu0 0.0
        %5072 = vmatpush1.msra.mxu0 0.0
        %5073 = vmatprep.subr.mxu0 0.0
        %5074 = vmatpush1.msra.mxu0 0.0
        %5075 = vmatprep.subr.mxu0 0.0
        %5076 = vmatpush1.msra.mxu0 0.0
        %5077 = vmatprep.subr.mxu0 0.0
        %5078 = vmatpush1.msra.mxu0 0.0
        %5079 = vmatprep.mubr.f32.mxu0 0.0
        %5080 = vmatmul.mubr.f32.gmra.mrb[0].mxu0 %v4920
        %v5081 = vpop.f32.mrb[0].mxu0
        %v5082 = vadd.f32 %v4917, %v5081
        %v5083 = vpop.f32.mrb[0].mxu0
        %5084 = vmatprep.mubr.f32.mxu0 0.0
        %5085 = vmatmul.mubr.f32.gmra.mrb[0].mxu0 %v4923
        %v5086 = vpop.f32.mrb[0].mxu0
        %v5087 = vadd.f32 %v4917, %v5086
        %v5088 = vpop.f32.mrb[0].mxu0
        %5089 = vmatprep.mubr.f32.mxu0 0.0
        %5090 = vmatmul.mubr.f32.gmra.mrb[0].mxu0 %v4926
        %v5091 = vpop.f32.mrb[0].mxu0
        %v5092 = vadd.f32 %v4917, %v5091
        %v5093 = vpop.f32.mrb[0].mxu0
        %5094 = vmatprep.mubr.f32.mxu0 0.0
        %5095 = vmatmul.mubr.f32.gmra.mrb[0].mxu0 %v4929
        %v5096 = vpop.f32.mrb[0].mxu0
        %v5097 = vadd.f32 %v4917, %v5096
        %v5098 = vpop.f32.mrb[0].mxu0
        %5099 = vmatprep.mubr.f32.mxu0 0.0
        %5100 = vmatmul.mubr.f32.gmra.mrb[0].mxu0 %v4932
        %v5101 = vpop.f32.mrb[0].mxu0
        %v5102 = vadd.f32 %v4917, %v5101
        %v5103 = vpop.f32.mrb[0].mxu0
        %5104 = vmatprep.mubr.f32.mxu0 0.0
        %5105 = vmatmul.mubr.f32.gmra.mrb[0].mxu0 %v4935
        %v5106 = vpop.f32.mrb[0].mxu0
        %v5107 = vadd.f32 %v4917, %v5106
        %v5108 = vpop.f32.mrb[0].mxu0
        %5109 = vmatprep.mubr.f32.mxu0 0.0
        %5110 = vmatmul.mubr.f32.gmra.mrb[0].mxu0 %v4938
        %v5111 = vpop.f32.mrb[0].mxu0
        %v5112 = vadd.f32 %v4917, %v5111
        %v5113 = vpop.f32.mrb[0].mxu0
        %5114 = vmatprep.mubr.f32.mxu0 0.0
        %5115 = vmatmul.mubr.f32.gmra.mrb[0].mxu0 %v4941
        %v5116 = vpop.f32.mrb[0].mxu0
        %v5117 = vadd.f32 %v4917, %v5116
        %v5118 = vpop.f32.mrb[0].mxu0
        %5119 = vmatprep.mubr.f32.mxu0 0.0
        %5120 = vmatmul.mubr.f32.gmra.mrb[0].mxu0 %v4944
        %v5121 = vpop.f32.mrb[0].mxu0
        %v5122 = vadd.f32 %v4917, %v5121
        %v5123 = vpop.f32.mrb[0].mxu0
        %5124 = vmatprep.mubr.f32.mxu0 0.0
        %5125 = vmatmul.mubr.f32.gmra.mrb[0].mxu0 %v4947
        %v5126 = vpop.f32.mrb[0].mxu0
        %v5127 = vadd.f32 %v4917, %v5126
        %v5128 = vpop.f32.mrb[0].mxu0
        %5129 = vmatprep.mubr.f32.mxu0 0.0
        %5130 = vmatmul.mubr.f32.gmra.mrb[0].mxu0 %v4950
        %v5131 = vpop.f32.mrb[0].mxu0
        %v5132 = vadd.f32 %v4917, %v5131
        %v5133 = vpop.f32.mrb[0].mxu0
        %5134 = vmatprep.mubr.f32.mxu0 0.0
        %5135 = vmatmul.mubr.f32.gmra.mrb[0].mxu0 %v4953
        %v5136 = vpop.f32.mrb[0].mxu0
        %v5137 = vadd.f32 %v4917, %v5136
        %v5138 = vpop.f32.mrb[0].mxu0
        %5139 = vmatprep.mubr.f32.mxu0 0.0
        %5140 = vmatmul.mubr.f32.gmra.mrb[0].mxu0 %v4956
        %v5141 = vpop.f32.mrb[0].mxu0
        %v5142 = vadd.f32 %v4917, %v5141
        %v5143 = vpop.f32.mrb[0].mxu0
        %5144 = vmatprep.mubr.f32.mxu0 0.0
        %5145 = vmatmul.mubr.f32.gmra.mrb[0].mxu0 %v4959
        %v5146 = vpop.f32.mrb[0].mxu0
        %v5147 = vadd.f32 %v4917, %v5146
        %v5148 = vpop.f32.mrb[0].mxu0
        %5149 = vmatprep.mubr.f32.mxu0 0.0
        %5150 = vmatmul.mubr.f32.gmra.mrb[0].mxu0 %v4962
        %v5151 = vpop.f32.mrb[0].mxu0
        %v5152 = vadd.f32 %v4917, %v5151
        %v5153 = vpop.f32.mrb[0].mxu0
        %5154 = vmatprep.mubr.f32.mxu0 0.0
        %5155 = vmatmul.mubr.f32.gmra.mrb[0].mxu0 %v4965
        %v5156 = vpop.f32.mrb[0].mxu0
        %v5157 = vadd.f32 %v4917, %v5156
        %v5158 = vpop.f32.mrb[0].mxu0
        %5159 = vmatprep.mubr.f32.mxu0 0.0
        %5160 = vmatmul.mubr.f32.gmra.mrb[0].mxu0 %v4968
        %v5161 = vpop.f32.mrb[0].mxu0
        %v5162 = vadd.f32 %v4917, %v5161
        %v5163 = vpop.f32.mrb[0].mxu0
        %5164 = vmatprep.mubr.f32.mxu0 0.0
        %5165 = vmatmul.mubr.f32.gmra.mrb[0].mxu0 %v4971
        %v5166 = vpop.f32.mrb[0].mxu0
        %v5167 = vadd.f32 %v4917, %v5166
        %v5168 = vpop.f32.mrb[0].mxu0
        %5169 = vmatprep.mubr.f32.mxu0 0.0
        %5170 = vmatmul.mubr.f32.gmra.mrb[0].mxu0 %v4974
        %v5171 = vpop.f32.mrb[0].mxu0
        %v5172 = vadd.f32 %v4917, %v5171
        %v5173 = vpop.f32.mrb[0].mxu0
        %5174 = vmatprep.mubr.f32.mxu0 0.0
        %5175 = vmatmul.mubr.f32.gmra.mrb[0].mxu0 %v4977
        %v5176 = vpop.f32.mrb[0].mxu0
        %v5177 = vadd.f32 %v4917, %v5176
        %v5178 = vpop.f32.mrb[0].mxu0
        %5179 = vmatprep.mubr.f32.mxu0 0.0
        %5180 = vmatmul.mubr.f32.gmra.mrb[0].mxu0 %v4980
        %v5181 = vpop.f32.mrb[0].mxu0
        %v5182 = vadd.f32 %v4917, %v5181
        %v5183 = vpop.f32.mrb[0].mxu0
        %5184 = vmatprep.mubr.f32.mxu0 0.0
        %5185 = vmatmul.mubr.f32.gmra.mrb[0].mxu0 %v4983
        %v5186 = vpop.f32.mrb[0].mxu0
        %v5187 = vadd.f32 %v4917, %v5186
        %v5188 = vpop.f32.mrb[0].mxu0
        %5189 = vmatprep.mubr.f32.mxu0 0.0
        %5190 = vmatmul.mubr.f32.gmra.mrb[0].mxu0 %v4986
        %v5191 = vpop.f32.mrb[0].mxu0
        %v5192 = vadd.f32 %v4917, %v5191
        %v5193 = vpop.f32.mrb[0].mxu0
        %5194 = vmatprep.mubr.f32.mxu0 0.0
        %5195 = vmatmul.mubr.f32.gmra.mrb[0].mxu0 %v4989
        %v5196 = vpop.f32.mrb[0].mxu0
        %v5197 = vadd.f32 %v4917, %v5196
        %v5198 = vpop.f32.mrb[0].mxu0
        %5199 = vmatprep.mubr.f32.mxu0 0.0
        %5200 = vmatmul.mubr.f32.gmra.mrb[0].mxu0 %v4992
        %v5201 = vpop.f32.mrb[0].mxu0
        %v5202 = vadd.f32 %v4917, %v5201
        %v5203 = vpop.f32.mrb[0].mxu0
        %5204 = vmatprep.mubr.f32.mxu0 0.0
        %5205 = vmatmul.mubr.f32.gmra.mrb[0].mxu0 %v4995
        %v5206 = vpop.f32.mrb[0].mxu0
        %v5207 = vadd.f32 %v4917, %v5206
        %v5208 = vpop.f32.mrb[0].mxu0
        %5209 = vmatprep.mubr.f32.mxu0 0.0
        %5210 = vmatmul.mubr.f32.gmra.mrb[0].mxu0 %v4998
        %v5211 = vpop.f32.mrb[0].mxu0
        %v5212 = vadd.f32 %v4917, %v5211
        %v5213 = vpop.f32.mrb[0].mxu0
        %5214 = vmatprep.mubr.f32.mxu0 0.0
        %5215 = vmatmul.mubr.f32.gmra.mrb[0].mxu0 %v5001
        %v5216 = vpop.f32.mrb[0].mxu0
        %v5217 = vadd.f32 %v4917, %v5216
        %v5218 = vpop.f32.mrb[0].mxu0
        %5219 = vmatprep.mubr.f32.mxu0 0.0
        %5220 = vmatmul.mubr.f32.gmra.mrb[0].mxu0 %v5004
        %v5221 = vpop.f32.mrb[0].mxu0
        %v5222 = vadd.f32 %v4917, %v5221
        %v5223 = vpop.f32.mrb[0].mxu0
        %5224 = vmatprep.mubr.f32.mxu0 0.0
        %5225 = vmatmul.mubr.f32.gmra.mrb[0].mxu0 %v5007
        %v5226 = vpop.f32.mrb[0].mxu0
        %v5227 = vadd.f32 %v4917, %v5226
        %v5228 = vpop.f32.mrb[0].mxu0
        %5229 = vmatprep.mubr.f32.mxu0 0.0
        %5230 = vmatmul.mubr.f32.gmra.mrb[0].mxu0 %v5010
        %v5231 = vpop.f32.mrb[0].mxu0
        %v5232 = vadd.f32 %v4917, %v5231
        %v5233 = vpop.f32.mrb[0].mxu0
        %5234 = vmatprep.mubr.f32.mxu0 0.0
        %5235 = vmatmul.mubr.f32.gmra.mrb[0].mxu0 %v5013
        %v5236 = vpop.f32.mrb[0].mxu0
        %v5237 = vadd.f32 %v4917, %v5236
        %v5238 = vpop.f32.mrb[0].mxu0
        %5239 = vdwg.mxu0
        %s5240 = scalar_lea.vmem %s276, 24
        %v5241 = vld [vmem:[%s5240 + $0x1] sm:$0xff]
        %v5242 = vld [vmem:[%s5240 + $0x9] sm:$0xff]
        %v5243 = vld [vmem:[%s5240 + $0x19] sm:$0xff]
        %v5244 = vld [vmem:[%s5240 + $0x21] sm:$0xff]
        %v5245 = vld [vmem:[%s5240 + $0x31] sm:$0xff]
        %v5246 = vld [vmem:[%s5240 + $0x39] sm:$0xff]
        %v5247 = vld [vmem:[%s5240 + $0x49] sm:$0xff]
        %v5248 = vld [vmem:[%s5240 + $0x51] sm:$0xff]
        %v5249 = vld [vmem:[%s5240 + $0x61] sm:$0xff]
        %v5250 = vld [vmem:[%s5240 + $0x69] sm:$0xff]
        %v5251 = vld [vmem:[%s5240 + $0x79] sm:$0xff]
        %v5252 = vld [vmem:[%s5240 + $0x81] sm:$0xff]
        %v5253 = vld [vmem:[%s5240 + $0x91] sm:$0xff]
        %v5254 = vld [vmem:[%s5240 + $0x99] sm:$0xff]
        %v5255 = vld [vmem:[%s5240 + $0xa9] sm:$0xff]
        %v5256 = vld [vmem:[%s5240 + $0xb1] sm:$0xff]
        %v5257 = vld [vmem:[%s5240 + $0xc1] sm:$0xff]
        %v5258 = vld [vmem:[%s5240 + $0xc9] sm:$0xff]
        %v5259 = vld [vmem:[%s5240 + $0xd9] sm:$0xff]
        %v5260 = vld [vmem:[%s5240 + $0xe1] sm:$0xff]
        %v5261 = vld [vmem:[%s5240 + $0xf1] sm:$0xff]
        %v5262 = vld [vmem:[%s5240 + $0xf9] sm:$0xff]
        %v5263 = vld [vmem:[%s5240 + $0x109] sm:$0xff]
        %v5264 = vld [vmem:[%s5240 + $0x111] sm:$0xff]
        %v5265 = vld [vmem:[%s5240 + $0x121] sm:$0xff]
        %v5266 = vld [vmem:[%s5240 + $0x129] sm:$0xff]
        %v5267 = vld [vmem:[%s5240 + $0x139] sm:$0xff]
        %v5268 = vld [vmem:[%s5240 + $0x141] sm:$0xff]
        %v5269 = vld [vmem:[%s5240 + $0x151] sm:$0xff]
        %v5270 = vld [vmem:[%s5240 + $0x159] sm:$0xff]
        %v5271 = vld [vmem:[%s5240 + $0x169] sm:$0xff]
        %v5272 = vld [vmem:[%s5240 + $0x171] sm:$0xff]
        %v5273 = vadd.f32 %v5082, %v5241
        %v5274 = vadd.f32 %v5087, %v5242
        %v5275 = vadd.f32 %v5092, %v5243
        %v5276 = vadd.f32 %v5097, %v5244
        %v5277 = vadd.f32 %v5102, %v5245
        %v5278 = vadd.f32 %v5107, %v5246
        %v5279 = vadd.f32 %v5112, %v5247
        %v5280 = vadd.f32 %v5117, %v5248
        %v5281 = vadd.f32 %v5122, %v5249
        %v5282 = vadd.f32 %v5127, %v5250
        %v5283 = vadd.f32 %v5132, %v5251
        %v5284 = vadd.f32 %v5137, %v5252
        %v5285 = vadd.f32 %v5142, %v5253
        %v5286 = vadd.f32 %v5147, %v5254
        %v5287 = vadd.f32 %v5152, %v5255
        %v5288 = vadd.f32 %v5157, %v5256
        %v5289 = vadd.f32 %v5162, %v5257
        %v5290 = vadd.f32 %v5167, %v5258
        %v5291 = vadd.f32 %v5172, %v5259
        %v5292 = vadd.f32 %v5177, %v5260
        %v5293 = vadd.f32 %v5182, %v5261
        %v5294 = vadd.f32 %v5187, %v5262
        %v5295 = vadd.f32 %v5192, %v5263
        %v5296 = vadd.f32 %v5197, %v5264
        %v5297 = vadd.f32 %v5202, %v5265
        %v5298 = vadd.f32 %v5207, %v5266
        %v5299 = vadd.f32 %v5212, %v5267
        %v5300 = vadd.f32 %v5217, %v5268
        %v5301 = vadd.f32 %v5222, %v5269
        %v5302 = vadd.f32 %v5227, %v5270
        %v5303 = vadd.f32 %v5232, %v5271
        %v5304 = vadd.f32 %v5237, %v5272
        %v5305 = vmax.f32 %v5273, 0.0
        %v5306 = vmax.f32 %v5274, 0.0
        %v5307 = vmax.f32 %v5275, 0.0
        %v5308 = vmax.f32 %v5276, 0.0
        %v5309 = vmax.f32 %v5277, 0.0
        %v5310 = vmax.f32 %v5278, 0.0
        %v5311 = vmax.f32 %v5279, 0.0
        %v5312 = vmax.f32 %v5280, 0.0
        %v5313 = vmax.f32 %v5281, 0.0
        %v5314 = vmax.f32 %v5282, 0.0
        %v5315 = vmax.f32 %v5283, 0.0
        %v5316 = vmax.f32 %v5284, 0.0
        %v5317 = vmax.f32 %v5285, 0.0
        %v5318 = vmax.f32 %v5286, 0.0
        %v5319 = vmax.f32 %v5287, 0.0
        %v5320 = vmax.f32 %v5288, 0.0
        %v5321 = vmax.f32 %v5289, 0.0
        %v5322 = vmax.f32 %v5290, 0.0
        %v5323 = vmax.f32 %v5291, 0.0
        %v5324 = vmax.f32 %v5292, 0.0
        %v5325 = vmax.f32 %v5293, 0.0
        %v5326 = vmax.f32 %v5294, 0.0
        %v5327 = vmax.f32 %v5295, 0.0
        %v5328 = vmax.f32 %v5296, 0.0
        %v5329 = vmax.f32 %v5297, 0.0
        %v5330 = vmax.f32 %v5298, 0.0
        %v5331 = vmax.f32 %v5299, 0.0
        %v5332 = vmax.f32 %v5300, 0.0
        %v5333 = vmax.f32 %v5301, 0.0
        %v5334 = vmax.f32 %v5302, 0.0
        %v5335 = vmax.f32 %v5303, 0.0
        %v5336 = vmax.f32 %v5304, 0.0
        %5337 = vst [vmem:[%s271] sm:$0xff] %v5305
        %5338 = vst [vmem:[%s271 + $0x8] sm:$0xff] %v5306
        %5339 = vst [vmem:[%s271 + $0x10] sm:$0xff] %v5307
        %5340 = vst [vmem:[%s271 + $0x18] sm:$0xff] %v5308
        %5341 = vst [vmem:[%s271 + $0x20] sm:$0xff] %v5309
        %5342 = vst [vmem:[%s271 + $0x28] sm:$0xff] %v5310
        %5343 = vst [vmem:[%s271 + $0x30] sm:$0xff] %v5311
        %5344 = vst [vmem:[%s271 + $0x38] sm:$0xff] %v5312
        %5345 = vst [vmem:[%s271 + $0x40] sm:$0xff] %v5313
        %5346 = vst [vmem:[%s271 + $0x48] sm:$0xff] %v5314
        %5347 = vst [vmem:[%s271 + $0x50] sm:$0xff] %v5315
        %5348 = vst [vmem:[%s271 + $0x58] sm:$0xff] %v5316
        %5349 = vst [vmem:[%s271 + $0x60] sm:$0xff] %v5317
        %5350 = vst [vmem:[%s271 + $0x68] sm:$0xff] %v5318
        %5351 = vst [vmem:[%s271 + $0x70] sm:$0xff] %v5319
        %5352 = vst [vmem:[%s271 + $0x78] sm:$0xff] %v5320
        %5353 = vst [vmem:[%s271 + $0x80] sm:$0xff] %v5321
        %5354 = vst [vmem:[%s271 + $0x88] sm:$0xff] %v5322
        %5355 = vst [vmem:[%s271 + $0x90] sm:$0xff] %v5323
        %5356 = vst [vmem:[%s271 + $0x98] sm:$0xff] %v5324
        %5357 = vst [vmem:[%s271 + $0xa0] sm:$0xff] %v5325
        %5358 = vst [vmem:[%s271 + $0xa8] sm:$0xff] %v5326
        %5359 = vst [vmem:[%s271 + $0xb0] sm:$0xff] %v5327
        %5360 = vst [vmem:[%s271 + $0xb8] sm:$0xff] %v5328
        %5361 = vst [vmem:[%s271 + $0xc0] sm:$0xff] %v5329
        %5362 = vst [vmem:[%s271 + $0xc8] sm:$0xff] %v5330
        %5363 = vst [vmem:[%s271 + $0xd0] sm:$0xff] %v5331
        %5364 = vst [vmem:[%s271 + $0xd8] sm:$0xff] %v5332
        %5365 = vst [vmem:[%s271 + $0xe0] sm:$0xff] %v5333
        %5366 = vst [vmem:[%s271 + $0xe8] sm:$0xff] %v5334
        %5367 = vst [vmem:[%s271 + $0xf0] sm:$0xff] %v5335
        %5368 = vst [vmem:[%s271 + $0xf8] sm:$0xff] %v5336
        %s5369 = sand.u32 %s181, 1
        %s5370 = scalar_lea.sflag [#allocation4], %s5369
        %s5371 = sand.u32 %s181, 1
        %s5372 = smul.addr %s5371, 256
        %s5373 = scalar_lea.vmem [#allocation3], %s5372
        // Predicated region
        $region49: #{resnet_layer_forward.3} parent=47 // pred_check
          %p5374 = pneg %p191
        $region50: #{resnet_layer_forward.3} parent=47 // pred_check_branch
          %5376 = sbr.rel (%p5374) target = $region52
        $region51: #{resnet_layer_forward.3} parent=47 // pred_region
          %s5378 = ssub.s32 4096, 4096
          %5379 = vsyncadd %s5370, %s5378
          %s5380 = smul.addr %s21, 32
          %s5381 = smul.addr %s5380, 128
          %s5382 = scalar_lea.hbm %s7, %s5381
          %s5383 = sshll.u32 %s5373, 4
          %s5384 = int_to_ptr.vmem [resolvable:$true] %s5383
          %5389 = dma.vmem_to_hbm [thread:$0]  %s5384, 4096, %s5382, %s5370, 128, 128, 8
        $region52: #{resnet_layer_forward.3} parent=47 // pred_fallthru
          _
      $region48: #{resnet_layer_forward.3} parent=5 // pred_fallthru
        _
      %p5390 = scmp.le.s32.totalorder 2, %s16
      // Predicated region
      $region53: #{resnet_layer_forward.3} parent=5 // pred_check
        %p5391 = pneg %p5390
      $region54: #{resnet_layer_forward.3} parent=5 // pred_check_branch
        %5393 = sbr.rel (%p5391) target = $region56
      $region55: #{resnet_layer_forward.3} parent=5 // pred_region
        %s5394 = ssub.s32 %s16, 2
        // Predicated region
        $region57: #{resnet_layer_forward.3} parent=55 // pred_check
          %p5395 = pneg %p197
        $region58: #{resnet_layer_forward.3} parent=55 // pred_check_branch
          %5397 = sbr.rel (%p5395) target = $region60
        $region59: #{resnet_layer_forward.3} parent=55 // pred_region
          %s5398 = sand.u32 %s182, 1
          %s5399 = scalar_lea.sflag [#allocation4], %s5398
          %s5400 = sand.u32 %s182, 1
          %s5401 = smul.addr %s5400, 256
          %s5402 = scalar_lea.vmem [#allocation3], %s5401
          %5403 = dma.done %s5399, 4096
        $region60: #{resnet_layer_forward.3} parent=55 // pred_fallthru
          _
      $region56: #{resnet_layer_forward.3} parent=5 // pred_fallthru
        _
    $region6: #{resnet_layer_forward.3} parent=1 // loop_footer
      %s20 = sadd.s32 1, %s16
    $region7: #{resnet_layer_forward.3} parent=1 // loop_footer_branch
      %15 = sbr.rel target = $region3
    $region8: #{resnet_layer_forward.3} parent=1 // loop_exit
      _
    %5404 = vsyncpa [#allocation4], 1
    %s5405 = scalar_lea.sflag [#allocation4], 1
    %5406 = vsyncpa %s5405, 1

// kernel: resnet_layer_forward.2
$region0: #{resnet_layer_forward.2}
  #allocation0 [shape = 'u32[]', space=smem, size = 0x4, offset = 0x4, fixed_abs, tag = 'smem constant byte address 0x4 - core index']
  #allocation1 [shape = 'u32[144,128]{1,0:T(1,128)}', space=vmem, size = 0x12000, scoped, tag = 'internal scratch']
  #allocation2 [shape = 'f32[18,24,32]{2,1,0:T(8,128)}', space=vmem, size = 0x36000, scoped, tag = 'scratch operand']
  %s0 = inlined_call_operand.vmem [shape: f32[2,18,24,64], index: 0, kind: input, shape index: {}]
  %s1 = inlined_call_operand.vmem [shape: f32[64,32], index: 1, kind: input, shape index: {}]
  %s2 = inlined_call_operand.vmem [shape: f32[1,32], index: 2, kind: input, shape index: {}]
  %s3 = inlined_call_operand.vmem [shape: f32[9,32,32], index: 3, kind: input, shape index: {}]
  %s4 = inlined_call_operand.vmem [shape: f32[1,32], index: 4, kind: input, shape index: {}]
  %s5 = inlined_call_operand.vmem [shape: f32[32,128], index: 5, kind: input, shape index: {}]
  %s6 = inlined_call_operand.vmem [shape: f32[1,128], index: 6, kind: input, shape index: {}]
  %s7 = inlined_call_operand.vmem [shape: f32[64,128], index: 7, kind: input, shape index: {}]
  %s8 = inlined_call_operand.vmem [shape: f32[1,128], index: 8, kind: input, shape index: {}]
  %s9 = inlined_call_operand.vmem [shape: f32[2,16,16,128], index: 9, kind: output, shape index: {}]
  %s10 = sld [smem:[#allocation0]]
  $region69: #{resnet_layer_forward.2} parent=0
    _
  %s12 = ssub.s32 1, %s10
  %s13 = scalar_select 0, %s12, %s10
  loop: start=0, step=1, limit=4
  $region2: #{resnet_layer_forward.2} parent=0 // loop_pre_header
    _
  $region3: #{resnet_layer_forward.2} parent=0 // loop_header
    %s15 = sphi 0, %s19
    %p16 = scmp.ge.s32.totalorder %s15, 4
    %s25 = sphi 0, %s27
    %s28 = sphi 0, %s25
    %s29 = sphi 0, %s28
    %s45 = sphi 0, %s29
    %s49 = sphi 0, %s49
    %s51 = sphi 0, %s49
    %s52 = sphi 0, %s51
    %s66 = sphi 0, %s52
    %s70 = sphi 0, %s70
    %s72 = sphi 0, %s70
    %s73 = sphi 0, %s72
    %s87 = sphi 0, %s73
    %s91 = sphi 0, %s91
    %s93 = sphi 0, %s91
    %s94 = sphi 0, %s93
    %s108 = sphi 0, %s94
    %s112 = sphi 0, %s112
    %s114 = sphi 0, %s112
    %s115 = sphi 0, %s114
    %s129 = sphi 0, %s115
    %s133 = sphi 0, %s133
    %s135 = sphi 0, %s133
    %s136 = sphi 0, %s135
    %s150 = sphi 0, %s136
    %s154 = sphi 0, %s154
    %s156 = sphi 0, %s154
    %s157 = sphi 0, %s156
    %s171 = sphi 0, %s157
    %s175 = sphi 0, %s175
    %s177 = sphi 0, %s175
    %s178 = sphi 0, %s177
    %s192 = sphi 0, %s178
    %s196 = sphi 0, %s196
    %s198 = sphi 0, %s196
    %s199 = sphi 0, %s198
    %s213 = sphi 0, %s199
    %s219 = sphi 0, %s221
    %s222 = sphi 0, %s219
    %s223 = sphi 0, %s222
    %s239 = sphi 0, %s223
  $region4: #{resnet_layer_forward.2} parent=0 // loop_header_branch
    %18 = sbr.rel (%p16) target = $region8
  $region5: #{resnet_layer_forward.2} parent=0 // loop_body
    %s20 = ssub.s32 %s15, 1
    %s21 = ssub.s32 %s15, 2
    %s22 = sadd.s32 %s15, 1
    %s23 = ssub.s32 %s15, %s22
    %p24 = scmp.eq.s32.totalorder %s23, 0
    %s26 = sadd.s32 %s25, 1
    %s27 = scalar_select %p24, %s25, %s26
    %p30 = pneg %p24
    %p31 = scmp.eq.s32.totalorder %s15, 1
    %p32 = por %p30, %p31
    %p33 = scmp.ne.s32.totalorder %s25, %s28
    %p34 = scmp.eq.s32.totalorder %s15, 0
    %p35 = por %p33, %p34
    %p36 = scmp.ne.s32.totalorder %s25, %s28
    %p37 = scmp.eq.s32.totalorder %s20, 1
    %p38 = por %p36, %p37
    %p39 = scmp.ne.s32.totalorder %s28, %s29
    %p40 = scmp.eq.s32.totalorder %s20, 0
    %p41 = por %p39, %p40
    %p42 = scmp.ne.s32.totalorder %s28, %s29
    %p43 = scmp.eq.s32.totalorder %s21, 1
    %p44 = por %p42, %p43
    %p46 = scmp.ne.s32.totalorder %s29, %s45
    %p47 = scmp.eq.s32.totalorder %s21, 0
    %p48 = por %p46, %p47
    %s50 = sadd.s32 %s49, 1
    %p53 = scmp.eq.s32.totalorder %s15, 1
    %p54 = scmp.ne.s32.totalorder %s49, %s51
    %p55 = scmp.eq.s32.totalorder %s15, 0
    %p56 = por %p54, %p55
    %p57 = scmp.ne.s32.totalorder %s49, %s51
    %p58 = scmp.eq.s32.totalorder %s20, 1
    %p59 = por %p57, %p58
    %p60 = scmp.ne.s32.totalorder %s51, %s52
    %p61 = scmp.eq.s32.totalorder %s20, 0
    %p62 = por %p60, %p61
    %p63 = scmp.ne.s32.totalorder %s51, %s52
    %p64 = scmp.eq.s32.totalorder %s21, 1
    %p65 = por %p63, %p64
    %p67 = scmp.ne.s32.totalorder %s52, %s66
    %p68 = scmp.eq.s32.totalorder %s21, 0
    %p69 = por %p67, %p68
    %s71 = sadd.s32 %s70, 1
    %p74 = scmp.eq.s32.totalorder %s15, 1
    %p75 = scmp.ne.s32.totalorder %s70, %s72
    %p76 = scmp.eq.s32.totalorder %s15, 0
    %p77 = por %p75, %p76
    %p78 = scmp.ne.s32.totalorder %s70, %s72
    %p79 = scmp.eq.s32.totalorder %s20, 1
    %p80 = por %p78, %p79
    %p81 = scmp.ne.s32.totalorder %s72, %s73
    %p82 = scmp.eq.s32.totalorder %s20, 0
    %p83 = por %p81, %p82
    %p84 = scmp.ne.s32.totalorder %s72, %s73
    %p85 = scmp.eq.s32.totalorder %s21, 1
    %p86 = por %p84, %p85
    %p88 = scmp.ne.s32.totalorder %s73, %s87
    %p89 = scmp.eq.s32.totalorder %s21, 0
    %p90 = por %p88, %p89
    %s92 = sadd.s32 %s91, 1
    %p95 = scmp.eq.s32.totalorder %s15, 1
    %p96 = scmp.ne.s32.totalorder %s91, %s93
    %p97 = scmp.eq.s32.totalorder %s15, 0
    %p98 = por %p96, %p97
    %p99 = scmp.ne.s32.totalorder %s91, %s93
    %p100 = scmp.eq.s32.totalorder %s20, 1
    %p101 = por %p99, %p100
    %p102 = scmp.ne.s32.totalorder %s93, %s94
    %p103 = scmp.eq.s32.totalorder %s20, 0
    %p104 = por %p102, %p103
    %p105 = scmp.ne.s32.totalorder %s93, %s94
    %p106 = scmp.eq.s32.totalorder %s21, 1
    %p107 = por %p105, %p106
    %p109 = scmp.ne.s32.totalorder %s94, %s108
    %p110 = scmp.eq.s32.totalorder %s21, 0
    %p111 = por %p109, %p110
    %s113 = sadd.s32 %s112, 1
    %p116 = scmp.eq.s32.totalorder %s15, 1
    %p117 = scmp.ne.s32.totalorder %s112, %s114
    %p118 = scmp.eq.s32.totalorder %s15, 0
    %p119 = por %p117, %p118
    %p120 = scmp.ne.s32.totalorder %s112, %s114
    %p121 = scmp.eq.s32.totalorder %s20, 1
    %p122 = por %p120, %p121
    %p123 = scmp.ne.s32.totalorder %s114, %s115
    %p124 = scmp.eq.s32.totalorder %s20, 0
    %p125 = por %p123, %p124
    %p126 = scmp.ne.s32.totalorder %s114, %s115
    %p127 = scmp.eq.s32.totalorder %s21, 1
    %p128 = por %p126, %p127
    %p130 = scmp.ne.s32.totalorder %s115, %s129
    %p131 = scmp.eq.s32.totalorder %s21, 0
    %p132 = por %p130, %p131
    %s134 = sadd.s32 %s133, 1
    %p137 = scmp.eq.s32.totalorder %s15, 1
    %p138 = scmp.ne.s32.totalorder %s133, %s135
    %p139 = scmp.eq.s32.totalorder %s15, 0
    %p140 = por %p138, %p139
    %p141 = scmp.ne.s32.totalorder %s133, %s135
    %p142 = scmp.eq.s32.totalorder %s20, 1
    %p143 = por %p141, %p142
    %p144 = scmp.ne.s32.totalorder %s135, %s136
    %p145 = scmp.eq.s32.totalorder %s20, 0
    %p146 = por %p144, %p145
    %p147 = scmp.ne.s32.totalorder %s135, %s136
    %p148 = scmp.eq.s32.totalorder %s21, 1
    %p149 = por %p147, %p148
    %p151 = scmp.ne.s32.totalorder %s136, %s150
    %p152 = scmp.eq.s32.totalorder %s21, 0
    %p153 = por %p151, %p152
    %s155 = sadd.s32 %s154, 1
    %p158 = scmp.eq.s32.totalorder %s15, 1
    %p159 = scmp.ne.s32.totalorder %s154, %s156
    %p160 = scmp.eq.s32.totalorder %s15, 0
    %p161 = por %p159, %p160
    %p162 = scmp.ne.s32.totalorder %s154, %s156
    %p163 = scmp.eq.s32.totalorder %s20, 1
    %p164 = por %p162, %p163
    %p165 = scmp.ne.s32.totalorder %s156, %s157
    %p166 = scmp.eq.s32.totalorder %s20, 0
    %p167 = por %p165, %p166
    %p168 = scmp.ne.s32.totalorder %s156, %s157
    %p169 = scmp.eq.s32.totalorder %s21, 1
    %p170 = por %p168, %p169
    %p172 = scmp.ne.s32.totalorder %s157, %s171
    %p173 = scmp.eq.s32.totalorder %s21, 0
    %p174 = por %p172, %p173
    %s176 = sadd.s32 %s175, 1
    %p179 = scmp.eq.s32.totalorder %s15, 1
    %p180 = scmp.ne.s32.totalorder %s175, %s177
    %p181 = scmp.eq.s32.totalorder %s15, 0
    %p182 = por %p180, %p181
    %p183 = scmp.ne.s32.totalorder %s175, %s177
    %p184 = scmp.eq.s32.totalorder %s20, 1
    %p185 = por %p183, %p184
    %p186 = scmp.ne.s32.totalorder %s177, %s178
    %p187 = scmp.eq.s32.totalorder %s20, 0
    %p188 = por %p186, %p187
    %p189 = scmp.ne.s32.totalorder %s177, %s178
    %p190 = scmp.eq.s32.totalorder %s21, 1
    %p191 = por %p189, %p190
    %p193 = scmp.ne.s32.totalorder %s178, %s192
    %p194 = scmp.eq.s32.totalorder %s21, 0
    %p195 = por %p193, %p194
    %s197 = sadd.s32 %s196, 1
    %p200 = scmp.eq.s32.totalorder %s15, 1
    %p201 = scmp.ne.s32.totalorder %s196, %s198
    %p202 = scmp.eq.s32.totalorder %s15, 0
    %p203 = por %p201, %p202
    %p204 = scmp.ne.s32.totalorder %s196, %s198
    %p205 = scmp.eq.s32.totalorder %s20, 1
    %p206 = por %p204, %p205
    %p207 = scmp.ne.s32.totalorder %s198, %s199
    %p208 = scmp.eq.s32.totalorder %s20, 0
    %p209 = por %p207, %p208
    %p210 = scmp.ne.s32.totalorder %s198, %s199
    %p211 = scmp.eq.s32.totalorder %s21, 1
    %p212 = por %p210, %p211
    %p214 = scmp.ne.s32.totalorder %s199, %s213
    %p215 = scmp.eq.s32.totalorder %s21, 0
    %p216 = por %p214, %p215
    %s217 = ssub.s32 %s15, %s22
    %p218 = scmp.eq.s32.totalorder %s217, 0
    %s220 = sadd.s32 %s219, 1
    %s221 = scalar_select %p218, %s219, %s220
    %p224 = pneg %p218
    %p225 = scmp.eq.s32.totalorder %s15, 1
    %p226 = por %p224, %p225
    %p227 = scmp.ne.s32.totalorder %s219, %s222
    %p228 = scmp.eq.s32.totalorder %s15, 0
    %p229 = por %p227, %p228
    %p230 = scmp.ne.s32.totalorder %s219, %s222
    %p231 = scmp.eq.s32.totalorder %s20, 1
    %p232 = por %p230, %p231
    %p233 = scmp.ne.s32.totalorder %s222, %s223
    %p234 = scmp.eq.s32.totalorder %s20, 0
    %p235 = por %p233, %p234
    %p236 = scmp.ne.s32.totalorder %s222, %s223
    %p237 = scmp.eq.s32.totalorder %s21, 1
    %p238 = por %p236, %p237
    %p240 = scmp.ne.s32.totalorder %s223, %s239
    %p241 = scmp.eq.s32.totalorder %s21, 0
    %p242 = por %p240, %p241
    %p243 = scmp.le.s32.totalorder 1, %s15
    %p244 = scmp.lt.s32.totalorder %s15, 3
    %p245 = pnand %p243, %p244
    %p246 = pneg %p245
    // Predicated region
    $region9: #{resnet_layer_forward.2} parent=5 // pred_check
      _
    $region10: #{resnet_layer_forward.2} parent=5 // pred_check_branch
      %248 = sbr.rel (%p245) target = $region12
    $region11: #{resnet_layer_forward.2} parent=5 // pred_region
      %s249 = ssub.s32 %s15, 1
      // Predicated region
      $region13: #{resnet_layer_forward.2} parent=11 // pred_check
        %p250 = pneg %p62
      $region14: #{resnet_layer_forward.2} parent=11 // pred_check_branch
        %252 = sbr.rel (%p250) target = $region16
      $region15: #{resnet_layer_forward.2} parent=11 // pred_region
        _
      $region16: #{resnet_layer_forward.2} parent=11 // pred_fallthru
        _
      // Predicated region
      $region17: #{resnet_layer_forward.2} parent=11 // pred_check
        %p253 = pneg %p83
      $region18: #{resnet_layer_forward.2} parent=11 // pred_check_branch
        %255 = sbr.rel (%p253) target = $region20
      $region19: #{resnet_layer_forward.2} parent=11 // pred_region
        _
      $region20: #{resnet_layer_forward.2} parent=11 // pred_fallthru
        _
      // Predicated region
      $region21: #{resnet_layer_forward.2} parent=11 // pred_check
        %p256 = pneg %p104
      $region22: #{resnet_layer_forward.2} parent=11 // pred_check_branch
        %258 = sbr.rel (%p256) target = $region24
      $region23: #{resnet_layer_forward.2} parent=11 // pred_region
        _
      $region24: #{resnet_layer_forward.2} parent=11 // pred_fallthru
        _
      // Predicated region
      $region25: #{resnet_layer_forward.2} parent=11 // pred_check
        %p259 = pneg %p125
      $region26: #{resnet_layer_forward.2} parent=11 // pred_check_branch
        %261 = sbr.rel (%p259) target = $region28
      $region27: #{resnet_layer_forward.2} parent=11 // pred_region
        _
      $region28: #{resnet_layer_forward.2} parent=11 // pred_fallthru
        _
      // Predicated region
      $region29: #{resnet_layer_forward.2} parent=11 // pred_check
        %p262 = pneg %p146
      $region30: #{resnet_layer_forward.2} parent=11 // pred_check_branch
        %264 = sbr.rel (%p262) target = $region32
      $region31: #{resnet_layer_forward.2} parent=11 // pred_region
        _
      $region32: #{resnet_layer_forward.2} parent=11 // pred_fallthru
        _
      // Predicated region
      $region33: #{resnet_layer_forward.2} parent=11 // pred_check
        %p265 = pneg %p167
      $region34: #{resnet_layer_forward.2} parent=11 // pred_check_branch
        %267 = sbr.rel (%p265) target = $region36
      $region35: #{resnet_layer_forward.2} parent=11 // pred_region
        _
      $region36: #{resnet_layer_forward.2} parent=11 // pred_fallthru
        _
      // Predicated region
      $region37: #{resnet_layer_forward.2} parent=11 // pred_check
        %p268 = pneg %p188
      $region38: #{resnet_layer_forward.2} parent=11 // pred_check_branch
        %270 = sbr.rel (%p268) target = $region40
      $region39: #{resnet_layer_forward.2} parent=11 // pred_region
        _
      $region40: #{resnet_layer_forward.2} parent=11 // pred_fallthru
        _
      // Predicated region
      $region41: #{resnet_layer_forward.2} parent=11 // pred_check
        %p271 = pneg %p209
      $region42: #{resnet_layer_forward.2} parent=11 // pred_check_branch
        %273 = sbr.rel (%p271) target = $region44
      $region43: #{resnet_layer_forward.2} parent=11 // pred_region
        _
      $region44: #{resnet_layer_forward.2} parent=11 // pred_fallthru
        _
    $region12: #{resnet_layer_forward.2} parent=5 // pred_fallthru
      _
    %p274 = scmp.lt.s32.totalorder %s15, 2
    // Predicated region
    $region45: #{resnet_layer_forward.2} parent=5 // pred_check
      %p275 = pneg %p274
    $region46: #{resnet_layer_forward.2} parent=5 // pred_check_branch
      %277 = sbr.rel (%p275) target = $region48
    $region47: #{resnet_layer_forward.2} parent=5 // pred_region
      // Predicated region
      $region49: #{resnet_layer_forward.2} parent=47 // pred_check
        %p278 = pneg %p35
      $region50: #{resnet_layer_forward.2} parent=47 // pred_check_branch
        %280 = sbr.rel (%p278) target = $region52
      $region51: #{resnet_layer_forward.2} parent=47 // pred_region
        %p281 = scmp.lt.s32.totalorder %s15, 1
        %s282 = scalar_select %p281, %s15, 1
        %s283 = smul.addr %s282, 54
        %s284 = smul.addr %s283, 8
        %s285 = scalar_lea.vmem %s0, %s284
      $region52: #{resnet_layer_forward.2} parent=47 // pred_fallthru
        _
    $region48: #{resnet_layer_forward.2} parent=5 // pred_fallthru
      _
    %p286 = scmp.le.s32.totalorder 1, %s15
    %p287 = scmp.lt.s32.totalorder %s15, 3
    %p288 = pnand %p286, %p287
    %p289 = pneg %p288
    // Predicated region
    $region53: #{resnet_layer_forward.2} parent=5 // pred_check
      _
    $region54: #{resnet_layer_forward.2} parent=5 // pred_check_branch
      %291 = sbr.rel (%p288) target = $region56
    $region55: #{resnet_layer_forward.2} parent=5 // pred_region
      %s292 = ssub.s32 %s15, 1
      %p293 = scmp.lt.s32.totalorder %s20, 1
      %s294 = scalar_select %p293, %s20, 1
      %s295 = smul.addr %s294, 54
      %s296 = smul.addr %s295, 8
      %s297 = scalar_lea.vmem %s0, %s296
      %p298 = pneg %p41
      %p299 = pneg %p38
      %p300 = pneg %p62
      %p301 = pneg %p59
      %p302 = pneg %p83
      %p303 = pneg %p80
      %p304 = pneg %p104
      %p305 = pneg %p101
      %p306 = pneg %p125
      %p307 = pneg %p122
      %p308 = pneg %p146
      %p309 = pneg %p143
      %p310 = pneg %p167
      %p311 = pneg %p164
      %p312 = pneg %p188
      %p313 = pneg %p185
      %p314 = pneg %p209
      %p315 = pneg %p206
      %p316 = pneg %p235
      %p317 = pneg %p232
      %p318 = scmp.lt.s32.totalorder %s20, 1
      %s319 = scalar_select %p318, %s20, 1
      %s320 = smul.addr %s319, 32
      %s321 = smul.addr %s320, 8
      %s322 = scalar_lea.vmem %s9, %s321
      %p323 = scmp.lt.s32.totalorder %s20, 1
      %s324 = scalar_select %p323, %s20, 1
      %s325 = smul.addr %s324, 54
      %s326 = smul.addr %s325, 8
      %s327 = scalar_lea.vmem %s0, %s326
      %p328 = scmp.lt.s32.totalorder %s20, 1
      %s329 = scalar_select %p328, %s20, 1
      %s330 = smul.addr %s329, 32
      %s331 = smul.addr %s330, 8
      %s332 = scalar_lea.vmem %s9, %s331
      %v333 = vld [vmem:[%s327] sm:$0xff]
      %v334 = vld [vmem:[%s327 + $0x8] sm:$0xff]
      %v335 = vld [vmem:[%s327 + $0x10] sm:$0xff]
      %v336 = vld [vmem:[%s327 + $0x18] sm:$0xff]
      %v337 = vld [vmem:[%s327 + $0x20] sm:$0xff]
      %v338 = vld [vmem:[%s327 + $0x28] sm:$0xff]
      %v339 = vld [vmem:[%s327 + $0x30] sm:$0xff]
      %v340 = vld [vmem:[%s327 + $0x38] sm:$0xff]
      %v341 = vld [vmem:[%s327 + $0x40] sm:$0xff]
      %v342 = vld [vmem:[%s327 + $0x48] sm:$0xff]
      %v343 = vld [vmem:[%s327 + $0x50] sm:$0xff]
      %v344 = vld [vmem:[%s327 + $0x58] sm:$0xff]
      %v345 = vld [vmem:[%s327 + $0x60] sm:$0xff]
      %v346 = vld [vmem:[%s327 + $0x68] sm:$0xff]
      %v347 = vld [vmem:[%s327 + $0x70] sm:$0xff]
      %v348 = vld [vmem:[%s327 + $0x78] sm:$0xff]
      %v349 = vld [vmem:[%s327 + $0x80] sm:$0xff]
      %v350 = vld [vmem:[%s327 + $0x88] sm:$0xff]
      %v351 = vld [vmem:[%s327 + $0x90] sm:$0xff]
      %v352 = vld [vmem:[%s327 + $0x98] sm:$0xff]
      %v353 = vld [vmem:[%s327 + $0xa0] sm:$0xff]
      %v354 = vld [vmem:[%s327 + $0xa8] sm:$0xff]
      %v355 = vld [vmem:[%s327 + $0xb0] sm:$0xff]
      %v356 = vld [vmem:[%s327 + $0xb8] sm:$0xff]
      %v357 = vld [vmem:[%s327 + $0xc0] sm:$0xff]
      %v358 = vld [vmem:[%s327 + $0xc8] sm:$0xff]
      %v359 = vld [vmem:[%s327 + $0xd0] sm:$0xff]
      %v360 = vld [vmem:[%s327 + $0xd8] sm:$0xff]
      %v361 = vld [vmem:[%s327 + $0xe0] sm:$0xff]
      %v362 = vld [vmem:[%s327 + $0xe8] sm:$0xff]
      %v363 = vld [vmem:[%s327 + $0xf0] sm:$0xff]
      %v364 = vld [vmem:[%s327 + $0xf8] sm:$0xff]
      %v365 = vld [vmem:[%s327 + $0x100] sm:$0xff]
      %v366 = vld [vmem:[%s327 + $0x108] sm:$0xff]
      %v367 = vld [vmem:[%s327 + $0x110] sm:$0xff]
      %v368 = vld [vmem:[%s327 + $0x118] sm:$0xff]
      %v369 = vld [vmem:[%s327 + $0x120] sm:$0xff]
      %v370 = vld [vmem:[%s327 + $0x128] sm:$0xff]
      %v371 = vld [vmem:[%s327 + $0x130] sm:$0xff]
      %v372 = vld [vmem:[%s327 + $0x138] sm:$0xff]
      %v373 = vld [vmem:[%s327 + $0x140] sm:$0xff]
      %v374 = vld [vmem:[%s327 + $0x148] sm:$0xff]
      %v375 = vld [vmem:[%s327 + $0x150] sm:$0xff]
      %v376 = vld [vmem:[%s327 + $0x158] sm:$0xff]
      %v377 = vld [vmem:[%s327 + $0x160] sm:$0xff]
      %v378 = vld [vmem:[%s327 + $0x168] sm:$0xff]
      %v379 = vld [vmem:[%s327 + $0x170] sm:$0xff]
      %v380 = vld [vmem:[%s327 + $0x178] sm:$0xff]
      %v381 = vld [vmem:[%s327 + $0x180] sm:$0xff]
      %v382 = vld [vmem:[%s327 + $0x188] sm:$0xff]
      %v383 = vld [vmem:[%s327 + $0x190] sm:$0xff]
      %v384 = vld [vmem:[%s327 + $0x198] sm:$0xff]
      %v385 = vld [vmem:[%s327 + $0x1a0] sm:$0xff]
      %v386 = vld [vmem:[%s327 + $0x1a8] sm:$0xff]
      %v387 = vld [vmem:[%s1] sm:$0xff]
      %v388 = vld [vmem:[%s1 + $0x8] sm:$0xff]
      %v389 = vld [vmem:[%s1 + $0x10] sm:$0xff]
      %v390 = vld [vmem:[%s1 + $0x18] sm:$0xff]
      %v391 = vld [vmem:[%s1 + $0x20] sm:$0xff]
      %v392 = vld [vmem:[%s1 + $0x28] sm:$0xff]
      %v393 = vld [vmem:[%s1 + $0x30] sm:$0xff]
      %v394 = vld [vmem:[%s1 + $0x38] sm:$0xff]
      %v395 = vld [vmem:[%s2] sm:$0x1]
      %v397 = vlaneseq
      %v398 = vshrl.u32 %v397, 7
      %v399 = vsub.s32 0, %v398
      %v400 = vrot.slane %v395, %v399
      %vm402 = vcmask 523264
      %v404 = vsel %vm402, %v333, 0
      %v407 = vsel %vm402, %v334, 0
      %v410 = vsel %vm402, %v335, 0
      %v413 = vsel %vm402, %v336, 0
      %v416 = vsel %vm402, %v337, 0
      %v419 = vsel %vm402, %v338, 0
      %v422 = vsel %vm402, %v339, 0
      %v425 = vsel %vm402, %v340, 0
      %v428 = vsel %vm402, %v341, 0
      %v431 = vsel %vm402, %v342, 0
      %v434 = vsel %vm402, %v343, 0
      %v437 = vsel %vm402, %v344, 0
      %v440 = vsel %vm402, %v345, 0
      %v443 = vsel %vm402, %v346, 0
      %v446 = vsel %vm402, %v347, 0
      %v449 = vsel %vm402, %v348, 0
      %v452 = vsel %vm402, %v349, 0
      %v455 = vsel %vm402, %v350, 0
      %v458 = vsel %vm402, %v351, 0
      %v461 = vsel %vm402, %v352, 0
      %v464 = vsel %vm402, %v353, 0
      %v467 = vsel %vm402, %v354, 0
      %v470 = vsel %vm402, %v355, 0
      %v473 = vsel %vm402, %v356, 0
      %v476 = vsel %vm402, %v357, 0
      %v479 = vsel %vm402, %v358, 0
      %v482 = vsel %vm402, %v359, 0
      %v485 = vsel %vm402, %v360, 0
      %v488 = vsel %vm402, %v361, 0
      %v491 = vsel %vm402, %v362, 0
      %v494 = vsel %vm402, %v363, 0
      %v497 = vsel %vm402, %v364, 0
      %v500 = vsel %vm402, %v365, 0
      %v503 = vsel %vm402, %v366, 0
      %v506 = vsel %vm402, %v367, 0
      %v509 = vsel %vm402, %v368, 0
      %v512 = vsel %vm402, %v369, 0
      %v515 = vsel %vm402, %v370, 0
      %v518 = vsel %vm402, %v371, 0
      %v521 = vsel %vm402, %v372, 0
      %v524 = vsel %vm402, %v373, 0
      %v527 = vsel %vm402, %v374, 0
      %v530 = vsel %vm402, %v375, 0
      %v533 = vsel %vm402, %v376, 0
      %v536 = vsel %vm402, %v377, 0
      %v539 = vsel %vm402, %v378, 0
      %v542 = vsel %vm402, %v379, 0
      %v545 = vsel %vm402, %v380, 0
      %v548 = vsel %vm402, %v381, 0
      %v551 = vsel %vm402, %v382, 0
      %v554 = vsel %vm402, %v383, 0
      %v557 = vsel %vm402, %v384, 0
      %v560 = vsel %vm402, %v385, 0
      %v563 = vsel %vm402, %v386, 0
      %565 = vmatprep.subr.mxu0 0.0
      %566 = vmatpush1.msra.mxu0 %v387
      %567 = vmatprep.subr.mxu0 0.0
      %568 = vmatpush1.msra.mxu0 %v388
      %569 = vmatprep.subr.mxu0 0.0
      %570 = vmatpush1.msra.mxu0 %v389
      %571 = vmatprep.subr.mxu0 0.0
      %572 = vmatpush1.msra.mxu0 %v390
      %573 = vmatprep.subr.mxu0 0.0
      %574 = vmatpush1.msra.mxu0 %v391
      %575 = vmatprep.subr.mxu0 0.0
      %576 = vmatpush1.msra.mxu0 %v392
      %577 = vmatprep.subr.mxu0 0.0
      %578 = vmatpush1.msra.mxu0 %v393
      %579 = vmatprep.subr.mxu0 0.0
      %580 = vmatpush1.msra.mxu0 %v394
      %581 = vmatprep.subr.mxu0 0.0
      %582 = vmatpush1.msra.mxu0 0.0
      %583 = vmatprep.subr.mxu0 0.0
      %584 = vmatpush1.msra.mxu0 0.0
      %585 = vmatprep.subr.mxu0 0.0
      %586 = vmatpush1.msra.mxu0 0.0
      %587 = vmatprep.subr.mxu0 0.0
      %588 = vmatpush1.msra.mxu0 0.0
      %589 = vmatprep.subr.mxu0 0.0
      %590 = vmatpush1.msra.mxu0 0.0
      %591 = vmatprep.subr.mxu0 0.0
      %592 = vmatpush1.msra.mxu0 0.0
      %593 = vmatprep.subr.mxu0 0.0
      %594 = vmatpush1.msra.mxu0 0.0
      %595 = vmatprep.subr.mxu0 0.0
      %596 = vmatpush1.msra.mxu0 0.0
      %597 = vmatprep.subr.mxu0 0.0
      %598 = vmatpush1.msra.mxu0 0.0
      %599 = vmatprep.subr.mxu0 0.0
      %600 = vmatpush1.msra.mxu0 0.0
      %601 = vmatprep.subr.mxu0 0.0
      %602 = vmatpush1.msra.mxu0 0.0
      %603 = vmatprep.subr.mxu0 0.0
      %604 = vmatpush1.msra.mxu0 0.0
      %605 = vmatprep.subr.mxu0 0.0
      %606 = vmatpush1.msra.mxu0 0.0
      %607 = vmatprep.subr.mxu0 0.0
      %608 = vmatpush1.msra.mxu0 0.0
      %609 = vmatprep.subr.mxu0 0.0
      %610 = vmatpush1.msra.mxu0 0.0
      %611 = vmatprep.subr.mxu0 0.0
      %612 = vmatpush1.msra.mxu0 0.0
      %613 = vmatprep.subr.mxu0 0.0
      %614 = vmatpush1.msra.mxu0 0.0
      %615 = vmatprep.subr.mxu0 0.0
      %616 = vmatpush1.msra.mxu0 0.0
      %617 = vmatprep.subr.mxu0 0.0
      %618 = vmatpush1.msra.mxu0 0.0
      %619 = vmatprep.subr.mxu0 0.0
      %620 = vmatpush1.msra.mxu0 0.0
      %621 = vmatprep.subr.mxu0 0.0
      %622 = vmatpush1.msra.mxu0 0.0
      %623 = vmatprep.subr.mxu0 0.0
      %624 = vmatpush1.msra.mxu0 0.0
      %625 = vmatprep.subr.mxu0 0.0
      %626 = vmatpush1.msra.mxu0 0.0
      %627 = vmatprep.subr.mxu0 0.0
      %628 = vmatpush1.msra.mxu0 0.0
      %629 = vmatprep.mubr.f32.mxu0 0.0
      %630 = vmatmul.mubr.f32.gmra.mrb[0].mxu0 %v404
      %v631 = vpop.f32.mrb[0].mxu0
      %v632 = vadd.f32 %v400, %v631
      %v633 = vpop.f32.mrb[0].mxu0
      %634 = vmatprep.mubr.f32.mxu0 0.0
      %635 = vmatmul.mubr.f32.gmra.mrb[0].mxu0 %v407
      %v636 = vpop.f32.mrb[0].mxu0
      %v637 = vadd.f32 %v400, %v636
      %v638 = vpop.f32.mrb[0].mxu0
      %639 = vmatprep.mubr.f32.mxu0 0.0
      %640 = vmatmul.mubr.f32.gmra.mrb[0].mxu0 %v410
      %v641 = vpop.f32.mrb[0].mxu0
      %v642 = vadd.f32 %v400, %v641
      %v643 = vpop.f32.mrb[0].mxu0
      %644 = vmatprep.mubr.f32.mxu0 0.0
      %645 = vmatmul.mubr.f32.gmra.mrb[0].mxu0 %v413
      %v646 = vpop.f32.mrb[0].mxu0
      %v647 = vadd.f32 %v400, %v646
      %v648 = vpop.f32.mrb[0].mxu0
      %649 = vmatprep.mubr.f32.mxu0 0.0
      %650 = vmatmul.mubr.f32.gmra.mrb[0].mxu0 %v416
      %v651 = vpop.f32.mrb[0].mxu0
      %v652 = vadd.f32 %v400, %v651
      %v653 = vpop.f32.mrb[0].mxu0
      %654 = vmatprep.mubr.f32.mxu0 0.0
      %655 = vmatmul.mubr.f32.gmra.mrb[0].mxu0 %v419
      %v656 = vpop.f32.mrb[0].mxu0
      %v657 = vadd.f32 %v400, %v656
      %v658 = vpop.f32.mrb[0].mxu0
      %659 = vmatprep.mubr.f32.mxu0 0.0
      %660 = vmatmul.mubr.f32.gmra.mrb[0].mxu0 %v422
      %v661 = vpop.f32.mrb[0].mxu0
      %v662 = vadd.f32 %v400, %v661
      %v663 = vpop.f32.mrb[0].mxu0
      %664 = vmatprep.mubr.f32.mxu0 0.0
      %665 = vmatmul.mubr.f32.gmra.mrb[0].mxu0 %v425
      %v666 = vpop.f32.mrb[0].mxu0
      %v667 = vadd.f32 %v400, %v666
      %v668 = vpop.f32.mrb[0].mxu0
      %669 = vmatprep.mubr.f32.mxu0 0.0
      %670 = vmatmul.mubr.f32.gmra.mrb[0].mxu0 %v428
      %v671 = vpop.f32.mrb[0].mxu0
      %v672 = vadd.f32 %v400, %v671
      %v673 = vpop.f32.mrb[0].mxu0
      %674 = vmatprep.mubr.f32.mxu0 0.0
      %675 = vmatmul.mubr.f32.gmra.mrb[0].mxu0 %v431
      %v676 = vpop.f32.mrb[0].mxu0
      %v677 = vadd.f32 %v400, %v676
      %v678 = vpop.f32.mrb[0].mxu0
      %679 = vmatprep.mubr.f32.mxu0 0.0
      %680 = vmatmul.mubr.f32.gmra.mrb[0].mxu0 %v434
      %v681 = vpop.f32.mrb[0].mxu0
      %v682 = vadd.f32 %v400, %v681
      %v683 = vpop.f32.mrb[0].mxu0
      %684 = vmatprep.mubr.f32.mxu0 0.0
      %685 = vmatmul.mubr.f32.gmra.mrb[0].mxu0 %v437
      %v686 = vpop.f32.mrb[0].mxu0
      %v687 = vadd.f32 %v400, %v686
      %v688 = vpop.f32.mrb[0].mxu0
      %689 = vmatprep.mubr.f32.mxu0 0.0
      %690 = vmatmul.mubr.f32.gmra.mrb[0].mxu0 %v440
      %v691 = vpop.f32.mrb[0].mxu0
      %v692 = vadd.f32 %v400, %v691
      %v693 = vpop.f32.mrb[0].mxu0
      %694 = vmatprep.mubr.f32.mxu0 0.0
      %695 = vmatmul.mubr.f32.gmra.mrb[0].mxu0 %v443
      %v696 = vpop.f32.mrb[0].mxu0
      %v697 = vadd.f32 %v400, %v696
      %v698 = vpop.f32.mrb[0].mxu0
      %699 = vmatprep.mubr.f32.mxu0 0.0
      %700 = vmatmul.mubr.f32.gmra.mrb[0].mxu0 %v446
      %v701 = vpop.f32.mrb[0].mxu0
      %v702 = vadd.f32 %v400, %v701
      %v703 = vpop.f32.mrb[0].mxu0
      %704 = vmatprep.mubr.f32.mxu0 0.0
      %705 = vmatmul.mubr.f32.gmra.mrb[0].mxu0 %v449
      %v706 = vpop.f32.mrb[0].mxu0
      %v707 = vadd.f32 %v400, %v706
      %v708 = vpop.f32.mrb[0].mxu0
      %709 = vmatprep.mubr.f32.mxu0 0.0
      %710 = vmatmul.mubr.f32.gmra.mrb[0].mxu0 %v452
      %v711 = vpop.f32.mrb[0].mxu0
      %v712 = vadd.f32 %v400, %v711
      %v713 = vpop.f32.mrb[0].mxu0
      %714 = vmatprep.mubr.f32.mxu0 0.0
      %715 = vmatmul.mubr.f32.gmra.mrb[0].mxu0 %v455
      %v716 = vpop.f32.mrb[0].mxu0
      %v717 = vadd.f32 %v400, %v716
      %v718 = vpop.f32.mrb[0].mxu0
      %719 = vmatprep.mubr.f32.mxu0 0.0
      %720 = vmatmul.mubr.f32.gmra.mrb[0].mxu0 %v458
      %v721 = vpop.f32.mrb[0].mxu0
      %v722 = vadd.f32 %v400, %v721
      %v723 = vpop.f32.mrb[0].mxu0
      %724 = vmatprep.mubr.f32.mxu0 0.0
      %725 = vmatmul.mubr.f32.gmra.mrb[0].mxu0 %v461
      %v726 = vpop.f32.mrb[0].mxu0
      %v727 = vadd.f32 %v400, %v726
      %v728 = vpop.f32.mrb[0].mxu0
      %729 = vmatprep.mubr.f32.mxu0 0.0
      %730 = vmatmul.mubr.f32.gmra.mrb[0].mxu0 %v464
      %v731 = vpop.f32.mrb[0].mxu0
      %v732 = vadd.f32 %v400, %v731
      %v733 = vpop.f32.mrb[0].mxu0
      %734 = vmatprep.mubr.f32.mxu0 0.0
      %735 = vmatmul.mubr.f32.gmra.mrb[0].mxu0 %v467
      %v736 = vpop.f32.mrb[0].mxu0
      %v737 = vadd.f32 %v400, %v736
      %v738 = vpop.f32.mrb[0].mxu0
      %739 = vmatprep.mubr.f32.mxu0 0.0
      %740 = vmatmul.mubr.f32.gmra.mrb[0].mxu0 %v470
      %v741 = vpop.f32.mrb[0].mxu0
      %v742 = vadd.f32 %v400, %v741
      %v743 = vpop.f32.mrb[0].mxu0
      %744 = vmatprep.mubr.f32.mxu0 0.0
      %745 = vmatmul.mubr.f32.gmra.mrb[0].mxu0 %v473
      %v746 = vpop.f32.mrb[0].mxu0
      %v747 = vadd.f32 %v400, %v746
      %v748 = vpop.f32.mrb[0].mxu0
      %749 = vmatprep.mubr.f32.mxu0 0.0
      %750 = vmatmul.mubr.f32.gmra.mrb[0].mxu0 %v476
      %v751 = vpop.f32.mrb[0].mxu0
      %v752 = vadd.f32 %v400, %v751
      %v753 = vpop.f32.mrb[0].mxu0
      %754 = vmatprep.mubr.f32.mxu0 0.0
      %755 = vmatmul.mubr.f32.gmra.mrb[0].mxu0 %v479
      %v756 = vpop.f32.mrb[0].mxu0
      %v757 = vadd.f32 %v400, %v756
      %v758 = vpop.f32.mrb[0].mxu0
      %759 = vmatprep.mubr.f32.mxu0 0.0
      %760 = vmatmul.mubr.f32.gmra.mrb[0].mxu0 %v482
      %v761 = vpop.f32.mrb[0].mxu0
      %v762 = vadd.f32 %v400, %v761
      %v763 = vpop.f32.mrb[0].mxu0
      %764 = vmatprep.mubr.f32.mxu0 0.0
      %765 = vmatmul.mubr.f32.gmra.mrb[0].mxu0 %v485
      %v766 = vpop.f32.mrb[0].mxu0
      %v767 = vadd.f32 %v400, %v766
      %v768 = vpop.f32.mrb[0].mxu0
      %769 = vmatprep.mubr.f32.mxu0 0.0
      %770 = vmatmul.mubr.f32.gmra.mrb[0].mxu0 %v488
      %v771 = vpop.f32.mrb[0].mxu0
      %v772 = vadd.f32 %v400, %v771
      %v773 = vpop.f32.mrb[0].mxu0
      %774 = vmatprep.mubr.f32.mxu0 0.0
      %775 = vmatmul.mubr.f32.gmra.mrb[0].mxu0 %v491
      %v776 = vpop.f32.mrb[0].mxu0
      %v777 = vadd.f32 %v400, %v776
      %v778 = vpop.f32.mrb[0].mxu0
      %779 = vmatprep.mubr.f32.mxu0 0.0
      %780 = vmatmul.mubr.f32.gmra.mrb[0].mxu0 %v494
      %v781 = vpop.f32.mrb[0].mxu0
      %v782 = vadd.f32 %v400, %v781
      %v783 = vpop.f32.mrb[0].mxu0
      %784 = vmatprep.mubr.f32.mxu0 0.0
      %785 = vmatmul.mubr.f32.gmra.mrb[0].mxu0 %v497
      %v786 = vpop.f32.mrb[0].mxu0
      %v787 = vadd.f32 %v400, %v786
      %v788 = vpop.f32.mrb[0].mxu0
      %789 = vmatprep.mubr.f32.mxu0 0.0
      %790 = vmatmul.mubr.f32.gmra.mrb[0].mxu0 %v500
      %v791 = vpop.f32.mrb[0].mxu0
      %v792 = vadd.f32 %v400, %v791
      %v793 = vpop.f32.mrb[0].mxu0
      %794 = vmatprep.mubr.f32.mxu0 0.0
      %795 = vmatmul.mubr.f32.gmra.mrb[0].mxu0 %v503
      %v796 = vpop.f32.mrb[0].mxu0
      %v797 = vadd.f32 %v400, %v796
      %v798 = vpop.f32.mrb[0].mxu0
      %799 = vmatprep.mubr.f32.mxu0 0.0
      %800 = vmatmul.mubr.f32.gmra.mrb[0].mxu0 %v506
      %v801 = vpop.f32.mrb[0].mxu0
      %v802 = vadd.f32 %v400, %v801
      %v803 = vpop.f32.mrb[0].mxu0
      %804 = vmatprep.mubr.f32.mxu0 0.0
      %805 = vmatmul.mubr.f32.gmra.mrb[0].mxu0 %v509
      %v806 = vpop.f32.mrb[0].mxu0
      %v807 = vadd.f32 %v400, %v806
      %v808 = vpop.f32.mrb[0].mxu0
      %809 = vmatprep.mubr.f32.mxu0 0.0
      %810 = vmatmul.mubr.f32.gmra.mrb[0].mxu0 %v512
      %v811 = vpop.f32.mrb[0].mxu0
      %v812 = vadd.f32 %v400, %v811
      %v813 = vpop.f32.mrb[0].mxu0
      %814 = vmatprep.mubr.f32.mxu0 0.0
      %815 = vmatmul.mubr.f32.gmra.mrb[0].mxu0 %v515
      %v816 = vpop.f32.mrb[0].mxu0
      %v817 = vadd.f32 %v400, %v816
      %v818 = vpop.f32.mrb[0].mxu0
      %819 = vmatprep.mubr.f32.mxu0 0.0
      %820 = vmatmul.mubr.f32.gmra.mrb[0].mxu0 %v518
      %v821 = vpop.f32.mrb[0].mxu0
      %v822 = vadd.f32 %v400, %v821
      %v823 = vpop.f32.mrb[0].mxu0
      %824 = vmatprep.mubr.f32.mxu0 0.0
      %825 = vmatmul.mubr.f32.gmra.mrb[0].mxu0 %v521
      %v826 = vpop.f32.mrb[0].mxu0
      %v827 = vadd.f32 %v400, %v826
      %v828 = vpop.f32.mrb[0].mxu0
      %829 = vmatprep.mubr.f32.mxu0 0.0
      %830 = vmatmul.mubr.f32.gmra.mrb[0].mxu0 %v524
      %v831 = vpop.f32.mrb[0].mxu0
      %v832 = vadd.f32 %v400, %v831
      %v833 = vpop.f32.mrb[0].mxu0
      %834 = vmatprep.mubr.f32.mxu0 0.0
      %835 = vmatmul.mubr.f32.gmra.mrb[0].mxu0 %v527
      %v836 = vpop.f32.mrb[0].mxu0
      %v837 = vadd.f32 %v400, %v836
      %v838 = vpop.f32.mrb[0].mxu0
      %839 = vmatprep.mubr.f32.mxu0 0.0
      %840 = vmatmul.mubr.f32.gmra.mrb[0].mxu0 %v530
      %v841 = vpop.f32.mrb[0].mxu0
      %v842 = vadd.f32 %v400, %v841
      %v843 = vpop.f32.mrb[0].mxu0
      %844 = vmatprep.mubr.f32.mxu0 0.0
      %845 = vmatmul.mubr.f32.gmra.mrb[0].mxu0 %v533
      %v846 = vpop.f32.mrb[0].mxu0
      %v847 = vadd.f32 %v400, %v846
      %v848 = vpop.f32.mrb[0].mxu0
      %849 = vmatprep.mubr.f32.mxu0 0.0
      %850 = vmatmul.mubr.f32.gmra.mrb[0].mxu0 %v536
      %v851 = vpop.f32.mrb[0].mxu0
      %v852 = vadd.f32 %v400, %v851
      %v853 = vpop.f32.mrb[0].mxu0
      %854 = vmatprep.mubr.f32.mxu0 0.0
      %855 = vmatmul.mubr.f32.gmra.mrb[0].mxu0 %v539
      %v856 = vpop.f32.mrb[0].mxu0
      %v857 = vadd.f32 %v400, %v856
      %v858 = vpop.f32.mrb[0].mxu0
      %859 = vmatprep.mubr.f32.mxu0 0.0
      %860 = vmatmul.mubr.f32.gmra.mrb[0].mxu0 %v542
      %v861 = vpop.f32.mrb[0].mxu0
      %v862 = vadd.f32 %v400, %v861
      %v863 = vpop.f32.mrb[0].mxu0
      %864 = vmatprep.mubr.f32.mxu0 0.0
      %865 = vmatmul.mubr.f32.gmra.mrb[0].mxu0 %v545
      %v866 = vpop.f32.mrb[0].mxu0
      %v867 = vadd.f32 %v400, %v866
      %v868 = vpop.f32.mrb[0].mxu0
      %869 = vmatprep.mubr.f32.mxu0 0.0
      %870 = vmatmul.mubr.f32.gmra.mrb[0].mxu0 %v548
      %v871 = vpop.f32.mrb[0].mxu0
      %v872 = vadd.f32 %v400, %v871
      %v873 = vpop.f32.mrb[0].mxu0
      %874 = vmatprep.mubr.f32.mxu0 0.0
      %875 = vmatmul.mubr.f32.gmra.mrb[0].mxu0 %v551
      %v876 = vpop.f32.mrb[0].mxu0
      %v877 = vadd.f32 %v400, %v876
      %v878 = vpop.f32.mrb[0].mxu0
      %879 = vmatprep.mubr.f32.mxu0 0.0
      %880 = vmatmul.mubr.f32.gmra.mrb[0].mxu0 %v554
      %v881 = vpop.f32.mrb[0].mxu0
      %v882 = vadd.f32 %v400, %v881
      %v883 = vpop.f32.mrb[0].mxu0
      %884 = vmatprep.mubr.f32.mxu0 0.0
      %885 = vmatmul.mubr.f32.gmra.mrb[0].mxu0 %v557
      %v886 = vpop.f32.mrb[0].mxu0
      %v887 = vadd.f32 %v400, %v886
      %v888 = vpop.f32.mrb[0].mxu0
      %889 = vmatprep.mubr.f32.mxu0 0.0
      %890 = vmatmul.mubr.f32.gmra.mrb[0].mxu0 %v560
      %v891 = vpop.f32.mrb[0].mxu0
      %v892 = vadd.f32 %v400, %v891
      %v893 = vpop.f32.mrb[0].mxu0
      %894 = vmatprep.mubr.f32.mxu0 0.0
      %895 = vmatmul.mubr.f32.gmra.mrb[0].mxu0 %v563
      %v896 = vpop.f32.mrb[0].mxu0
      %v897 = vadd.f32 %v400, %v896
      %v898 = vpop.f32.mrb[0].mxu0
      %899 = vdwg.mxu0
      %v900 = vxor.u32 %v632, 2147483648
      %v901 = vxor.u32 %v637, 2147483648
      %v902 = vxor.u32 %v642, 2147483648
      %v903 = vxor.u32 %v647, 2147483648
      %v904 = vxor.u32 %v652, 2147483648
      %v905 = vxor.u32 %v657, 2147483648
      %v906 = vxor.u32 %v662, 2147483648
      %v907 = vxor.u32 %v667, 2147483648
      %v908 = vxor.u32 %v672, 2147483648
      %v909 = vxor.u32 %v677, 2147483648
      %v910 = vxor.u32 %v682, 2147483648
      %v911 = vxor.u32 %v687, 2147483648
      %v912 = vxor.u32 %v692, 2147483648
      %v913 = vxor.u32 %v697, 2147483648
      %v914 = vxor.u32 %v702, 2147483648
      %v915 = vxor.u32 %v707, 2147483648
      %v916 = vxor.u32 %v712, 2147483648
      %v917 = vxor.u32 %v717, 2147483648
      %v918 = vxor.u32 %v722, 2147483648
      %v919 = vxor.u32 %v727, 2147483648
      %v920 = vxor.u32 %v732, 2147483648
      %v921 = vxor.u32 %v737, 2147483648
      %v922 = vxor.u32 %v742, 2147483648
      %v923 = vxor.u32 %v747, 2147483648
      %v924 = vxor.u32 %v752, 2147483648
      %v925 = vxor.u32 %v757, 2147483648
      %v926 = vxor.u32 %v762, 2147483648
      %v927 = vxor.u32 %v767, 2147483648
      %v928 = vxor.u32 %v772, 2147483648
      %v929 = vxor.u32 %v777, 2147483648
      %v930 = vxor.u32 %v782, 2147483648
      %v931 = vxor.u32 %v787, 2147483648
      %v932 = vxor.u32 %v792, 2147483648
      %v933 = vxor.u32 %v797, 2147483648
      %v934 = vxor.u32 %v802, 2147483648
      %v935 = vxor.u32 %v807, 2147483648
      %v936 = vxor.u32 %v812, 2147483648
      %v937 = vxor.u32 %v817, 2147483648
      %v938 = vxor.u32 %v822, 2147483648
      %v939 = vxor.u32 %v827, 2147483648
      %v940 = vxor.u32 %v832, 2147483648
      %v941 = vxor.u32 %v837, 2147483648
      %v942 = vxor.u32 %v842, 2147483648
      %v943 = vxor.u32 %v847, 2147483648
      %v944 = vxor.u32 %v852, 2147483648
      %v945 = vxor.u32 %v857, 2147483648
      %v946 = vxor.u32 %v862, 2147483648
      %v947 = vxor.u32 %v867, 2147483648
      %v948 = vxor.u32 %v872, 2147483648
      %v949 = vxor.u32 %v877, 2147483648
      %v950 = vxor.u32 %v882, 2147483648
      %v951 = vxor.u32 %v887, 2147483648
      %v952 = vxor.u32 %v892, 2147483648
      %v953 = vxor.u32 %v897, 2147483648
      %v954 = vmul.f32 %v900, 1.442695
      %v955 = vpow.pop %v954
      %v956 = vmul.f32 %v901, 1.442695
      %v957 = vpow.pop %v956
      %v958 = vmul.f32 %v902, 1.442695
      %v959 = vpow.pop %v958
      %v960 = vmul.f32 %v903, 1.442695
      %v961 = vpow.pop %v960
      %v962 = vmul.f32 %v904, 1.442695
      %v963 = vpow.pop %v962
      %v964 = vmul.f32 %v905, 1.442695
      %v965 = vpow.pop %v964
      %v966 = vmul.f32 %v906, 1.442695
      %v967 = vpow.pop %v966
      %v968 = vmul.f32 %v907, 1.442695
      %v969 = vpow.pop %v968
      %v970 = vmul.f32 %v908, 1.442695
      %v971 = vpow.pop %v970
      %v972 = vmul.f32 %v909, 1.442695
      %v973 = vpow.pop %v972
      %v974 = vmul.f32 %v910, 1.442695
      %v975 = vpow.pop %v974
      %v976 = vmul.f32 %v911, 1.442695
      %v977 = vpow.pop %v976
      %v978 = vmul.f32 %v912, 1.442695
      %v979 = vpow.pop %v978
      %v980 = vmul.f32 %v913, 1.442695
      %v981 = vpow.pop %v980
      %v982 = vmul.f32 %v914, 1.442695
      %v983 = vpow.pop %v982
      %v984 = vmul.f32 %v915, 1.442695
      %v985 = vpow.pop %v984
      %v986 = vmul.f32 %v916, 1.442695
      %v987 = vpow.pop %v986
      %v988 = vmul.f32 %v917, 1.442695
      %v989 = vpow.pop %v988
      %v990 = vmul.f32 %v918, 1.442695
      %v991 = vpow.pop %v990
      %v992 = vmul.f32 %v919, 1.442695
      %v993 = vpow.pop %v992
      %v994 = vmul.f32 %v920, 1.442695
      %v995 = vpow.pop %v994
      %v996 = vmul.f32 %v921, 1.442695
      %v997 = vpow.pop %v996
      %v998 = vmul.f32 %v922, 1.442695
      %v999 = vpow.pop %v998
      %v1000 = vmul.f32 %v923, 1.442695
      %v1001 = vpow.pop %v1000
      %v1002 = vmul.f32 %v924, 1.442695
      %v1003 = vpow.pop %v1002
      %v1004 = vmul.f32 %v925, 1.442695
      %v1005 = vpow.pop %v1004
      %v1006 = vmul.f32 %v926, 1.442695
      %v1007 = vpow.pop %v1006
      %v1008 = vmul.f32 %v927, 1.442695
      %v1009 = vpow.pop %v1008
      %v1010 = vmul.f32 %v928, 1.442695
      %v1011 = vpow.pop %v1010
      %v1012 = vmul.f32 %v929, 1.442695
      %v1013 = vpow.pop %v1012
      %v1014 = vmul.f32 %v930, 1.442695
      %v1015 = vpow.pop %v1014
      %v1016 = vmul.f32 %v931, 1.442695
      %v1017 = vpow.pop %v1016
      %v1018 = vmul.f32 %v932, 1.442695
      %v1019 = vpow.pop %v1018
      %v1020 = vmul.f32 %v933, 1.442695
      %v1021 = vpow.pop %v1020
      %v1022 = vmul.f32 %v934, 1.442695
      %v1023 = vpow.pop %v1022
      %v1024 = vmul.f32 %v935, 1.442695
      %v1025 = vpow.pop %v1024
      %v1026 = vmul.f32 %v936, 1.442695
      %v1027 = vpow.pop %v1026
      %v1028 = vmul.f32 %v937, 1.442695
      %v1029 = vpow.pop %v1028
      %v1030 = vmul.f32 %v938, 1.442695
      %v1031 = vpow.pop %v1030
      %v1032 = vmul.f32 %v939, 1.442695
      %v1033 = vpow.pop %v1032
      %v1034 = vmul.f32 %v940, 1.442695
      %v1035 = vpow.pop %v1034
      %v1036 = vmul.f32 %v941, 1.442695
      %v1037 = vpow.pop %v1036
      %v1038 = vmul.f32 %v942, 1.442695
      %v1039 = vpow.pop %v1038
      %v1040 = vmul.f32 %v943, 1.442695
      %v1041 = vpow.pop %v1040
      %v1042 = vmul.f32 %v944, 1.442695
      %v1043 = vpow.pop %v1042
      %v1044 = vmul.f32 %v945, 1.442695
      %v1045 = vpow.pop %v1044
      %v1046 = vmul.f32 %v946, 1.442695
      %v1047 = vpow.pop %v1046
      %v1048 = vmul.f32 %v947, 1.442695
      %v1049 = vpow.pop %v1048
      %v1050 = vmul.f32 %v948, 1.442695
      %v1051 = vpow.pop %v1050
      %v1052 = vmul.f32 %v949, 1.442695
      %v1053 = vpow.pop %v1052
      %v1054 = vmul.f32 %v950, 1.442695
      %v1055 = vpow.pop %v1054
      %v1056 = vmul.f32 %v951, 1.442695
      %v1057 = vpow.pop %v1056
      %v1058 = vmul.f32 %v952, 1.442695
      %v1059 = vpow.pop %v1058
      %v1060 = vmul.f32 %v953, 1.442695
      %v1061 = vpow.pop %v1060
      %v1062 = vadd.f32 %v955, 1.0
      %v1063 = vadd.f32 %v957, 1.0
      %v1064 = vadd.f32 %v959, 1.0
      %v1065 = vadd.f32 %v961, 1.0
      %v1066 = vadd.f32 %v963, 1.0
      %v1067 = vadd.f32 %v965, 1.0
      %v1068 = vadd.f32 %v967, 1.0
      %v1069 = vadd.f32 %v969, 1.0
      %v1070 = vadd.f32 %v971, 1.0
      %v1071 = vadd.f32 %v973, 1.0
      %v1072 = vadd.f32 %v975, 1.0
      %v1073 = vadd.f32 %v977, 1.0
      %v1074 = vadd.f32 %v979, 1.0
      %v1075 = vadd.f32 %v981, 1.0
      %v1076 = vadd.f32 %v983, 1.0
      %v1077 = vadd.f32 %v985, 1.0
      %v1078 = vadd.f32 %v987, 1.0
      %v1079 = vadd.f32 %v989, 1.0
      %v1080 = vadd.f32 %v991, 1.0
      %v1081 = vadd.f32 %v993, 1.0
      %v1082 = vadd.f32 %v995, 1.0
      %v1083 = vadd.f32 %v997, 1.0
      %v1084 = vadd.f32 %v999, 1.0
      %v1085 = vadd.f32 %v1001, 1.0
      %v1086 = vadd.f32 %v1003, 1.0
      %v1087 = vadd.f32 %v1005, 1.0
      %v1088 = vadd.f32 %v1007, 1.0
      %v1089 = vadd.f32 %v1009, 1.0
      %v1090 = vadd.f32 %v1011, 1.0
      %v1091 = vadd.f32 %v1013, 1.0
      %v1092 = vadd.f32 %v1015, 1.0
      %v1093 = vadd.f32 %v1017, 1.0
      %v1094 = vadd.f32 %v1019, 1.0
      %v1095 = vadd.f32 %v1021, 1.0
      %v1096 = vadd.f32 %v1023, 1.0
      %v1097 = vadd.f32 %v1025, 1.0
      %v1098 = vadd.f32 %v1027, 1.0
      %v1099 = vadd.f32 %v1029, 1.0
      %v1100 = vadd.f32 %v1031, 1.0
      %v1101 = vadd.f32 %v1033, 1.0
      %v1102 = vadd.f32 %v1035, 1.0
      %v1103 = vadd.f32 %v1037, 1.0
      %v1104 = vadd.f32 %v1039, 1.0
      %v1105 = vadd.f32 %v1041, 1.0
      %v1106 = vadd.f32 %v1043, 1.0
      %v1107 = vadd.f32 %v1045, 1.0
      %v1108 = vadd.f32 %v1047, 1.0
      %v1109 = vadd.f32 %v1049, 1.0
      %v1110 = vadd.f32 %v1051, 1.0
      %v1111 = vadd.f32 %v1053, 1.0
      %v1112 = vadd.f32 %v1055, 1.0
      %v1113 = vadd.f32 %v1057, 1.0
      %v1114 = vadd.f32 %v1059, 1.0
      %v1115 = vadd.f32 %v1061, 1.0
      %v1116 = vrcp.pop %v1062
      %v1117 = vmul.f32 1.0, %v1116
      %v1118 = vrcp.pop %v1063
      %v1119 = vmul.f32 1.0, %v1118
      %v1120 = vrcp.pop %v1064
      %v1121 = vmul.f32 1.0, %v1120
      %v1122 = vrcp.pop %v1065
      %v1123 = vmul.f32 1.0, %v1122
      %v1124 = vrcp.pop %v1066
      %v1125 = vmul.f32 1.0, %v1124
      %v1126 = vrcp.pop %v1067
      %v1127 = vmul.f32 1.0, %v1126
      %v1128 = vrcp.pop %v1068
      %v1129 = vmul.f32 1.0, %v1128
      %v1130 = vrcp.pop %v1069
      %v1131 = vmul.f32 1.0, %v1130
      %v1132 = vrcp.pop %v1070
      %v1133 = vmul.f32 1.0, %v1132
      %v1134 = vrcp.pop %v1071
      %v1135 = vmul.f32 1.0, %v1134
      %v1136 = vrcp.pop %v1072
      %v1137 = vmul.f32 1.0, %v1136
      %v1138 = vrcp.pop %v1073
      %v1139 = vmul.f32 1.0, %v1138
      %v1140 = vrcp.pop %v1074
      %v1141 = vmul.f32 1.0, %v1140
      %v1142 = vrcp.pop %v1075
      %v1143 = vmul.f32 1.0, %v1142
      %v1144 = vrcp.pop %v1076
      %v1145 = vmul.f32 1.0, %v1144
      %v1146 = vrcp.pop %v1077
      %v1147 = vmul.f32 1.0, %v1146
      %v1148 = vrcp.pop %v1078
      %v1149 = vmul.f32 1.0, %v1148
      %v1150 = vrcp.pop %v1079
      %v1151 = vmul.f32 1.0, %v1150
      %v1152 = vrcp.pop %v1080
      %v1153 = vmul.f32 1.0, %v1152
      %v1154 = vrcp.pop %v1081
      %v1155 = vmul.f32 1.0, %v1154
      %v1156 = vrcp.pop %v1082
      %v1157 = vmul.f32 1.0, %v1156
      %v1158 = vrcp.pop %v1083
      %v1159 = vmul.f32 1.0, %v1158
      %v1160 = vrcp.pop %v1084
      %v1161 = vmul.f32 1.0, %v1160
      %v1162 = vrcp.pop %v1085
      %v1163 = vmul.f32 1.0, %v1162
      %v1164 = vrcp.pop %v1086
      %v1165 = vmul.f32 1.0, %v1164
      %v1166 = vrcp.pop %v1087
      %v1167 = vmul.f32 1.0, %v1166
      %v1168 = vrcp.pop %v1088
      %v1169 = vmul.f32 1.0, %v1168
      %v1170 = vrcp.pop %v1089
      %v1171 = vmul.f32 1.0, %v1170
      %v1172 = vrcp.pop %v1090
      %v1173 = vmul.f32 1.0, %v1172
      %v1174 = vrcp.pop %v1091
      %v1175 = vmul.f32 1.0, %v1174
      %v1176 = vrcp.pop %v1092
      %v1177 = vmul.f32 1.0, %v1176
      %v1178 = vrcp.pop %v1093
      %v1179 = vmul.f32 1.0, %v1178
      %v1180 = vrcp.pop %v1094
      %v1181 = vmul.f32 1.0, %v1180
      %v1182 = vrcp.pop %v1095
      %v1183 = vmul.f32 1.0, %v1182
      %v1184 = vrcp.pop %v1096
      %v1185 = vmul.f32 1.0, %v1184
      %v1186 = vrcp.pop %v1097
      %v1187 = vmul.f32 1.0, %v1186
      %v1188 = vrcp.pop %v1098
      %v1189 = vmul.f32 1.0, %v1188
      %v1190 = vrcp.pop %v1099
      %v1191 = vmul.f32 1.0, %v1190
      %v1192 = vrcp.pop %v1100
      %v1193 = vmul.f32 1.0, %v1192
      %v1194 = vrcp.pop %v1101
      %v1195 = vmul.f32 1.0, %v1194
      %v1196 = vrcp.pop %v1102
      %v1197 = vmul.f32 1.0, %v1196
      %v1198 = vrcp.pop %v1103
      %v1199 = vmul.f32 1.0, %v1198
      %v1200 = vrcp.pop %v1104
      %v1201 = vmul.f32 1.0, %v1200
      %v1202 = vrcp.pop %v1105
      %v1203 = vmul.f32 1.0, %v1202
      %v1204 = vrcp.pop %v1106
      %v1205 = vmul.f32 1.0, %v1204
      %v1206 = vrcp.pop %v1107
      %v1207 = vmul.f32 1.0, %v1206
      %v1208 = vrcp.pop %v1108
      %v1209 = vmul.f32 1.0, %v1208
      %v1210 = vrcp.pop %v1109
      %v1211 = vmul.f32 1.0, %v1210
      %v1212 = vrcp.pop %v1110
      %v1213 = vmul.f32 1.0, %v1212
      %v1214 = vrcp.pop %v1111
      %v1215 = vmul.f32 1.0, %v1214
      %v1216 = vrcp.pop %v1112
      %v1217 = vmul.f32 1.0, %v1216
      %v1218 = vrcp.pop %v1113
      %v1219 = vmul.f32 1.0, %v1218
      %v1220 = vrcp.pop %v1114
      %v1221 = vmul.f32 1.0, %v1220
      %v1222 = vrcp.pop %v1115
      %v1223 = vmul.f32 1.0, %v1222
      %v1224 = vmul.f32 %v632, %v1117
      %v1225 = vmul.f32 %v637, %v1119
      %v1226 = vmul.f32 %v642, %v1121
      %v1227 = vmul.f32 %v647, %v1123
      %v1228 = vmul.f32 %v652, %v1125
      %v1229 = vmul.f32 %v657, %v1127
      %v1230 = vmul.f32 %v662, %v1129
      %v1231 = vmul.f32 %v667, %v1131
      %v1232 = vmul.f32 %v672, %v1133
      %v1233 = vmul.f32 %v677, %v1135
      %v1234 = vmul.f32 %v682, %v1137
      %v1235 = vmul.f32 %v687, %v1139
      %v1236 = vmul.f32 %v692, %v1141
      %v1237 = vmul.f32 %v697, %v1143
      %v1238 = vmul.f32 %v702, %v1145
      %v1239 = vmul.f32 %v707, %v1147
      %v1240 = vmul.f32 %v712, %v1149
      %v1241 = vmul.f32 %v717, %v1151
      %v1242 = vmul.f32 %v722, %v1153
      %v1243 = vmul.f32 %v727, %v1155
      %v1244 = vmul.f32 %v732, %v1157
      %v1245 = vmul.f32 %v737, %v1159
      %v1246 = vmul.f32 %v742, %v1161
      %v1247 = vmul.f32 %v747, %v1163
      %v1248 = vmul.f32 %v752, %v1165
      %v1249 = vmul.f32 %v757, %v1167
      %v1250 = vmul.f32 %v762, %v1169
      %v1251 = vmul.f32 %v767, %v1171
      %v1252 = vmul.f32 %v772, %v1173
      %v1253 = vmul.f32 %v777, %v1175
      %v1254 = vmul.f32 %v782, %v1177
      %v1255 = vmul.f32 %v787, %v1179
      %v1256 = vmul.f32 %v792, %v1181
      %v1257 = vmul.f32 %v797, %v1183
      %v1258 = vmul.f32 %v802, %v1185
      %v1259 = vmul.f32 %v807, %v1187
      %v1260 = vmul.f32 %v812, %v1189
      %v1261 = vmul.f32 %v817, %v1191
      %v1262 = vmul.f32 %v822, %v1193
      %v1263 = vmul.f32 %v827, %v1195
      %v1264 = vmul.f32 %v832, %v1197
      %v1265 = vmul.f32 %v837, %v1199
      %v1266 = vmul.f32 %v842, %v1201
      %v1267 = vmul.f32 %v847, %v1203
      %v1268 = vmul.f32 %v852, %v1205
      %v1269 = vmul.f32 %v857, %v1207
      %v1270 = vmul.f32 %v862, %v1209
      %v1271 = vmul.f32 %v867, %v1211
      %v1272 = vmul.f32 %v872, %v1213
      %v1273 = vmul.f32 %v877, %v1215
      %v1274 = vmul.f32 %v882, %v1217
      %v1275 = vmul.f32 %v887, %v1219
      %v1276 = vmul.f32 %v892, %v1221
      %v1277 = vmul.f32 %v897, %v1223
      %v1278 = vlaneseq
      %v1279 = vshrl.u32 %v1278, 7
      %v1280 = vadd.s32 %v1279, 8
      %v1281 = vadd.s32 %v1279, 16
      %vm1282 = vcmp.ge.s32.totalorder %v1279, 1
      %vm1283 = vcmp.ge.s32.totalorder %v1280, 1
      %vm1284 = vcmp.ge.s32.totalorder %v1281, 1
      %vm1285 = vmand 0, %vm1282
      %vm1286 = vmand 0, %vm1283
      %vm1287 = vmand 0, %vm1284
      %vm1288 = vmand 1, %vm1282
      %vm1289 = vmand 1, %vm1283
      %vm1290 = vmand 1, %vm1284
      %vm1291 = vcmp.le.s32.totalorder %v1279, 16
      %vm1292 = vcmp.le.s32.totalorder %v1280, 16
      %vm1293 = vcmp.le.s32.totalorder %v1281, 16
      %vm1294 = vmand %vm1285, %vm1291
      %vm1295 = vmand %vm1286, %vm1292
      %vm1296 = vmand %vm1287, %vm1293
      %vm1297 = vmand %vm1288, %vm1291
      %vm1298 = vmand %vm1289, %vm1292
      %vm1299 = vmand %vm1290, %vm1293
      %v1300 = vsel %vm1294, %v1224, 0.0
      %v1301 = vsel %vm1295, %v1225, 0.0
      %v1302 = vsel %vm1296, %v1226, 0.0
      %v1303 = vsel %vm1297, %v1227, 0.0
      %v1304 = vsel %vm1298, %v1228, 0.0
      %v1305 = vsel %vm1299, %v1229, 0.0
      %v1306 = vsel %vm1297, %v1230, 0.0
      %v1307 = vsel %vm1298, %v1231, 0.0
      %v1308 = vsel %vm1299, %v1232, 0.0
      %v1309 = vsel %vm1297, %v1233, 0.0
      %v1310 = vsel %vm1298, %v1234, 0.0
      %v1311 = vsel %vm1299, %v1235, 0.0
      %v1312 = vsel %vm1297, %v1236, 0.0
      %v1313 = vsel %vm1298, %v1237, 0.0
      %v1314 = vsel %vm1299, %v1238, 0.0
      %v1315 = vsel %vm1297, %v1239, 0.0
      %v1316 = vsel %vm1298, %v1240, 0.0
      %v1317 = vsel %vm1299, %v1241, 0.0
      %v1318 = vsel %vm1297, %v1242, 0.0
      %v1319 = vsel %vm1298, %v1243, 0.0
      %v1320 = vsel %vm1299, %v1244, 0.0
      %v1321 = vsel %vm1297, %v1245, 0.0
      %v1322 = vsel %vm1298, %v1246, 0.0
      %v1323 = vsel %vm1299, %v1247, 0.0
      %v1324 = vsel %vm1297, %v1248, 0.0
      %v1325 = vsel %vm1298, %v1249, 0.0
      %v1326 = vsel %vm1299, %v1250, 0.0
      %v1327 = vsel %vm1297, %v1251, 0.0
      %v1328 = vsel %vm1298, %v1252, 0.0
      %v1329 = vsel %vm1299, %v1253, 0.0
      %v1330 = vsel %vm1297, %v1254, 0.0
      %v1331 = vsel %vm1298, %v1255, 0.0
      %v1332 = vsel %vm1299, %v1256, 0.0
      %v1333 = vsel %vm1297, %v1257, 0.0
      %v1334 = vsel %vm1298, %v1258, 0.0
      %v1335 = vsel %vm1299, %v1259, 0.0
      %v1336 = vsel %vm1297, %v1260, 0.0
      %v1337 = vsel %vm1298, %v1261, 0.0
      %v1338 = vsel %vm1299, %v1262, 0.0
      %v1339 = vsel %vm1297, %v1263, 0.0
      %v1340 = vsel %vm1298, %v1264, 0.0
      %v1341 = vsel %vm1299, %v1265, 0.0
      %v1342 = vsel %vm1297, %v1266, 0.0
      %v1343 = vsel %vm1298, %v1267, 0.0
      %v1344 = vsel %vm1299, %v1268, 0.0
      %v1345 = vsel %vm1297, %v1269, 0.0
      %v1346 = vsel %vm1298, %v1270, 0.0
      %v1347 = vsel %vm1299, %v1271, 0.0
      %v1348 = vsel %vm1297, %v1272, 0.0
      %v1349 = vsel %vm1298, %v1273, 0.0
      %v1350 = vsel %vm1299, %v1274, 0.0
      %v1351 = vsel %vm1294, %v1275, 0.0
      %v1352 = vsel %vm1295, %v1276, 0.0
      %v1353 = vsel %vm1296, %v1277, 0.0
      %vm1354 = vcmask 261120
      %1355 = vst.msk [vmem:[#allocation2] sm:$0xff] %vm1354, %v1300
      %1356 = vst.msk [vmem:[#allocation2 + $0x8] sm:$0xff] %vm1354, %v1301
      %1357 = vst.msk [vmem:[#allocation2 + $0x10] sm:$0xff] %vm1354, %v1302
      %1358 = vst.msk [vmem:[#allocation2 + $0x18] sm:$0xff] %vm1354, %v1303
      %1359 = vst.msk [vmem:[#allocation2 + $0x20] sm:$0xff] %vm1354, %v1304
      %1360 = vst.msk [vmem:[#allocation2 + $0x28] sm:$0xff] %vm1354, %v1305
      %1361 = vst.msk [vmem:[#allocation2 + $0x30] sm:$0xff] %vm1354, %v1306
      %1362 = vst.msk [vmem:[#allocation2 + $0x38] sm:$0xff] %vm1354, %v1307
      %1363 = vst.msk [vmem:[#allocation2 + $0x40] sm:$0xff] %vm1354, %v1308
      %1364 = vst.msk [vmem:[#allocation2 + $0x48] sm:$0xff] %vm1354, %v1309
      %1365 = vst.msk [vmem:[#allocation2 + $0x50] sm:$0xff] %vm1354, %v1310
      %1366 = vst.msk [vmem:[#allocation2 + $0x58] sm:$0xff] %vm1354, %v1311
      %1367 = vst.msk [vmem:[#allocation2 + $0x60] sm:$0xff] %vm1354, %v1312
      %1368 = vst.msk [vmem:[#allocation2 + $0x68] sm:$0xff] %vm1354, %v1313
      %1369 = vst.msk [vmem:[#allocation2 + $0x70] sm:$0xff] %vm1354, %v1314
      %1370 = vst.msk [vmem:[#allocation2 + $0x78] sm:$0xff] %vm1354, %v1315
      %1371 = vst.msk [vmem:[#allocation2 + $0x80] sm:$0xff] %vm1354, %v1316
      %1372 = vst.msk [vmem:[#allocation2 + $0x88] sm:$0xff] %vm1354, %v1317
      %1373 = vst.msk [vmem:[#allocation2 + $0x90] sm:$0xff] %vm1354, %v1318
      %1374 = vst.msk [vmem:[#allocation2 + $0x98] sm:$0xff] %vm1354, %v1319
      %1375 = vst.msk [vmem:[#allocation2 + $0xa0] sm:$0xff] %vm1354, %v1320
      %1376 = vst.msk [vmem:[#allocation2 + $0xa8] sm:$0xff] %vm1354, %v1321
      %1377 = vst.msk [vmem:[#allocation2 + $0xb0] sm:$0xff] %vm1354, %v1322
      %1378 = vst.msk [vmem:[#allocation2 + $0xb8] sm:$0xff] %vm1354, %v1323
      %1379 = vst.msk [vmem:[#allocation2 + $0xc0] sm:$0xff] %vm1354, %v1324
      %1380 = vst.msk [vmem:[#allocation2 + $0xc8] sm:$0xff] %vm1354, %v1325
      %1381 = vst.msk [vmem:[#allocation2 + $0xd0] sm:$0xff] %vm1354, %v1326
      %1382 = vst.msk [vmem:[#allocation2 + $0xd8] sm:$0xff] %vm1354, %v1327
      %1383 = vst.msk [vmem:[#allocation2 + $0xe0] sm:$0xff] %vm1354, %v1328
      %1384 = vst.msk [vmem:[#allocation2 + $0xe8] sm:$0xff] %vm1354, %v1329
      %1385 = vst.msk [vmem:[#allocation2 + $0xf0] sm:$0xff] %vm1354, %v1330
      %1386 = vst.msk [vmem:[#allocation2 + $0xf8] sm:$0xff] %vm1354, %v1331
      %1387 = vst.msk [vmem:[#allocation2 + $0x100] sm:$0xff] %vm1354, %v1332
      %1388 = vst.msk [vmem:[#allocation2 + $0x108] sm:$0xff] %vm1354, %v1333
      %1389 = vst.msk [vmem:[#allocation2 + $0x110] sm:$0xff] %vm1354, %v1334
      %1390 = vst.msk [vmem:[#allocation2 + $0x118] sm:$0xff] %vm1354, %v1335
      %1391 = vst.msk [vmem:[#allocation2 + $0x120] sm:$0xff] %vm1354, %v1336
      %1392 = vst.msk [vmem:[#allocation2 + $0x128] sm:$0xff] %vm1354, %v1337
      %1393 = vst.msk [vmem:[#allocation2 + $0x130] sm:$0xff] %vm1354, %v1338
      %1394 = vst.msk [vmem:[#allocation2 + $0x138] sm:$0xff] %vm1354, %v1339
      %1395 = vst.msk [vmem:[#allocation2 + $0x140] sm:$0xff] %vm1354, %v1340
      %1396 = vst.msk [vmem:[#allocation2 + $0x148] sm:$0xff] %vm1354, %v1341
      %1397 = vst.msk [vmem:[#allocation2 + $0x150] sm:$0xff] %vm1354, %v1342
      %1398 = vst.msk [vmem:[#allocation2 + $0x158] sm:$0xff] %vm1354, %v1343
      %1399 = vst.msk [vmem:[#allocation2 + $0x160] sm:$0xff] %vm1354, %v1344
      %1400 = vst.msk [vmem:[#allocation2 + $0x168] sm:$0xff] %vm1354, %v1345
      %1401 = vst.msk [vmem:[#allocation2 + $0x170] sm:$0xff] %vm1354, %v1346
      %1402 = vst.msk [vmem:[#allocation2 + $0x178] sm:$0xff] %vm1354, %v1347
      %1403 = vst.msk [vmem:[#allocation2 + $0x180] sm:$0xff] %vm1354, %v1348
      %1404 = vst.msk [vmem:[#allocation2 + $0x188] sm:$0xff] %vm1354, %v1349
      %1405 = vst.msk [vmem:[#allocation2 + $0x190] sm:$0xff] %vm1354, %v1350
      %1406 = vst.msk [vmem:[#allocation2 + $0x198] sm:$0xff] %vm1354, %v1351
      %1407 = vst.msk [vmem:[#allocation2 + $0x1a0] sm:$0xff] %vm1354, %v1352
      %1408 = vst.msk [vmem:[#allocation2 + $0x1a8] sm:$0xff] %vm1354, %v1353
      %v1409 = vld [vmem:[#allocation2] sm:$0xff]
      %v1410 = vld [vmem:[#allocation2 + $0x8] sm:$0xff]
      %v1411 = vld [vmem:[#allocation2 + $0x18] sm:$0xff]
      %v1412 = vld [vmem:[#allocation2 + $0x20] sm:$0xff]
      %v1413 = vld [vmem:[#allocation2 + $0x30] sm:$0xff]
      %v1414 = vld [vmem:[#allocation2 + $0x38] sm:$0xff]
      %v1415 = vld [vmem:[#allocation2 + $0x48] sm:$0xff]
      %v1416 = vld [vmem:[#allocation2 + $0x50] sm:$0xff]
      %v1417 = vld [vmem:[#allocation2 + $0x60] sm:$0xff]
      %v1418 = vld [vmem:[#allocation2 + $0x68] sm:$0xff]
      %v1419 = vld [vmem:[#allocation2 + $0x78] sm:$0xff]
      %v1420 = vld [vmem:[#allocation2 + $0x80] sm:$0xff]
      %v1421 = vld [vmem:[#allocation2 + $0x90] sm:$0xff]
      %v1422 = vld [vmem:[#allocation2 + $0x98] sm:$0xff]
      %v1423 = vld [vmem:[#allocation2 + $0xa8] sm:$0xff]
      %v1424 = vld [vmem:[#allocation2 + $0xb0] sm:$0xff]
      %v1425 = vld [vmem:[#allocation2 + $0xc0] sm:$0xff]
      %v1426 = vld [vmem:[#allocation2 + $0xc8] sm:$0xff]
      %v1427 = vld [vmem:[#allocation2 + $0xd8] sm:$0xff]
      %v1428 = vld [vmem:[#allocation2 + $0xe0] sm:$0xff]
      %v1429 = vld [vmem:[#allocation2 + $0xf0] sm:$0xff]
      %v1430 = vld [vmem:[#allocation2 + $0xf8] sm:$0xff]
      %v1431 = vld [vmem:[#allocation2 + $0x108] sm:$0xff]
      %v1432 = vld [vmem:[#allocation2 + $0x110] sm:$0xff]
      %v1433 = vld [vmem:[#allocation2 + $0x120] sm:$0xff]
      %v1434 = vld [vmem:[#allocation2 + $0x128] sm:$0xff]
      %v1435 = vld [vmem:[#allocation2 + $0x138] sm:$0xff]
      %v1436 = vld [vmem:[#allocation2 + $0x140] sm:$0xff]
      %v1437 = vld [vmem:[#allocation2 + $0x150] sm:$0xff]
      %v1438 = vld [vmem:[#allocation2 + $0x158] sm:$0xff]
      %v1439 = vld [vmem:[#allocation2 + $0x168] sm:$0xff]
      %v1440 = vld [vmem:[#allocation2 + $0x170] sm:$0xff]
      %v1441 = vld [vmem:[%s3] sm:$0xff]
      %v1442 = vld [vmem:[%s3 + $0x8] sm:$0xff]
      %v1443 = vld [vmem:[%s3 + $0x10] sm:$0xff]
      %v1444 = vld [vmem:[%s3 + $0x18] sm:$0xff]
      %v1445 = vld [vmem:[#allocation2 + $0x1] sm:$0xff]
      %v1446 = vld [vmem:[#allocation2 + $0x9] sm:$0xff]
      %v1447 = vld [vmem:[#allocation2 + $0x19] sm:$0xff]
      %v1448 = vld [vmem:[#allocation2 + $0x21] sm:$0xff]
      %v1449 = vld [vmem:[#allocation2 + $0x31] sm:$0xff]
      %v1450 = vld [vmem:[#allocation2 + $0x39] sm:$0xff]
      %v1451 = vld [vmem:[#allocation2 + $0x49] sm:$0xff]
      %v1452 = vld [vmem:[#allocation2 + $0x51] sm:$0xff]
      %v1453 = vld [vmem:[#allocation2 + $0x61] sm:$0xff]
      %v1454 = vld [vmem:[#allocation2 + $0x69] sm:$0xff]
      %v1455 = vld [vmem:[#allocation2 + $0x79] sm:$0xff]
      %v1456 = vld [vmem:[#allocation2 + $0x81] sm:$0xff]
      %v1457 = vld [vmem:[#allocation2 + $0x91] sm:$0xff]
      %v1458 = vld [vmem:[#allocation2 + $0x99] sm:$0xff]
      %v1459 = vld [vmem:[#allocation2 + $0xa9] sm:$0xff]
      %v1460 = vld [vmem:[#allocation2 + $0xb1] sm:$0xff]
      %v1461 = vld [vmem:[#allocation2 + $0xc1] sm:$0xff]
      %v1462 = vld [vmem:[#allocation2 + $0xc9] sm:$0xff]
      %v1463 = vld [vmem:[#allocation2 + $0xd9] sm:$0xff]
      %v1464 = vld [vmem:[#allocation2 + $0xe1] sm:$0xff]
      %v1465 = vld [vmem:[#allocation2 + $0xf1] sm:$0xff]
      %v1466 = vld [vmem:[#allocation2 + $0xf9] sm:$0xff]
      %v1467 = vld [vmem:[#allocation2 + $0x109] sm:$0xff]
      %v1468 = vld [vmem:[#allocation2 + $0x111] sm:$0xff]
      %v1469 = vld [vmem:[#allocation2 + $0x121] sm:$0xff]
      %v1470 = vld [vmem:[#allocation2 + $0x129] sm:$0xff]
      %v1471 = vld [vmem:[#allocation2 + $0x139] sm:$0xff]
      %v1472 = vld [vmem:[#allocation2 + $0x141] sm:$0xff]
      %v1473 = vld [vmem:[#allocation2 + $0x151] sm:$0xff]
      %v1474 = vld [vmem:[#allocation2 + $0x159] sm:$0xff]
      %v1475 = vld [vmem:[#allocation2 + $0x169] sm:$0xff]
      %v1476 = vld [vmem:[#allocation2 + $0x171] sm:$0xff]
      %s1477 = scalar_lea.vmem %s3, 32
      %v1478 = vld [vmem:[%s1477] sm:$0xff]
      %v1479 = vld [vmem:[%s1477 + $0x8] sm:$0xff]
      %v1480 = vld [vmem:[%s1477 + $0x10] sm:$0xff]
      %v1481 = vld [vmem:[%s1477 + $0x18] sm:$0xff]
      %v1483 = vsel %vm1354, %v1445, 0
      %v1486 = vsel %vm1354, %v1446, 0
      %v1489 = vsel %vm1354, %v1447, 0
      %v1492 = vsel %vm1354, %v1448, 0
      %v1495 = vsel %vm1354, %v1449, 0
      %v1498 = vsel %vm1354, %v1450, 0
      %v1501 = vsel %vm1354, %v1451, 0
      %v1504 = vsel %vm1354, %v1452, 0
      %v1507 = vsel %vm1354, %v1453, 0
      %v1510 = vsel %vm1354, %v1454, 0
      %v1513 = vsel %vm1354, %v1455, 0
      %v1516 = vsel %vm1354, %v1456, 0
      %v1519 = vsel %vm1354, %v1457, 0
      %v1522 = vsel %vm1354, %v1458, 0
      %v1525 = vsel %vm1354, %v1459, 0
      %v1528 = vsel %vm1354, %v1460, 0
      %v1531 = vsel %vm1354, %v1461, 0
      %v1534 = vsel %vm1354, %v1462, 0
      %v1537 = vsel %vm1354, %v1463, 0
      %v1540 = vsel %vm1354, %v1464, 0
      %v1543 = vsel %vm1354, %v1465, 0
      %v1546 = vsel %vm1354, %v1466, 0
      %v1549 = vsel %vm1354, %v1467, 0
      %v1552 = vsel %vm1354, %v1468, 0
      %v1555 = vsel %vm1354, %v1469, 0
      %v1558 = vsel %vm1354, %v1470, 0
      %v1561 = vsel %vm1354, %v1471, 0
      %v1564 = vsel %vm1354, %v1472, 0
      %v1567 = vsel %vm1354, %v1473, 0
      %v1570 = vsel %vm1354, %v1474, 0
      %v1573 = vsel %vm1354, %v1475, 0
      %v1576 = vsel %vm1354, %v1476, 0
      %1578 = vmatprep.subr.mxu0 0.0
      %1579 = vmatpush1.msra.mxu0 %v1478
      %1580 = vmatprep.subr.mxu0 0.0
      %1581 = vmatpush1.msra.mxu0 %v1479
      %1582 = vmatprep.subr.mxu0 0.0
      %1583 = vmatpush1.msra.mxu0 %v1480
      %1584 = vmatprep.subr.mxu0 0.0
      %1585 = vmatpush1.msra.mxu0 %v1481
      %1586 = vmatprep.subr.mxu0 0.0
      %1587 = vmatpush1.msra.mxu0 0.0
      %1588 = vmatprep.subr.mxu0 0.0
      %1589 = vmatpush1.msra.mxu0 0.0
      %1590 = vmatprep.subr.mxu0 0.0
      %1591 = vmatpush1.msra.mxu0 0.0
      %1592 = vmatprep.subr.mxu0 0.0
      %1593 = vmatpush1.msra.mxu0 0.0
      %1594 = vmatprep.subr.mxu0 0.0
      %1595 = vmatpush1.msra.mxu0 0.0
      %1596 = vmatprep.subr.mxu0 0.0
      %1597 = vmatpush1.msra.mxu0 0.0
      %1598 = vmatprep.subr.mxu0 0.0
      %1599 = vmatpush1.msra.mxu0 0.0
      %1600 = vmatprep.subr.mxu0 0.0
      %1601 = vmatpush1.msra.mxu0 0.0
      %1602 = vmatprep.subr.mxu0 0.0
      %1603 = vmatpush1.msra.mxu0 0.0
      %1604 = vmatprep.subr.mxu0 0.0
      %1605 = vmatpush1.msra.mxu0 0.0
      %1606 = vmatprep.subr.mxu0 0.0
      %1607 = vmatpush1.msra.mxu0 0.0
      %1608 = vmatprep.subr.mxu0 0.0
      %1609 = vmatpush1.msra.mxu0 0.0
      %1610 = vmatprep.subr.mxu0 0.0
      %1611 = vmatpush1.msra.mxu0 0.0
      %1612 = vmatprep.subr.mxu0 0.0
      %1613 = vmatpush1.msra.mxu0 0.0
      %1614 = vmatprep.subr.mxu0 0.0
      %1615 = vmatpush1.msra.mxu0 0.0
      %1616 = vmatprep.subr.mxu0 0.0
      %1617 = vmatpush1.msra.mxu0 0.0
      %1618 = vmatprep.subr.mxu0 0.0
      %1619 = vmatpush1.msra.mxu0 0.0
      %1620 = vmatprep.subr.mxu0 0.0
      %1621 = vmatpush1.msra.mxu0 0.0
      %1622 = vmatprep.subr.mxu0 0.0
      %1623 = vmatpush1.msra.mxu0 0.0
      %1624 = vmatprep.subr.mxu0 0.0
      %1625 = vmatpush1.msra.mxu0 0.0
      %1626 = vmatprep.subr.mxu0 0.0
      %1627 = vmatpush1.msra.mxu0 0.0
      %1628 = vmatprep.subr.mxu0 0.0
      %1629 = vmatpush1.msra.mxu0 0.0
      %1630 = vmatprep.subr.mxu0 0.0
      %1631 = vmatpush1.msra.mxu0 0.0
      %1632 = vmatprep.subr.mxu0 0.0
      %1633 = vmatpush1.msra.mxu0 0.0
      %1634 = vmatprep.subr.mxu0 0.0
      %1635 = vmatpush1.msra.mxu0 0.0
      %1636 = vmatprep.subr.mxu0 0.0
      %1637 = vmatpush1.msra.mxu0 0.0
      %1638 = vmatprep.subr.mxu0 0.0
      %1639 = vmatpush1.msra.mxu0 0.0
      %1640 = vmatprep.subr.mxu0 0.0
      %1641 = vmatpush1.msra.mxu0 0.0
      %1642 = vmatprep.mubr.f32.mxu0 0.0
      %1643 = vmatmul.mubr.f32.gmra.mrb[0].mxu0 %v1483
      %v1644 = vpop.f32.mrb[0].mxu0
      %v1645 = vadd.f32 0.0, %v1644
      %v1646 = vpop.f32.mrb[0].mxu0
      %1647 = vmatprep.mubr.f32.mxu0 0.0
      %1648 = vmatmul.mubr.f32.gmra.mrb[0].mxu0 %v1486
      %v1649 = vpop.f32.mrb[0].mxu0
      %v1650 = vadd.f32 0.0, %v1649
      %v1651 = vpop.f32.mrb[0].mxu0
      %1652 = vmatprep.mubr.f32.mxu0 0.0
      %1653 = vmatmul.mubr.f32.gmra.mrb[0].mxu0 %v1489
      %v1654 = vpop.f32.mrb[0].mxu0
      %v1655 = vadd.f32 0.0, %v1654
      %v1656 = vpop.f32.mrb[0].mxu0
      %1657 = vmatprep.mubr.f32.mxu0 0.0
      %1658 = vmatmul.mubr.f32.gmra.mrb[0].mxu0 %v1492
      %v1659 = vpop.f32.mrb[0].mxu0
      %v1660 = vadd.f32 0.0, %v1659
      %v1661 = vpop.f32.mrb[0].mxu0
      %1662 = vmatprep.mubr.f32.mxu0 0.0
      %1663 = vmatmul.mubr.f32.gmra.mrb[0].mxu0 %v1495
      %v1664 = vpop.f32.mrb[0].mxu0
      %v1665 = vadd.f32 0.0, %v1664
      %v1666 = vpop.f32.mrb[0].mxu0
      %1667 = vmatprep.mubr.f32.mxu0 0.0
      %1668 = vmatmul.mubr.f32.gmra.mrb[0].mxu0 %v1498
      %v1669 = vpop.f32.mrb[0].mxu0
      %v1670 = vadd.f32 0.0, %v1669
      %v1671 = vpop.f32.mrb[0].mxu0
      %1672 = vmatprep.mubr.f32.mxu0 0.0
      %1673 = vmatmul.mubr.f32.gmra.mrb[0].mxu0 %v1501
      %v1674 = vpop.f32.mrb[0].mxu0
      %v1675 = vadd.f32 0.0, %v1674
      %v1676 = vpop.f32.mrb[0].mxu0
      %1677 = vmatprep.mubr.f32.mxu0 0.0
      %1678 = vmatmul.mubr.f32.gmra.mrb[0].mxu0 %v1504
      %v1679 = vpop.f32.mrb[0].mxu0
      %v1680 = vadd.f32 0.0, %v1679
      %v1681 = vpop.f32.mrb[0].mxu0
      %1682 = vmatprep.mubr.f32.mxu0 0.0
      %1683 = vmatmul.mubr.f32.gmra.mrb[0].mxu0 %v1507
      %v1684 = vpop.f32.mrb[0].mxu0
      %v1685 = vadd.f32 0.0, %v1684
      %v1686 = vpop.f32.mrb[0].mxu0
      %1687 = vmatprep.mubr.f32.mxu0 0.0
      %1688 = vmatmul.mubr.f32.gmra.mrb[0].mxu0 %v1510
      %v1689 = vpop.f32.mrb[0].mxu0
      %v1690 = vadd.f32 0.0, %v1689
      %v1691 = vpop.f32.mrb[0].mxu0
      %1692 = vmatprep.mubr.f32.mxu0 0.0
      %1693 = vmatmul.mubr.f32.gmra.mrb[0].mxu0 %v1513
      %v1694 = vpop.f32.mrb[0].mxu0
      %v1695 = vadd.f32 0.0, %v1694
      %v1696 = vpop.f32.mrb[0].mxu0
      %1697 = vmatprep.mubr.f32.mxu0 0.0
      %1698 = vmatmul.mubr.f32.gmra.mrb[0].mxu0 %v1516
      %v1699 = vpop.f32.mrb[0].mxu0
      %v1700 = vadd.f32 0.0, %v1699
      %v1701 = vpop.f32.mrb[0].mxu0
      %1702 = vmatprep.mubr.f32.mxu0 0.0
      %1703 = vmatmul.mubr.f32.gmra.mrb[0].mxu0 %v1519
      %v1704 = vpop.f32.mrb[0].mxu0
      %v1705 = vadd.f32 0.0, %v1704
      %v1706 = vpop.f32.mrb[0].mxu0
      %1707 = vmatprep.mubr.f32.mxu0 0.0
      %1708 = vmatmul.mubr.f32.gmra.mrb[0].mxu0 %v1522
      %v1709 = vpop.f32.mrb[0].mxu0
      %v1710 = vadd.f32 0.0, %v1709
      %v1711 = vpop.f32.mrb[0].mxu0
      %1712 = vmatprep.mubr.f32.mxu0 0.0
      %1713 = vmatmul.mubr.f32.gmra.mrb[0].mxu0 %v1525
      %v1714 = vpop.f32.mrb[0].mxu0
      %v1715 = vadd.f32 0.0, %v1714
      %v1716 = vpop.f32.mrb[0].mxu0
      %1717 = vmatprep.mubr.f32.mxu0 0.0
      %1718 = vmatmul.mubr.f32.gmra.mrb[0].mxu0 %v1528
      %v1719 = vpop.f32.mrb[0].mxu0
      %v1720 = vadd.f32 0.0, %v1719
      %v1721 = vpop.f32.mrb[0].mxu0
      %1722 = vmatprep.mubr.f32.mxu0 0.0
      %1723 = vmatmul.mubr.f32.gmra.mrb[0].mxu0 %v1531
      %v1724 = vpop.f32.mrb[0].mxu0
      %v1725 = vadd.f32 0.0, %v1724
      %v1726 = vpop.f32.mrb[0].mxu0
      %1727 = vmatprep.mubr.f32.mxu0 0.0
      %1728 = vmatmul.mubr.f32.gmra.mrb[0].mxu0 %v1534
      %v1729 = vpop.f32.mrb[0].mxu0
      %v1730 = vadd.f32 0.0, %v1729
      %v1731 = vpop.f32.mrb[0].mxu0
      %1732 = vmatprep.mubr.f32.mxu0 0.0
      %1733 = vmatmul.mubr.f32.gmra.mrb[0].mxu0 %v1537
      %v1734 = vpop.f32.mrb[0].mxu0
      %v1735 = vadd.f32 0.0, %v1734
      %v1736 = vpop.f32.mrb[0].mxu0
      %1737 = vmatprep.mubr.f32.mxu0 0.0
      %1738 = vmatmul.mubr.f32.gmra.mrb[0].mxu0 %v1540
      %v1739 = vpop.f32.mrb[0].mxu0
      %v1740 = vadd.f32 0.0, %v1739
      %v1741 = vpop.f32.mrb[0].mxu0
      %1742 = vmatprep.mubr.f32.mxu0 0.0
      %1743 = vmatmul.mubr.f32.gmra.mrb[0].mxu0 %v1543
      %v1744 = vpop.f32.mrb[0].mxu0
      %v1745 = vadd.f32 0.0, %v1744
      %v1746 = vpop.f32.mrb[0].mxu0
      %1747 = vmatprep.mubr.f32.mxu0 0.0
      %1748 = vmatmul.mubr.f32.gmra.mrb[0].mxu0 %v1546
      %v1749 = vpop.f32.mrb[0].mxu0
      %v1750 = vadd.f32 0.0, %v1749
      %v1751 = vpop.f32.mrb[0].mxu0
      %1752 = vmatprep.mubr.f32.mxu0 0.0
      %1753 = vmatmul.mubr.f32.gmra.mrb[0].mxu0 %v1549
      %v1754 = vpop.f32.mrb[0].mxu0
      %v1755 = vadd.f32 0.0, %v1754
      %v1756 = vpop.f32.mrb[0].mxu0
      %1757 = vmatprep.mubr.f32.mxu0 0.0
      %1758 = vmatmul.mubr.f32.gmra.mrb[0].mxu0 %v1552
      %v1759 = vpop.f32.mrb[0].mxu0
      %v1760 = vadd.f32 0.0, %v1759
      %v1761 = vpop.f32.mrb[0].mxu0
      %1762 = vmatprep.mubr.f32.mxu0 0.0
      %1763 = vmatmul.mubr.f32.gmra.mrb[0].mxu0 %v1555
      %v1764 = vpop.f32.mrb[0].mxu0
      %v1765 = vadd.f32 0.0, %v1764
      %v1766 = vpop.f32.mrb[0].mxu0
      %1767 = vmatprep.mubr.f32.mxu0 0.0
      %1768 = vmatmul.mubr.f32.gmra.mrb[0].mxu0 %v1558
      %v1769 = vpop.f32.mrb[0].mxu0
      %v1770 = vadd.f32 0.0, %v1769
      %v1771 = vpop.f32.mrb[0].mxu0
      %1772 = vmatprep.mubr.f32.mxu0 0.0
      %1773 = vmatmul.mubr.f32.gmra.mrb[0].mxu0 %v1561
      %v1774 = vpop.f32.mrb[0].mxu0
      %v1775 = vadd.f32 0.0, %v1774
      %v1776 = vpop.f32.mrb[0].mxu0
      %1777 = vmatprep.mubr.f32.mxu0 0.0
      %1778 = vmatmul.mubr.f32.gmra.mrb[0].mxu0 %v1564
      %v1779 = vpop.f32.mrb[0].mxu0
      %v1780 = vadd.f32 0.0, %v1779
      %v1781 = vpop.f32.mrb[0].mxu0
      %1782 = vmatprep.mubr.f32.mxu0 0.0
      %1783 = vmatmul.mubr.f32.gmra.mrb[0].mxu0 %v1567
      %v1784 = vpop.f32.mrb[0].mxu0
      %v1785 = vadd.f32 0.0, %v1784
      %v1786 = vpop.f32.mrb[0].mxu0
      %1787 = vmatprep.mubr.f32.mxu0 0.0
      %1788 = vmatmul.mubr.f32.gmra.mrb[0].mxu0 %v1570
      %v1789 = vpop.f32.mrb[0].mxu0
      %v1790 = vadd.f32 0.0, %v1789
      %v1791 = vpop.f32.mrb[0].mxu0
      %1792 = vmatprep.mubr.f32.mxu0 0.0
      %1793 = vmatmul.mubr.f32.gmra.mrb[0].mxu0 %v1573
      %v1794 = vpop.f32.mrb[0].mxu0
      %v1795 = vadd.f32 0.0, %v1794
      %v1796 = vpop.f32.mrb[0].mxu0
      %1797 = vmatprep.mubr.f32.mxu0 0.0
      %1798 = vmatmul.mubr.f32.gmra.mrb[0].mxu0 %v1576
      %v1799 = vpop.f32.mrb[0].mxu0
      %v1800 = vadd.f32 0.0, %v1799
      %v1801 = vpop.f32.mrb[0].mxu0
      %1802 = vdwg.mxu0
      %v1804 = vsel %vm1354, %v1409, 0
      %v1807 = vsel %vm1354, %v1410, 0
      %v1810 = vsel %vm1354, %v1411, 0
      %v1813 = vsel %vm1354, %v1412, 0
      %v1816 = vsel %vm1354, %v1413, 0
      %v1819 = vsel %vm1354, %v1414, 0
      %v1822 = vsel %vm1354, %v1415, 0
      %v1825 = vsel %vm1354, %v1416, 0
      %v1828 = vsel %vm1354, %v1417, 0
      %v1831 = vsel %vm1354, %v1418, 0
      %v1834 = vsel %vm1354, %v1419, 0
      %v1837 = vsel %vm1354, %v1420, 0
      %v1840 = vsel %vm1354, %v1421, 0
      %v1843 = vsel %vm1354, %v1422, 0
      %v1846 = vsel %vm1354, %v1423, 0
      %v1849 = vsel %vm1354, %v1424, 0
      %v1852 = vsel %vm1354, %v1425, 0
      %v1855 = vsel %vm1354, %v1426, 0
      %v1858 = vsel %vm1354, %v1427, 0
      %v1861 = vsel %vm1354, %v1428, 0
      %v1864 = vsel %vm1354, %v1429, 0
      %v1867 = vsel %vm1354, %v1430, 0
      %v1870 = vsel %vm1354, %v1431, 0
      %v1873 = vsel %vm1354, %v1432, 0
      %v1876 = vsel %vm1354, %v1433, 0
      %v1879 = vsel %vm1354, %v1434, 0
      %v1882 = vsel %vm1354, %v1435, 0
      %v1885 = vsel %vm1354, %v1436, 0
      %v1888 = vsel %vm1354, %v1437, 0
      %v1891 = vsel %vm1354, %v1438, 0
      %v1894 = vsel %vm1354, %v1439, 0
      %v1897 = vsel %vm1354, %v1440, 0
      %1899 = vmatprep.subr.mxu0 0.0
      %1900 = vmatpush1.msra.mxu0 %v1441
      %1901 = vmatprep.subr.mxu0 0.0
      %1902 = vmatpush1.msra.mxu0 %v1442
      %1903 = vmatprep.subr.mxu0 0.0
      %1904 = vmatpush1.msra.mxu0 %v1443
      %1905 = vmatprep.subr.mxu0 0.0
      %1906 = vmatpush1.msra.mxu0 %v1444
      %1907 = vmatprep.subr.mxu0 0.0
      %1908 = vmatpush1.msra.mxu0 0.0
      %1909 = vmatprep.subr.mxu0 0.0
      %1910 = vmatpush1.msra.mxu0 0.0
      %1911 = vmatprep.subr.mxu0 0.0
      %1912 = vmatpush1.msra.mxu0 0.0
      %1913 = vmatprep.subr.mxu0 0.0
      %1914 = vmatpush1.msra.mxu0 0.0
      %1915 = vmatprep.subr.mxu0 0.0
      %1916 = vmatpush1.msra.mxu0 0.0
      %1917 = vmatprep.subr.mxu0 0.0
      %1918 = vmatpush1.msra.mxu0 0.0
      %1919 = vmatprep.subr.mxu0 0.0
      %1920 = vmatpush1.msra.mxu0 0.0
      %1921 = vmatprep.subr.mxu0 0.0
      %1922 = vmatpush1.msra.mxu0 0.0
      %1923 = vmatprep.subr.mxu0 0.0
      %1924 = vmatpush1.msra.mxu0 0.0
      %1925 = vmatprep.subr.mxu0 0.0
      %1926 = vmatpush1.msra.mxu0 0.0
      %1927 = vmatprep.subr.mxu0 0.0
      %1928 = vmatpush1.msra.mxu0 0.0
      %1929 = vmatprep.subr.mxu0 0.0
      %1930 = vmatpush1.msra.mxu0 0.0
      %1931 = vmatprep.subr.mxu0 0.0
      %1932 = vmatpush1.msra.mxu0 0.0
      %1933 = vmatprep.subr.mxu0 0.0
      %1934 = vmatpush1.msra.mxu0 0.0
      %1935 = vmatprep.subr.mxu0 0.0
      %1936 = vmatpush1.msra.mxu0 0.0
      %1937 = vmatprep.subr.mxu0 0.0
      %1938 = vmatpush1.msra.mxu0 0.0
      %1939 = vmatprep.subr.mxu0 0.0
      %1940 = vmatpush1.msra.mxu0 0.0
      %1941 = vmatprep.subr.mxu0 0.0
      %1942 = vmatpush1.msra.mxu0 0.0
      %1943 = vmatprep.subr.mxu0 0.0
      %1944 = vmatpush1.msra.mxu0 0.0
      %1945 = vmatprep.subr.mxu0 0.0
      %1946 = vmatpush1.msra.mxu0 0.0
      %1947 = vmatprep.subr.mxu0 0.0
      %1948 = vmatpush1.msra.mxu0 0.0
      %1949 = vmatprep.subr.mxu0 0.0
      %1950 = vmatpush1.msra.mxu0 0.0
      %1951 = vmatprep.subr.mxu0 0.0
      %1952 = vmatpush1.msra.mxu0 0.0
      %1953 = vmatprep.subr.mxu0 0.0
      %1954 = vmatpush1.msra.mxu0 0.0
      %1955 = vmatprep.subr.mxu0 0.0
      %1956 = vmatpush1.msra.mxu0 0.0
      %1957 = vmatprep.subr.mxu0 0.0
      %1958 = vmatpush1.msra.mxu0 0.0
      %1959 = vmatprep.subr.mxu0 0.0
      %1960 = vmatpush1.msra.mxu0 0.0
      %1961 = vmatprep.subr.mxu0 0.0
      %1962 = vmatpush1.msra.mxu0 0.0
      %1963 = vmatprep.mubr.f32.mxu0 0.0
      %1964 = vmatmul.mubr.f32.gmra.mrb[0].mxu0 %v1804
      %v1965 = vpop.f32.mrb[0].mxu0
      %v1966 = vadd.f32 %v1645, %v1965
      %v1967 = vpop.f32.mrb[0].mxu0
      %1968 = vmatprep.mubr.f32.mxu0 0.0
      %1969 = vmatmul.mubr.f32.gmra.mrb[0].mxu0 %v1807
      %v1970 = vpop.f32.mrb[0].mxu0
      %v1971 = vadd.f32 %v1650, %v1970
      %v1972 = vpop.f32.mrb[0].mxu0
      %1973 = vmatprep.mubr.f32.mxu0 0.0
      %1974 = vmatmul.mubr.f32.gmra.mrb[0].mxu0 %v1810
      %v1975 = vpop.f32.mrb[0].mxu0
      %v1976 = vadd.f32 %v1655, %v1975
      %v1977 = vpop.f32.mrb[0].mxu0
      %1978 = vmatprep.mubr.f32.mxu0 0.0
      %1979 = vmatmul.mubr.f32.gmra.mrb[0].mxu0 %v1813
      %v1980 = vpop.f32.mrb[0].mxu0
      %v1981 = vadd.f32 %v1660, %v1980
      %v1982 = vpop.f32.mrb[0].mxu0
      %1983 = vmatprep.mubr.f32.mxu0 0.0
      %1984 = vmatmul.mubr.f32.gmra.mrb[0].mxu0 %v1816
      %v1985 = vpop.f32.mrb[0].mxu0
      %v1986 = vadd.f32 %v1665, %v1985
      %v1987 = vpop.f32.mrb[0].mxu0
      %1988 = vmatprep.mubr.f32.mxu0 0.0
      %1989 = vmatmul.mubr.f32.gmra.mrb[0].mxu0 %v1819
      %v1990 = vpop.f32.mrb[0].mxu0
      %v1991 = vadd.f32 %v1670, %v1990
      %v1992 = vpop.f32.mrb[0].mxu0
      %1993 = vmatprep.mubr.f32.mxu0 0.0
      %1994 = vmatmul.mubr.f32.gmra.mrb[0].mxu0 %v1822
      %v1995 = vpop.f32.mrb[0].mxu0
      %v1996 = vadd.f32 %v1675, %v1995
      %v1997 = vpop.f32.mrb[0].mxu0
      %1998 = vmatprep.mubr.f32.mxu0 0.0
      %1999 = vmatmul.mubr.f32.gmra.mrb[0].mxu0 %v1825
      %v2000 = vpop.f32.mrb[0].mxu0
      %v2001 = vadd.f32 %v1680, %v2000
      %v2002 = vpop.f32.mrb[0].mxu0
      %2003 = vmatprep.mubr.f32.mxu0 0.0
      %2004 = vmatmul.mubr.f32.gmra.mrb[0].mxu0 %v1828
      %v2005 = vpop.f32.mrb[0].mxu0
      %v2006 = vadd.f32 %v1685, %v2005
      %v2007 = vpop.f32.mrb[0].mxu0
      %2008 = vmatprep.mubr.f32.mxu0 0.0
      %2009 = vmatmul.mubr.f32.gmra.mrb[0].mxu0 %v1831
      %v2010 = vpop.f32.mrb[0].mxu0
      %v2011 = vadd.f32 %v1690, %v2010
      %v2012 = vpop.f32.mrb[0].mxu0
      %2013 = vmatprep.mubr.f32.mxu0 0.0
      %2014 = vmatmul.mubr.f32.gmra.mrb[0].mxu0 %v1834
      %v2015 = vpop.f32.mrb[0].mxu0
      %v2016 = vadd.f32 %v1695, %v2015
      %v2017 = vpop.f32.mrb[0].mxu0
      %2018 = vmatprep.mubr.f32.mxu0 0.0
      %2019 = vmatmul.mubr.f32.gmra.mrb[0].mxu0 %v1837
      %v2020 = vpop.f32.mrb[0].mxu0
      %v2021 = vadd.f32 %v1700, %v2020
      %v2022 = vpop.f32.mrb[0].mxu0
      %2023 = vmatprep.mubr.f32.mxu0 0.0
      %2024 = vmatmul.mubr.f32.gmra.mrb[0].mxu0 %v1840
      %v2025 = vpop.f32.mrb[0].mxu0
      %v2026 = vadd.f32 %v1705, %v2025
      %v2027 = vpop.f32.mrb[0].mxu0
      %2028 = vmatprep.mubr.f32.mxu0 0.0
      %2029 = vmatmul.mubr.f32.gmra.mrb[0].mxu0 %v1843
      %v2030 = vpop.f32.mrb[0].mxu0
      %v2031 = vadd.f32 %v1710, %v2030
      %v2032 = vpop.f32.mrb[0].mxu0
      %2033 = vmatprep.mubr.f32.mxu0 0.0
      %2034 = vmatmul.mubr.f32.gmra.mrb[0].mxu0 %v1846
      %v2035 = vpop.f32.mrb[0].mxu0
      %v2036 = vadd.f32 %v1715, %v2035
      %v2037 = vpop.f32.mrb[0].mxu0
      %2038 = vmatprep.mubr.f32.mxu0 0.0
      %2039 = vmatmul.mubr.f32.gmra.mrb[0].mxu0 %v1849
      %v2040 = vpop.f32.mrb[0].mxu0
      %v2041 = vadd.f32 %v1720, %v2040
      %v2042 = vpop.f32.mrb[0].mxu0
      %2043 = vmatprep.mubr.f32.mxu0 0.0
      %2044 = vmatmul.mubr.f32.gmra.mrb[0].mxu0 %v1852
      %v2045 = vpop.f32.mrb[0].mxu0
      %v2046 = vadd.f32 %v1725, %v2045
      %v2047 = vpop.f32.mrb[0].mxu0
      %2048 = vmatprep.mubr.f32.mxu0 0.0
      %2049 = vmatmul.mubr.f32.gmra.mrb[0].mxu0 %v1855
      %v2050 = vpop.f32.mrb[0].mxu0
      %v2051 = vadd.f32 %v1730, %v2050
      %v2052 = vpop.f32.mrb[0].mxu0
      %2053 = vmatprep.mubr.f32.mxu0 0.0
      %2054 = vmatmul.mubr.f32.gmra.mrb[0].mxu0 %v1858
      %v2055 = vpop.f32.mrb[0].mxu0
      %v2056 = vadd.f32 %v1735, %v2055
      %v2057 = vpop.f32.mrb[0].mxu0
      %2058 = vmatprep.mubr.f32.mxu0 0.0
      %2059 = vmatmul.mubr.f32.gmra.mrb[0].mxu0 %v1861
      %v2060 = vpop.f32.mrb[0].mxu0
      %v2061 = vadd.f32 %v1740, %v2060
      %v2062 = vpop.f32.mrb[0].mxu0
      %2063 = vmatprep.mubr.f32.mxu0 0.0
      %2064 = vmatmul.mubr.f32.gmra.mrb[0].mxu0 %v1864
      %v2065 = vpop.f32.mrb[0].mxu0
      %v2066 = vadd.f32 %v1745, %v2065
      %v2067 = vpop.f32.mrb[0].mxu0
      %2068 = vmatprep.mubr.f32.mxu0 0.0
      %2069 = vmatmul.mubr.f32.gmra.mrb[0].mxu0 %v1867
      %v2070 = vpop.f32.mrb[0].mxu0
      %v2071 = vadd.f32 %v1750, %v2070
      %v2072 = vpop.f32.mrb[0].mxu0
      %2073 = vmatprep.mubr.f32.mxu0 0.0
      %2074 = vmatmul.mubr.f32.gmra.mrb[0].mxu0 %v1870
      %v2075 = vpop.f32.mrb[0].mxu0
      %v2076 = vadd.f32 %v1755, %v2075
      %v2077 = vpop.f32.mrb[0].mxu0
      %2078 = vmatprep.mubr.f32.mxu0 0.0
      %2079 = vmatmul.mubr.f32.gmra.mrb[0].mxu0 %v1873
      %v2080 = vpop.f32.mrb[0].mxu0
      %v2081 = vadd.f32 %v1760, %v2080
      %v2082 = vpop.f32.mrb[0].mxu0
      %2083 = vmatprep.mubr.f32.mxu0 0.0
      %2084 = vmatmul.mubr.f32.gmra.mrb[0].mxu0 %v1876
      %v2085 = vpop.f32.mrb[0].mxu0
      %v2086 = vadd.f32 %v1765, %v2085
      %v2087 = vpop.f32.mrb[0].mxu0
      %2088 = vmatprep.mubr.f32.mxu0 0.0
      %2089 = vmatmul.mubr.f32.gmra.mrb[0].mxu0 %v1879
      %v2090 = vpop.f32.mrb[0].mxu0
      %v2091 = vadd.f32 %v1770, %v2090
      %v2092 = vpop.f32.mrb[0].mxu0
      %2093 = vmatprep.mubr.f32.mxu0 0.0
      %2094 = vmatmul.mubr.f32.gmra.mrb[0].mxu0 %v1882
      %v2095 = vpop.f32.mrb[0].mxu0
      %v2096 = vadd.f32 %v1775, %v2095
      %v2097 = vpop.f32.mrb[0].mxu0
      %2098 = vmatprep.mubr.f32.mxu0 0.0
      %2099 = vmatmul.mubr.f32.gmra.mrb[0].mxu0 %v1885
      %v2100 = vpop.f32.mrb[0].mxu0
      %v2101 = vadd.f32 %v1780, %v2100
      %v2102 = vpop.f32.mrb[0].mxu0
      %2103 = vmatprep.mubr.f32.mxu0 0.0
      %2104 = vmatmul.mubr.f32.gmra.mrb[0].mxu0 %v1888
      %v2105 = vpop.f32.mrb[0].mxu0
      %v2106 = vadd.f32 %v1785, %v2105
      %v2107 = vpop.f32.mrb[0].mxu0
      %2108 = vmatprep.mubr.f32.mxu0 0.0
      %2109 = vmatmul.mubr.f32.gmra.mrb[0].mxu0 %v1891
      %v2110 = vpop.f32.mrb[0].mxu0
      %v2111 = vadd.f32 %v1790, %v2110
      %v2112 = vpop.f32.mrb[0].mxu0
      %2113 = vmatprep.mubr.f32.mxu0 0.0
      %2114 = vmatmul.mubr.f32.gmra.mrb[0].mxu0 %v1894
      %v2115 = vpop.f32.mrb[0].mxu0
      %v2116 = vadd.f32 %v1795, %v2115
      %v2117 = vpop.f32.mrb[0].mxu0
      %2118 = vmatprep.mubr.f32.mxu0 0.0
      %2119 = vmatmul.mubr.f32.gmra.mrb[0].mxu0 %v1897
      %v2120 = vpop.f32.mrb[0].mxu0
      %v2121 = vadd.f32 %v1800, %v2120
      %v2122 = vpop.f32.mrb[0].mxu0
      %2123 = vdwg.mxu0
      %v2124 = vld [vmem:[#allocation2 + $0x2] sm:$0xff]
      %v2125 = vld [vmem:[#allocation2 + $0xa] sm:$0xff]
      %v2126 = vld [vmem:[#allocation2 + $0x1a] sm:$0xff]
      %v2127 = vld [vmem:[#allocation2 + $0x22] sm:$0xff]
      %v2128 = vld [vmem:[#allocation2 + $0x32] sm:$0xff]
      %v2129 = vld [vmem:[#allocation2 + $0x3a] sm:$0xff]
      %v2130 = vld [vmem:[#allocation2 + $0x4a] sm:$0xff]
      %v2131 = vld [vmem:[#allocation2 + $0x52] sm:$0xff]
      %v2132 = vld [vmem:[#allocation2 + $0x62] sm:$0xff]
      %v2133 = vld [vmem:[#allocation2 + $0x6a] sm:$0xff]
      %v2134 = vld [vmem:[#allocation2 + $0x7a] sm:$0xff]
      %v2135 = vld [vmem:[#allocation2 + $0x82] sm:$0xff]
      %v2136 = vld [vmem:[#allocation2 + $0x92] sm:$0xff]
      %v2137 = vld [vmem:[#allocation2 + $0x9a] sm:$0xff]
      %v2138 = vld [vmem:[#allocation2 + $0xaa] sm:$0xff]
      %v2139 = vld [vmem:[#allocation2 + $0xb2] sm:$0xff]
      %v2140 = vld [vmem:[#allocation2 + $0xc2] sm:$0xff]
      %v2141 = vld [vmem:[#allocation2 + $0xca] sm:$0xff]
      %v2142 = vld [vmem:[#allocation2 + $0xda] sm:$0xff]
      %v2143 = vld [vmem:[#allocation2 + $0xe2] sm:$0xff]
      %v2144 = vld [vmem:[#allocation2 + $0xf2] sm:$0xff]
      %v2145 = vld [vmem:[#allocation2 + $0xfa] sm:$0xff]
      %v2146 = vld [vmem:[#allocation2 + $0x10a] sm:$0xff]
      %v2147 = vld [vmem:[#allocation2 + $0x112] sm:$0xff]
      %v2148 = vld [vmem:[#allocation2 + $0x122] sm:$0xff]
      %v2149 = vld [vmem:[#allocation2 + $0x12a] sm:$0xff]
      %v2150 = vld [vmem:[#allocation2 + $0x13a] sm:$0xff]
      %v2151 = vld [vmem:[#allocation2 + $0x142] sm:$0xff]
      %v2152 = vld [vmem:[#allocation2 + $0x152] sm:$0xff]
      %v2153 = vld [vmem:[#allocation2 + $0x15a] sm:$0xff]
      %v2154 = vld [vmem:[#allocation2 + $0x16a] sm:$0xff]
      %v2155 = vld [vmem:[#allocation2 + $0x172] sm:$0xff]
      %s2156 = scalar_lea.vmem %s3, 64
      %v2157 = vld [vmem:[%s2156] sm:$0xff]
      %v2158 = vld [vmem:[%s2156 + $0x8] sm:$0xff]
      %v2159 = vld [vmem:[%s2156 + $0x10] sm:$0xff]
      %v2160 = vld [vmem:[%s2156 + $0x18] sm:$0xff]
      %v2162 = vsel %vm1354, %v2124, 0
      %v2165 = vsel %vm1354, %v2125, 0
      %v2168 = vsel %vm1354, %v2126, 0
      %v2171 = vsel %vm1354, %v2127, 0
      %v2174 = vsel %vm1354, %v2128, 0
      %v2177 = vsel %vm1354, %v2129, 0
      %v2180 = vsel %vm1354, %v2130, 0
      %v2183 = vsel %vm1354, %v2131, 0
      %v2186 = vsel %vm1354, %v2132, 0
      %v2189 = vsel %vm1354, %v2133, 0
      %v2192 = vsel %vm1354, %v2134, 0
      %v2195 = vsel %vm1354, %v2135, 0
      %v2198 = vsel %vm1354, %v2136, 0
      %v2201 = vsel %vm1354, %v2137, 0
      %v2204 = vsel %vm1354, %v2138, 0
      %v2207 = vsel %vm1354, %v2139, 0
      %v2210 = vsel %vm1354, %v2140, 0
      %v2213 = vsel %vm1354, %v2141, 0
      %v2216 = vsel %vm1354, %v2142, 0
      %v2219 = vsel %vm1354, %v2143, 0
      %v2222 = vsel %vm1354, %v2144, 0
      %v2225 = vsel %vm1354, %v2145, 0
      %v2228 = vsel %vm1354, %v2146, 0
      %v2231 = vsel %vm1354, %v2147, 0
      %v2234 = vsel %vm1354, %v2148, 0
      %v2237 = vsel %vm1354, %v2149, 0
      %v2240 = vsel %vm1354, %v2150, 0
      %v2243 = vsel %vm1354, %v2151, 0
      %v2246 = vsel %vm1354, %v2152, 0
      %v2249 = vsel %vm1354, %v2153, 0
      %v2252 = vsel %vm1354, %v2154, 0
      %v2255 = vsel %vm1354, %v2155, 0
      %2257 = vmatprep.subr.mxu0 0.0
      %2258 = vmatpush1.msra.mxu0 %v2157
      %2259 = vmatprep.subr.mxu0 0.0
      %2260 = vmatpush1.msra.mxu0 %v2158
      %2261 = vmatprep.subr.mxu0 0.0
      %2262 = vmatpush1.msra.mxu0 %v2159
      %2263 = vmatprep.subr.mxu0 0.0
      %2264 = vmatpush1.msra.mxu0 %v2160
      %2265 = vmatprep.subr.mxu0 0.0
      %2266 = vmatpush1.msra.mxu0 0.0
      %2267 = vmatprep.subr.mxu0 0.0
      %2268 = vmatpush1.msra.mxu0 0.0
      %2269 = vmatprep.subr.mxu0 0.0
      %2270 = vmatpush1.msra.mxu0 0.0
      %2271 = vmatprep.subr.mxu0 0.0
      %2272 = vmatpush1.msra.mxu0 0.0
      %2273 = vmatprep.subr.mxu0 0.0
      %2274 = vmatpush1.msra.mxu0 0.0
      %2275 = vmatprep.subr.mxu0 0.0
      %2276 = vmatpush1.msra.mxu0 0.0
      %2277 = vmatprep.subr.mxu0 0.0
      %2278 = vmatpush1.msra.mxu0 0.0
      %2279 = vmatprep.subr.mxu0 0.0
      %2280 = vmatpush1.msra.mxu0 0.0
      %2281 = vmatprep.subr.mxu0 0.0
      %2282 = vmatpush1.msra.mxu0 0.0
      %2283 = vmatprep.subr.mxu0 0.0
      %2284 = vmatpush1.msra.mxu0 0.0
      %2285 = vmatprep.subr.mxu0 0.0
      %2286 = vmatpush1.msra.mxu0 0.0
      %2287 = vmatprep.subr.mxu0 0.0
      %2288 = vmatpush1.msra.mxu0 0.0
      %2289 = vmatprep.subr.mxu0 0.0
      %2290 = vmatpush1.msra.mxu0 0.0
      %2291 = vmatprep.subr.mxu0 0.0
      %2292 = vmatpush1.msra.mxu0 0.0
      %2293 = vmatprep.subr.mxu0 0.0
      %2294 = vmatpush1.msra.mxu0 0.0
      %2295 = vmatprep.subr.mxu0 0.0
      %2296 = vmatpush1.msra.mxu0 0.0
      %2297 = vmatprep.subr.mxu0 0.0
      %2298 = vmatpush1.msra.mxu0 0.0
      %2299 = vmatprep.subr.mxu0 0.0
      %2300 = vmatpush1.msra.mxu0 0.0
      %2301 = vmatprep.subr.mxu0 0.0
      %2302 = vmatpush1.msra.mxu0 0.0
      %2303 = vmatprep.subr.mxu0 0.0
      %2304 = vmatpush1.msra.mxu0 0.0
      %2305 = vmatprep.subr.mxu0 0.0
      %2306 = vmatpush1.msra.mxu0 0.0
      %2307 = vmatprep.subr.mxu0 0.0
      %2308 = vmatpush1.msra.mxu0 0.0
      %2309 = vmatprep.subr.mxu0 0.0
      %2310 = vmatpush1.msra.mxu0 0.0
      %2311 = vmatprep.subr.mxu0 0.0
      %2312 = vmatpush1.msra.mxu0 0.0
      %2313 = vmatprep.subr.mxu0 0.0
      %2314 = vmatpush1.msra.mxu0 0.0
      %2315 = vmatprep.subr.mxu0 0.0
      %2316 = vmatpush1.msra.mxu0 0.0
      %2317 = vmatprep.subr.mxu0 0.0
      %2318 = vmatpush1.msra.mxu0 0.0
      %2319 = vmatprep.subr.mxu0 0.0
      %2320 = vmatpush1.msra.mxu0 0.0
      %2321 = vmatprep.mubr.f32.mxu0 0.0
      %2322 = vmatmul.mubr.f32.gmra.mrb[0].mxu0 %v2162
      %v2323 = vpop.f32.mrb[0].mxu0
      %v2324 = vadd.f32 0.0, %v2323
      %v2325 = vpop.f32.mrb[0].mxu0
      %2326 = vmatprep.mubr.f32.mxu0 0.0
      %2327 = vmatmul.mubr.f32.gmra.mrb[0].mxu0 %v2165
      %v2328 = vpop.f32.mrb[0].mxu0
      %v2329 = vadd.f32 0.0, %v2328
      %v2330 = vpop.f32.mrb[0].mxu0
      %2331 = vmatprep.mubr.f32.mxu0 0.0
      %2332 = vmatmul.mubr.f32.gmra.mrb[0].mxu0 %v2168
      %v2333 = vpop.f32.mrb[0].mxu0
      %v2334 = vadd.f32 0.0, %v2333
      %v2335 = vpop.f32.mrb[0].mxu0
      %2336 = vmatprep.mubr.f32.mxu0 0.0
      %2337 = vmatmul.mubr.f32.gmra.mrb[0].mxu0 %v2171
      %v2338 = vpop.f32.mrb[0].mxu0
      %v2339 = vadd.f32 0.0, %v2338
      %v2340 = vpop.f32.mrb[0].mxu0
      %2341 = vmatprep.mubr.f32.mxu0 0.0
      %2342 = vmatmul.mubr.f32.gmra.mrb[0].mxu0 %v2174
      %v2343 = vpop.f32.mrb[0].mxu0
      %v2344 = vadd.f32 0.0, %v2343
      %v2345 = vpop.f32.mrb[0].mxu0
      %2346 = vmatprep.mubr.f32.mxu0 0.0
      %2347 = vmatmul.mubr.f32.gmra.mrb[0].mxu0 %v2177
      %v2348 = vpop.f32.mrb[0].mxu0
      %v2349 = vadd.f32 0.0, %v2348
      %v2350 = vpop.f32.mrb[0].mxu0
      %2351 = vmatprep.mubr.f32.mxu0 0.0
      %2352 = vmatmul.mubr.f32.gmra.mrb[0].mxu0 %v2180
      %v2353 = vpop.f32.mrb[0].mxu0
      %v2354 = vadd.f32 0.0, %v2353
      %v2355 = vpop.f32.mrb[0].mxu0
      %2356 = vmatprep.mubr.f32.mxu0 0.0
      %2357 = vmatmul.mubr.f32.gmra.mrb[0].mxu0 %v2183
      %v2358 = vpop.f32.mrb[0].mxu0
      %v2359 = vadd.f32 0.0, %v2358
      %v2360 = vpop.f32.mrb[0].mxu0
      %2361 = vmatprep.mubr.f32.mxu0 0.0
      %2362 = vmatmul.mubr.f32.gmra.mrb[0].mxu0 %v2186
      %v2363 = vpop.f32.mrb[0].mxu0
      %v2364 = vadd.f32 0.0, %v2363
      %v2365 = vpop.f32.mrb[0].mxu0
      %2366 = vmatprep.mubr.f32.mxu0 0.0
      %2367 = vmatmul.mubr.f32.gmra.mrb[0].mxu0 %v2189
      %v2368 = vpop.f32.mrb[0].mxu0
      %v2369 = vadd.f32 0.0, %v2368
      %v2370 = vpop.f32.mrb[0].mxu0
      %2371 = vmatprep.mubr.f32.mxu0 0.0
      %2372 = vmatmul.mubr.f32.gmra.mrb[0].mxu0 %v2192
      %v2373 = vpop.f32.mrb[0].mxu0
      %v2374 = vadd.f32 0.0, %v2373
      %v2375 = vpop.f32.mrb[0].mxu0
      %2376 = vmatprep.mubr.f32.mxu0 0.0
      %2377 = vmatmul.mubr.f32.gmra.mrb[0].mxu0 %v2195
      %v2378 = vpop.f32.mrb[0].mxu0
      %v2379 = vadd.f32 0.0, %v2378
      %v2380 = vpop.f32.mrb[0].mxu0
      %2381 = vmatprep.mubr.f32.mxu0 0.0
      %2382 = vmatmul.mubr.f32.gmra.mrb[0].mxu0 %v2198
      %v2383 = vpop.f32.mrb[0].mxu0
      %v2384 = vadd.f32 0.0, %v2383
      %v2385 = vpop.f32.mrb[0].mxu0
      %2386 = vmatprep.mubr.f32.mxu0 0.0
      %2387 = vmatmul.mubr.f32.gmra.mrb[0].mxu0 %v2201
      %v2388 = vpop.f32.mrb[0].mxu0
      %v2389 = vadd.f32 0.0, %v2388
      %v2390 = vpop.f32.mrb[0].mxu0
      %2391 = vmatprep.mubr.f32.mxu0 0.0
      %2392 = vmatmul.mubr.f32.gmra.mrb[0].mxu0 %v2204
      %v2393 = vpop.f32.mrb[0].mxu0
      %v2394 = vadd.f32 0.0, %v2393
      %v2395 = vpop.f32.mrb[0].mxu0
      %2396 = vmatprep.mubr.f32.mxu0 0.0
      %2397 = vmatmul.mubr.f32.gmra.mrb[0].mxu0 %v2207
      %v2398 = vpop.f32.mrb[0].mxu0
      %v2399 = vadd.f32 0.0, %v2398
      %v2400 = vpop.f32.mrb[0].mxu0
      %2401 = vmatprep.mubr.f32.mxu0 0.0
      %2402 = vmatmul.mubr.f32.gmra.mrb[0].mxu0 %v2210
      %v2403 = vpop.f32.mrb[0].mxu0
      %v2404 = vadd.f32 0.0, %v2403
      %v2405 = vpop.f32.mrb[0].mxu0
      %2406 = vmatprep.mubr.f32.mxu0 0.0
      %2407 = vmatmul.mubr.f32.gmra.mrb[0].mxu0 %v2213
      %v2408 = vpop.f32.mrb[0].mxu0
      %v2409 = vadd.f32 0.0, %v2408
      %v2410 = vpop.f32.mrb[0].mxu0
      %2411 = vmatprep.mubr.f32.mxu0 0.0
      %2412 = vmatmul.mubr.f32.gmra.mrb[0].mxu0 %v2216
      %v2413 = vpop.f32.mrb[0].mxu0
      %v2414 = vadd.f32 0.0, %v2413
      %v2415 = vpop.f32.mrb[0].mxu0
      %2416 = vmatprep.mubr.f32.mxu0 0.0
      %2417 = vmatmul.mubr.f32.gmra.mrb[0].mxu0 %v2219
      %v2418 = vpop.f32.mrb[0].mxu0
      %v2419 = vadd.f32 0.0, %v2418
      %v2420 = vpop.f32.mrb[0].mxu0
      %2421 = vmatprep.mubr.f32.mxu0 0.0
      %2422 = vmatmul.mubr.f32.gmra.mrb[0].mxu0 %v2222
      %v2423 = vpop.f32.mrb[0].mxu0
      %v2424 = vadd.f32 0.0, %v2423
      %v2425 = vpop.f32.mrb[0].mxu0
      %2426 = vmatprep.mubr.f32.mxu0 0.0
      %2427 = vmatmul.mubr.f32.gmra.mrb[0].mxu0 %v2225
      %v2428 = vpop.f32.mrb[0].mxu0
      %v2429 = vadd.f32 0.0, %v2428
      %v2430 = vpop.f32.mrb[0].mxu0
      %2431 = vmatprep.mubr.f32.mxu0 0.0
      %2432 = vmatmul.mubr.f32.gmra.mrb[0].mxu0 %v2228
      %v2433 = vpop.f32.mrb[0].mxu0
      %v2434 = vadd.f32 0.0, %v2433
      %v2435 = vpop.f32.mrb[0].mxu0
      %2436 = vmatprep.mubr.f32.mxu0 0.0
      %2437 = vmatmul.mubr.f32.gmra.mrb[0].mxu0 %v2231
      %v2438 = vpop.f32.mrb[0].mxu0
      %v2439 = vadd.f32 0.0, %v2438
      %v2440 = vpop.f32.mrb[0].mxu0
      %2441 = vmatprep.mubr.f32.mxu0 0.0
      %2442 = vmatmul.mubr.f32.gmra.mrb[0].mxu0 %v2234
      %v2443 = vpop.f32.mrb[0].mxu0
      %v2444 = vadd.f32 0.0, %v2443
      %v2445 = vpop.f32.mrb[0].mxu0
      %2446 = vmatprep.mubr.f32.mxu0 0.0
      %2447 = vmatmul.mubr.f32.gmra.mrb[0].mxu0 %v2237
      %v2448 = vpop.f32.mrb[0].mxu0
      %v2449 = vadd.f32 0.0, %v2448
      %v2450 = vpop.f32.mrb[0].mxu0
      %2451 = vmatprep.mubr.f32.mxu0 0.0
      %2452 = vmatmul.mubr.f32.gmra.mrb[0].mxu0 %v2240
      %v2453 = vpop.f32.mrb[0].mxu0
      %v2454 = vadd.f32 0.0, %v2453
      %v2455 = vpop.f32.mrb[0].mxu0
      %2456 = vmatprep.mubr.f32.mxu0 0.0
      %2457 = vmatmul.mubr.f32.gmra.mrb[0].mxu0 %v2243
      %v2458 = vpop.f32.mrb[0].mxu0
      %v2459 = vadd.f32 0.0, %v2458
      %v2460 = vpop.f32.mrb[0].mxu0
      %2461 = vmatprep.mubr.f32.mxu0 0.0
      %2462 = vmatmul.mubr.f32.gmra.mrb[0].mxu0 %v2246
      %v2463 = vpop.f32.mrb[0].mxu0
      %v2464 = vadd.f32 0.0, %v2463
      %v2465 = vpop.f32.mrb[0].mxu0
      %2466 = vmatprep.mubr.f32.mxu0 0.0
      %2467 = vmatmul.mubr.f32.gmra.mrb[0].mxu0 %v2249
      %v2468 = vpop.f32.mrb[0].mxu0
      %v2469 = vadd.f32 0.0, %v2468
      %v2470 = vpop.f32.mrb[0].mxu0
      %2471 = vmatprep.mubr.f32.mxu0 0.0
      %2472 = vmatmul.mubr.f32.gmra.mrb[0].mxu0 %v2252
      %v2473 = vpop.f32.mrb[0].mxu0
      %v2474 = vadd.f32 0.0, %v2473
      %v2475 = vpop.f32.mrb[0].mxu0
      %2476 = vmatprep.mubr.f32.mxu0 0.0
      %2477 = vmatmul.mubr.f32.gmra.mrb[0].mxu0 %v2255
      %v2478 = vpop.f32.mrb[0].mxu0
      %v2479 = vadd.f32 0.0, %v2478
      %v2480 = vpop.f32.mrb[0].mxu0
      %2481 = vdwg.mxu0
      %v2482 = vadd.f32 %v1966, %v2324
      %v2483 = vadd.f32 %v1971, %v2329
      %v2484 = vadd.f32 %v1976, %v2334
      %v2485 = vadd.f32 %v1981, %v2339
      %v2486 = vadd.f32 %v1986, %v2344
      %v2487 = vadd.f32 %v1991, %v2349
      %v2488 = vadd.f32 %v1996, %v2354
      %v2489 = vadd.f32 %v2001, %v2359
      %v2490 = vadd.f32 %v2006, %v2364
      %v2491 = vadd.f32 %v2011, %v2369
      %v2492 = vadd.f32 %v2016, %v2374
      %v2493 = vadd.f32 %v2021, %v2379
      %v2494 = vadd.f32 %v2026, %v2384
      %v2495 = vadd.f32 %v2031, %v2389
      %v2496 = vadd.f32 %v2036, %v2394
      %v2497 = vadd.f32 %v2041, %v2399
      %v2498 = vadd.f32 %v2046, %v2404
      %v2499 = vadd.f32 %v2051, %v2409
      %v2500 = vadd.f32 %v2056, %v2414
      %v2501 = vadd.f32 %v2061, %v2419
      %v2502 = vadd.f32 %v2066, %v2424
      %v2503 = vadd.f32 %v2071, %v2429
      %v2504 = vadd.f32 %v2076, %v2434
      %v2505 = vadd.f32 %v2081, %v2439
      %v2506 = vadd.f32 %v2086, %v2444
      %v2507 = vadd.f32 %v2091, %v2449
      %v2508 = vadd.f32 %v2096, %v2454
      %v2509 = vadd.f32 %v2101, %v2459
      %v2510 = vadd.f32 %v2106, %v2464
      %v2511 = vadd.f32 %v2111, %v2469
      %v2512 = vadd.f32 %v2116, %v2474
      %v2513 = vadd.f32 %v2121, %v2479
      %s2514 = scalar_lea.vmem [#allocation2], 24
      %v2515 = vld [vmem:[%s2514] sm:$0xff]
      %v2516 = vld [vmem:[%s2514 + $0x8] sm:$0xff]
      %v2517 = vld [vmem:[%s2514 + $0x18] sm:$0xff]
      %v2518 = vld [vmem:[%s2514 + $0x20] sm:$0xff]
      %v2519 = vld [vmem:[%s2514 + $0x30] sm:$0xff]
      %v2520 = vld [vmem:[%s2514 + $0x38] sm:$0xff]
      %v2521 = vld [vmem:[%s2514 + $0x48] sm:$0xff]
      %v2522 = vld [vmem:[%s2514 + $0x50] sm:$0xff]
      %v2523 = vld [vmem:[%s2514 + $0x60] sm:$0xff]
      %v2524 = vld [vmem:[%s2514 + $0x68] sm:$0xff]
      %v2525 = vld [vmem:[%s2514 + $0x78] sm:$0xff]
      %v2526 = vld [vmem:[%s2514 + $0x80] sm:$0xff]
      %v2527 = vld [vmem:[%s2514 + $0x90] sm:$0xff]
      %v2528 = vld [vmem:[%s2514 + $0x98] sm:$0xff]
      %v2529 = vld [vmem:[%s2514 + $0xa8] sm:$0xff]
      %v2530 = vld [vmem:[%s2514 + $0xb0] sm:$0xff]
      %v2531 = vld [vmem:[%s2514 + $0xc0] sm:$0xff]
      %v2532 = vld [vmem:[%s2514 + $0xc8] sm:$0xff]
      %v2533 = vld [vmem:[%s2514 + $0xd8] sm:$0xff]
      %v2534 = vld [vmem:[%s2514 + $0xe0] sm:$0xff]
      %v2535 = vld [vmem:[%s2514 + $0xf0] sm:$0xff]
      %v2536 = vld [vmem:[%s2514 + $0xf8] sm:$0xff]
      %v2537 = vld [vmem:[%s2514 + $0x108] sm:$0xff]
      %v2538 = vld [vmem:[%s2514 + $0x110] sm:$0xff]
      %v2539 = vld [vmem:[%s2514 + $0x120] sm:$0xff]
      %v2540 = vld [vmem:[%s2514 + $0x128] sm:$0xff]
      %v2541 = vld [vmem:[%s2514 + $0x138] sm:$0xff]
      %v2542 = vld [vmem:[%s2514 + $0x140] sm:$0xff]
      %v2543 = vld [vmem:[%s2514 + $0x150] sm:$0xff]
      %v2544 = vld [vmem:[%s2514 + $0x158] sm:$0xff]
      %v2545 = vld [vmem:[%s2514 + $0x168] sm:$0xff]
      %v2546 = vld [vmem:[%s2514 + $0x170] sm:$0xff]
      %s2547 = scalar_lea.vmem %s3, 96
      %v2548 = vld [vmem:[%s2547] sm:$0xff]
      %v2549 = vld [vmem:[%s2547 + $0x8] sm:$0xff]
      %v2550 = vld [vmem:[%s2547 + $0x10] sm:$0xff]
      %v2551 = vld [vmem:[%s2547 + $0x18] sm:$0xff]
      %v2553 = vsel %vm1354, %v2515, 0
      %v2556 = vsel %vm1354, %v2516, 0
      %v2559 = vsel %vm1354, %v2517, 0
      %v2562 = vsel %vm1354, %v2518, 0
      %v2565 = vsel %vm1354, %v2519, 0
      %v2568 = vsel %vm1354, %v2520, 0
      %v2571 = vsel %vm1354, %v2521, 0
      %v2574 = vsel %vm1354, %v2522, 0
      %v2577 = vsel %vm1354, %v2523, 0
      %v2580 = vsel %vm1354, %v2524, 0
      %v2583 = vsel %vm1354, %v2525, 0
      %v2586 = vsel %vm1354, %v2526, 0
      %v2589 = vsel %vm1354, %v2527, 0
      %v2592 = vsel %vm1354, %v2528, 0
      %v2595 = vsel %vm1354, %v2529, 0
      %v2598 = vsel %vm1354, %v2530, 0
      %v2601 = vsel %vm1354, %v2531, 0
      %v2604 = vsel %vm1354, %v2532, 0
      %v2607 = vsel %vm1354, %v2533, 0
      %v2610 = vsel %vm1354, %v2534, 0
      %v2613 = vsel %vm1354, %v2535, 0
      %v2616 = vsel %vm1354, %v2536, 0
      %v2619 = vsel %vm1354, %v2537, 0
      %v2622 = vsel %vm1354, %v2538, 0
      %v2625 = vsel %vm1354, %v2539, 0
      %v2628 = vsel %vm1354, %v2540, 0
      %v2631 = vsel %vm1354, %v2541, 0
      %v2634 = vsel %vm1354, %v2542, 0
      %v2637 = vsel %vm1354, %v2543, 0
      %v2640 = vsel %vm1354, %v2544, 0
      %v2643 = vsel %vm1354, %v2545, 0
      %v2646 = vsel %vm1354, %v2546, 0
      %2648 = vmatprep.subr.mxu0 0.0
      %2649 = vmatpush1.msra.mxu0 %v2548
      %2650 = vmatprep.subr.mxu0 0.0
      %2651 = vmatpush1.msra.mxu0 %v2549
      %2652 = vmatprep.subr.mxu0 0.0
      %2653 = vmatpush1.msra.mxu0 %v2550
      %2654 = vmatprep.subr.mxu0 0.0
      %2655 = vmatpush1.msra.mxu0 %v2551
      %2656 = vmatprep.subr.mxu0 0.0
      %2657 = vmatpush1.msra.mxu0 0.0
      %2658 = vmatprep.subr.mxu0 0.0
      %2659 = vmatpush1.msra.mxu0 0.0
      %2660 = vmatprep.subr.mxu0 0.0
      %2661 = vmatpush1.msra.mxu0 0.0
      %2662 = vmatprep.subr.mxu0 0.0
      %2663 = vmatpush1.msra.mxu0 0.0
      %2664 = vmatprep.subr.mxu0 0.0
      %2665 = vmatpush1.msra.mxu0 0.0
      %2666 = vmatprep.subr.mxu0 0.0
      %2667 = vmatpush1.msra.mxu0 0.0
      %2668 = vmatprep.subr.mxu0 0.0
      %2669 = vmatpush1.msra.mxu0 0.0
      %2670 = vmatprep.subr.mxu0 0.0
      %2671 = vmatpush1.msra.mxu0 0.0
      %2672 = vmatprep.subr.mxu0 0.0
      %2673 = vmatpush1.msra.mxu0 0.0
      %2674 = vmatprep.subr.mxu0 0.0
      %2675 = vmatpush1.msra.mxu0 0.0
      %2676 = vmatprep.subr.mxu0 0.0
      %2677 = vmatpush1.msra.mxu0 0.0
      %2678 = vmatprep.subr.mxu0 0.0
      %2679 = vmatpush1.msra.mxu0 0.0
      %2680 = vmatprep.subr.mxu0 0.0
      %2681 = vmatpush1.msra.mxu0 0.0
      %2682 = vmatprep.subr.mxu0 0.0
      %2683 = vmatpush1.msra.mxu0 0.0
      %2684 = vmatprep.subr.mxu0 0.0
      %2685 = vmatpush1.msra.mxu0 0.0
      %2686 = vmatprep.subr.mxu0 0.0
      %2687 = vmatpush1.msra.mxu0 0.0
      %2688 = vmatprep.subr.mxu0 0.0
      %2689 = vmatpush1.msra.mxu0 0.0
      %2690 = vmatprep.subr.mxu0 0.0
      %2691 = vmatpush1.msra.mxu0 0.0
      %2692 = vmatprep.subr.mxu0 0.0
      %2693 = vmatpush1.msra.mxu0 0.0
      %2694 = vmatprep.subr.mxu0 0.0
      %2695 = vmatpush1.msra.mxu0 0.0
      %2696 = vmatprep.subr.mxu0 0.0
      %2697 = vmatpush1.msra.mxu0 0.0
      %2698 = vmatprep.subr.mxu0 0.0
      %2699 = vmatpush1.msra.mxu0 0.0
      %2700 = vmatprep.subr.mxu0 0.0
      %2701 = vmatpush1.msra.mxu0 0.0
      %2702 = vmatprep.subr.mxu0 0.0
      %2703 = vmatpush1.msra.mxu0 0.0
      %2704 = vmatprep.subr.mxu0 0.0
      %2705 = vmatpush1.msra.mxu0 0.0
      %2706 = vmatprep.subr.mxu0 0.0
      %2707 = vmatpush1.msra.mxu0 0.0
      %2708 = vmatprep.subr.mxu0 0.0
      %2709 = vmatpush1.msra.mxu0 0.0
      %2710 = vmatprep.subr.mxu0 0.0
      %2711 = vmatpush1.msra.mxu0 0.0
      %2712 = vmatprep.mubr.f32.mxu0 0.0
      %2713 = vmatmul.mubr.f32.gmra.mrb[0].mxu0 %v2553
      %v2714 = vpop.f32.mrb[0].mxu0
      %v2715 = vadd.f32 0.0, %v2714
      %v2716 = vpop.f32.mrb[0].mxu0
      %2717 = vmatprep.mubr.f32.mxu0 0.0
      %2718 = vmatmul.mubr.f32.gmra.mrb[0].mxu0 %v2556
      %v2719 = vpop.f32.mrb[0].mxu0
      %v2720 = vadd.f32 0.0, %v2719
      %v2721 = vpop.f32.mrb[0].mxu0
      %2722 = vmatprep.mubr.f32.mxu0 0.0
      %2723 = vmatmul.mubr.f32.gmra.mrb[0].mxu0 %v2559
      %v2724 = vpop.f32.mrb[0].mxu0
      %v2725 = vadd.f32 0.0, %v2724
      %v2726 = vpop.f32.mrb[0].mxu0
      %2727 = vmatprep.mubr.f32.mxu0 0.0
      %2728 = vmatmul.mubr.f32.gmra.mrb[0].mxu0 %v2562
      %v2729 = vpop.f32.mrb[0].mxu0
      %v2730 = vadd.f32 0.0, %v2729
      %v2731 = vpop.f32.mrb[0].mxu0
      %2732 = vmatprep.mubr.f32.mxu0 0.0
      %2733 = vmatmul.mubr.f32.gmra.mrb[0].mxu0 %v2565
      %v2734 = vpop.f32.mrb[0].mxu0
      %v2735 = vadd.f32 0.0, %v2734
      %v2736 = vpop.f32.mrb[0].mxu0
      %2737 = vmatprep.mubr.f32.mxu0 0.0
      %2738 = vmatmul.mubr.f32.gmra.mrb[0].mxu0 %v2568
      %v2739 = vpop.f32.mrb[0].mxu0
      %v2740 = vadd.f32 0.0, %v2739
      %v2741 = vpop.f32.mrb[0].mxu0
      %2742 = vmatprep.mubr.f32.mxu0 0.0
      %2743 = vmatmul.mubr.f32.gmra.mrb[0].mxu0 %v2571
      %v2744 = vpop.f32.mrb[0].mxu0
      %v2745 = vadd.f32 0.0, %v2744
      %v2746 = vpop.f32.mrb[0].mxu0
      %2747 = vmatprep.mubr.f32.mxu0 0.0
      %2748 = vmatmul.mubr.f32.gmra.mrb[0].mxu0 %v2574
      %v2749 = vpop.f32.mrb[0].mxu0
      %v2750 = vadd.f32 0.0, %v2749
      %v2751 = vpop.f32.mrb[0].mxu0
      %2752 = vmatprep.mubr.f32.mxu0 0.0
      %2753 = vmatmul.mubr.f32.gmra.mrb[0].mxu0 %v2577
      %v2754 = vpop.f32.mrb[0].mxu0
      %v2755 = vadd.f32 0.0, %v2754
      %v2756 = vpop.f32.mrb[0].mxu0
      %2757 = vmatprep.mubr.f32.mxu0 0.0
      %2758 = vmatmul.mubr.f32.gmra.mrb[0].mxu0 %v2580
      %v2759 = vpop.f32.mrb[0].mxu0
      %v2760 = vadd.f32 0.0, %v2759
      %v2761 = vpop.f32.mrb[0].mxu0
      %2762 = vmatprep.mubr.f32.mxu0 0.0
      %2763 = vmatmul.mubr.f32.gmra.mrb[0].mxu0 %v2583
      %v2764 = vpop.f32.mrb[0].mxu0
      %v2765 = vadd.f32 0.0, %v2764
      %v2766 = vpop.f32.mrb[0].mxu0
      %2767 = vmatprep.mubr.f32.mxu0 0.0
      %2768 = vmatmul.mubr.f32.gmra.mrb[0].mxu0 %v2586
      %v2769 = vpop.f32.mrb[0].mxu0
      %v2770 = vadd.f32 0.0, %v2769
      %v2771 = vpop.f32.mrb[0].mxu0
      %2772 = vmatprep.mubr.f32.mxu0 0.0
      %2773 = vmatmul.mubr.f32.gmra.mrb[0].mxu0 %v2589
      %v2774 = vpop.f32.mrb[0].mxu0
      %v2775 = vadd.f32 0.0, %v2774
      %v2776 = vpop.f32.mrb[0].mxu0
      %2777 = vmatprep.mubr.f32.mxu0 0.0
      %2778 = vmatmul.mubr.f32.gmra.mrb[0].mxu0 %v2592
      %v2779 = vpop.f32.mrb[0].mxu0
      %v2780 = vadd.f32 0.0, %v2779
      %v2781 = vpop.f32.mrb[0].mxu0
      %2782 = vmatprep.mubr.f32.mxu0 0.0
      %2783 = vmatmul.mubr.f32.gmra.mrb[0].mxu0 %v2595
      %v2784 = vpop.f32.mrb[0].mxu0
      %v2785 = vadd.f32 0.0, %v2784
      %v2786 = vpop.f32.mrb[0].mxu0
      %2787 = vmatprep.mubr.f32.mxu0 0.0
      %2788 = vmatmul.mubr.f32.gmra.mrb[0].mxu0 %v2598
      %v2789 = vpop.f32.mrb[0].mxu0
      %v2790 = vadd.f32 0.0, %v2789
      %v2791 = vpop.f32.mrb[0].mxu0
      %2792 = vmatprep.mubr.f32.mxu0 0.0
      %2793 = vmatmul.mubr.f32.gmra.mrb[0].mxu0 %v2601
      %v2794 = vpop.f32.mrb[0].mxu0
      %v2795 = vadd.f32 0.0, %v2794
      %v2796 = vpop.f32.mrb[0].mxu0
      %2797 = vmatprep.mubr.f32.mxu0 0.0
      %2798 = vmatmul.mubr.f32.gmra.mrb[0].mxu0 %v2604
      %v2799 = vpop.f32.mrb[0].mxu0
      %v2800 = vadd.f32 0.0, %v2799
      %v2801 = vpop.f32.mrb[0].mxu0
      %2802 = vmatprep.mubr.f32.mxu0 0.0
      %2803 = vmatmul.mubr.f32.gmra.mrb[0].mxu0 %v2607
      %v2804 = vpop.f32.mrb[0].mxu0
      %v2805 = vadd.f32 0.0, %v2804
      %v2806 = vpop.f32.mrb[0].mxu0
      %2807 = vmatprep.mubr.f32.mxu0 0.0
      %2808 = vmatmul.mubr.f32.gmra.mrb[0].mxu0 %v2610
      %v2809 = vpop.f32.mrb[0].mxu0
      %v2810 = vadd.f32 0.0, %v2809
      %v2811 = vpop.f32.mrb[0].mxu0
      %2812 = vmatprep.mubr.f32.mxu0 0.0
      %2813 = vmatmul.mubr.f32.gmra.mrb[0].mxu0 %v2613
      %v2814 = vpop.f32.mrb[0].mxu0
      %v2815 = vadd.f32 0.0, %v2814
      %v2816 = vpop.f32.mrb[0].mxu0
      %2817 = vmatprep.mubr.f32.mxu0 0.0
      %2818 = vmatmul.mubr.f32.gmra.mrb[0].mxu0 %v2616
      %v2819 = vpop.f32.mrb[0].mxu0
      %v2820 = vadd.f32 0.0, %v2819
      %v2821 = vpop.f32.mrb[0].mxu0
      %2822 = vmatprep.mubr.f32.mxu0 0.0
      %2823 = vmatmul.mubr.f32.gmra.mrb[0].mxu0 %v2619
      %v2824 = vpop.f32.mrb[0].mxu0
      %v2825 = vadd.f32 0.0, %v2824
      %v2826 = vpop.f32.mrb[0].mxu0
      %2827 = vmatprep.mubr.f32.mxu0 0.0
      %2828 = vmatmul.mubr.f32.gmra.mrb[0].mxu0 %v2622
      %v2829 = vpop.f32.mrb[0].mxu0
      %v2830 = vadd.f32 0.0, %v2829
      %v2831 = vpop.f32.mrb[0].mxu0
      %2832 = vmatprep.mubr.f32.mxu0 0.0
      %2833 = vmatmul.mubr.f32.gmra.mrb[0].mxu0 %v2625
      %v2834 = vpop.f32.mrb[0].mxu0
      %v2835 = vadd.f32 0.0, %v2834
      %v2836 = vpop.f32.mrb[0].mxu0
      %2837 = vmatprep.mubr.f32.mxu0 0.0
      %2838 = vmatmul.mubr.f32.gmra.mrb[0].mxu0 %v2628
      %v2839 = vpop.f32.mrb[0].mxu0
      %v2840 = vadd.f32 0.0, %v2839
      %v2841 = vpop.f32.mrb[0].mxu0
      %2842 = vmatprep.mubr.f32.mxu0 0.0
      %2843 = vmatmul.mubr.f32.gmra.mrb[0].mxu0 %v2631
      %v2844 = vpop.f32.mrb[0].mxu0
      %v2845 = vadd.f32 0.0, %v2844
      %v2846 = vpop.f32.mrb[0].mxu0
      %2847 = vmatprep.mubr.f32.mxu0 0.0
      %2848 = vmatmul.mubr.f32.gmra.mrb[0].mxu0 %v2634
      %v2849 = vpop.f32.mrb[0].mxu0
      %v2850 = vadd.f32 0.0, %v2849
      %v2851 = vpop.f32.mrb[0].mxu0
      %2852 = vmatprep.mubr.f32.mxu0 0.0
      %2853 = vmatmul.mubr.f32.gmra.mrb[0].mxu0 %v2637
      %v2854 = vpop.f32.mrb[0].mxu0
      %v2855 = vadd.f32 0.0, %v2854
      %v2856 = vpop.f32.mrb[0].mxu0
      %2857 = vmatprep.mubr.f32.mxu0 0.0
      %2858 = vmatmul.mubr.f32.gmra.mrb[0].mxu0 %v2640
      %v2859 = vpop.f32.mrb[0].mxu0
      %v2860 = vadd.f32 0.0, %v2859
      %v2861 = vpop.f32.mrb[0].mxu0
      %2862 = vmatprep.mubr.f32.mxu0 0.0
      %2863 = vmatmul.mubr.f32.gmra.mrb[0].mxu0 %v2643
      %v2864 = vpop.f32.mrb[0].mxu0
      %v2865 = vadd.f32 0.0, %v2864
      %v2866 = vpop.f32.mrb[0].mxu0
      %2867 = vmatprep.mubr.f32.mxu0 0.0
      %2868 = vmatmul.mubr.f32.gmra.mrb[0].mxu0 %v2646
      %v2869 = vpop.f32.mrb[0].mxu0
      %v2870 = vadd.f32 0.0, %v2869
      %v2871 = vpop.f32.mrb[0].mxu0
      %2872 = vdwg.mxu0
      %v2873 = vadd.f32 %v2482, %v2715
      %v2874 = vadd.f32 %v2483, %v2720
      %v2875 = vadd.f32 %v2484, %v2725
      %v2876 = vadd.f32 %v2485, %v2730
      %v2877 = vadd.f32 %v2486, %v2735
      %v2878 = vadd.f32 %v2487, %v2740
      %v2879 = vadd.f32 %v2488, %v2745
      %v2880 = vadd.f32 %v2489, %v2750
      %v2881 = vadd.f32 %v2490, %v2755
      %v2882 = vadd.f32 %v2491, %v2760
      %v2883 = vadd.f32 %v2492, %v2765
      %v2884 = vadd.f32 %v2493, %v2770
      %v2885 = vadd.f32 %v2494, %v2775
      %v2886 = vadd.f32 %v2495, %v2780
      %v2887 = vadd.f32 %v2496, %v2785
      %v2888 = vadd.f32 %v2497, %v2790
      %v2889 = vadd.f32 %v2498, %v2795
      %v2890 = vadd.f32 %v2499, %v2800
      %v2891 = vadd.f32 %v2500, %v2805
      %v2892 = vadd.f32 %v2501, %v2810
      %v2893 = vadd.f32 %v2502, %v2815
      %v2894 = vadd.f32 %v2503, %v2820
      %v2895 = vadd.f32 %v2504, %v2825
      %v2896 = vadd.f32 %v2505, %v2830
      %v2897 = vadd.f32 %v2506, %v2835
      %v2898 = vadd.f32 %v2507, %v2840
      %v2899 = vadd.f32 %v2508, %v2845
      %v2900 = vadd.f32 %v2509, %v2850
      %v2901 = vadd.f32 %v2510, %v2855
      %v2902 = vadd.f32 %v2511, %v2860
      %v2903 = vadd.f32 %v2512, %v2865
      %v2904 = vadd.f32 %v2513, %v2870
      %v2905 = vld [vmem:[%s2514 + $0x1] sm:$0xff]
      %v2906 = vld [vmem:[%s2514 + $0x9] sm:$0xff]
      %v2907 = vld [vmem:[%s2514 + $0x19] sm:$0xff]
      %v2908 = vld [vmem:[%s2514 + $0x21] sm:$0xff]
      %v2909 = vld [vmem:[%s2514 + $0x31] sm:$0xff]
      %v2910 = vld [vmem:[%s2514 + $0x39] sm:$0xff]
      %v2911 = vld [vmem:[%s2514 + $0x49] sm:$0xff]
      %v2912 = vld [vmem:[%s2514 + $0x51] sm:$0xff]
      %v2913 = vld [vmem:[%s2514 + $0x61] sm:$0xff]
      %v2914 = vld [vmem:[%s2514 + $0x69] sm:$0xff]
      %v2915 = vld [vmem:[%s2514 + $0x79] sm:$0xff]
      %v2916 = vld [vmem:[%s2514 + $0x81] sm:$0xff]
      %v2917 = vld [vmem:[%s2514 + $0x91] sm:$0xff]
      %v2918 = vld [vmem:[%s2514 + $0x99] sm:$0xff]
      %v2919 = vld [vmem:[%s2514 + $0xa9] sm:$0xff]
      %v2920 = vld [vmem:[%s2514 + $0xb1] sm:$0xff]
      %v2921 = vld [vmem:[%s2514 + $0xc1] sm:$0xff]
      %v2922 = vld [vmem:[%s2514 + $0xc9] sm:$0xff]
      %v2923 = vld [vmem:[%s2514 + $0xd9] sm:$0xff]
      %v2924 = vld [vmem:[%s2514 + $0xe1] sm:$0xff]
      %v2925 = vld [vmem:[%s2514 + $0xf1] sm:$0xff]
      %v2926 = vld [vmem:[%s2514 + $0xf9] sm:$0xff]
      %v2927 = vld [vmem:[%s2514 + $0x109] sm:$0xff]
      %v2928 = vld [vmem:[%s2514 + $0x111] sm:$0xff]
      %v2929 = vld [vmem:[%s2514 + $0x121] sm:$0xff]
      %v2930 = vld [vmem:[%s2514 + $0x129] sm:$0xff]
      %v2931 = vld [vmem:[%s2514 + $0x139] sm:$0xff]
      %v2932 = vld [vmem:[%s2514 + $0x141] sm:$0xff]
      %v2933 = vld [vmem:[%s2514 + $0x151] sm:$0xff]
      %v2934 = vld [vmem:[%s2514 + $0x159] sm:$0xff]
      %v2935 = vld [vmem:[%s2514 + $0x169] sm:$0xff]
      %v2936 = vld [vmem:[%s2514 + $0x171] sm:$0xff]
      %s2937 = scalar_lea.vmem %s3, 128
      %v2938 = vld [vmem:[%s2937] sm:$0xff]
      %v2939 = vld [vmem:[%s2937 + $0x8] sm:$0xff]
      %v2940 = vld [vmem:[%s2937 + $0x10] sm:$0xff]
      %v2941 = vld [vmem:[%s2937 + $0x18] sm:$0xff]
      %v2943 = vsel %vm1354, %v2905, 0
      %v2946 = vsel %vm1354, %v2906, 0
      %v2949 = vsel %vm1354, %v2907, 0
      %v2952 = vsel %vm1354, %v2908, 0
      %v2955 = vsel %vm1354, %v2909, 0
      %v2958 = vsel %vm1354, %v2910, 0
      %v2961 = vsel %vm1354, %v2911, 0
      %v2964 = vsel %vm1354, %v2912, 0
      %v2967 = vsel %vm1354, %v2913, 0
      %v2970 = vsel %vm1354, %v2914, 0
      %v2973 = vsel %vm1354, %v2915, 0
      %v2976 = vsel %vm1354, %v2916, 0
      %v2979 = vsel %vm1354, %v2917, 0
      %v2982 = vsel %vm1354, %v2918, 0
      %v2985 = vsel %vm1354, %v2919, 0
      %v2988 = vsel %vm1354, %v2920, 0
      %v2991 = vsel %vm1354, %v2921, 0
      %v2994 = vsel %vm1354, %v2922, 0
      %v2997 = vsel %vm1354, %v2923, 0
      %v3000 = vsel %vm1354, %v2924, 0
      %v3003 = vsel %vm1354, %v2925, 0
      %v3006 = vsel %vm1354, %v2926, 0
      %v3009 = vsel %vm1354, %v2927, 0
      %v3012 = vsel %vm1354, %v2928, 0
      %v3015 = vsel %vm1354, %v2929, 0
      %v3018 = vsel %vm1354, %v2930, 0
      %v3021 = vsel %vm1354, %v2931, 0
      %v3024 = vsel %vm1354, %v2932, 0
      %v3027 = vsel %vm1354, %v2933, 0
      %v3030 = vsel %vm1354, %v2934, 0
      %v3033 = vsel %vm1354, %v2935, 0
      %v3036 = vsel %vm1354, %v2936, 0
      %3038 = vmatprep.subr.mxu0 0.0
      %3039 = vmatpush1.msra.mxu0 %v2938
      %3040 = vmatprep.subr.mxu0 0.0
      %3041 = vmatpush1.msra.mxu0 %v2939
      %3042 = vmatprep.subr.mxu0 0.0
      %3043 = vmatpush1.msra.mxu0 %v2940
      %3044 = vmatprep.subr.mxu0 0.0
      %3045 = vmatpush1.msra.mxu0 %v2941
      %3046 = vmatprep.subr.mxu0 0.0
      %3047 = vmatpush1.msra.mxu0 0.0
      %3048 = vmatprep.subr.mxu0 0.0
      %3049 = vmatpush1.msra.mxu0 0.0
      %3050 = vmatprep.subr.mxu0 0.0
      %3051 = vmatpush1.msra.mxu0 0.0
      %3052 = vmatprep.subr.mxu0 0.0
      %3053 = vmatpush1.msra.mxu0 0.0
      %3054 = vmatprep.subr.mxu0 0.0
      %3055 = vmatpush1.msra.mxu0 0.0
      %3056 = vmatprep.subr.mxu0 0.0
      %3057 = vmatpush1.msra.mxu0 0.0
      %3058 = vmatprep.subr.mxu0 0.0
      %3059 = vmatpush1.msra.mxu0 0.0
      %3060 = vmatprep.subr.mxu0 0.0
      %3061 = vmatpush1.msra.mxu0 0.0
      %3062 = vmatprep.subr.mxu0 0.0
      %3063 = vmatpush1.msra.mxu0 0.0
      %3064 = vmatprep.subr.mxu0 0.0
      %3065 = vmatpush1.msra.mxu0 0.0
      %3066 = vmatprep.subr.mxu0 0.0
      %3067 = vmatpush1.msra.mxu0 0.0
      %3068 = vmatprep.subr.mxu0 0.0
      %3069 = vmatpush1.msra.mxu0 0.0
      %3070 = vmatprep.subr.mxu0 0.0
      %3071 = vmatpush1.msra.mxu0 0.0
      %3072 = vmatprep.subr.mxu0 0.0
      %3073 = vmatpush1.msra.mxu0 0.0
      %3074 = vmatprep.subr.mxu0 0.0
      %3075 = vmatpush1.msra.mxu0 0.0
      %3076 = vmatprep.subr.mxu0 0.0
      %3077 = vmatpush1.msra.mxu0 0.0
      %3078 = vmatprep.subr.mxu0 0.0
      %3079 = vmatpush1.msra.mxu0 0.0
      %3080 = vmatprep.subr.mxu0 0.0
      %3081 = vmatpush1.msra.mxu0 0.0
      %3082 = vmatprep.subr.mxu0 0.0
      %3083 = vmatpush1.msra.mxu0 0.0
      %3084 = vmatprep.subr.mxu0 0.0
      %3085 = vmatpush1.msra.mxu0 0.0
      %3086 = vmatprep.subr.mxu0 0.0
      %3087 = vmatpush1.msra.mxu0 0.0
      %3088 = vmatprep.subr.mxu0 0.0
      %3089 = vmatpush1.msra.mxu0 0.0
      %3090 = vmatprep.subr.mxu0 0.0
      %3091 = vmatpush1.msra.mxu0 0.0
      %3092 = vmatprep.subr.mxu0 0.0
      %3093 = vmatpush1.msra.mxu0 0.0
      %3094 = vmatprep.subr.mxu0 0.0
      %3095 = vmatpush1.msra.mxu0 0.0
      %3096 = vmatprep.subr.mxu0 0.0
      %3097 = vmatpush1.msra.mxu0 0.0
      %3098 = vmatprep.subr.mxu0 0.0
      %3099 = vmatpush1.msra.mxu0 0.0
      %3100 = vmatprep.subr.mxu0 0.0
      %3101 = vmatpush1.msra.mxu0 0.0
      %3102 = vmatprep.mubr.f32.mxu0 0.0
      %3103 = vmatmul.mubr.f32.gmra.mrb[0].mxu0 %v2943
      %v3104 = vpop.f32.mrb[0].mxu0
      %v3105 = vadd.f32 0.0, %v3104
      %v3106 = vpop.f32.mrb[0].mxu0
      %3107 = vmatprep.mubr.f32.mxu0 0.0
      %3108 = vmatmul.mubr.f32.gmra.mrb[0].mxu0 %v2946
      %v3109 = vpop.f32.mrb[0].mxu0
      %v3110 = vadd.f32 0.0, %v3109
      %v3111 = vpop.f32.mrb[0].mxu0
      %3112 = vmatprep.mubr.f32.mxu0 0.0
      %3113 = vmatmul.mubr.f32.gmra.mrb[0].mxu0 %v2949
      %v3114 = vpop.f32.mrb[0].mxu0
      %v3115 = vadd.f32 0.0, %v3114
      %v3116 = vpop.f32.mrb[0].mxu0
      %3117 = vmatprep.mubr.f32.mxu0 0.0
      %3118 = vmatmul.mubr.f32.gmra.mrb[0].mxu0 %v2952
      %v3119 = vpop.f32.mrb[0].mxu0
      %v3120 = vadd.f32 0.0, %v3119
      %v3121 = vpop.f32.mrb[0].mxu0
      %3122 = vmatprep.mubr.f32.mxu0 0.0
      %3123 = vmatmul.mubr.f32.gmra.mrb[0].mxu0 %v2955
      %v3124 = vpop.f32.mrb[0].mxu0
      %v3125 = vadd.f32 0.0, %v3124
      %v3126 = vpop.f32.mrb[0].mxu0
      %3127 = vmatprep.mubr.f32.mxu0 0.0
      %3128 = vmatmul.mubr.f32.gmra.mrb[0].mxu0 %v2958
      %v3129 = vpop.f32.mrb[0].mxu0
      %v3130 = vadd.f32 0.0, %v3129
      %v3131 = vpop.f32.mrb[0].mxu0
      %3132 = vmatprep.mubr.f32.mxu0 0.0
      %3133 = vmatmul.mubr.f32.gmra.mrb[0].mxu0 %v2961
      %v3134 = vpop.f32.mrb[0].mxu0
      %v3135 = vadd.f32 0.0, %v3134
      %v3136 = vpop.f32.mrb[0].mxu0
      %3137 = vmatprep.mubr.f32.mxu0 0.0
      %3138 = vmatmul.mubr.f32.gmra.mrb[0].mxu0 %v2964
      %v3139 = vpop.f32.mrb[0].mxu0
      %v3140 = vadd.f32 0.0, %v3139
      %v3141 = vpop.f32.mrb[0].mxu0
      %3142 = vmatprep.mubr.f32.mxu0 0.0
      %3143 = vmatmul.mubr.f32.gmra.mrb[0].mxu0 %v2967
      %v3144 = vpop.f32.mrb[0].mxu0
      %v3145 = vadd.f32 0.0, %v3144
      %v3146 = vpop.f32.mrb[0].mxu0
      %3147 = vmatprep.mubr.f32.mxu0 0.0
      %3148 = vmatmul.mubr.f32.gmra.mrb[0].mxu0 %v2970
      %v3149 = vpop.f32.mrb[0].mxu0
      %v3150 = vadd.f32 0.0, %v3149
      %v3151 = vpop.f32.mrb[0].mxu0
      %3152 = vmatprep.mubr.f32.mxu0 0.0
      %3153 = vmatmul.mubr.f32.gmra.mrb[0].mxu0 %v2973
      %v3154 = vpop.f32.mrb[0].mxu0
      %v3155 = vadd.f32 0.0, %v3154
      %v3156 = vpop.f32.mrb[0].mxu0
      %3157 = vmatprep.mubr.f32.mxu0 0.0
      %3158 = vmatmul.mubr.f32.gmra.mrb[0].mxu0 %v2976
      %v3159 = vpop.f32.mrb[0].mxu0
      %v3160 = vadd.f32 0.0, %v3159
      %v3161 = vpop.f32.mrb[0].mxu0
      %3162 = vmatprep.mubr.f32.mxu0 0.0
      %3163 = vmatmul.mubr.f32.gmra.mrb[0].mxu0 %v2979
      %v3164 = vpop.f32.mrb[0].mxu0
      %v3165 = vadd.f32 0.0, %v3164
      %v3166 = vpop.f32.mrb[0].mxu0
      %3167 = vmatprep.mubr.f32.mxu0 0.0
      %3168 = vmatmul.mubr.f32.gmra.mrb[0].mxu0 %v2982
      %v3169 = vpop.f32.mrb[0].mxu0
      %v3170 = vadd.f32 0.0, %v3169
      %v3171 = vpop.f32.mrb[0].mxu0
      %3172 = vmatprep.mubr.f32.mxu0 0.0
      %3173 = vmatmul.mubr.f32.gmra.mrb[0].mxu0 %v2985
      %v3174 = vpop.f32.mrb[0].mxu0
      %v3175 = vadd.f32 0.0, %v3174
      %v3176 = vpop.f32.mrb[0].mxu0
      %3177 = vmatprep.mubr.f32.mxu0 0.0
      %3178 = vmatmul.mubr.f32.gmra.mrb[0].mxu0 %v2988
      %v3179 = vpop.f32.mrb[0].mxu0
      %v3180 = vadd.f32 0.0, %v3179
      %v3181 = vpop.f32.mrb[0].mxu0
      %3182 = vmatprep.mubr.f32.mxu0 0.0
      %3183 = vmatmul.mubr.f32.gmra.mrb[0].mxu0 %v2991
      %v3184 = vpop.f32.mrb[0].mxu0
      %v3185 = vadd.f32 0.0, %v3184
      %v3186 = vpop.f32.mrb[0].mxu0
      %3187 = vmatprep.mubr.f32.mxu0 0.0
      %3188 = vmatmul.mubr.f32.gmra.mrb[0].mxu0 %v2994
      %v3189 = vpop.f32.mrb[0].mxu0
      %v3190 = vadd.f32 0.0, %v3189
      %v3191 = vpop.f32.mrb[0].mxu0
      %3192 = vmatprep.mubr.f32.mxu0 0.0
      %3193 = vmatmul.mubr.f32.gmra.mrb[0].mxu0 %v2997
      %v3194 = vpop.f32.mrb[0].mxu0
      %v3195 = vadd.f32 0.0, %v3194
      %v3196 = vpop.f32.mrb[0].mxu0
      %3197 = vmatprep.mubr.f32.mxu0 0.0
      %3198 = vmatmul.mubr.f32.gmra.mrb[0].mxu0 %v3000
      %v3199 = vpop.f32.mrb[0].mxu0
      %v3200 = vadd.f32 0.0, %v3199
      %v3201 = vpop.f32.mrb[0].mxu0
      %3202 = vmatprep.mubr.f32.mxu0 0.0
      %3203 = vmatmul.mubr.f32.gmra.mrb[0].mxu0 %v3003
      %v3204 = vpop.f32.mrb[0].mxu0
      %v3205 = vadd.f32 0.0, %v3204
      %v3206 = vpop.f32.mrb[0].mxu0
      %3207 = vmatprep.mubr.f32.mxu0 0.0
      %3208 = vmatmul.mubr.f32.gmra.mrb[0].mxu0 %v3006
      %v3209 = vpop.f32.mrb[0].mxu0
      %v3210 = vadd.f32 0.0, %v3209
      %v3211 = vpop.f32.mrb[0].mxu0
      %3212 = vmatprep.mubr.f32.mxu0 0.0
      %3213 = vmatmul.mubr.f32.gmra.mrb[0].mxu0 %v3009
      %v3214 = vpop.f32.mrb[0].mxu0
      %v3215 = vadd.f32 0.0, %v3214
      %v3216 = vpop.f32.mrb[0].mxu0
      %3217 = vmatprep.mubr.f32.mxu0 0.0
      %3218 = vmatmul.mubr.f32.gmra.mrb[0].mxu0 %v3012
      %v3219 = vpop.f32.mrb[0].mxu0
      %v3220 = vadd.f32 0.0, %v3219
      %v3221 = vpop.f32.mrb[0].mxu0
      %3222 = vmatprep.mubr.f32.mxu0 0.0
      %3223 = vmatmul.mubr.f32.gmra.mrb[0].mxu0 %v3015
      %v3224 = vpop.f32.mrb[0].mxu0
      %v3225 = vadd.f32 0.0, %v3224
      %v3226 = vpop.f32.mrb[0].mxu0
      %3227 = vmatprep.mubr.f32.mxu0 0.0
      %3228 = vmatmul.mubr.f32.gmra.mrb[0].mxu0 %v3018
      %v3229 = vpop.f32.mrb[0].mxu0
      %v3230 = vadd.f32 0.0, %v3229
      %v3231 = vpop.f32.mrb[0].mxu0
      %3232 = vmatprep.mubr.f32.mxu0 0.0
      %3233 = vmatmul.mubr.f32.gmra.mrb[0].mxu0 %v3021
      %v3234 = vpop.f32.mrb[0].mxu0
      %v3235 = vadd.f32 0.0, %v3234
      %v3236 = vpop.f32.mrb[0].mxu0
      %3237 = vmatprep.mubr.f32.mxu0 0.0
      %3238 = vmatmul.mubr.f32.gmra.mrb[0].mxu0 %v3024
      %v3239 = vpop.f32.mrb[0].mxu0
      %v3240 = vadd.f32 0.0, %v3239
      %v3241 = vpop.f32.mrb[0].mxu0
      %3242 = vmatprep.mubr.f32.mxu0 0.0
      %3243 = vmatmul.mubr.f32.gmra.mrb[0].mxu0 %v3027
      %v3244 = vpop.f32.mrb[0].mxu0
      %v3245 = vadd.f32 0.0, %v3244
      %v3246 = vpop.f32.mrb[0].mxu0
      %3247 = vmatprep.mubr.f32.mxu0 0.0
      %3248 = vmatmul.mubr.f32.gmra.mrb[0].mxu0 %v3030
      %v3249 = vpop.f32.mrb[0].mxu0
      %v3250 = vadd.f32 0.0, %v3249
      %v3251 = vpop.f32.mrb[0].mxu0
      %3252 = vmatprep.mubr.f32.mxu0 0.0
      %3253 = vmatmul.mubr.f32.gmra.mrb[0].mxu0 %v3033
      %v3254 = vpop.f32.mrb[0].mxu0
      %v3255 = vadd.f32 0.0, %v3254
      %v3256 = vpop.f32.mrb[0].mxu0
      %3257 = vmatprep.mubr.f32.mxu0 0.0
      %3258 = vmatmul.mubr.f32.gmra.mrb[0].mxu0 %v3036
      %v3259 = vpop.f32.mrb[0].mxu0
      %v3260 = vadd.f32 0.0, %v3259
      %v3261 = vpop.f32.mrb[0].mxu0
      %3262 = vdwg.mxu0
      %v3263 = vadd.f32 %v2873, %v3105
      %v3264 = vadd.f32 %v2874, %v3110
      %v3265 = vadd.f32 %v2875, %v3115
      %v3266 = vadd.f32 %v2876, %v3120
      %v3267 = vadd.f32 %v2877, %v3125
      %v3268 = vadd.f32 %v2878, %v3130
      %v3269 = vadd.f32 %v2879, %v3135
      %v3270 = vadd.f32 %v2880, %v3140
      %v3271 = vadd.f32 %v2881, %v3145
      %v3272 = vadd.f32 %v2882, %v3150
      %v3273 = vadd.f32 %v2883, %v3155
      %v3274 = vadd.f32 %v2884, %v3160
      %v3275 = vadd.f32 %v2885, %v3165
      %v3276 = vadd.f32 %v2886, %v3170
      %v3277 = vadd.f32 %v2887, %v3175
      %v3278 = vadd.f32 %v2888, %v3180
      %v3279 = vadd.f32 %v2889, %v3185
      %v3280 = vadd.f32 %v2890, %v3190
      %v3281 = vadd.f32 %v2891, %v3195
      %v3282 = vadd.f32 %v2892, %v3200
      %v3283 = vadd.f32 %v2893, %v3205
      %v3284 = vadd.f32 %v2894, %v3210
      %v3285 = vadd.f32 %v2895, %v3215
      %v3286 = vadd.f32 %v2896, %v3220
      %v3287 = vadd.f32 %v2897, %v3225
      %v3288 = vadd.f32 %v2898, %v3230
      %v3289 = vadd.f32 %v2899, %v3235
      %v3290 = vadd.f32 %v2900, %v3240
      %v3291 = vadd.f32 %v2901, %v3245
      %v3292 = vadd.f32 %v2902, %v3250
      %v3293 = vadd.f32 %v2903, %v3255
      %v3294 = vadd.f32 %v2904, %v3260
      %v3295 = vld [vmem:[%s2514 + $0x2] sm:$0xff]
      %v3296 = vld [vmem:[%s2514 + $0xa] sm:$0xff]
      %v3297 = vld [vmem:[%s2514 + $0x1a] sm:$0xff]
      %v3298 = vld [vmem:[%s2514 + $0x22] sm:$0xff]
      %v3299 = vld [vmem:[%s2514 + $0x32] sm:$0xff]
      %v3300 = vld [vmem:[%s2514 + $0x3a] sm:$0xff]
      %v3301 = vld [vmem:[%s2514 + $0x4a] sm:$0xff]
      %v3302 = vld [vmem:[%s2514 + $0x52] sm:$0xff]
      %v3303 = vld [vmem:[%s2514 + $0x62] sm:$0xff]
      %v3304 = vld [vmem:[%s2514 + $0x6a] sm:$0xff]
      %v3305 = vld [vmem:[%s2514 + $0x7a] sm:$0xff]
      %v3306 = vld [vmem:[%s2514 + $0x82] sm:$0xff]
      %v3307 = vld [vmem:[%s2514 + $0x92] sm:$0xff]
      %v3308 = vld [vmem:[%s2514 + $0x9a] sm:$0xff]
      %v3309 = vld [vmem:[%s2514 + $0xaa] sm:$0xff]
      %v3310 = vld [vmem:[%s2514 + $0xb2] sm:$0xff]
      %v3311 = vld [vmem:[%s2514 + $0xc2] sm:$0xff]
      %v3312 = vld [vmem:[%s2514 + $0xca] sm:$0xff]
      %v3313 = vld [vmem:[%s2514 + $0xda] sm:$0xff]
      %v3314 = vld [vmem:[%s2514 + $0xe2] sm:$0xff]
      %v3315 = vld [vmem:[%s2514 + $0xf2] sm:$0xff]
      %v3316 = vld [vmem:[%s2514 + $0xfa] sm:$0xff]
      %v3317 = vld [vmem:[%s2514 + $0x10a] sm:$0xff]
      %v3318 = vld [vmem:[%s2514 + $0x112] sm:$0xff]
      %v3319 = vld [vmem:[%s2514 + $0x122] sm:$0xff]
      %v3320 = vld [vmem:[%s2514 + $0x12a] sm:$0xff]
      %v3321 = vld [vmem:[%s2514 + $0x13a] sm:$0xff]
      %v3322 = vld [vmem:[%s2514 + $0x142] sm:$0xff]
      %v3323 = vld [vmem:[%s2514 + $0x152] sm:$0xff]
      %v3324 = vld [vmem:[%s2514 + $0x15a] sm:$0xff]
      %v3325 = vld [vmem:[%s2514 + $0x16a] sm:$0xff]
      %v3326 = vld [vmem:[%s2514 + $0x172] sm:$0xff]
      %s3327 = scalar_lea.vmem %s3, 160
      %v3328 = vld [vmem:[%s3327] sm:$0xff]
      %v3329 = vld [vmem:[%s3327 + $0x8] sm:$0xff]
      %v3330 = vld [vmem:[%s3327 + $0x10] sm:$0xff]
      %v3331 = vld [vmem:[%s3327 + $0x18] sm:$0xff]
      %v3333 = vsel %vm1354, %v3295, 0
      %v3336 = vsel %vm1354, %v3296, 0
      %v3339 = vsel %vm1354, %v3297, 0
      %v3342 = vsel %vm1354, %v3298, 0
      %v3345 = vsel %vm1354, %v3299, 0
      %v3348 = vsel %vm1354, %v3300, 0
      %v3351 = vsel %vm1354, %v3301, 0
      %v3354 = vsel %vm1354, %v3302, 0
      %v3357 = vsel %vm1354, %v3303, 0
      %v3360 = vsel %vm1354, %v3304, 0
      %v3363 = vsel %vm1354, %v3305, 0
      %v3366 = vsel %vm1354, %v3306, 0
      %v3369 = vsel %vm1354, %v3307, 0
      %v3372 = vsel %vm1354, %v3308, 0
      %v3375 = vsel %vm1354, %v3309, 0
      %v3378 = vsel %vm1354, %v3310, 0
      %v3381 = vsel %vm1354, %v3311, 0
      %v3384 = vsel %vm1354, %v3312, 0
      %v3387 = vsel %vm1354, %v3313, 0
      %v3390 = vsel %vm1354, %v3314, 0
      %v3393 = vsel %vm1354, %v3315, 0
      %v3396 = vsel %vm1354, %v3316, 0
      %v3399 = vsel %vm1354, %v3317, 0
      %v3402 = vsel %vm1354, %v3318, 0
      %v3405 = vsel %vm1354, %v3319, 0
      %v3408 = vsel %vm1354, %v3320, 0
      %v3411 = vsel %vm1354, %v3321, 0
      %v3414 = vsel %vm1354, %v3322, 0
      %v3417 = vsel %vm1354, %v3323, 0
      %v3420 = vsel %vm1354, %v3324, 0
      %v3423 = vsel %vm1354, %v3325, 0
      %v3426 = vsel %vm1354, %v3326, 0
      %3428 = vmatprep.subr.mxu0 0.0
      %3429 = vmatpush1.msra.mxu0 %v3328
      %3430 = vmatprep.subr.mxu0 0.0
      %3431 = vmatpush1.msra.mxu0 %v3329
      %3432 = vmatprep.subr.mxu0 0.0
      %3433 = vmatpush1.msra.mxu0 %v3330
      %3434 = vmatprep.subr.mxu0 0.0
      %3435 = vmatpush1.msra.mxu0 %v3331
      %3436 = vmatprep.subr.mxu0 0.0
      %3437 = vmatpush1.msra.mxu0 0.0
      %3438 = vmatprep.subr.mxu0 0.0
      %3439 = vmatpush1.msra.mxu0 0.0
      %3440 = vmatprep.subr.mxu0 0.0
      %3441 = vmatpush1.msra.mxu0 0.0
      %3442 = vmatprep.subr.mxu0 0.0
      %3443 = vmatpush1.msra.mxu0 0.0
      %3444 = vmatprep.subr.mxu0 0.0
      %3445 = vmatpush1.msra.mxu0 0.0
      %3446 = vmatprep.subr.mxu0 0.0
      %3447 = vmatpush1.msra.mxu0 0.0
      %3448 = vmatprep.subr.mxu0 0.0
      %3449 = vmatpush1.msra.mxu0 0.0
      %3450 = vmatprep.subr.mxu0 0.0
      %3451 = vmatpush1.msra.mxu0 0.0
      %3452 = vmatprep.subr.mxu0 0.0
      %3453 = vmatpush1.msra.mxu0 0.0
      %3454 = vmatprep.subr.mxu0 0.0
      %3455 = vmatpush1.msra.mxu0 0.0
      %3456 = vmatprep.subr.mxu0 0.0
      %3457 = vmatpush1.msra.mxu0 0.0
      %3458 = vmatprep.subr.mxu0 0.0
      %3459 = vmatpush1.msra.mxu0 0.0
      %3460 = vmatprep.subr.mxu0 0.0
      %3461 = vmatpush1.msra.mxu0 0.0
      %3462 = vmatprep.subr.mxu0 0.0
      %3463 = vmatpush1.msra.mxu0 0.0
      %3464 = vmatprep.subr.mxu0 0.0
      %3465 = vmatpush1.msra.mxu0 0.0
      %3466 = vmatprep.subr.mxu0 0.0
      %3467 = vmatpush1.msra.mxu0 0.0
      %3468 = vmatprep.subr.mxu0 0.0
      %3469 = vmatpush1.msra.mxu0 0.0
      %3470 = vmatprep.subr.mxu0 0.0
      %3471 = vmatpush1.msra.mxu0 0.0
      %3472 = vmatprep.subr.mxu0 0.0
      %3473 = vmatpush1.msra.mxu0 0.0
      %3474 = vmatprep.subr.mxu0 0.0
      %3475 = vmatpush1.msra.mxu0 0.0
      %3476 = vmatprep.subr.mxu0 0.0
      %3477 = vmatpush1.msra.mxu0 0.0
      %3478 = vmatprep.subr.mxu0 0.0
      %3479 = vmatpush1.msra.mxu0 0.0
      %3480 = vmatprep.subr.mxu0 0.0
      %3481 = vmatpush1.msra.mxu0 0.0
      %3482 = vmatprep.subr.mxu0 0.0
      %3483 = vmatpush1.msra.mxu0 0.0
      %3484 = vmatprep.subr.mxu0 0.0
      %3485 = vmatpush1.msra.mxu0 0.0
      %3486 = vmatprep.subr.mxu0 0.0
      %3487 = vmatpush1.msra.mxu0 0.0
      %3488 = vmatprep.subr.mxu0 0.0
      %3489 = vmatpush1.msra.mxu0 0.0
      %3490 = vmatprep.subr.mxu0 0.0
      %3491 = vmatpush1.msra.mxu0 0.0
      %3492 = vmatprep.mubr.f32.mxu0 0.0
      %3493 = vmatmul.mubr.f32.gmra.mrb[0].mxu0 %v3333
      %v3494 = vpop.f32.mrb[0].mxu0
      %v3495 = vadd.f32 0.0, %v3494
      %v3496 = vpop.f32.mrb[0].mxu0
      %3497 = vmatprep.mubr.f32.mxu0 0.0
      %3498 = vmatmul.mubr.f32.gmra.mrb[0].mxu0 %v3336
      %v3499 = vpop.f32.mrb[0].mxu0
      %v3500 = vadd.f32 0.0, %v3499
      %v3501 = vpop.f32.mrb[0].mxu0
      %3502 = vmatprep.mubr.f32.mxu0 0.0
      %3503 = vmatmul.mubr.f32.gmra.mrb[0].mxu0 %v3339
      %v3504 = vpop.f32.mrb[0].mxu0
      %v3505 = vadd.f32 0.0, %v3504
      %v3506 = vpop.f32.mrb[0].mxu0
      %3507 = vmatprep.mubr.f32.mxu0 0.0
      %3508 = vmatmul.mubr.f32.gmra.mrb[0].mxu0 %v3342
      %v3509 = vpop.f32.mrb[0].mxu0
      %v3510 = vadd.f32 0.0, %v3509
      %v3511 = vpop.f32.mrb[0].mxu0
      %3512 = vmatprep.mubr.f32.mxu0 0.0
      %3513 = vmatmul.mubr.f32.gmra.mrb[0].mxu0 %v3345
      %v3514 = vpop.f32.mrb[0].mxu0
      %v3515 = vadd.f32 0.0, %v3514
      %v3516 = vpop.f32.mrb[0].mxu0
      %3517 = vmatprep.mubr.f32.mxu0 0.0
      %3518 = vmatmul.mubr.f32.gmra.mrb[0].mxu0 %v3348
      %v3519 = vpop.f32.mrb[0].mxu0
      %v3520 = vadd.f32 0.0, %v3519
      %v3521 = vpop.f32.mrb[0].mxu0
      %3522 = vmatprep.mubr.f32.mxu0 0.0
      %3523 = vmatmul.mubr.f32.gmra.mrb[0].mxu0 %v3351
      %v3524 = vpop.f32.mrb[0].mxu0
      %v3525 = vadd.f32 0.0, %v3524
      %v3526 = vpop.f32.mrb[0].mxu0
      %3527 = vmatprep.mubr.f32.mxu0 0.0
      %3528 = vmatmul.mubr.f32.gmra.mrb[0].mxu0 %v3354
      %v3529 = vpop.f32.mrb[0].mxu0
      %v3530 = vadd.f32 0.0, %v3529
      %v3531 = vpop.f32.mrb[0].mxu0
      %3532 = vmatprep.mubr.f32.mxu0 0.0
      %3533 = vmatmul.mubr.f32.gmra.mrb[0].mxu0 %v3357
      %v3534 = vpop.f32.mrb[0].mxu0
      %v3535 = vadd.f32 0.0, %v3534
      %v3536 = vpop.f32.mrb[0].mxu0
      %3537 = vmatprep.mubr.f32.mxu0 0.0
      %3538 = vmatmul.mubr.f32.gmra.mrb[0].mxu0 %v3360
      %v3539 = vpop.f32.mrb[0].mxu0
      %v3540 = vadd.f32 0.0, %v3539
      %v3541 = vpop.f32.mrb[0].mxu0
      %3542 = vmatprep.mubr.f32.mxu0 0.0
      %3543 = vmatmul.mubr.f32.gmra.mrb[0].mxu0 %v3363
      %v3544 = vpop.f32.mrb[0].mxu0
      %v3545 = vadd.f32 0.0, %v3544
      %v3546 = vpop.f32.mrb[0].mxu0
      %3547 = vmatprep.mubr.f32.mxu0 0.0
      %3548 = vmatmul.mubr.f32.gmra.mrb[0].mxu0 %v3366
      %v3549 = vpop.f32.mrb[0].mxu0
      %v3550 = vadd.f32 0.0, %v3549
      %v3551 = vpop.f32.mrb[0].mxu0
      %3552 = vmatprep.mubr.f32.mxu0 0.0
      %3553 = vmatmul.mubr.f32.gmra.mrb[0].mxu0 %v3369
      %v3554 = vpop.f32.mrb[0].mxu0
      %v3555 = vadd.f32 0.0, %v3554
      %v3556 = vpop.f32.mrb[0].mxu0
      %3557 = vmatprep.mubr.f32.mxu0 0.0
      %3558 = vmatmul.mubr.f32.gmra.mrb[0].mxu0 %v3372
      %v3559 = vpop.f32.mrb[0].mxu0
      %v3560 = vadd.f32 0.0, %v3559
      %v3561 = vpop.f32.mrb[0].mxu0
      %3562 = vmatprep.mubr.f32.mxu0 0.0
      %3563 = vmatmul.mubr.f32.gmra.mrb[0].mxu0 %v3375
      %v3564 = vpop.f32.mrb[0].mxu0
      %v3565 = vadd.f32 0.0, %v3564
      %v3566 = vpop.f32.mrb[0].mxu0
      %3567 = vmatprep.mubr.f32.mxu0 0.0
      %3568 = vmatmul.mubr.f32.gmra.mrb[0].mxu0 %v3378
      %v3569 = vpop.f32.mrb[0].mxu0
      %v3570 = vadd.f32 0.0, %v3569
      %v3571 = vpop.f32.mrb[0].mxu0
      %3572 = vmatprep.mubr.f32.mxu0 0.0
      %3573 = vmatmul.mubr.f32.gmra.mrb[0].mxu0 %v3381
      %v3574 = vpop.f32.mrb[0].mxu0
      %v3575 = vadd.f32 0.0, %v3574
      %v3576 = vpop.f32.mrb[0].mxu0
      %3577 = vmatprep.mubr.f32.mxu0 0.0
      %3578 = vmatmul.mubr.f32.gmra.mrb[0].mxu0 %v3384
      %v3579 = vpop.f32.mrb[0].mxu0
      %v3580 = vadd.f32 0.0, %v3579
      %v3581 = vpop.f32.mrb[0].mxu0
      %3582 = vmatprep.mubr.f32.mxu0 0.0
      %3583 = vmatmul.mubr.f32.gmra.mrb[0].mxu0 %v3387
      %v3584 = vpop.f32.mrb[0].mxu0
      %v3585 = vadd.f32 0.0, %v3584
      %v3586 = vpop.f32.mrb[0].mxu0
      %3587 = vmatprep.mubr.f32.mxu0 0.0
      %3588 = vmatmul.mubr.f32.gmra.mrb[0].mxu0 %v3390
      %v3589 = vpop.f32.mrb[0].mxu0
      %v3590 = vadd.f32 0.0, %v3589
      %v3591 = vpop.f32.mrb[0].mxu0
      %3592 = vmatprep.mubr.f32.mxu0 0.0
      %3593 = vmatmul.mubr.f32.gmra.mrb[0].mxu0 %v3393
      %v3594 = vpop.f32.mrb[0].mxu0
      %v3595 = vadd.f32 0.0, %v3594
      %v3596 = vpop.f32.mrb[0].mxu0
      %3597 = vmatprep.mubr.f32.mxu0 0.0
      %3598 = vmatmul.mubr.f32.gmra.mrb[0].mxu0 %v3396
      %v3599 = vpop.f32.mrb[0].mxu0
      %v3600 = vadd.f32 0.0, %v3599
      %v3601 = vpop.f32.mrb[0].mxu0
      %3602 = vmatprep.mubr.f32.mxu0 0.0
      %3603 = vmatmul.mubr.f32.gmra.mrb[0].mxu0 %v3399
      %v3604 = vpop.f32.mrb[0].mxu0
      %v3605 = vadd.f32 0.0, %v3604
      %v3606 = vpop.f32.mrb[0].mxu0
      %3607 = vmatprep.mubr.f32.mxu0 0.0
      %3608 = vmatmul.mubr.f32.gmra.mrb[0].mxu0 %v3402
      %v3609 = vpop.f32.mrb[0].mxu0
      %v3610 = vadd.f32 0.0, %v3609
      %v3611 = vpop.f32.mrb[0].mxu0
      %3612 = vmatprep.mubr.f32.mxu0 0.0
      %3613 = vmatmul.mubr.f32.gmra.mrb[0].mxu0 %v3405
      %v3614 = vpop.f32.mrb[0].mxu0
      %v3615 = vadd.f32 0.0, %v3614
      %v3616 = vpop.f32.mrb[0].mxu0
      %3617 = vmatprep.mubr.f32.mxu0 0.0
      %3618 = vmatmul.mubr.f32.gmra.mrb[0].mxu0 %v3408
      %v3619 = vpop.f32.mrb[0].mxu0
      %v3620 = vadd.f32 0.0, %v3619
      %v3621 = vpop.f32.mrb[0].mxu0
      %3622 = vmatprep.mubr.f32.mxu0 0.0
      %3623 = vmatmul.mubr.f32.gmra.mrb[0].mxu0 %v3411
      %v3624 = vpop.f32.mrb[0].mxu0
      %v3625 = vadd.f32 0.0, %v3624
      %v3626 = vpop.f32.mrb[0].mxu0
      %3627 = vmatprep.mubr.f32.mxu0 0.0
      %3628 = vmatmul.mubr.f32.gmra.mrb[0].mxu0 %v3414
      %v3629 = vpop.f32.mrb[0].mxu0
      %v3630 = vadd.f32 0.0, %v3629
      %v3631 = vpop.f32.mrb[0].mxu0
      %3632 = vmatprep.mubr.f32.mxu0 0.0
      %3633 = vmatmul.mubr.f32.gmra.mrb[0].mxu0 %v3417
      %v3634 = vpop.f32.mrb[0].mxu0
      %v3635 = vadd.f32 0.0, %v3634
      %v3636 = vpop.f32.mrb[0].mxu0
      %3637 = vmatprep.mubr.f32.mxu0 0.0
      %3638 = vmatmul.mubr.f32.gmra.mrb[0].mxu0 %v3420
      %v3639 = vpop.f32.mrb[0].mxu0
      %v3640 = vadd.f32 0.0, %v3639
      %v3641 = vpop.f32.mrb[0].mxu0
      %3642 = vmatprep.mubr.f32.mxu0 0.0
      %3643 = vmatmul.mubr.f32.gmra.mrb[0].mxu0 %v3423
      %v3644 = vpop.f32.mrb[0].mxu0
      %v3645 = vadd.f32 0.0, %v3644
      %v3646 = vpop.f32.mrb[0].mxu0
      %3647 = vmatprep.mubr.f32.mxu0 0.0
      %3648 = vmatmul.mubr.f32.gmra.mrb[0].mxu0 %v3426
      %v3649 = vpop.f32.mrb[0].mxu0
      %v3650 = vadd.f32 0.0, %v3649
      %v3651 = vpop.f32.mrb[0].mxu0
      %3652 = vdwg.mxu0
      %v3653 = vadd.f32 %v3263, %v3495
      %v3654 = vadd.f32 %v3264, %v3500
      %v3655 = vadd.f32 %v3265, %v3505
      %v3656 = vadd.f32 %v3266, %v3510
      %v3657 = vadd.f32 %v3267, %v3515
      %v3658 = vadd.f32 %v3268, %v3520
      %v3659 = vadd.f32 %v3269, %v3525
      %v3660 = vadd.f32 %v3270, %v3530
      %v3661 = vadd.f32 %v3271, %v3535
      %v3662 = vadd.f32 %v3272, %v3540
      %v3663 = vadd.f32 %v3273, %v3545
      %v3664 = vadd.f32 %v3274, %v3550
      %v3665 = vadd.f32 %v3275, %v3555
      %v3666 = vadd.f32 %v3276, %v3560
      %v3667 = vadd.f32 %v3277, %v3565
      %v3668 = vadd.f32 %v3278, %v3570
      %v3669 = vadd.f32 %v3279, %v3575
      %v3670 = vadd.f32 %v3280, %v3580
      %v3671 = vadd.f32 %v3281, %v3585
      %v3672 = vadd.f32 %v3282, %v3590
      %v3673 = vadd.f32 %v3283, %v3595
      %v3674 = vadd.f32 %v3284, %v3600
      %v3675 = vadd.f32 %v3285, %v3605
      %v3676 = vadd.f32 %v3286, %v3610
      %v3677 = vadd.f32 %v3287, %v3615
      %v3678 = vadd.f32 %v3288, %v3620
      %v3679 = vadd.f32 %v3289, %v3625
      %v3680 = vadd.f32 %v3290, %v3630
      %v3681 = vadd.f32 %v3291, %v3635
      %v3682 = vadd.f32 %v3292, %v3640
      %v3683 = vadd.f32 %v3293, %v3645
      %v3684 = vadd.f32 %v3294, %v3650
      %s3685 = scalar_lea.vmem [#allocation2], 48
      %v3686 = vld [vmem:[%s3685] sm:$0xff]
      %v3687 = vld [vmem:[%s3685 + $0x8] sm:$0xff]
      %v3688 = vld [vmem:[%s3685 + $0x18] sm:$0xff]
      %v3689 = vld [vmem:[%s3685 + $0x20] sm:$0xff]
      %v3690 = vld [vmem:[%s3685 + $0x30] sm:$0xff]
      %v3691 = vld [vmem:[%s3685 + $0x38] sm:$0xff]
      %v3692 = vld [vmem:[%s3685 + $0x48] sm:$0xff]
      %v3693 = vld [vmem:[%s3685 + $0x50] sm:$0xff]
      %v3694 = vld [vmem:[%s3685 + $0x60] sm:$0xff]
      %v3695 = vld [vmem:[%s3685 + $0x68] sm:$0xff]
      %v3696 = vld [vmem:[%s3685 + $0x78] sm:$0xff]
      %v3697 = vld [vmem:[%s3685 + $0x80] sm:$0xff]
      %v3698 = vld [vmem:[%s3685 + $0x90] sm:$0xff]
      %v3699 = vld [vmem:[%s3685 + $0x98] sm:$0xff]
      %v3700 = vld [vmem:[%s3685 + $0xa8] sm:$0xff]
      %v3701 = vld [vmem:[%s3685 + $0xb0] sm:$0xff]
      %v3702 = vld [vmem:[%s3685 + $0xc0] sm:$0xff]
      %v3703 = vld [vmem:[%s3685 + $0xc8] sm:$0xff]
      %v3704 = vld [vmem:[%s3685 + $0xd8] sm:$0xff]
      %v3705 = vld [vmem:[%s3685 + $0xe0] sm:$0xff]
      %v3706 = vld [vmem:[%s3685 + $0xf0] sm:$0xff]
      %v3707 = vld [vmem:[%s3685 + $0xf8] sm:$0xff]
      %v3708 = vld [vmem:[%s3685 + $0x108] sm:$0xff]
      %v3709 = vld [vmem:[%s3685 + $0x110] sm:$0xff]
      %v3710 = vld [vmem:[%s3685 + $0x120] sm:$0xff]
      %v3711 = vld [vmem:[%s3685 + $0x128] sm:$0xff]
      %v3712 = vld [vmem:[%s3685 + $0x138] sm:$0xff]
      %v3713 = vld [vmem:[%s3685 + $0x140] sm:$0xff]
      %v3714 = vld [vmem:[%s3685 + $0x150] sm:$0xff]
      %v3715 = vld [vmem:[%s3685 + $0x158] sm:$0xff]
      %v3716 = vld [vmem:[%s3685 + $0x168] sm:$0xff]
      %v3717 = vld [vmem:[%s3685 + $0x170] sm:$0xff]
      %s3718 = scalar_lea.vmem %s3, 192
      %v3719 = vld [vmem:[%s3718] sm:$0xff]
      %v3720 = vld [vmem:[%s3718 + $0x8] sm:$0xff]
      %v3721 = vld [vmem:[%s3718 + $0x10] sm:$0xff]
      %v3722 = vld [vmem:[%s3718 + $0x18] sm:$0xff]
      %v3724 = vsel %vm1354, %v3686, 0
      %v3727 = vsel %vm1354, %v3687, 0
      %v3730 = vsel %vm1354, %v3688, 0
      %v3733 = vsel %vm1354, %v3689, 0
      %v3736 = vsel %vm1354, %v3690, 0
      %v3739 = vsel %vm1354, %v3691, 0
      %v3742 = vsel %vm1354, %v3692, 0
      %v3745 = vsel %vm1354, %v3693, 0
      %v3748 = vsel %vm1354, %v3694, 0
      %v3751 = vsel %vm1354, %v3695, 0
      %v3754 = vsel %vm1354, %v3696, 0
      %v3757 = vsel %vm1354, %v3697, 0
      %v3760 = vsel %vm1354, %v3698, 0
      %v3763 = vsel %vm1354, %v3699, 0
      %v3766 = vsel %vm1354, %v3700, 0
      %v3769 = vsel %vm1354, %v3701, 0
      %v3772 = vsel %vm1354, %v3702, 0
      %v3775 = vsel %vm1354, %v3703, 0
      %v3778 = vsel %vm1354, %v3704, 0
      %v3781 = vsel %vm1354, %v3705, 0
      %v3784 = vsel %vm1354, %v3706, 0
      %v3787 = vsel %vm1354, %v3707, 0
      %v3790 = vsel %vm1354, %v3708, 0
      %v3793 = vsel %vm1354, %v3709, 0
      %v3796 = vsel %vm1354, %v3710, 0
      %v3799 = vsel %vm1354, %v3711, 0
      %v3802 = vsel %vm1354, %v3712, 0
      %v3805 = vsel %vm1354, %v3713, 0
      %v3808 = vsel %vm1354, %v3714, 0
      %v3811 = vsel %vm1354, %v3715, 0
      %v3814 = vsel %vm1354, %v3716, 0
      %v3817 = vsel %vm1354, %v3717, 0
      %3819 = vmatprep.subr.mxu0 0.0
      %3820 = vmatpush1.msra.mxu0 %v3719
      %3821 = vmatprep.subr.mxu0 0.0
      %3822 = vmatpush1.msra.mxu0 %v3720
      %3823 = vmatprep.subr.mxu0 0.0
      %3824 = vmatpush1.msra.mxu0 %v3721
      %3825 = vmatprep.subr.mxu0 0.0
      %3826 = vmatpush1.msra.mxu0 %v3722
      %3827 = vmatprep.subr.mxu0 0.0
      %3828 = vmatpush1.msra.mxu0 0.0
      %3829 = vmatprep.subr.mxu0 0.0
      %3830 = vmatpush1.msra.mxu0 0.0
      %3831 = vmatprep.subr.mxu0 0.0
      %3832 = vmatpush1.msra.mxu0 0.0
      %3833 = vmatprep.subr.mxu0 0.0
      %3834 = vmatpush1.msra.mxu0 0.0
      %3835 = vmatprep.subr.mxu0 0.0
      %3836 = vmatpush1.msra.mxu0 0.0
      %3837 = vmatprep.subr.mxu0 0.0
      %3838 = vmatpush1.msra.mxu0 0.0
      %3839 = vmatprep.subr.mxu0 0.0
      %3840 = vmatpush1.msra.mxu0 0.0
      %3841 = vmatprep.subr.mxu0 0.0
      %3842 = vmatpush1.msra.mxu0 0.0
      %3843 = vmatprep.subr.mxu0 0.0
      %3844 = vmatpush1.msra.mxu0 0.0
      %3845 = vmatprep.subr.mxu0 0.0
      %3846 = vmatpush1.msra.mxu0 0.0
      %3847 = vmatprep.subr.mxu0 0.0
      %3848 = vmatpush1.msra.mxu0 0.0
      %3849 = vmatprep.subr.mxu0 0.0
      %3850 = vmatpush1.msra.mxu0 0.0
      %3851 = vmatprep.subr.mxu0 0.0
      %3852 = vmatpush1.msra.mxu0 0.0
      %3853 = vmatprep.subr.mxu0 0.0
      %3854 = vmatpush1.msra.mxu0 0.0
      %3855 = vmatprep.subr.mxu0 0.0
      %3856 = vmatpush1.msra.mxu0 0.0
      %3857 = vmatprep.subr.mxu0 0.0
      %3858 = vmatpush1.msra.mxu0 0.0
      %3859 = vmatprep.subr.mxu0 0.0
      %3860 = vmatpush1.msra.mxu0 0.0
      %3861 = vmatprep.subr.mxu0 0.0
      %3862 = vmatpush1.msra.mxu0 0.0
      %3863 = vmatprep.subr.mxu0 0.0
      %3864 = vmatpush1.msra.mxu0 0.0
      %3865 = vmatprep.subr.mxu0 0.0
      %3866 = vmatpush1.msra.mxu0 0.0
      %3867 = vmatprep.subr.mxu0 0.0
      %3868 = vmatpush1.msra.mxu0 0.0
      %3869 = vmatprep.subr.mxu0 0.0
      %3870 = vmatpush1.msra.mxu0 0.0
      %3871 = vmatprep.subr.mxu0 0.0
      %3872 = vmatpush1.msra.mxu0 0.0
      %3873 = vmatprep.subr.mxu0 0.0
      %3874 = vmatpush1.msra.mxu0 0.0
      %3875 = vmatprep.subr.mxu0 0.0
      %3876 = vmatpush1.msra.mxu0 0.0
      %3877 = vmatprep.subr.mxu0 0.0
      %3878 = vmatpush1.msra.mxu0 0.0
      %3879 = vmatprep.subr.mxu0 0.0
      %3880 = vmatpush1.msra.mxu0 0.0
      %3881 = vmatprep.subr.mxu0 0.0
      %3882 = vmatpush1.msra.mxu0 0.0
      %3883 = vmatprep.mubr.f32.mxu0 0.0
      %3884 = vmatmul.mubr.f32.gmra.mrb[0].mxu0 %v3724
      %v3885 = vpop.f32.mrb[0].mxu0
      %v3886 = vadd.f32 0.0, %v3885
      %v3887 = vpop.f32.mrb[0].mxu0
      %3888 = vmatprep.mubr.f32.mxu0 0.0
      %3889 = vmatmul.mubr.f32.gmra.mrb[0].mxu0 %v3727
      %v3890 = vpop.f32.mrb[0].mxu0
      %v3891 = vadd.f32 0.0, %v3890
      %v3892 = vpop.f32.mrb[0].mxu0
      %3893 = vmatprep.mubr.f32.mxu0 0.0
      %3894 = vmatmul.mubr.f32.gmra.mrb[0].mxu0 %v3730
      %v3895 = vpop.f32.mrb[0].mxu0
      %v3896 = vadd.f32 0.0, %v3895
      %v3897 = vpop.f32.mrb[0].mxu0
      %3898 = vmatprep.mubr.f32.mxu0 0.0
      %3899 = vmatmul.mubr.f32.gmra.mrb[0].mxu0 %v3733
      %v3900 = vpop.f32.mrb[0].mxu0
      %v3901 = vadd.f32 0.0, %v3900
      %v3902 = vpop.f32.mrb[0].mxu0
      %3903 = vmatprep.mubr.f32.mxu0 0.0
      %3904 = vmatmul.mubr.f32.gmra.mrb[0].mxu0 %v3736
      %v3905 = vpop.f32.mrb[0].mxu0
      %v3906 = vadd.f32 0.0, %v3905
      %v3907 = vpop.f32.mrb[0].mxu0
      %3908 = vmatprep.mubr.f32.mxu0 0.0
      %3909 = vmatmul.mubr.f32.gmra.mrb[0].mxu0 %v3739
      %v3910 = vpop.f32.mrb[0].mxu0
      %v3911 = vadd.f32 0.0, %v3910
      %v3912 = vpop.f32.mrb[0].mxu0
      %3913 = vmatprep.mubr.f32.mxu0 0.0
      %3914 = vmatmul.mubr.f32.gmra.mrb[0].mxu0 %v3742
      %v3915 = vpop.f32.mrb[0].mxu0
      %v3916 = vadd.f32 0.0, %v3915
      %v3917 = vpop.f32.mrb[0].mxu0
      %3918 = vmatprep.mubr.f32.mxu0 0.0
      %3919 = vmatmul.mubr.f32.gmra.mrb[0].mxu0 %v3745
      %v3920 = vpop.f32.mrb[0].mxu0
      %v3921 = vadd.f32 0.0, %v3920
      %v3922 = vpop.f32.mrb[0].mxu0
      %3923 = vmatprep.mubr.f32.mxu0 0.0
      %3924 = vmatmul.mubr.f32.gmra.mrb[0].mxu0 %v3748
      %v3925 = vpop.f32.mrb[0].mxu0
      %v3926 = vadd.f32 0.0, %v3925
      %v3927 = vpop.f32.mrb[0].mxu0
      %3928 = vmatprep.mubr.f32.mxu0 0.0
      %3929 = vmatmul.mubr.f32.gmra.mrb[0].mxu0 %v3751
      %v3930 = vpop.f32.mrb[0].mxu0
      %v3931 = vadd.f32 0.0, %v3930
      %v3932 = vpop.f32.mrb[0].mxu0
      %3933 = vmatprep.mubr.f32.mxu0 0.0
      %3934 = vmatmul.mubr.f32.gmra.mrb[0].mxu0 %v3754
      %v3935 = vpop.f32.mrb[0].mxu0
      %v3936 = vadd.f32 0.0, %v3935
      %v3937 = vpop.f32.mrb[0].mxu0
      %3938 = vmatprep.mubr.f32.mxu0 0.0
      %3939 = vmatmul.mubr.f32.gmra.mrb[0].mxu0 %v3757
      %v3940 = vpop.f32.mrb[0].mxu0
      %v3941 = vadd.f32 0.0, %v3940
      %v3942 = vpop.f32.mrb[0].mxu0
      %3943 = vmatprep.mubr.f32.mxu0 0.0
      %3944 = vmatmul.mubr.f32.gmra.mrb[0].mxu0 %v3760
      %v3945 = vpop.f32.mrb[0].mxu0
      %v3946 = vadd.f32 0.0, %v3945
      %v3947 = vpop.f32.mrb[0].mxu0
      %3948 = vmatprep.mubr.f32.mxu0 0.0
      %3949 = vmatmul.mubr.f32.gmra.mrb[0].mxu0 %v3763
      %v3950 = vpop.f32.mrb[0].mxu0
      %v3951 = vadd.f32 0.0, %v3950
      %v3952 = vpop.f32.mrb[0].mxu0
      %3953 = vmatprep.mubr.f32.mxu0 0.0
      %3954 = vmatmul.mubr.f32.gmra.mrb[0].mxu0 %v3766
      %v3955 = vpop.f32.mrb[0].mxu0
      %v3956 = vadd.f32 0.0, %v3955
      %v3957 = vpop.f32.mrb[0].mxu0
      %3958 = vmatprep.mubr.f32.mxu0 0.0
      %3959 = vmatmul.mubr.f32.gmra.mrb[0].mxu0 %v3769
      %v3960 = vpop.f32.mrb[0].mxu0
      %v3961 = vadd.f32 0.0, %v3960
      %v3962 = vpop.f32.mrb[0].mxu0
      %3963 = vmatprep.mubr.f32.mxu0 0.0
      %3964 = vmatmul.mubr.f32.gmra.mrb[0].mxu0 %v3772
      %v3965 = vpop.f32.mrb[0].mxu0
      %v3966 = vadd.f32 0.0, %v3965
      %v3967 = vpop.f32.mrb[0].mxu0
      %3968 = vmatprep.mubr.f32.mxu0 0.0
      %3969 = vmatmul.mubr.f32.gmra.mrb[0].mxu0 %v3775
      %v3970 = vpop.f32.mrb[0].mxu0
      %v3971 = vadd.f32 0.0, %v3970
      %v3972 = vpop.f32.mrb[0].mxu0
      %3973 = vmatprep.mubr.f32.mxu0 0.0
      %3974 = vmatmul.mubr.f32.gmra.mrb[0].mxu0 %v3778
      %v3975 = vpop.f32.mrb[0].mxu0
      %v3976 = vadd.f32 0.0, %v3975
      %v3977 = vpop.f32.mrb[0].mxu0
      %3978 = vmatprep.mubr.f32.mxu0 0.0
      %3979 = vmatmul.mubr.f32.gmra.mrb[0].mxu0 %v3781
      %v3980 = vpop.f32.mrb[0].mxu0
      %v3981 = vadd.f32 0.0, %v3980
      %v3982 = vpop.f32.mrb[0].mxu0
      %3983 = vmatprep.mubr.f32.mxu0 0.0
      %3984 = vmatmul.mubr.f32.gmra.mrb[0].mxu0 %v3784
      %v3985 = vpop.f32.mrb[0].mxu0
      %v3986 = vadd.f32 0.0, %v3985
      %v3987 = vpop.f32.mrb[0].mxu0
      %3988 = vmatprep.mubr.f32.mxu0 0.0
      %3989 = vmatmul.mubr.f32.gmra.mrb[0].mxu0 %v3787
      %v3990 = vpop.f32.mrb[0].mxu0
      %v3991 = vadd.f32 0.0, %v3990
      %v3992 = vpop.f32.mrb[0].mxu0
      %3993 = vmatprep.mubr.f32.mxu0 0.0
      %3994 = vmatmul.mubr.f32.gmra.mrb[0].mxu0 %v3790
      %v3995 = vpop.f32.mrb[0].mxu0
      %v3996 = vadd.f32 0.0, %v3995
      %v3997 = vpop.f32.mrb[0].mxu0
      %3998 = vmatprep.mubr.f32.mxu0 0.0
      %3999 = vmatmul.mubr.f32.gmra.mrb[0].mxu0 %v3793
      %v4000 = vpop.f32.mrb[0].mxu0
      %v4001 = vadd.f32 0.0, %v4000
      %v4002 = vpop.f32.mrb[0].mxu0
      %4003 = vmatprep.mubr.f32.mxu0 0.0
      %4004 = vmatmul.mubr.f32.gmra.mrb[0].mxu0 %v3796
      %v4005 = vpop.f32.mrb[0].mxu0
      %v4006 = vadd.f32 0.0, %v4005
      %v4007 = vpop.f32.mrb[0].mxu0
      %4008 = vmatprep.mubr.f32.mxu0 0.0
      %4009 = vmatmul.mubr.f32.gmra.mrb[0].mxu0 %v3799
      %v4010 = vpop.f32.mrb[0].mxu0
      %v4011 = vadd.f32 0.0, %v4010
      %v4012 = vpop.f32.mrb[0].mxu0
      %4013 = vmatprep.mubr.f32.mxu0 0.0
      %4014 = vmatmul.mubr.f32.gmra.mrb[0].mxu0 %v3802
      %v4015 = vpop.f32.mrb[0].mxu0
      %v4016 = vadd.f32 0.0, %v4015
      %v4017 = vpop.f32.mrb[0].mxu0
      %4018 = vmatprep.mubr.f32.mxu0 0.0
      %4019 = vmatmul.mubr.f32.gmra.mrb[0].mxu0 %v3805
      %v4020 = vpop.f32.mrb[0].mxu0
      %v4021 = vadd.f32 0.0, %v4020
      %v4022 = vpop.f32.mrb[0].mxu0
      %4023 = vmatprep.mubr.f32.mxu0 0.0
      %4024 = vmatmul.mubr.f32.gmra.mrb[0].mxu0 %v3808
      %v4025 = vpop.f32.mrb[0].mxu0
      %v4026 = vadd.f32 0.0, %v4025
      %v4027 = vpop.f32.mrb[0].mxu0
      %4028 = vmatprep.mubr.f32.mxu0 0.0
      %4029 = vmatmul.mubr.f32.gmra.mrb[0].mxu0 %v3811
      %v4030 = vpop.f32.mrb[0].mxu0
      %v4031 = vadd.f32 0.0, %v4030
      %v4032 = vpop.f32.mrb[0].mxu0
      %4033 = vmatprep.mubr.f32.mxu0 0.0
      %4034 = vmatmul.mubr.f32.gmra.mrb[0].mxu0 %v3814
      %v4035 = vpop.f32.mrb[0].mxu0
      %v4036 = vadd.f32 0.0, %v4035
      %v4037 = vpop.f32.mrb[0].mxu0
      %4038 = vmatprep.mubr.f32.mxu0 0.0
      %4039 = vmatmul.mubr.f32.gmra.mrb[0].mxu0 %v3817
      %v4040 = vpop.f32.mrb[0].mxu0
      %v4041 = vadd.f32 0.0, %v4040
      %v4042 = vpop.f32.mrb[0].mxu0
      %4043 = vdwg.mxu0
      %v4044 = vadd.f32 %v3653, %v3886
      %v4045 = vadd.f32 %v3654, %v3891
      %v4046 = vadd.f32 %v3655, %v3896
      %v4047 = vadd.f32 %v3656, %v3901
      %v4048 = vadd.f32 %v3657, %v3906
      %v4049 = vadd.f32 %v3658, %v3911
      %v4050 = vadd.f32 %v3659, %v3916
      %v4051 = vadd.f32 %v3660, %v3921
      %v4052 = vadd.f32 %v3661, %v3926
      %v4053 = vadd.f32 %v3662, %v3931
      %v4054 = vadd.f32 %v3663, %v3936
      %v4055 = vadd.f32 %v3664, %v3941
      %v4056 = vadd.f32 %v3665, %v3946
      %v4057 = vadd.f32 %v3666, %v3951
      %v4058 = vadd.f32 %v3667, %v3956
      %v4059 = vadd.f32 %v3668, %v3961
      %v4060 = vadd.f32 %v3669, %v3966
      %v4061 = vadd.f32 %v3670, %v3971
      %v4062 = vadd.f32 %v3671, %v3976
      %v4063 = vadd.f32 %v3672, %v3981
      %v4064 = vadd.f32 %v3673, %v3986
      %v4065 = vadd.f32 %v3674, %v3991
      %v4066 = vadd.f32 %v3675, %v3996
      %v4067 = vadd.f32 %v3676, %v4001
      %v4068 = vadd.f32 %v3677, %v4006
      %v4069 = vadd.f32 %v3678, %v4011
      %v4070 = vadd.f32 %v3679, %v4016
      %v4071 = vadd.f32 %v3680, %v4021
      %v4072 = vadd.f32 %v3681, %v4026
      %v4073 = vadd.f32 %v3682, %v4031
      %v4074 = vadd.f32 %v3683, %v4036
      %v4075 = vadd.f32 %v3684, %v4041
      %v4076 = vld [vmem:[%s3685 + $0x1] sm:$0xff]
      %v4077 = vld [vmem:[%s3685 + $0x9] sm:$0xff]
      %v4078 = vld [vmem:[%s3685 + $0x19] sm:$0xff]
      %v4079 = vld [vmem:[%s3685 + $0x21] sm:$0xff]
      %v4080 = vld [vmem:[%s3685 + $0x31] sm:$0xff]
      %v4081 = vld [vmem:[%s3685 + $0x39] sm:$0xff]
      %v4082 = vld [vmem:[%s3685 + $0x49] sm:$0xff]
      %v4083 = vld [vmem:[%s3685 + $0x51] sm:$0xff]
      %v4084 = vld [vmem:[%s3685 + $0x61] sm:$0xff]
      %v4085 = vld [vmem:[%s3685 + $0x69] sm:$0xff]
      %v4086 = vld [vmem:[%s3685 + $0x79] sm:$0xff]
      %v4087 = vld [vmem:[%s3685 + $0x81] sm:$0xff]
      %v4088 = vld [vmem:[%s3685 + $0x91] sm:$0xff]
      %v4089 = vld [vmem:[%s3685 + $0x99] sm:$0xff]
      %v4090 = vld [vmem:[%s3685 + $0xa9] sm:$0xff]
      %v4091 = vld [vmem:[%s3685 + $0xb1] sm:$0xff]
      %v4092 = vld [vmem:[%s3685 + $0xc1] sm:$0xff]
      %v4093 = vld [vmem:[%s3685 + $0xc9] sm:$0xff]
      %v4094 = vld [vmem:[%s3685 + $0xd9] sm:$0xff]
      %v4095 = vld [vmem:[%s3685 + $0xe1] sm:$0xff]
      %v4096 = vld [vmem:[%s3685 + $0xf1] sm:$0xff]
      %v4097 = vld [vmem:[%s3685 + $0xf9] sm:$0xff]
      %v4098 = vld [vmem:[%s3685 + $0x109] sm:$0xff]
      %v4099 = vld [vmem:[%s3685 + $0x111] sm:$0xff]
      %v4100 = vld [vmem:[%s3685 + $0x121] sm:$0xff]
      %v4101 = vld [vmem:[%s3685 + $0x129] sm:$0xff]
      %v4102 = vld [vmem:[%s3685 + $0x139] sm:$0xff]
      %v4103 = vld [vmem:[%s3685 + $0x141] sm:$0xff]
      %v4104 = vld [vmem:[%s3685 + $0x151] sm:$0xff]
      %v4105 = vld [vmem:[%s3685 + $0x159] sm:$0xff]
      %v4106 = vld [vmem:[%s3685 + $0x169] sm:$0xff]
      %v4107 = vld [vmem:[%s3685 + $0x171] sm:$0xff]
      %s4108 = scalar_lea.vmem %s3, 224
      %v4109 = vld [vmem:[%s4108] sm:$0xff]
      %v4110 = vld [vmem:[%s4108 + $0x8] sm:$0xff]
      %v4111 = vld [vmem:[%s4108 + $0x10] sm:$0xff]
      %v4112 = vld [vmem:[%s4108 + $0x18] sm:$0xff]
      %v4114 = vsel %vm1354, %v4076, 0
      %v4117 = vsel %vm1354, %v4077, 0
      %v4120 = vsel %vm1354, %v4078, 0
      %v4123 = vsel %vm1354, %v4079, 0
      %v4126 = vsel %vm1354, %v4080, 0
      %v4129 = vsel %vm1354, %v4081, 0
      %v4132 = vsel %vm1354, %v4082, 0
      %v4135 = vsel %vm1354, %v4083, 0
      %v4138 = vsel %vm1354, %v4084, 0
      %v4141 = vsel %vm1354, %v4085, 0
      %v4144 = vsel %vm1354, %v4086, 0
      %v4147 = vsel %vm1354, %v4087, 0
      %v4150 = vsel %vm1354, %v4088, 0
      %v4153 = vsel %vm1354, %v4089, 0
      %v4156 = vsel %vm1354, %v4090, 0
      %v4159 = vsel %vm1354, %v4091, 0
      %v4162 = vsel %vm1354, %v4092, 0
      %v4165 = vsel %vm1354, %v4093, 0
      %v4168 = vsel %vm1354, %v4094, 0
      %v4171 = vsel %vm1354, %v4095, 0
      %v4174 = vsel %vm1354, %v4096, 0
      %v4177 = vsel %vm1354, %v4097, 0
      %v4180 = vsel %vm1354, %v4098, 0
      %v4183 = vsel %vm1354, %v4099, 0
      %v4186 = vsel %vm1354, %v4100, 0
      %v4189 = vsel %vm1354, %v4101, 0
      %v4192 = vsel %vm1354, %v4102, 0
      %v4195 = vsel %vm1354, %v4103, 0
      %v4198 = vsel %vm1354, %v4104, 0
      %v4201 = vsel %vm1354, %v4105, 0
      %v4204 = vsel %vm1354, %v4106, 0
      %v4207 = vsel %vm1354, %v4107, 0
      %4209 = vmatprep.subr.mxu0 0.0
      %4210 = vmatpush1.msra.mxu0 %v4109
      %4211 = vmatprep.subr.mxu0 0.0
      %4212 = vmatpush1.msra.mxu0 %v4110
      %4213 = vmatprep.subr.mxu0 0.0
      %4214 = vmatpush1.msra.mxu0 %v4111
      %4215 = vmatprep.subr.mxu0 0.0
      %4216 = vmatpush1.msra.mxu0 %v4112
      %4217 = vmatprep.subr.mxu0 0.0
      %4218 = vmatpush1.msra.mxu0 0.0
      %4219 = vmatprep.subr.mxu0 0.0
      %4220 = vmatpush1.msra.mxu0 0.0
      %4221 = vmatprep.subr.mxu0 0.0
      %4222 = vmatpush1.msra.mxu0 0.0
      %4223 = vmatprep.subr.mxu0 0.0
      %4224 = vmatpush1.msra.mxu0 0.0
      %4225 = vmatprep.subr.mxu0 0.0
      %4226 = vmatpush1.msra.mxu0 0.0
      %4227 = vmatprep.subr.mxu0 0.0
      %4228 = vmatpush1.msra.mxu0 0.0
      %4229 = vmatprep.subr.mxu0 0.0
      %4230 = vmatpush1.msra.mxu0 0.0
      %4231 = vmatprep.subr.mxu0 0.0
      %4232 = vmatpush1.msra.mxu0 0.0
      %4233 = vmatprep.subr.mxu0 0.0
      %4234 = vmatpush1.msra.mxu0 0.0
      %4235 = vmatprep.subr.mxu0 0.0
      %4236 = vmatpush1.msra.mxu0 0.0
      %4237 = vmatprep.subr.mxu0 0.0
      %4238 = vmatpush1.msra.mxu0 0.0
      %4239 = vmatprep.subr.mxu0 0.0
      %4240 = vmatpush1.msra.mxu0 0.0
      %4241 = vmatprep.subr.mxu0 0.0
      %4242 = vmatpush1.msra.mxu0 0.0
      %4243 = vmatprep.subr.mxu0 0.0
      %4244 = vmatpush1.msra.mxu0 0.0
      %4245 = vmatprep.subr.mxu0 0.0
      %4246 = vmatpush1.msra.mxu0 0.0
      %4247 = vmatprep.subr.mxu0 0.0
      %4248 = vmatpush1.msra.mxu0 0.0
      %4249 = vmatprep.subr.mxu0 0.0
      %4250 = vmatpush1.msra.mxu0 0.0
      %4251 = vmatprep.subr.mxu0 0.0
      %4252 = vmatpush1.msra.mxu0 0.0
      %4253 = vmatprep.subr.mxu0 0.0
      %4254 = vmatpush1.msra.mxu0 0.0
      %4255 = vmatprep.subr.mxu0 0.0
      %4256 = vmatpush1.msra.mxu0 0.0
      %4257 = vmatprep.subr.mxu0 0.0
      %4258 = vmatpush1.msra.mxu0 0.0
      %4259 = vmatprep.subr.mxu0 0.0
      %4260 = vmatpush1.msra.mxu0 0.0
      %4261 = vmatprep.subr.mxu0 0.0
      %4262 = vmatpush1.msra.mxu0 0.0
      %4263 = vmatprep.subr.mxu0 0.0
      %4264 = vmatpush1.msra.mxu0 0.0
      %4265 = vmatprep.subr.mxu0 0.0
      %4266 = vmatpush1.msra.mxu0 0.0
      %4267 = vmatprep.subr.mxu0 0.0
      %4268 = vmatpush1.msra.mxu0 0.0
      %4269 = vmatprep.subr.mxu0 0.0
      %4270 = vmatpush1.msra.mxu0 0.0
      %4271 = vmatprep.subr.mxu0 0.0
      %4272 = vmatpush1.msra.mxu0 0.0
      %4273 = vmatprep.mubr.f32.mxu0 0.0
      %4274 = vmatmul.mubr.f32.gmra.mrb[0].mxu0 %v4114
      %v4275 = vpop.f32.mrb[0].mxu0
      %v4276 = vadd.f32 0.0, %v4275
      %v4277 = vpop.f32.mrb[0].mxu0
      %4278 = vmatprep.mubr.f32.mxu0 0.0
      %4279 = vmatmul.mubr.f32.gmra.mrb[0].mxu0 %v4117
      %v4280 = vpop.f32.mrb[0].mxu0
      %v4281 = vadd.f32 0.0, %v4280
      %v4282 = vpop.f32.mrb[0].mxu0
      %4283 = vmatprep.mubr.f32.mxu0 0.0
      %4284 = vmatmul.mubr.f32.gmra.mrb[0].mxu0 %v4120
      %v4285 = vpop.f32.mrb[0].mxu0
      %v4286 = vadd.f32 0.0, %v4285
      %v4287 = vpop.f32.mrb[0].mxu0
      %4288 = vmatprep.mubr.f32.mxu0 0.0
      %4289 = vmatmul.mubr.f32.gmra.mrb[0].mxu0 %v4123
      %v4290 = vpop.f32.mrb[0].mxu0
      %v4291 = vadd.f32 0.0, %v4290
      %v4292 = vpop.f32.mrb[0].mxu0
      %4293 = vmatprep.mubr.f32.mxu0 0.0
      %4294 = vmatmul.mubr.f32.gmra.mrb[0].mxu0 %v4126
      %v4295 = vpop.f32.mrb[0].mxu0
      %v4296 = vadd.f32 0.0, %v4295
      %v4297 = vpop.f32.mrb[0].mxu0
      %4298 = vmatprep.mubr.f32.mxu0 0.0
      %4299 = vmatmul.mubr.f32.gmra.mrb[0].mxu0 %v4129
      %v4300 = vpop.f32.mrb[0].mxu0
      %v4301 = vadd.f32 0.0, %v4300
      %v4302 = vpop.f32.mrb[0].mxu0
      %4303 = vmatprep.mubr.f32.mxu0 0.0
      %4304 = vmatmul.mubr.f32.gmra.mrb[0].mxu0 %v4132
      %v4305 = vpop.f32.mrb[0].mxu0
      %v4306 = vadd.f32 0.0, %v4305
      %v4307 = vpop.f32.mrb[0].mxu0
      %4308 = vmatprep.mubr.f32.mxu0 0.0
      %4309 = vmatmul.mubr.f32.gmra.mrb[0].mxu0 %v4135
      %v4310 = vpop.f32.mrb[0].mxu0
      %v4311 = vadd.f32 0.0, %v4310
      %v4312 = vpop.f32.mrb[0].mxu0
      %4313 = vmatprep.mubr.f32.mxu0 0.0
      %4314 = vmatmul.mubr.f32.gmra.mrb[0].mxu0 %v4138
      %v4315 = vpop.f32.mrb[0].mxu0
      %v4316 = vadd.f32 0.0, %v4315
      %v4317 = vpop.f32.mrb[0].mxu0
      %4318 = vmatprep.mubr.f32.mxu0 0.0
      %4319 = vmatmul.mubr.f32.gmra.mrb[0].mxu0 %v4141
      %v4320 = vpop.f32.mrb[0].mxu0
      %v4321 = vadd.f32 0.0, %v4320
      %v4322 = vpop.f32.mrb[0].mxu0
      %4323 = vmatprep.mubr.f32.mxu0 0.0
      %4324 = vmatmul.mubr.f32.gmra.mrb[0].mxu0 %v4144
      %v4325 = vpop.f32.mrb[0].mxu0
      %v4326 = vadd.f32 0.0, %v4325
      %v4327 = vpop.f32.mrb[0].mxu0
      %4328 = vmatprep.mubr.f32.mxu0 0.0
      %4329 = vmatmul.mubr.f32.gmra.mrb[0].mxu0 %v4147
      %v4330 = vpop.f32.mrb[0].mxu0
      %v4331 = vadd.f32 0.0, %v4330
      %v4332 = vpop.f32.mrb[0].mxu0
      %4333 = vmatprep.mubr.f32.mxu0 0.0
      %4334 = vmatmul.mubr.f32.gmra.mrb[0].mxu0 %v4150
      %v4335 = vpop.f32.mrb[0].mxu0
      %v4336 = vadd.f32 0.0, %v4335
      %v4337 = vpop.f32.mrb[0].mxu0
      %4338 = vmatprep.mubr.f32.mxu0 0.0
      %4339 = vmatmul.mubr.f32.gmra.mrb[0].mxu0 %v4153
      %v4340 = vpop.f32.mrb[0].mxu0
      %v4341 = vadd.f32 0.0, %v4340
      %v4342 = vpop.f32.mrb[0].mxu0
      %4343 = vmatprep.mubr.f32.mxu0 0.0
      %4344 = vmatmul.mubr.f32.gmra.mrb[0].mxu0 %v4156
      %v4345 = vpop.f32.mrb[0].mxu0
      %v4346 = vadd.f32 0.0, %v4345
      %v4347 = vpop.f32.mrb[0].mxu0
      %4348 = vmatprep.mubr.f32.mxu0 0.0
      %4349 = vmatmul.mubr.f32.gmra.mrb[0].mxu0 %v4159
      %v4350 = vpop.f32.mrb[0].mxu0
      %v4351 = vadd.f32 0.0, %v4350
      %v4352 = vpop.f32.mrb[0].mxu0
      %4353 = vmatprep.mubr.f32.mxu0 0.0
      %4354 = vmatmul.mubr.f32.gmra.mrb[0].mxu0 %v4162
      %v4355 = vpop.f32.mrb[0].mxu0
      %v4356 = vadd.f32 0.0, %v4355
      %v4357 = vpop.f32.mrb[0].mxu0
      %4358 = vmatprep.mubr.f32.mxu0 0.0
      %4359 = vmatmul.mubr.f32.gmra.mrb[0].mxu0 %v4165
      %v4360 = vpop.f32.mrb[0].mxu0
      %v4361 = vadd.f32 0.0, %v4360
      %v4362 = vpop.f32.mrb[0].mxu0
      %4363 = vmatprep.mubr.f32.mxu0 0.0
      %4364 = vmatmul.mubr.f32.gmra.mrb[0].mxu0 %v4168
      %v4365 = vpop.f32.mrb[0].mxu0
      %v4366 = vadd.f32 0.0, %v4365
      %v4367 = vpop.f32.mrb[0].mxu0
      %4368 = vmatprep.mubr.f32.mxu0 0.0
      %4369 = vmatmul.mubr.f32.gmra.mrb[0].mxu0 %v4171
      %v4370 = vpop.f32.mrb[0].mxu0
      %v4371 = vadd.f32 0.0, %v4370
      %v4372 = vpop.f32.mrb[0].mxu0
      %4373 = vmatprep.mubr.f32.mxu0 0.0
      %4374 = vmatmul.mubr.f32.gmra.mrb[0].mxu0 %v4174
      %v4375 = vpop.f32.mrb[0].mxu0
      %v4376 = vadd.f32 0.0, %v4375
      %v4377 = vpop.f32.mrb[0].mxu0
      %4378 = vmatprep.mubr.f32.mxu0 0.0
      %4379 = vmatmul.mubr.f32.gmra.mrb[0].mxu0 %v4177
      %v4380 = vpop.f32.mrb[0].mxu0
      %v4381 = vadd.f32 0.0, %v4380
      %v4382 = vpop.f32.mrb[0].mxu0
      %4383 = vmatprep.mubr.f32.mxu0 0.0
      %4384 = vmatmul.mubr.f32.gmra.mrb[0].mxu0 %v4180
      %v4385 = vpop.f32.mrb[0].mxu0
      %v4386 = vadd.f32 0.0, %v4385
      %v4387 = vpop.f32.mrb[0].mxu0
      %4388 = vmatprep.mubr.f32.mxu0 0.0
      %4389 = vmatmul.mubr.f32.gmra.mrb[0].mxu0 %v4183
      %v4390 = vpop.f32.mrb[0].mxu0
      %v4391 = vadd.f32 0.0, %v4390
      %v4392 = vpop.f32.mrb[0].mxu0
      %4393 = vmatprep.mubr.f32.mxu0 0.0
      %4394 = vmatmul.mubr.f32.gmra.mrb[0].mxu0 %v4186
      %v4395 = vpop.f32.mrb[0].mxu0
      %v4396 = vadd.f32 0.0, %v4395
      %v4397 = vpop.f32.mrb[0].mxu0
      %4398 = vmatprep.mubr.f32.mxu0 0.0
      %4399 = vmatmul.mubr.f32.gmra.mrb[0].mxu0 %v4189
      %v4400 = vpop.f32.mrb[0].mxu0
      %v4401 = vadd.f32 0.0, %v4400
      %v4402 = vpop.f32.mrb[0].mxu0
      %4403 = vmatprep.mubr.f32.mxu0 0.0
      %4404 = vmatmul.mubr.f32.gmra.mrb[0].mxu0 %v4192
      %v4405 = vpop.f32.mrb[0].mxu0
      %v4406 = vadd.f32 0.0, %v4405
      %v4407 = vpop.f32.mrb[0].mxu0
      %4408 = vmatprep.mubr.f32.mxu0 0.0
      %4409 = vmatmul.mubr.f32.gmra.mrb[0].mxu0 %v4195
      %v4410 = vpop.f32.mrb[0].mxu0
      %v4411 = vadd.f32 0.0, %v4410
      %v4412 = vpop.f32.mrb[0].mxu0
      %4413 = vmatprep.mubr.f32.mxu0 0.0
      %4414 = vmatmul.mubr.f32.gmra.mrb[0].mxu0 %v4198
      %v4415 = vpop.f32.mrb[0].mxu0
      %v4416 = vadd.f32 0.0, %v4415
      %v4417 = vpop.f32.mrb[0].mxu0
      %4418 = vmatprep.mubr.f32.mxu0 0.0
      %4419 = vmatmul.mubr.f32.gmra.mrb[0].mxu0 %v4201
      %v4420 = vpop.f32.mrb[0].mxu0
      %v4421 = vadd.f32 0.0, %v4420
      %v4422 = vpop.f32.mrb[0].mxu0
      %4423 = vmatprep.mubr.f32.mxu0 0.0
      %4424 = vmatmul.mubr.f32.gmra.mrb[0].mxu0 %v4204
      %v4425 = vpop.f32.mrb[0].mxu0
      %v4426 = vadd.f32 0.0, %v4425
      %v4427 = vpop.f32.mrb[0].mxu0
      %4428 = vmatprep.mubr.f32.mxu0 0.0
      %4429 = vmatmul.mubr.f32.gmra.mrb[0].mxu0 %v4207
      %v4430 = vpop.f32.mrb[0].mxu0
      %v4431 = vadd.f32 0.0, %v4430
      %v4432 = vpop.f32.mrb[0].mxu0
      %4433 = vdwg.mxu0
      %v4434 = vadd.f32 %v4044, %v4276
      %v4435 = vadd.f32 %v4045, %v4281
      %v4436 = vadd.f32 %v4046, %v4286
      %v4437 = vadd.f32 %v4047, %v4291
      %v4438 = vadd.f32 %v4048, %v4296
      %v4439 = vadd.f32 %v4049, %v4301
      %v4440 = vadd.f32 %v4050, %v4306
      %v4441 = vadd.f32 %v4051, %v4311
      %v4442 = vadd.f32 %v4052, %v4316
      %v4443 = vadd.f32 %v4053, %v4321
      %v4444 = vadd.f32 %v4054, %v4326
      %v4445 = vadd.f32 %v4055, %v4331
      %v4446 = vadd.f32 %v4056, %v4336
      %v4447 = vadd.f32 %v4057, %v4341
      %v4448 = vadd.f32 %v4058, %v4346
      %v4449 = vadd.f32 %v4059, %v4351
      %v4450 = vadd.f32 %v4060, %v4356
      %v4451 = vadd.f32 %v4061, %v4361
      %v4452 = vadd.f32 %v4062, %v4366
      %v4453 = vadd.f32 %v4063, %v4371
      %v4454 = vadd.f32 %v4064, %v4376
      %v4455 = vadd.f32 %v4065, %v4381
      %v4456 = vadd.f32 %v4066, %v4386
      %v4457 = vadd.f32 %v4067, %v4391
      %v4458 = vadd.f32 %v4068, %v4396
      %v4459 = vadd.f32 %v4069, %v4401
      %v4460 = vadd.f32 %v4070, %v4406
      %v4461 = vadd.f32 %v4071, %v4411
      %v4462 = vadd.f32 %v4072, %v4416
      %v4463 = vadd.f32 %v4073, %v4421
      %v4464 = vadd.f32 %v4074, %v4426
      %v4465 = vadd.f32 %v4075, %v4431
      %v4466 = vld [vmem:[%s3685 + $0x2] sm:$0xff]
      %v4467 = vld [vmem:[%s3685 + $0xa] sm:$0xff]
      %v4468 = vld [vmem:[%s3685 + $0x1a] sm:$0xff]
      %v4469 = vld [vmem:[%s3685 + $0x22] sm:$0xff]
      %v4470 = vld [vmem:[%s3685 + $0x32] sm:$0xff]
      %v4471 = vld [vmem:[%s3685 + $0x3a] sm:$0xff]
      %v4472 = vld [vmem:[%s3685 + $0x4a] sm:$0xff]
      %v4473 = vld [vmem:[%s3685 + $0x52] sm:$0xff]
      %v4474 = vld [vmem:[%s3685 + $0x62] sm:$0xff]
      %v4475 = vld [vmem:[%s3685 + $0x6a] sm:$0xff]
      %v4476 = vld [vmem:[%s3685 + $0x7a] sm:$0xff]
      %v4477 = vld [vmem:[%s3685 + $0x82] sm:$0xff]
      %v4478 = vld [vmem:[%s3685 + $0x92] sm:$0xff]
      %v4479 = vld [vmem:[%s3685 + $0x9a] sm:$0xff]
      %v4480 = vld [vmem:[%s3685 + $0xaa] sm:$0xff]
      %v4481 = vld [vmem:[%s3685 + $0xb2] sm:$0xff]
      %v4482 = vld [vmem:[%s3685 + $0xc2] sm:$0xff]
      %v4483 = vld [vmem:[%s3685 + $0xca] sm:$0xff]
      %v4484 = vld [vmem:[%s3685 + $0xda] sm:$0xff]
      %v4485 = vld [vmem:[%s3685 + $0xe2] sm:$0xff]
      %v4486 = vld [vmem:[%s3685 + $0xf2] sm:$0xff]
      %v4487 = vld [vmem:[%s3685 + $0xfa] sm:$0xff]
      %v4488 = vld [vmem:[%s3685 + $0x10a] sm:$0xff]
      %v4489 = vld [vmem:[%s3685 + $0x112] sm:$0xff]
      %v4490 = vld [vmem:[%s3685 + $0x122] sm:$0xff]
      %v4491 = vld [vmem:[%s3685 + $0x12a] sm:$0xff]
      %v4492 = vld [vmem:[%s3685 + $0x13a] sm:$0xff]
      %v4493 = vld [vmem:[%s3685 + $0x142] sm:$0xff]
      %v4494 = vld [vmem:[%s3685 + $0x152] sm:$0xff]
      %v4495 = vld [vmem:[%s3685 + $0x15a] sm:$0xff]
      %v4496 = vld [vmem:[%s3685 + $0x16a] sm:$0xff]
      %v4497 = vld [vmem:[%s3685 + $0x172] sm:$0xff]
      %s4498 = scalar_lea.vmem %s3, 256
      %v4499 = vld [vmem:[%s4498] sm:$0xff]
      %v4500 = vld [vmem:[%s4498 + $0x8] sm:$0xff]
      %v4501 = vld [vmem:[%s4498 + $0x10] sm:$0xff]
      %v4502 = vld [vmem:[%s4498 + $0x18] sm:$0xff]
      %v4504 = vsel %vm1354, %v4466, 0
      %v4507 = vsel %vm1354, %v4467, 0
      %v4510 = vsel %vm1354, %v4468, 0
      %v4513 = vsel %vm1354, %v4469, 0
      %v4516 = vsel %vm1354, %v4470, 0
      %v4519 = vsel %vm1354, %v4471, 0
      %v4522 = vsel %vm1354, %v4472, 0
      %v4525 = vsel %vm1354, %v4473, 0
      %v4528 = vsel %vm1354, %v4474, 0
      %v4531 = vsel %vm1354, %v4475, 0
      %v4534 = vsel %vm1354, %v4476, 0
      %v4537 = vsel %vm1354, %v4477, 0
      %v4540 = vsel %vm1354, %v4478, 0
      %v4543 = vsel %vm1354, %v4479, 0
      %v4546 = vsel %vm1354, %v4480, 0
      %v4549 = vsel %vm1354, %v4481, 0
      %v4552 = vsel %vm1354, %v4482, 0
      %v4555 = vsel %vm1354, %v4483, 0
      %v4558 = vsel %vm1354, %v4484, 0
      %v4561 = vsel %vm1354, %v4485, 0
      %v4564 = vsel %vm1354, %v4486, 0
      %v4567 = vsel %vm1354, %v4487, 0
      %v4570 = vsel %vm1354, %v4488, 0
      %v4573 = vsel %vm1354, %v4489, 0
      %v4576 = vsel %vm1354, %v4490, 0
      %v4579 = vsel %vm1354, %v4491, 0
      %v4582 = vsel %vm1354, %v4492, 0
      %v4585 = vsel %vm1354, %v4493, 0
      %v4588 = vsel %vm1354, %v4494, 0
      %v4591 = vsel %vm1354, %v4495, 0
      %v4594 = vsel %vm1354, %v4496, 0
      %v4597 = vsel %vm1354, %v4497, 0
      %4599 = vmatprep.subr.mxu0 0.0
      %4600 = vmatpush1.msra.mxu0 %v4499
      %4601 = vmatprep.subr.mxu0 0.0
      %4602 = vmatpush1.msra.mxu0 %v4500
      %4603 = vmatprep.subr.mxu0 0.0
      %4604 = vmatpush1.msra.mxu0 %v4501
      %4605 = vmatprep.subr.mxu0 0.0
      %4606 = vmatpush1.msra.mxu0 %v4502
      %4607 = vmatprep.subr.mxu0 0.0
      %4608 = vmatpush1.msra.mxu0 0.0
      %4609 = vmatprep.subr.mxu0 0.0
      %4610 = vmatpush1.msra.mxu0 0.0
      %4611 = vmatprep.subr.mxu0 0.0
      %4612 = vmatpush1.msra.mxu0 0.0
      %4613 = vmatprep.subr.mxu0 0.0
      %4614 = vmatpush1.msra.mxu0 0.0
      %4615 = vmatprep.subr.mxu0 0.0
      %4616 = vmatpush1.msra.mxu0 0.0
      %4617 = vmatprep.subr.mxu0 0.0
      %4618 = vmatpush1.msra.mxu0 0.0
      %4619 = vmatprep.subr.mxu0 0.0
      %4620 = vmatpush1.msra.mxu0 0.0
      %4621 = vmatprep.subr.mxu0 0.0
      %4622 = vmatpush1.msra.mxu0 0.0
      %4623 = vmatprep.subr.mxu0 0.0
      %4624 = vmatpush1.msra.mxu0 0.0
      %4625 = vmatprep.subr.mxu0 0.0
      %4626 = vmatpush1.msra.mxu0 0.0
      %4627 = vmatprep.subr.mxu0 0.0
      %4628 = vmatpush1.msra.mxu0 0.0
      %4629 = vmatprep.subr.mxu0 0.0
      %4630 = vmatpush1.msra.mxu0 0.0
      %4631 = vmatprep.subr.mxu0 0.0
      %4632 = vmatpush1.msra.mxu0 0.0
      %4633 = vmatprep.subr.mxu0 0.0
      %4634 = vmatpush1.msra.mxu0 0.0
      %4635 = vmatprep.subr.mxu0 0.0
      %4636 = vmatpush1.msra.mxu0 0.0
      %4637 = vmatprep.subr.mxu0 0.0
      %4638 = vmatpush1.msra.mxu0 0.0
      %4639 = vmatprep.subr.mxu0 0.0
      %4640 = vmatpush1.msra.mxu0 0.0
      %4641 = vmatprep.subr.mxu0 0.0
      %4642 = vmatpush1.msra.mxu0 0.0
      %4643 = vmatprep.subr.mxu0 0.0
      %4644 = vmatpush1.msra.mxu0 0.0
      %4645 = vmatprep.subr.mxu0 0.0
      %4646 = vmatpush1.msra.mxu0 0.0
      %4647 = vmatprep.subr.mxu0 0.0
      %4648 = vmatpush1.msra.mxu0 0.0
      %4649 = vmatprep.subr.mxu0 0.0
      %4650 = vmatpush1.msra.mxu0 0.0
      %4651 = vmatprep.subr.mxu0 0.0
      %4652 = vmatpush1.msra.mxu0 0.0
      %4653 = vmatprep.subr.mxu0 0.0
      %4654 = vmatpush1.msra.mxu0 0.0
      %4655 = vmatprep.subr.mxu0 0.0
      %4656 = vmatpush1.msra.mxu0 0.0
      %4657 = vmatprep.subr.mxu0 0.0
      %4658 = vmatpush1.msra.mxu0 0.0
      %4659 = vmatprep.subr.mxu0 0.0
      %4660 = vmatpush1.msra.mxu0 0.0
      %4661 = vmatprep.subr.mxu0 0.0
      %4662 = vmatpush1.msra.mxu0 0.0
      %4663 = vmatprep.mubr.f32.mxu0 0.0
      %4664 = vmatmul.mubr.f32.gmra.mrb[0].mxu0 %v4504
      %v4665 = vpop.f32.mrb[0].mxu0
      %v4666 = vadd.f32 0.0, %v4665
      %v4667 = vpop.f32.mrb[0].mxu0
      %4668 = vmatprep.mubr.f32.mxu0 0.0
      %4669 = vmatmul.mubr.f32.gmra.mrb[0].mxu0 %v4507
      %v4670 = vpop.f32.mrb[0].mxu0
      %v4671 = vadd.f32 0.0, %v4670
      %v4672 = vpop.f32.mrb[0].mxu0
      %4673 = vmatprep.mubr.f32.mxu0 0.0
      %4674 = vmatmul.mubr.f32.gmra.mrb[0].mxu0 %v4510
      %v4675 = vpop.f32.mrb[0].mxu0
      %v4676 = vadd.f32 0.0, %v4675
      %v4677 = vpop.f32.mrb[0].mxu0
      %4678 = vmatprep.mubr.f32.mxu0 0.0
      %4679 = vmatmul.mubr.f32.gmra.mrb[0].mxu0 %v4513
      %v4680 = vpop.f32.mrb[0].mxu0
      %v4681 = vadd.f32 0.0, %v4680
      %v4682 = vpop.f32.mrb[0].mxu0
      %4683 = vmatprep.mubr.f32.mxu0 0.0
      %4684 = vmatmul.mubr.f32.gmra.mrb[0].mxu0 %v4516
      %v4685 = vpop.f32.mrb[0].mxu0
      %v4686 = vadd.f32 0.0, %v4685
      %v4687 = vpop.f32.mrb[0].mxu0
      %4688 = vmatprep.mubr.f32.mxu0 0.0
      %4689 = vmatmul.mubr.f32.gmra.mrb[0].mxu0 %v4519
      %v4690 = vpop.f32.mrb[0].mxu0
      %v4691 = vadd.f32 0.0, %v4690
      %v4692 = vpop.f32.mrb[0].mxu0
      %4693 = vmatprep.mubr.f32.mxu0 0.0
      %4694 = vmatmul.mubr.f32.gmra.mrb[0].mxu0 %v4522
      %v4695 = vpop.f32.mrb[0].mxu0
      %v4696 = vadd.f32 0.0, %v4695
      %v4697 = vpop.f32.mrb[0].mxu0
      %4698 = vmatprep.mubr.f32.mxu0 0.0
      %4699 = vmatmul.mubr.f32.gmra.mrb[0].mxu0 %v4525
      %v4700 = vpop.f32.mrb[0].mxu0
      %v4701 = vadd.f32 0.0, %v4700
      %v4702 = vpop.f32.mrb[0].mxu0
      %4703 = vmatprep.mubr.f32.mxu0 0.0
      %4704 = vmatmul.mubr.f32.gmra.mrb[0].mxu0 %v4528
      %v4705 = vpop.f32.mrb[0].mxu0
      %v4706 = vadd.f32 0.0, %v4705
      %v4707 = vpop.f32.mrb[0].mxu0
      %4708 = vmatprep.mubr.f32.mxu0 0.0
      %4709 = vmatmul.mubr.f32.gmra.mrb[0].mxu0 %v4531
      %v4710 = vpop.f32.mrb[0].mxu0
      %v4711 = vadd.f32 0.0, %v4710
      %v4712 = vpop.f32.mrb[0].mxu0
      %4713 = vmatprep.mubr.f32.mxu0 0.0
      %4714 = vmatmul.mubr.f32.gmra.mrb[0].mxu0 %v4534
      %v4715 = vpop.f32.mrb[0].mxu0
      %v4716 = vadd.f32 0.0, %v4715
      %v4717 = vpop.f32.mrb[0].mxu0
      %4718 = vmatprep.mubr.f32.mxu0 0.0
      %4719 = vmatmul.mubr.f32.gmra.mrb[0].mxu0 %v4537
      %v4720 = vpop.f32.mrb[0].mxu0
      %v4721 = vadd.f32 0.0, %v4720
      %v4722 = vpop.f32.mrb[0].mxu0
      %4723 = vmatprep.mubr.f32.mxu0 0.0
      %4724 = vmatmul.mubr.f32.gmra.mrb[0].mxu0 %v4540
      %v4725 = vpop.f32.mrb[0].mxu0
      %v4726 = vadd.f32 0.0, %v4725
      %v4727 = vpop.f32.mrb[0].mxu0
      %4728 = vmatprep.mubr.f32.mxu0 0.0
      %4729 = vmatmul.mubr.f32.gmra.mrb[0].mxu0 %v4543
      %v4730 = vpop.f32.mrb[0].mxu0
      %v4731 = vadd.f32 0.0, %v4730
      %v4732 = vpop.f32.mrb[0].mxu0
      %4733 = vmatprep.mubr.f32.mxu0 0.0
      %4734 = vmatmul.mubr.f32.gmra.mrb[0].mxu0 %v4546
      %v4735 = vpop.f32.mrb[0].mxu0
      %v4736 = vadd.f32 0.0, %v4735
      %v4737 = vpop.f32.mrb[0].mxu0
      %4738 = vmatprep.mubr.f32.mxu0 0.0
      %4739 = vmatmul.mubr.f32.gmra.mrb[0].mxu0 %v4549
      %v4740 = vpop.f32.mrb[0].mxu0
      %v4741 = vadd.f32 0.0, %v4740
      %v4742 = vpop.f32.mrb[0].mxu0
      %4743 = vmatprep.mubr.f32.mxu0 0.0
      %4744 = vmatmul.mubr.f32.gmra.mrb[0].mxu0 %v4552
      %v4745 = vpop.f32.mrb[0].mxu0
      %v4746 = vadd.f32 0.0, %v4745
      %v4747 = vpop.f32.mrb[0].mxu0
      %4748 = vmatprep.mubr.f32.mxu0 0.0
      %4749 = vmatmul.mubr.f32.gmra.mrb[0].mxu0 %v4555
      %v4750 = vpop.f32.mrb[0].mxu0
      %v4751 = vadd.f32 0.0, %v4750
      %v4752 = vpop.f32.mrb[0].mxu0
      %4753 = vmatprep.mubr.f32.mxu0 0.0
      %4754 = vmatmul.mubr.f32.gmra.mrb[0].mxu0 %v4558
      %v4755 = vpop.f32.mrb[0].mxu0
      %v4756 = vadd.f32 0.0, %v4755
      %v4757 = vpop.f32.mrb[0].mxu0
      %4758 = vmatprep.mubr.f32.mxu0 0.0
      %4759 = vmatmul.mubr.f32.gmra.mrb[0].mxu0 %v4561
      %v4760 = vpop.f32.mrb[0].mxu0
      %v4761 = vadd.f32 0.0, %v4760
      %v4762 = vpop.f32.mrb[0].mxu0
      %4763 = vmatprep.mubr.f32.mxu0 0.0
      %4764 = vmatmul.mubr.f32.gmra.mrb[0].mxu0 %v4564
      %v4765 = vpop.f32.mrb[0].mxu0
      %v4766 = vadd.f32 0.0, %v4765
      %v4767 = vpop.f32.mrb[0].mxu0
      %4768 = vmatprep.mubr.f32.mxu0 0.0
      %4769 = vmatmul.mubr.f32.gmra.mrb[0].mxu0 %v4567
      %v4770 = vpop.f32.mrb[0].mxu0
      %v4771 = vadd.f32 0.0, %v4770
      %v4772 = vpop.f32.mrb[0].mxu0
      %4773 = vmatprep.mubr.f32.mxu0 0.0
      %4774 = vmatmul.mubr.f32.gmra.mrb[0].mxu0 %v4570
      %v4775 = vpop.f32.mrb[0].mxu0
      %v4776 = vadd.f32 0.0, %v4775
      %v4777 = vpop.f32.mrb[0].mxu0
      %4778 = vmatprep.mubr.f32.mxu0 0.0
      %4779 = vmatmul.mubr.f32.gmra.mrb[0].mxu0 %v4573
      %v4780 = vpop.f32.mrb[0].mxu0
      %v4781 = vadd.f32 0.0, %v4780
      %v4782 = vpop.f32.mrb[0].mxu0
      %4783 = vmatprep.mubr.f32.mxu0 0.0
      %4784 = vmatmul.mubr.f32.gmra.mrb[0].mxu0 %v4576
      %v4785 = vpop.f32.mrb[0].mxu0
      %v4786 = vadd.f32 0.0, %v4785
      %v4787 = vpop.f32.mrb[0].mxu0
      %4788 = vmatprep.mubr.f32.mxu0 0.0
      %4789 = vmatmul.mubr.f32.gmra.mrb[0].mxu0 %v4579
      %v4790 = vpop.f32.mrb[0].mxu0
      %v4791 = vadd.f32 0.0, %v4790
      %v4792 = vpop.f32.mrb[0].mxu0
      %4793 = vmatprep.mubr.f32.mxu0 0.0
      %4794 = vmatmul.mubr.f32.gmra.mrb[0].mxu0 %v4582
      %v4795 = vpop.f32.mrb[0].mxu0
      %v4796 = vadd.f32 0.0, %v4795
      %v4797 = vpop.f32.mrb[0].mxu0
      %4798 = vmatprep.mubr.f32.mxu0 0.0
      %4799 = vmatmul.mubr.f32.gmra.mrb[0].mxu0 %v4585
      %v4800 = vpop.f32.mrb[0].mxu0
      %v4801 = vadd.f32 0.0, %v4800
      %v4802 = vpop.f32.mrb[0].mxu0
      %4803 = vmatprep.mubr.f32.mxu0 0.0
      %4804 = vmatmul.mubr.f32.gmra.mrb[0].mxu0 %v4588
      %v4805 = vpop.f32.mrb[0].mxu0
      %v4806 = vadd.f32 0.0, %v4805
      %v4807 = vpop.f32.mrb[0].mxu0
      %4808 = vmatprep.mubr.f32.mxu0 0.0
      %4809 = vmatmul.mubr.f32.gmra.mrb[0].mxu0 %v4591
      %v4810 = vpop.f32.mrb[0].mxu0
      %v4811 = vadd.f32 0.0, %v4810
      %v4812 = vpop.f32.mrb[0].mxu0
      %4813 = vmatprep.mubr.f32.mxu0 0.0
      %4814 = vmatmul.mubr.f32.gmra.mrb[0].mxu0 %v4594
      %v4815 = vpop.f32.mrb[0].mxu0
      %v4816 = vadd.f32 0.0, %v4815
      %v4817 = vpop.f32.mrb[0].mxu0
      %4818 = vmatprep.mubr.f32.mxu0 0.0
      %4819 = vmatmul.mubr.f32.gmra.mrb[0].mxu0 %v4597
      %v4820 = vpop.f32.mrb[0].mxu0
      %v4821 = vadd.f32 0.0, %v4820
      %v4822 = vpop.f32.mrb[0].mxu0
      %4823 = vdwg.mxu0
      %v4824 = vadd.f32 %v4434, %v4666
      %v4825 = vadd.f32 %v4435, %v4671
      %v4826 = vadd.f32 %v4436, %v4676
      %v4827 = vadd.f32 %v4437, %v4681
      %v4828 = vadd.f32 %v4438, %v4686
      %v4829 = vadd.f32 %v4439, %v4691
      %v4830 = vadd.f32 %v4440, %v4696
      %v4831 = vadd.f32 %v4441, %v4701
      %v4832 = vadd.f32 %v4442, %v4706
      %v4833 = vadd.f32 %v4443, %v4711
      %v4834 = vadd.f32 %v4444, %v4716
      %v4835 = vadd.f32 %v4445, %v4721
      %v4836 = vadd.f32 %v4446, %v4726
      %v4837 = vadd.f32 %v4447, %v4731
      %v4838 = vadd.f32 %v4448, %v4736
      %v4839 = vadd.f32 %v4449, %v4741
      %v4840 = vadd.f32 %v4450, %v4746
      %v4841 = vadd.f32 %v4451, %v4751
      %v4842 = vadd.f32 %v4452, %v4756
      %v4843 = vadd.f32 %v4453, %v4761
      %v4844 = vadd.f32 %v4454, %v4766
      %v4845 = vadd.f32 %v4455, %v4771
      %v4846 = vadd.f32 %v4456, %v4776
      %v4847 = vadd.f32 %v4457, %v4781
      %v4848 = vadd.f32 %v4458, %v4786
      %v4849 = vadd.f32 %v4459, %v4791
      %v4850 = vadd.f32 %v4460, %v4796
      %v4851 = vadd.f32 %v4461, %v4801
      %v4852 = vadd.f32 %v4462, %v4806
      %v4853 = vadd.f32 %v4463, %v4811
      %v4854 = vadd.f32 %v4464, %v4816
      %v4855 = vadd.f32 %v4465, %v4821
      %v4856 = vld [vmem:[%s4] sm:$0x1]
      %v4858 = vlaneseq
      %v4859 = vshrl.u32 %v4858, 7
      %v4860 = vsub.s32 0, %v4859
      %v4861 = vrot.slane %v4856, %v4860
      %v4863 = vadd.f32 %v4824, %v4861
      %v4864 = vadd.f32 %v4825, %v4861
      %v4865 = vadd.f32 %v4826, %v4861
      %v4866 = vadd.f32 %v4827, %v4861
      %v4867 = vadd.f32 %v4828, %v4861
      %v4868 = vadd.f32 %v4829, %v4861
      %v4869 = vadd.f32 %v4830, %v4861
      %v4870 = vadd.f32 %v4831, %v4861
      %v4871 = vadd.f32 %v4832, %v4861
      %v4872 = vadd.f32 %v4833, %v4861
      %v4873 = vadd.f32 %v4834, %v4861
      %v4874 = vadd.f32 %v4835, %v4861
      %v4875 = vadd.f32 %v4836, %v4861
      %v4876 = vadd.f32 %v4837, %v4861
      %v4877 = vadd.f32 %v4838, %v4861
      %v4878 = vadd.f32 %v4839, %v4861
      %v4879 = vadd.f32 %v4840, %v4861
      %v4880 = vadd.f32 %v4841, %v4861
      %v4881 = vadd.f32 %v4842, %v4861
      %v4882 = vadd.f32 %v4843, %v4861
      %v4883 = vadd.f32 %v4844, %v4861
      %v4884 = vadd.f32 %v4845, %v4861
      %v4885 = vadd.f32 %v4846, %v4861
      %v4886 = vadd.f32 %v4847, %v4861
      %v4887 = vadd.f32 %v4848, %v4861
      %v4888 = vadd.f32 %v4849, %v4861
      %v4889 = vadd.f32 %v4850, %v4861
      %v4890 = vadd.f32 %v4851, %v4861
      %v4891 = vadd.f32 %v4852, %v4861
      %v4892 = vadd.f32 %v4853, %v4861
      %v4893 = vadd.f32 %v4854, %v4861
      %v4894 = vadd.f32 %v4855, %v4861
      %v4895 = vxor.u32 %v4863, 2147483648
      %v4896 = vxor.u32 %v4864, 2147483648
      %v4897 = vxor.u32 %v4865, 2147483648
      %v4898 = vxor.u32 %v4866, 2147483648
      %v4899 = vxor.u32 %v4867, 2147483648
      %v4900 = vxor.u32 %v4868, 2147483648
      %v4901 = vxor.u32 %v4869, 2147483648
      %v4902 = vxor.u32 %v4870, 2147483648
      %v4903 = vxor.u32 %v4871, 2147483648
      %v4904 = vxor.u32 %v4872, 2147483648
      %v4905 = vxor.u32 %v4873, 2147483648
      %v4906 = vxor.u32 %v4874, 2147483648
      %v4907 = vxor.u32 %v4875, 2147483648
      %v4908 = vxor.u32 %v4876, 2147483648
      %v4909 = vxor.u32 %v4877, 2147483648
      %v4910 = vxor.u32 %v4878, 2147483648
      %v4911 = vxor.u32 %v4879, 2147483648
      %v4912 = vxor.u32 %v4880, 2147483648
      %v4913 = vxor.u32 %v4881, 2147483648
      %v4914 = vxor.u32 %v4882, 2147483648
      %v4915 = vxor.u32 %v4883, 2147483648
      %v4916 = vxor.u32 %v4884, 2147483648
      %v4917 = vxor.u32 %v4885, 2147483648
      %v4918 = vxor.u32 %v4886, 2147483648
      %v4919 = vxor.u32 %v4887, 2147483648
      %v4920 = vxor.u32 %v4888, 2147483648
      %v4921 = vxor.u32 %v4889, 2147483648
      %v4922 = vxor.u32 %v4890, 2147483648
      %v4923 = vxor.u32 %v4891, 2147483648
      %v4924 = vxor.u32 %v4892, 2147483648
      %v4925 = vxor.u32 %v4893, 2147483648
      %v4926 = vxor.u32 %v4894, 2147483648
      %v4927 = vmul.f32 %v4895, 1.442695
      %v4928 = vpow.pop %v4927
      %v4929 = vmul.f32 %v4896, 1.442695
      %v4930 = vpow.pop %v4929
      %v4931 = vmul.f32 %v4897, 1.442695
      %v4932 = vpow.pop %v4931
      %v4933 = vmul.f32 %v4898, 1.442695
      %v4934 = vpow.pop %v4933
      %v4935 = vmul.f32 %v4899, 1.442695
      %v4936 = vpow.pop %v4935
      %v4937 = vmul.f32 %v4900, 1.442695
      %v4938 = vpow.pop %v4937
      %v4939 = vmul.f32 %v4901, 1.442695
      %v4940 = vpow.pop %v4939
      %v4941 = vmul.f32 %v4902, 1.442695
      %v4942 = vpow.pop %v4941
      %v4943 = vmul.f32 %v4903, 1.442695
      %v4944 = vpow.pop %v4943
      %v4945 = vmul.f32 %v4904, 1.442695
      %v4946 = vpow.pop %v4945
      %v4947 = vmul.f32 %v4905, 1.442695
      %v4948 = vpow.pop %v4947
      %v4949 = vmul.f32 %v4906, 1.442695
      %v4950 = vpow.pop %v4949
      %v4951 = vmul.f32 %v4907, 1.442695
      %v4952 = vpow.pop %v4951
      %v4953 = vmul.f32 %v4908, 1.442695
      %v4954 = vpow.pop %v4953
      %v4955 = vmul.f32 %v4909, 1.442695
      %v4956 = vpow.pop %v4955
      %v4957 = vmul.f32 %v4910, 1.442695
      %v4958 = vpow.pop %v4957
      %v4959 = vmul.f32 %v4911, 1.442695
      %v4960 = vpow.pop %v4959
      %v4961 = vmul.f32 %v4912, 1.442695
      %v4962 = vpow.pop %v4961
      %v4963 = vmul.f32 %v4913, 1.442695
      %v4964 = vpow.pop %v4963
      %v4965 = vmul.f32 %v4914, 1.442695
      %v4966 = vpow.pop %v4965
      %v4967 = vmul.f32 %v4915, 1.442695
      %v4968 = vpow.pop %v4967
      %v4969 = vmul.f32 %v4916, 1.442695
      %v4970 = vpow.pop %v4969
      %v4971 = vmul.f32 %v4917, 1.442695
      %v4972 = vpow.pop %v4971
      %v4973 = vmul.f32 %v4918, 1.442695
      %v4974 = vpow.pop %v4973
      %v4975 = vmul.f32 %v4919, 1.442695
      %v4976 = vpow.pop %v4975
      %v4977 = vmul.f32 %v4920, 1.442695
      %v4978 = vpow.pop %v4977
      %v4979 = vmul.f32 %v4921, 1.442695
      %v4980 = vpow.pop %v4979
      %v4981 = vmul.f32 %v4922, 1.442695
      %v4982 = vpow.pop %v4981
      %v4983 = vmul.f32 %v4923, 1.442695
      %v4984 = vpow.pop %v4983
      %v4985 = vmul.f32 %v4924, 1.442695
      %v4986 = vpow.pop %v4985
      %v4987 = vmul.f32 %v4925, 1.442695
      %v4988 = vpow.pop %v4987
      %v4989 = vmul.f32 %v4926, 1.442695
      %v4990 = vpow.pop %v4989
      %v4991 = vadd.f32 %v4928, 1.0
      %v4992 = vadd.f32 %v4930, 1.0
      %v4993 = vadd.f32 %v4932, 1.0
      %v4994 = vadd.f32 %v4934, 1.0
      %v4995 = vadd.f32 %v4936, 1.0
      %v4996 = vadd.f32 %v4938, 1.0
      %v4997 = vadd.f32 %v4940, 1.0
      %v4998 = vadd.f32 %v4942, 1.0
      %v4999 = vadd.f32 %v4944, 1.0
      %v5000 = vadd.f32 %v4946, 1.0
      %v5001 = vadd.f32 %v4948, 1.0
      %v5002 = vadd.f32 %v4950, 1.0
      %v5003 = vadd.f32 %v4952, 1.0
      %v5004 = vadd.f32 %v4954, 1.0
      %v5005 = vadd.f32 %v4956, 1.0
      %v5006 = vadd.f32 %v4958, 1.0
      %v5007 = vadd.f32 %v4960, 1.0
      %v5008 = vadd.f32 %v4962, 1.0
      %v5009 = vadd.f32 %v4964, 1.0
      %v5010 = vadd.f32 %v4966, 1.0
      %v5011 = vadd.f32 %v4968, 1.0
      %v5012 = vadd.f32 %v4970, 1.0
      %v5013 = vadd.f32 %v4972, 1.0
      %v5014 = vadd.f32 %v4974, 1.0
      %v5015 = vadd.f32 %v4976, 1.0
      %v5016 = vadd.f32 %v4978, 1.0
      %v5017 = vadd.f32 %v4980, 1.0
      %v5018 = vadd.f32 %v4982, 1.0
      %v5019 = vadd.f32 %v4984, 1.0
      %v5020 = vadd.f32 %v4986, 1.0
      %v5021 = vadd.f32 %v4988, 1.0
      %v5022 = vadd.f32 %v4990, 1.0
      %v5023 = vrcp.pop %v4991
      %v5024 = vmul.f32 1.0, %v5023
      %v5025 = vrcp.pop %v4992
      %v5026 = vmul.f32 1.0, %v5025
      %v5027 = vrcp.pop %v4993
      %v5028 = vmul.f32 1.0, %v5027
      %v5029 = vrcp.pop %v4994
      %v5030 = vmul.f32 1.0, %v5029
      %v5031 = vrcp.pop %v4995
      %v5032 = vmul.f32 1.0, %v5031
      %v5033 = vrcp.pop %v4996
      %v5034 = vmul.f32 1.0, %v5033
      %v5035 = vrcp.pop %v4997
      %v5036 = vmul.f32 1.0, %v5035
      %v5037 = vrcp.pop %v4998
      %v5038 = vmul.f32 1.0, %v5037
      %v5039 = vrcp.pop %v4999
      %v5040 = vmul.f32 1.0, %v5039
      %v5041 = vrcp.pop %v5000
      %v5042 = vmul.f32 1.0, %v5041
      %v5043 = vrcp.pop %v5001
      %v5044 = vmul.f32 1.0, %v5043
      %v5045 = vrcp.pop %v5002
      %v5046 = vmul.f32 1.0, %v5045
      %v5047 = vrcp.pop %v5003
      %v5048 = vmul.f32 1.0, %v5047
      %v5049 = vrcp.pop %v5004
      %v5050 = vmul.f32 1.0, %v5049
      %v5051 = vrcp.pop %v5005
      %v5052 = vmul.f32 1.0, %v5051
      %v5053 = vrcp.pop %v5006
      %v5054 = vmul.f32 1.0, %v5053
      %v5055 = vrcp.pop %v5007
      %v5056 = vmul.f32 1.0, %v5055
      %v5057 = vrcp.pop %v5008
      %v5058 = vmul.f32 1.0, %v5057
      %v5059 = vrcp.pop %v5009
      %v5060 = vmul.f32 1.0, %v5059
      %v5061 = vrcp.pop %v5010
      %v5062 = vmul.f32 1.0, %v5061
      %v5063 = vrcp.pop %v5011
      %v5064 = vmul.f32 1.0, %v5063
      %v5065 = vrcp.pop %v5012
      %v5066 = vmul.f32 1.0, %v5065
      %v5067 = vrcp.pop %v5013
      %v5068 = vmul.f32 1.0, %v5067
      %v5069 = vrcp.pop %v5014
      %v5070 = vmul.f32 1.0, %v5069
      %v5071 = vrcp.pop %v5015
      %v5072 = vmul.f32 1.0, %v5071
      %v5073 = vrcp.pop %v5016
      %v5074 = vmul.f32 1.0, %v5073
      %v5075 = vrcp.pop %v5017
      %v5076 = vmul.f32 1.0, %v5075
      %v5077 = vrcp.pop %v5018
      %v5078 = vmul.f32 1.0, %v5077
      %v5079 = vrcp.pop %v5019
      %v5080 = vmul.f32 1.0, %v5079
      %v5081 = vrcp.pop %v5020
      %v5082 = vmul.f32 1.0, %v5081
      %v5083 = vrcp.pop %v5021
      %v5084 = vmul.f32 1.0, %v5083
      %v5085 = vrcp.pop %v5022
      %v5086 = vmul.f32 1.0, %v5085
      %v5087 = vmul.f32 %v4863, %v5024
      %v5088 = vmul.f32 %v4864, %v5026
      %v5089 = vmul.f32 %v4865, %v5028
      %v5090 = vmul.f32 %v4866, %v5030
      %v5091 = vmul.f32 %v4867, %v5032
      %v5092 = vmul.f32 %v4868, %v5034
      %v5093 = vmul.f32 %v4869, %v5036
      %v5094 = vmul.f32 %v4870, %v5038
      %v5095 = vmul.f32 %v4871, %v5040
      %v5096 = vmul.f32 %v4872, %v5042
      %v5097 = vmul.f32 %v4873, %v5044
      %v5098 = vmul.f32 %v4874, %v5046
      %v5099 = vmul.f32 %v4875, %v5048
      %v5100 = vmul.f32 %v4876, %v5050
      %v5101 = vmul.f32 %v4877, %v5052
      %v5102 = vmul.f32 %v4878, %v5054
      %v5103 = vmul.f32 %v4879, %v5056
      %v5104 = vmul.f32 %v4880, %v5058
      %v5105 = vmul.f32 %v4881, %v5060
      %v5106 = vmul.f32 %v4882, %v5062
      %v5107 = vmul.f32 %v4883, %v5064
      %v5108 = vmul.f32 %v4884, %v5066
      %v5109 = vmul.f32 %v4885, %v5068
      %v5110 = vmul.f32 %v4886, %v5070
      %v5111 = vmul.f32 %v4887, %v5072
      %v5112 = vmul.f32 %v4888, %v5074
      %v5113 = vmul.f32 %v4889, %v5076
      %v5114 = vmul.f32 %v4890, %v5078
      %v5115 = vmul.f32 %v4891, %v5080
      %v5116 = vmul.f32 %v4892, %v5082
      %v5117 = vmul.f32 %v4893, %v5084
      %v5118 = vmul.f32 %v4894, %v5086
      %v5119 = vld [vmem:[%s5] sm:$0xff]
      %v5120 = vld [vmem:[%s5 + $0x8] sm:$0xff]
      %v5121 = vld [vmem:[%s5 + $0x10] sm:$0xff]
      %v5122 = vld [vmem:[%s5 + $0x18] sm:$0xff]
      %v5123 = vld [vmem:[%s6] sm:$0x1]
      %v5125 = vlaneseq
      %v5126 = vshrl.u32 %v5125, 7
      %v5127 = vsub.s32 0, %v5126
      %v5128 = vrot.slane %v5123, %v5127
      %v5131 = vsel %vm1354, %v5087, 0
      %v5134 = vsel %vm1354, %v5088, 0
      %v5137 = vsel %vm1354, %v5089, 0
      %v5140 = vsel %vm1354, %v5090, 0
      %v5143 = vsel %vm1354, %v5091, 0
      %v5146 = vsel %vm1354, %v5092, 0
      %v5149 = vsel %vm1354, %v5093, 0
      %v5152 = vsel %vm1354, %v5094, 0
      %v5155 = vsel %vm1354, %v5095, 0
      %v5158 = vsel %vm1354, %v5096, 0
      %v5161 = vsel %vm1354, %v5097, 0
      %v5164 = vsel %vm1354, %v5098, 0
      %v5167 = vsel %vm1354, %v5099, 0
      %v5170 = vsel %vm1354, %v5100, 0
      %v5173 = vsel %vm1354, %v5101, 0
      %v5176 = vsel %vm1354, %v5102, 0
      %v5179 = vsel %vm1354, %v5103, 0
      %v5182 = vsel %vm1354, %v5104, 0
      %v5185 = vsel %vm1354, %v5105, 0
      %v5188 = vsel %vm1354, %v5106, 0
      %v5191 = vsel %vm1354, %v5107, 0
      %v5194 = vsel %vm1354, %v5108, 0
      %v5197 = vsel %vm1354, %v5109, 0
      %v5200 = vsel %vm1354, %v5110, 0
      %v5203 = vsel %vm1354, %v5111, 0
      %v5206 = vsel %vm1354, %v5112, 0
      %v5209 = vsel %vm1354, %v5113, 0
      %v5212 = vsel %vm1354, %v5114, 0
      %v5215 = vsel %vm1354, %v5115, 0
      %v5218 = vsel %vm1354, %v5116, 0
      %v5221 = vsel %vm1354, %v5117, 0
      %v5224 = vsel %vm1354, %v5118, 0
      %5226 = vmatprep.subr.mxu0 0.0
      %5227 = vmatpush1.msra.mxu0 %v5119
      %5228 = vmatprep.subr.mxu0 0.0
      %5229 = vmatpush1.msra.mxu0 %v5120
      %5230 = vmatprep.subr.mxu0 0.0
      %5231 = vmatpush1.msra.mxu0 %v5121
      %5232 = vmatprep.subr.mxu0 0.0
      %5233 = vmatpush1.msra.mxu0 %v5122
      %5234 = vmatprep.subr.mxu0 0.0
      %5235 = vmatpush1.msra.mxu0 0.0
      %5236 = vmatprep.subr.mxu0 0.0
      %5237 = vmatpush1.msra.mxu0 0.0
      %5238 = vmatprep.subr.mxu0 0.0
      %5239 = vmatpush1.msra.mxu0 0.0
      %5240 = vmatprep.subr.mxu0 0.0
      %5241 = vmatpush1.msra.mxu0 0.0
      %5242 = vmatprep.subr.mxu0 0.0
      %5243 = vmatpush1.msra.mxu0 0.0
      %5244 = vmatprep.subr.mxu0 0.0
      %5245 = vmatpush1.msra.mxu0 0.0
      %5246 = vmatprep.subr.mxu0 0.0
      %5247 = vmatpush1.msra.mxu0 0.0
      %5248 = vmatprep.subr.mxu0 0.0
      %5249 = vmatpush1.msra.mxu0 0.0
      %5250 = vmatprep.subr.mxu0 0.0
      %5251 = vmatpush1.msra.mxu0 0.0
      %5252 = vmatprep.subr.mxu0 0.0
      %5253 = vmatpush1.msra.mxu0 0.0
      %5254 = vmatprep.subr.mxu0 0.0
      %5255 = vmatpush1.msra.mxu0 0.0
      %5256 = vmatprep.subr.mxu0 0.0
      %5257 = vmatpush1.msra.mxu0 0.0
      %5258 = vmatprep.subr.mxu0 0.0
      %5259 = vmatpush1.msra.mxu0 0.0
      %5260 = vmatprep.subr.mxu0 0.0
      %5261 = vmatpush1.msra.mxu0 0.0
      %5262 = vmatprep.subr.mxu0 0.0
      %5263 = vmatpush1.msra.mxu0 0.0
      %5264 = vmatprep.subr.mxu0 0.0
      %5265 = vmatpush1.msra.mxu0 0.0
      %5266 = vmatprep.subr.mxu0 0.0
      %5267 = vmatpush1.msra.mxu0 0.0
      %5268 = vmatprep.subr.mxu0 0.0
      %5269 = vmatpush1.msra.mxu0 0.0
      %5270 = vmatprep.subr.mxu0 0.0
      %5271 = vmatpush1.msra.mxu0 0.0
      %5272 = vmatprep.subr.mxu0 0.0
      %5273 = vmatpush1.msra.mxu0 0.0
      %5274 = vmatprep.subr.mxu0 0.0
      %5275 = vmatpush1.msra.mxu0 0.0
      %5276 = vmatprep.subr.mxu0 0.0
      %5277 = vmatpush1.msra.mxu0 0.0
      %5278 = vmatprep.subr.mxu0 0.0
      %5279 = vmatpush1.msra.mxu0 0.0
      %5280 = vmatprep.subr.mxu0 0.0
      %5281 = vmatpush1.msra.mxu0 0.0
      %5282 = vmatprep.subr.mxu0 0.0
      %5283 = vmatpush1.msra.mxu0 0.0
      %5284 = vmatprep.subr.mxu0 0.0
      %5285 = vmatpush1.msra.mxu0 0.0
      %5286 = vmatprep.subr.mxu0 0.0
      %5287 = vmatpush1.msra.mxu0 0.0
      %5288 = vmatprep.subr.mxu0 0.0
      %5289 = vmatpush1.msra.mxu0 0.0
      %5290 = vmatprep.mubr.f32.mxu0 0.0
      %5291 = vmatmul.mubr.f32.gmra.mrb[0].mxu0 %v5131
      %v5292 = vpop.f32.mrb[0].mxu0
      %v5293 = vadd.f32 %v5128, %v5292
      %v5294 = vpop.f32.mrb[0].mxu0
      %5295 = vmatprep.mubr.f32.mxu0 0.0
      %5296 = vmatmul.mubr.f32.gmra.mrb[0].mxu0 %v5134
      %v5297 = vpop.f32.mrb[0].mxu0
      %v5298 = vadd.f32 %v5128, %v5297
      %v5299 = vpop.f32.mrb[0].mxu0
      %5300 = vmatprep.mubr.f32.mxu0 0.0
      %5301 = vmatmul.mubr.f32.gmra.mrb[0].mxu0 %v5137
      %v5302 = vpop.f32.mrb[0].mxu0
      %v5303 = vadd.f32 %v5128, %v5302
      %v5304 = vpop.f32.mrb[0].mxu0
      %5305 = vmatprep.mubr.f32.mxu0 0.0
      %5306 = vmatmul.mubr.f32.gmra.mrb[0].mxu0 %v5140
      %v5307 = vpop.f32.mrb[0].mxu0
      %v5308 = vadd.f32 %v5128, %v5307
      %v5309 = vpop.f32.mrb[0].mxu0
      %5310 = vmatprep.mubr.f32.mxu0 0.0
      %5311 = vmatmul.mubr.f32.gmra.mrb[0].mxu0 %v5143
      %v5312 = vpop.f32.mrb[0].mxu0
      %v5313 = vadd.f32 %v5128, %v5312
      %v5314 = vpop.f32.mrb[0].mxu0
      %5315 = vmatprep.mubr.f32.mxu0 0.0
      %5316 = vmatmul.mubr.f32.gmra.mrb[0].mxu0 %v5146
      %v5317 = vpop.f32.mrb[0].mxu0
      %v5318 = vadd.f32 %v5128, %v5317
      %v5319 = vpop.f32.mrb[0].mxu0
      %5320 = vmatprep.mubr.f32.mxu0 0.0
      %5321 = vmatmul.mubr.f32.gmra.mrb[0].mxu0 %v5149
      %v5322 = vpop.f32.mrb[0].mxu0
      %v5323 = vadd.f32 %v5128, %v5322
      %v5324 = vpop.f32.mrb[0].mxu0
      %5325 = vmatprep.mubr.f32.mxu0 0.0
      %5326 = vmatmul.mubr.f32.gmra.mrb[0].mxu0 %v5152
      %v5327 = vpop.f32.mrb[0].mxu0
      %v5328 = vadd.f32 %v5128, %v5327
      %v5329 = vpop.f32.mrb[0].mxu0
      %5330 = vmatprep.mubr.f32.mxu0 0.0
      %5331 = vmatmul.mubr.f32.gmra.mrb[0].mxu0 %v5155
      %v5332 = vpop.f32.mrb[0].mxu0
      %v5333 = vadd.f32 %v5128, %v5332
      %v5334 = vpop.f32.mrb[0].mxu0
      %5335 = vmatprep.mubr.f32.mxu0 0.0
      %5336 = vmatmul.mubr.f32.gmra.mrb[0].mxu0 %v5158
      %v5337 = vpop.f32.mrb[0].mxu0
      %v5338 = vadd.f32 %v5128, %v5337
      %v5339 = vpop.f32.mrb[0].mxu0
      %5340 = vmatprep.mubr.f32.mxu0 0.0
      %5341 = vmatmul.mubr.f32.gmra.mrb[0].mxu0 %v5161
      %v5342 = vpop.f32.mrb[0].mxu0
      %v5343 = vadd.f32 %v5128, %v5342
      %v5344 = vpop.f32.mrb[0].mxu0
      %5345 = vmatprep.mubr.f32.mxu0 0.0
      %5346 = vmatmul.mubr.f32.gmra.mrb[0].mxu0 %v5164
      %v5347 = vpop.f32.mrb[0].mxu0
      %v5348 = vadd.f32 %v5128, %v5347
      %v5349 = vpop.f32.mrb[0].mxu0
      %5350 = vmatprep.mubr.f32.mxu0 0.0
      %5351 = vmatmul.mubr.f32.gmra.mrb[0].mxu0 %v5167
      %v5352 = vpop.f32.mrb[0].mxu0
      %v5353 = vadd.f32 %v5128, %v5352
      %v5354 = vpop.f32.mrb[0].mxu0
      %5355 = vmatprep.mubr.f32.mxu0 0.0
      %5356 = vmatmul.mubr.f32.gmra.mrb[0].mxu0 %v5170
      %v5357 = vpop.f32.mrb[0].mxu0
      %v5358 = vadd.f32 %v5128, %v5357
      %v5359 = vpop.f32.mrb[0].mxu0
      %5360 = vmatprep.mubr.f32.mxu0 0.0
      %5361 = vmatmul.mubr.f32.gmra.mrb[0].mxu0 %v5173
      %v5362 = vpop.f32.mrb[0].mxu0
      %v5363 = vadd.f32 %v5128, %v5362
      %v5364 = vpop.f32.mrb[0].mxu0
      %5365 = vmatprep.mubr.f32.mxu0 0.0
      %5366 = vmatmul.mubr.f32.gmra.mrb[0].mxu0 %v5176
      %v5367 = vpop.f32.mrb[0].mxu0
      %v5368 = vadd.f32 %v5128, %v5367
      %v5369 = vpop.f32.mrb[0].mxu0
      %5370 = vmatprep.mubr.f32.mxu0 0.0
      %5371 = vmatmul.mubr.f32.gmra.mrb[0].mxu0 %v5179
      %v5372 = vpop.f32.mrb[0].mxu0
      %v5373 = vadd.f32 %v5128, %v5372
      %v5374 = vpop.f32.mrb[0].mxu0
      %5375 = vmatprep.mubr.f32.mxu0 0.0
      %5376 = vmatmul.mubr.f32.gmra.mrb[0].mxu0 %v5182
      %v5377 = vpop.f32.mrb[0].mxu0
      %v5378 = vadd.f32 %v5128, %v5377
      %v5379 = vpop.f32.mrb[0].mxu0
      %5380 = vmatprep.mubr.f32.mxu0 0.0
      %5381 = vmatmul.mubr.f32.gmra.mrb[0].mxu0 %v5185
      %v5382 = vpop.f32.mrb[0].mxu0
      %v5383 = vadd.f32 %v5128, %v5382
      %v5384 = vpop.f32.mrb[0].mxu0
      %5385 = vmatprep.mubr.f32.mxu0 0.0
      %5386 = vmatmul.mubr.f32.gmra.mrb[0].mxu0 %v5188
      %v5387 = vpop.f32.mrb[0].mxu0
      %v5388 = vadd.f32 %v5128, %v5387
      %v5389 = vpop.f32.mrb[0].mxu0
      %5390 = vmatprep.mubr.f32.mxu0 0.0
      %5391 = vmatmul.mubr.f32.gmra.mrb[0].mxu0 %v5191
      %v5392 = vpop.f32.mrb[0].mxu0
      %v5393 = vadd.f32 %v5128, %v5392
      %v5394 = vpop.f32.mrb[0].mxu0
      %5395 = vmatprep.mubr.f32.mxu0 0.0
      %5396 = vmatmul.mubr.f32.gmra.mrb[0].mxu0 %v5194
      %v5397 = vpop.f32.mrb[0].mxu0
      %v5398 = vadd.f32 %v5128, %v5397
      %v5399 = vpop.f32.mrb[0].mxu0
      %5400 = vmatprep.mubr.f32.mxu0 0.0
      %5401 = vmatmul.mubr.f32.gmra.mrb[0].mxu0 %v5197
      %v5402 = vpop.f32.mrb[0].mxu0
      %v5403 = vadd.f32 %v5128, %v5402
      %v5404 = vpop.f32.mrb[0].mxu0
      %5405 = vmatprep.mubr.f32.mxu0 0.0
      %5406 = vmatmul.mubr.f32.gmra.mrb[0].mxu0 %v5200
      %v5407 = vpop.f32.mrb[0].mxu0
      %v5408 = vadd.f32 %v5128, %v5407
      %v5409 = vpop.f32.mrb[0].mxu0
      %5410 = vmatprep.mubr.f32.mxu0 0.0
      %5411 = vmatmul.mubr.f32.gmra.mrb[0].mxu0 %v5203
      %v5412 = vpop.f32.mrb[0].mxu0
      %v5413 = vadd.f32 %v5128, %v5412
      %v5414 = vpop.f32.mrb[0].mxu0
      %5415 = vmatprep.mubr.f32.mxu0 0.0
      %5416 = vmatmul.mubr.f32.gmra.mrb[0].mxu0 %v5206
      %v5417 = vpop.f32.mrb[0].mxu0
      %v5418 = vadd.f32 %v5128, %v5417
      %v5419 = vpop.f32.mrb[0].mxu0
      %5420 = vmatprep.mubr.f32.mxu0 0.0
      %5421 = vmatmul.mubr.f32.gmra.mrb[0].mxu0 %v5209
      %v5422 = vpop.f32.mrb[0].mxu0
      %v5423 = vadd.f32 %v5128, %v5422
      %v5424 = vpop.f32.mrb[0].mxu0
      %5425 = vmatprep.mubr.f32.mxu0 0.0
      %5426 = vmatmul.mubr.f32.gmra.mrb[0].mxu0 %v5212
      %v5427 = vpop.f32.mrb[0].mxu0
      %v5428 = vadd.f32 %v5128, %v5427
      %v5429 = vpop.f32.mrb[0].mxu0
      %5430 = vmatprep.mubr.f32.mxu0 0.0
      %5431 = vmatmul.mubr.f32.gmra.mrb[0].mxu0 %v5215
      %v5432 = vpop.f32.mrb[0].mxu0
      %v5433 = vadd.f32 %v5128, %v5432
      %v5434 = vpop.f32.mrb[0].mxu0
      %5435 = vmatprep.mubr.f32.mxu0 0.0
      %5436 = vmatmul.mubr.f32.gmra.mrb[0].mxu0 %v5218
      %v5437 = vpop.f32.mrb[0].mxu0
      %v5438 = vadd.f32 %v5128, %v5437
      %v5439 = vpop.f32.mrb[0].mxu0
      %5440 = vmatprep.mubr.f32.mxu0 0.0
      %5441 = vmatmul.mubr.f32.gmra.mrb[0].mxu0 %v5221
      %v5442 = vpop.f32.mrb[0].mxu0
      %v5443 = vadd.f32 %v5128, %v5442
      %v5444 = vpop.f32.mrb[0].mxu0
      %5445 = vmatprep.mubr.f32.mxu0 0.0
      %5446 = vmatmul.mubr.f32.gmra.mrb[0].mxu0 %v5224
      %v5447 = vpop.f32.mrb[0].mxu0
      %v5448 = vadd.f32 %v5128, %v5447
      %v5449 = vpop.f32.mrb[0].mxu0
      %5450 = vdwg.mxu0
      %s5451 = scalar_lea.vmem %s327, 24
      %v5452 = vld [vmem:[%s5451 + $0x1] sm:$0xff]
      %v5453 = vld [vmem:[%s5451 + $0x9] sm:$0xff]
      %v5454 = vld [vmem:[%s5451 + $0x19] sm:$0xff]
      %v5455 = vld [vmem:[%s5451 + $0x21] sm:$0xff]
      %v5456 = vld [vmem:[%s5451 + $0x31] sm:$0xff]
      %v5457 = vld [vmem:[%s5451 + $0x39] sm:$0xff]
      %v5458 = vld [vmem:[%s5451 + $0x49] sm:$0xff]
      %v5459 = vld [vmem:[%s5451 + $0x51] sm:$0xff]
      %v5460 = vld [vmem:[%s5451 + $0x61] sm:$0xff]
      %v5461 = vld [vmem:[%s5451 + $0x69] sm:$0xff]
      %v5462 = vld [vmem:[%s5451 + $0x79] sm:$0xff]
      %v5463 = vld [vmem:[%s5451 + $0x81] sm:$0xff]
      %v5464 = vld [vmem:[%s5451 + $0x91] sm:$0xff]
      %v5465 = vld [vmem:[%s5451 + $0x99] sm:$0xff]
      %v5466 = vld [vmem:[%s5451 + $0xa9] sm:$0xff]
      %v5467 = vld [vmem:[%s5451 + $0xb1] sm:$0xff]
      %v5468 = vld [vmem:[%s5451 + $0xc1] sm:$0xff]
      %v5469 = vld [vmem:[%s5451 + $0xc9] sm:$0xff]
      %v5470 = vld [vmem:[%s5451 + $0xd9] sm:$0xff]
      %v5471 = vld [vmem:[%s5451 + $0xe1] sm:$0xff]
      %v5472 = vld [vmem:[%s5451 + $0xf1] sm:$0xff]
      %v5473 = vld [vmem:[%s5451 + $0xf9] sm:$0xff]
      %v5474 = vld [vmem:[%s5451 + $0x109] sm:$0xff]
      %v5475 = vld [vmem:[%s5451 + $0x111] sm:$0xff]
      %v5476 = vld [vmem:[%s5451 + $0x121] sm:$0xff]
      %v5477 = vld [vmem:[%s5451 + $0x129] sm:$0xff]
      %v5478 = vld [vmem:[%s5451 + $0x139] sm:$0xff]
      %v5479 = vld [vmem:[%s5451 + $0x141] sm:$0xff]
      %v5480 = vld [vmem:[%s5451 + $0x151] sm:$0xff]
      %v5481 = vld [vmem:[%s5451 + $0x159] sm:$0xff]
      %v5482 = vld [vmem:[%s5451 + $0x169] sm:$0xff]
      %v5483 = vld [vmem:[%s5451 + $0x171] sm:$0xff]
      %v5484 = vld [vmem:[%s7] sm:$0xff]
      %v5485 = vld [vmem:[%s7 + $0x8] sm:$0xff]
      %v5486 = vld [vmem:[%s7 + $0x10] sm:$0xff]
      %v5487 = vld [vmem:[%s7 + $0x18] sm:$0xff]
      %v5488 = vld [vmem:[%s7 + $0x20] sm:$0xff]
      %v5489 = vld [vmem:[%s7 + $0x28] sm:$0xff]
      %v5490 = vld [vmem:[%s7 + $0x30] sm:$0xff]
      %v5491 = vld [vmem:[%s7 + $0x38] sm:$0xff]
      %v5492 = vld [vmem:[%s8] sm:$0x1]
      %v5494 = vlaneseq
      %v5495 = vshrl.u32 %v5494, 7
      %v5496 = vsub.s32 0, %v5495
      %v5497 = vrot.slane %v5492, %v5496
      %v5500 = vsel %vm402, %v5452, 0
      %v5503 = vsel %vm402, %v5453, 0
      %v5506 = vsel %vm402, %v5454, 0
      %v5509 = vsel %vm402, %v5455, 0
      %v5512 = vsel %vm402, %v5456, 0
      %v5515 = vsel %vm402, %v5457, 0
      %v5518 = vsel %vm402, %v5458, 0
      %v5521 = vsel %vm402, %v5459, 0
      %v5524 = vsel %vm402, %v5460, 0
      %v5527 = vsel %vm402, %v5461, 0
      %v5530 = vsel %vm402, %v5462, 0
      %v5533 = vsel %vm402, %v5463, 0
      %v5536 = vsel %vm402, %v5464, 0
      %v5539 = vsel %vm402, %v5465, 0
      %v5542 = vsel %vm402, %v5466, 0
      %v5545 = vsel %vm402, %v5467, 0
      %v5548 = vsel %vm402, %v5468, 0
      %v5551 = vsel %vm402, %v5469, 0
      %v5554 = vsel %vm402, %v5470, 0
      %v5557 = vsel %vm402, %v5471, 0
      %v5560 = vsel %vm402, %v5472, 0
      %v5563 = vsel %vm402, %v5473, 0
      %v5566 = vsel %vm402, %v5474, 0
      %v5569 = vsel %vm402, %v5475, 0
      %v5572 = vsel %vm402, %v5476, 0
      %v5575 = vsel %vm402, %v5477, 0
      %v5578 = vsel %vm402, %v5478, 0
      %v5581 = vsel %vm402, %v5479, 0
      %v5584 = vsel %vm402, %v5480, 0
      %v5587 = vsel %vm402, %v5481, 0
      %v5590 = vsel %vm402, %v5482, 0
      %v5593 = vsel %vm402, %v5483, 0
      %5595 = vmatprep.subr.mxu0 0.0
      %5596 = vmatpush1.msra.mxu0 %v5484
      %5597 = vmatprep.subr.mxu0 0.0
      %5598 = vmatpush1.msra.mxu0 %v5485
      %5599 = vmatprep.subr.mxu0 0.0
      %5600 = vmatpush1.msra.mxu0 %v5486
      %5601 = vmatprep.subr.mxu0 0.0
      %5602 = vmatpush1.msra.mxu0 %v5487
      %5603 = vmatprep.subr.mxu0 0.0
      %5604 = vmatpush1.msra.mxu0 %v5488
      %5605 = vmatprep.subr.mxu0 0.0
      %5606 = vmatpush1.msra.mxu0 %v5489
      %5607 = vmatprep.subr.mxu0 0.0
      %5608 = vmatpush1.msra.mxu0 %v5490
      %5609 = vmatprep.subr.mxu0 0.0
      %5610 = vmatpush1.msra.mxu0 %v5491
      %5611 = vmatprep.subr.mxu0 0.0
      %5612 = vmatpush1.msra.mxu0 0.0
      %5613 = vmatprep.subr.mxu0 0.0
      %5614 = vmatpush1.msra.mxu0 0.0
      %5615 = vmatprep.subr.mxu0 0.0
      %5616 = vmatpush1.msra.mxu0 0.0
      %5617 = vmatprep.subr.mxu0 0.0
      %5618 = vmatpush1.msra.mxu0 0.0
      %5619 = vmatprep.subr.mxu0 0.0
      %5620 = vmatpush1.msra.mxu0 0.0
      %5621 = vmatprep.subr.mxu0 0.0
      %5622 = vmatpush1.msra.mxu0 0.0
      %5623 = vmatprep.subr.mxu0 0.0
      %5624 = vmatpush1.msra.mxu0 0.0
      %5625 = vmatprep.subr.mxu0 0.0
      %5626 = vmatpush1.msra.mxu0 0.0
      %5627 = vmatprep.subr.mxu0 0.0
      %5628 = vmatpush1.msra.mxu0 0.0
      %5629 = vmatprep.subr.mxu0 0.0
      %5630 = vmatpush1.msra.mxu0 0.0
      %5631 = vmatprep.subr.mxu0 0.0
      %5632 = vmatpush1.msra.mxu0 0.0
      %5633 = vmatprep.subr.mxu0 0.0
      %5634 = vmatpush1.msra.mxu0 0.0
      %5635 = vmatprep.subr.mxu0 0.0
      %5636 = vmatpush1.msra.mxu0 0.0
      %5637 = vmatprep.subr.mxu0 0.0
      %5638 = vmatpush1.msra.mxu0 0.0
      %5639 = vmatprep.subr.mxu0 0.0
      %5640 = vmatpush1.msra.mxu0 0.0
      %5641 = vmatprep.subr.mxu0 0.0
      %5642 = vmatpush1.msra.mxu0 0.0
      %5643 = vmatprep.subr.mxu0 0.0
      %5644 = vmatpush1.msra.mxu0 0.0
      %5645 = vmatprep.subr.mxu0 0.0
      %5646 = vmatpush1.msra.mxu0 0.0
      %5647 = vmatprep.subr.mxu0 0.0
      %5648 = vmatpush1.msra.mxu0 0.0
      %5649 = vmatprep.subr.mxu0 0.0
      %5650 = vmatpush1.msra.mxu0 0.0
      %5651 = vmatprep.subr.mxu0 0.0
      %5652 = vmatpush1.msra.mxu0 0.0
      %5653 = vmatprep.subr.mxu0 0.0
      %5654 = vmatpush1.msra.mxu0 0.0
      %5655 = vmatprep.subr.mxu0 0.0
      %5656 = vmatpush1.msra.mxu0 0.0
      %5657 = vmatprep.subr.mxu0 0.0
      %5658 = vmatpush1.msra.mxu0 0.0
      %5659 = vmatprep.mubr.f32.mxu0 0.0
      %5660 = vmatmul.mubr.f32.gmra.mrb[0].mxu0 %v5500
      %v5661 = vpop.f32.mrb[0].mxu0
      %v5662 = vadd.f32 %v5497, %v5661
      %v5663 = vpop.f32.mrb[0].mxu0
      %5664 = vmatprep.mubr.f32.mxu0 0.0
      %5665 = vmatmul.mubr.f32.gmra.mrb[0].mxu0 %v5503
      %v5666 = vpop.f32.mrb[0].mxu0
      %v5667 = vadd.f32 %v5497, %v5666
      %v5668 = vpop.f32.mrb[0].mxu0
      %5669 = vmatprep.mubr.f32.mxu0 0.0
      %5670 = vmatmul.mubr.f32.gmra.mrb[0].mxu0 %v5506
      %v5671 = vpop.f32.mrb[0].mxu0
      %v5672 = vadd.f32 %v5497, %v5671
      %v5673 = vpop.f32.mrb[0].mxu0
      %5674 = vmatprep.mubr.f32.mxu0 0.0
      %5675 = vmatmul.mubr.f32.gmra.mrb[0].mxu0 %v5509
      %v5676 = vpop.f32.mrb[0].mxu0
      %v5677 = vadd.f32 %v5497, %v5676
      %v5678 = vpop.f32.mrb[0].mxu0
      %5679 = vmatprep.mubr.f32.mxu0 0.0
      %5680 = vmatmul.mubr.f32.gmra.mrb[0].mxu0 %v5512
      %v5681 = vpop.f32.mrb[0].mxu0
      %v5682 = vadd.f32 %v5497, %v5681
      %v5683 = vpop.f32.mrb[0].mxu0
      %5684 = vmatprep.mubr.f32.mxu0 0.0
      %5685 = vmatmul.mubr.f32.gmra.mrb[0].mxu0 %v5515
      %v5686 = vpop.f32.mrb[0].mxu0
      %v5687 = vadd.f32 %v5497, %v5686
      %v5688 = vpop.f32.mrb[0].mxu0
      %5689 = vmatprep.mubr.f32.mxu0 0.0
      %5690 = vmatmul.mubr.f32.gmra.mrb[0].mxu0 %v5518
      %v5691 = vpop.f32.mrb[0].mxu0
      %v5692 = vadd.f32 %v5497, %v5691
      %v5693 = vpop.f32.mrb[0].mxu0
      %5694 = vmatprep.mubr.f32.mxu0 0.0
      %5695 = vmatmul.mubr.f32.gmra.mrb[0].mxu0 %v5521
      %v5696 = vpop.f32.mrb[0].mxu0
      %v5697 = vadd.f32 %v5497, %v5696
      %v5698 = vpop.f32.mrb[0].mxu0
      %5699 = vmatprep.mubr.f32.mxu0 0.0
      %5700 = vmatmul.mubr.f32.gmra.mrb[0].mxu0 %v5524
      %v5701 = vpop.f32.mrb[0].mxu0
      %v5702 = vadd.f32 %v5497, %v5701
      %v5703 = vpop.f32.mrb[0].mxu0
      %5704 = vmatprep.mubr.f32.mxu0 0.0
      %5705 = vmatmul.mubr.f32.gmra.mrb[0].mxu0 %v5527
      %v5706 = vpop.f32.mrb[0].mxu0
      %v5707 = vadd.f32 %v5497, %v5706
      %v5708 = vpop.f32.mrb[0].mxu0
      %5709 = vmatprep.mubr.f32.mxu0 0.0
      %5710 = vmatmul.mubr.f32.gmra.mrb[0].mxu0 %v5530
      %v5711 = vpop.f32.mrb[0].mxu0
      %v5712 = vadd.f32 %v5497, %v5711
      %v5713 = vpop.f32.mrb[0].mxu0
      %5714 = vmatprep.mubr.f32.mxu0 0.0
      %5715 = vmatmul.mubr.f32.gmra.mrb[0].mxu0 %v5533
      %v5716 = vpop.f32.mrb[0].mxu0
      %v5717 = vadd.f32 %v5497, %v5716
      %v5718 = vpop.f32.mrb[0].mxu0
      %5719 = vmatprep.mubr.f32.mxu0 0.0
      %5720 = vmatmul.mubr.f32.gmra.mrb[0].mxu0 %v5536
      %v5721 = vpop.f32.mrb[0].mxu0
      %v5722 = vadd.f32 %v5497, %v5721
      %v5723 = vpop.f32.mrb[0].mxu0
      %5724 = vmatprep.mubr.f32.mxu0 0.0
      %5725 = vmatmul.mubr.f32.gmra.mrb[0].mxu0 %v5539
      %v5726 = vpop.f32.mrb[0].mxu0
      %v5727 = vadd.f32 %v5497, %v5726
      %v5728 = vpop.f32.mrb[0].mxu0
      %5729 = vmatprep.mubr.f32.mxu0 0.0
      %5730 = vmatmul.mubr.f32.gmra.mrb[0].mxu0 %v5542
      %v5731 = vpop.f32.mrb[0].mxu0
      %v5732 = vadd.f32 %v5497, %v5731
      %v5733 = vpop.f32.mrb[0].mxu0
      %5734 = vmatprep.mubr.f32.mxu0 0.0
      %5735 = vmatmul.mubr.f32.gmra.mrb[0].mxu0 %v5545
      %v5736 = vpop.f32.mrb[0].mxu0
      %v5737 = vadd.f32 %v5497, %v5736
      %v5738 = vpop.f32.mrb[0].mxu0
      %5739 = vmatprep.mubr.f32.mxu0 0.0
      %5740 = vmatmul.mubr.f32.gmra.mrb[0].mxu0 %v5548
      %v5741 = vpop.f32.mrb[0].mxu0
      %v5742 = vadd.f32 %v5497, %v5741
      %v5743 = vpop.f32.mrb[0].mxu0
      %5744 = vmatprep.mubr.f32.mxu0 0.0
      %5745 = vmatmul.mubr.f32.gmra.mrb[0].mxu0 %v5551
      %v5746 = vpop.f32.mrb[0].mxu0
      %v5747 = vadd.f32 %v5497, %v5746
      %v5748 = vpop.f32.mrb[0].mxu0
      %5749 = vmatprep.mubr.f32.mxu0 0.0
      %5750 = vmatmul.mubr.f32.gmra.mrb[0].mxu0 %v5554
      %v5751 = vpop.f32.mrb[0].mxu0
      %v5752 = vadd.f32 %v5497, %v5751
      %v5753 = vpop.f32.mrb[0].mxu0
      %5754 = vmatprep.mubr.f32.mxu0 0.0
      %5755 = vmatmul.mubr.f32.gmra.mrb[0].mxu0 %v5557
      %v5756 = vpop.f32.mrb[0].mxu0
      %v5757 = vadd.f32 %v5497, %v5756
      %v5758 = vpop.f32.mrb[0].mxu0
      %5759 = vmatprep.mubr.f32.mxu0 0.0
      %5760 = vmatmul.mubr.f32.gmra.mrb[0].mxu0 %v5560
      %v5761 = vpop.f32.mrb[0].mxu0
      %v5762 = vadd.f32 %v5497, %v5761
      %v5763 = vpop.f32.mrb[0].mxu0
      %5764 = vmatprep.mubr.f32.mxu0 0.0
      %5765 = vmatmul.mubr.f32.gmra.mrb[0].mxu0 %v5563
      %v5766 = vpop.f32.mrb[0].mxu0
      %v5767 = vadd.f32 %v5497, %v5766
      %v5768 = vpop.f32.mrb[0].mxu0
      %5769 = vmatprep.mubr.f32.mxu0 0.0
      %5770 = vmatmul.mubr.f32.gmra.mrb[0].mxu0 %v5566
      %v5771 = vpop.f32.mrb[0].mxu0
      %v5772 = vadd.f32 %v5497, %v5771
      %v5773 = vpop.f32.mrb[0].mxu0
      %5774 = vmatprep.mubr.f32.mxu0 0.0
      %5775 = vmatmul.mubr.f32.gmra.mrb[0].mxu0 %v5569
      %v5776 = vpop.f32.mrb[0].mxu0
      %v5777 = vadd.f32 %v5497, %v5776
      %v5778 = vpop.f32.mrb[0].mxu0
      %5779 = vmatprep.mubr.f32.mxu0 0.0
      %5780 = vmatmul.mubr.f32.gmra.mrb[0].mxu0 %v5572
      %v5781 = vpop.f32.mrb[0].mxu0
      %v5782 = vadd.f32 %v5497, %v5781
      %v5783 = vpop.f32.mrb[0].mxu0
      %5784 = vmatprep.mubr.f32.mxu0 0.0
      %5785 = vmatmul.mubr.f32.gmra.mrb[0].mxu0 %v5575
      %v5786 = vpop.f32.mrb[0].mxu0
      %v5787 = vadd.f32 %v5497, %v5786
      %v5788 = vpop.f32.mrb[0].mxu0
      %5789 = vmatprep.mubr.f32.mxu0 0.0
      %5790 = vmatmul.mubr.f32.gmra.mrb[0].mxu0 %v5578
      %v5791 = vpop.f32.mrb[0].mxu0
      %v5792 = vadd.f32 %v5497, %v5791
      %v5793 = vpop.f32.mrb[0].mxu0
      %5794 = vmatprep.mubr.f32.mxu0 0.0
      %5795 = vmatmul.mubr.f32.gmra.mrb[0].mxu0 %v5581
      %v5796 = vpop.f32.mrb[0].mxu0
      %v5797 = vadd.f32 %v5497, %v5796
      %v5798 = vpop.f32.mrb[0].mxu0
      %5799 = vmatprep.mubr.f32.mxu0 0.0
      %5800 = vmatmul.mubr.f32.gmra.mrb[0].mxu0 %v5584
      %v5801 = vpop.f32.mrb[0].mxu0
      %v5802 = vadd.f32 %v5497, %v5801
      %v5803 = vpop.f32.mrb[0].mxu0
      %5804 = vmatprep.mubr.f32.mxu0 0.0
      %5805 = vmatmul.mubr.f32.gmra.mrb[0].mxu0 %v5587
      %v5806 = vpop.f32.mrb[0].mxu0
      %v5807 = vadd.f32 %v5497, %v5806
      %v5808 = vpop.f32.mrb[0].mxu0
      %5809 = vmatprep.mubr.f32.mxu0 0.0
      %5810 = vmatmul.mubr.f32.gmra.mrb[0].mxu0 %v5590
      %v5811 = vpop.f32.mrb[0].mxu0
      %v5812 = vadd.f32 %v5497, %v5811
      %v5813 = vpop.f32.mrb[0].mxu0
      %5814 = vmatprep.mubr.f32.mxu0 0.0
      %5815 = vmatmul.mubr.f32.gmra.mrb[0].mxu0 %v5593
      %v5816 = vpop.f32.mrb[0].mxu0
      %v5817 = vadd.f32 %v5497, %v5816
      %v5818 = vpop.f32.mrb[0].mxu0
      %5819 = vdwg.mxu0
      %v5820 = vadd.f32 %v5293, %v5662
      %v5821 = vadd.f32 %v5298, %v5667
      %v5822 = vadd.f32 %v5303, %v5672
      %v5823 = vadd.f32 %v5308, %v5677
      %v5824 = vadd.f32 %v5313, %v5682
      %v5825 = vadd.f32 %v5318, %v5687
      %v5826 = vadd.f32 %v5323, %v5692
      %v5827 = vadd.f32 %v5328, %v5697
      %v5828 = vadd.f32 %v5333, %v5702
      %v5829 = vadd.f32 %v5338, %v5707
      %v5830 = vadd.f32 %v5343, %v5712
      %v5831 = vadd.f32 %v5348, %v5717
      %v5832 = vadd.f32 %v5353, %v5722
      %v5833 = vadd.f32 %v5358, %v5727
      %v5834 = vadd.f32 %v5363, %v5732
      %v5835 = vadd.f32 %v5368, %v5737
      %v5836 = vadd.f32 %v5373, %v5742
      %v5837 = vadd.f32 %v5378, %v5747
      %v5838 = vadd.f32 %v5383, %v5752
      %v5839 = vadd.f32 %v5388, %v5757
      %v5840 = vadd.f32 %v5393, %v5762
      %v5841 = vadd.f32 %v5398, %v5767
      %v5842 = vadd.f32 %v5403, %v5772
      %v5843 = vadd.f32 %v5408, %v5777
      %v5844 = vadd.f32 %v5413, %v5782
      %v5845 = vadd.f32 %v5418, %v5787
      %v5846 = vadd.f32 %v5423, %v5792
      %v5847 = vadd.f32 %v5428, %v5797
      %v5848 = vadd.f32 %v5433, %v5802
      %v5849 = vadd.f32 %v5438, %v5807
      %v5850 = vadd.f32 %v5443, %v5812
      %v5851 = vadd.f32 %v5448, %v5817
      %v5852 = vmax.f32 %v5820, 0.0
      %v5853 = vmax.f32 %v5821, 0.0
      %v5854 = vmax.f32 %v5822, 0.0
      %v5855 = vmax.f32 %v5823, 0.0
      %v5856 = vmax.f32 %v5824, 0.0
      %v5857 = vmax.f32 %v5825, 0.0
      %v5858 = vmax.f32 %v5826, 0.0
      %v5859 = vmax.f32 %v5827, 0.0
      %v5860 = vmax.f32 %v5828, 0.0
      %v5861 = vmax.f32 %v5829, 0.0
      %v5862 = vmax.f32 %v5830, 0.0
      %v5863 = vmax.f32 %v5831, 0.0
      %v5864 = vmax.f32 %v5832, 0.0
      %v5865 = vmax.f32 %v5833, 0.0
      %v5866 = vmax.f32 %v5834, 0.0
      %v5867 = vmax.f32 %v5835, 0.0
      %v5868 = vmax.f32 %v5836, 0.0
      %v5869 = vmax.f32 %v5837, 0.0
      %v5870 = vmax.f32 %v5838, 0.0
      %v5871 = vmax.f32 %v5839, 0.0
      %v5872 = vmax.f32 %v5840, 0.0
      %v5873 = vmax.f32 %v5841, 0.0
      %v5874 = vmax.f32 %v5842, 0.0
      %v5875 = vmax.f32 %v5843, 0.0
      %v5876 = vmax.f32 %v5844, 0.0
      %v5877 = vmax.f32 %v5845, 0.0
      %v5878 = vmax.f32 %v5846, 0.0
      %v5879 = vmax.f32 %v5847, 0.0
      %v5880 = vmax.f32 %v5848, 0.0
      %v5881 = vmax.f32 %v5849, 0.0
      %v5882 = vmax.f32 %v5850, 0.0
      %v5883 = vmax.f32 %v5851, 0.0
      %5884 = vst [vmem:[%s332] sm:$0xff] %v5852
      %5885 = vst [vmem:[%s332 + $0x8] sm:$0xff] %v5853
      %5886 = vst [vmem:[%s332 + $0x10] sm:$0xff] %v5854
      %5887 = vst [vmem:[%s332 + $0x18] sm:$0xff] %v5855
      %5888 = vst [vmem:[%s332 + $0x20] sm:$0xff] %v5856
      %5889 = vst [vmem:[%s332 + $0x28] sm:$0xff] %v5857
      %5890 = vst [vmem:[%s332 + $0x30] sm:$0xff] %v5858
      %5891 = vst [vmem:[%s332 + $0x38] sm:$0xff] %v5859
      %5892 = vst [vmem:[%s332 + $0x40] sm:$0xff] %v5860
      %5893 = vst [vmem:[%s332 + $0x48] sm:$0xff] %v5861
      %5894 = vst [vmem:[%s332 + $0x50] sm:$0xff] %v5862
      %5895 = vst [vmem:[%s332 + $0x58] sm:$0xff] %v5863
      %5896 = vst [vmem:[%s332 + $0x60] sm:$0xff] %v5864
      %5897 = vst [vmem:[%s332 + $0x68] sm:$0xff] %v5865
      %5898 = vst [vmem:[%s332 + $0x70] sm:$0xff] %v5866
      %5899 = vst [vmem:[%s332 + $0x78] sm:$0xff] %v5867
      %5900 = vst [vmem:[%s332 + $0x80] sm:$0xff] %v5868
      %5901 = vst [vmem:[%s332 + $0x88] sm:$0xff] %v5869
      %5902 = vst [vmem:[%s332 + $0x90] sm:$0xff] %v5870
      %5903 = vst [vmem:[%s332 + $0x98] sm:$0xff] %v5871
      %5904 = vst [vmem:[%s332 + $0xa0] sm:$0xff] %v5872
      %5905 = vst [vmem:[%s332 + $0xa8] sm:$0xff] %v5873
      %5906 = vst [vmem:[%s332 + $0xb0] sm:$0xff] %v5874
      %5907 = vst [vmem:[%s332 + $0xb8] sm:$0xff] %v5875
      %5908 = vst [vmem:[%s332 + $0xc0] sm:$0xff] %v5876
      %5909 = vst [vmem:[%s332 + $0xc8] sm:$0xff] %v5877
      %5910 = vst [vmem:[%s332 + $0xd0] sm:$0xff] %v5878
      %5911 = vst [vmem:[%s332 + $0xd8] sm:$0xff] %v5879
      %5912 = vst [vmem:[%s332 + $0xe0] sm:$0xff] %v5880
      %5913 = vst [vmem:[%s332 + $0xe8] sm:$0xff] %v5881
      %5914 = vst [vmem:[%s332 + $0xf0] sm:$0xff] %v5882
      %5915 = vst [vmem:[%s332 + $0xf8] sm:$0xff] %v5883
      %p5916 = scmp.lt.s32.totalorder %s20, 1
      %s5917 = scalar_select %p5916, %s20, 1
      %s5918 = smul.addr %s5917, 32
      %s5919 = smul.addr %s5918, 8
      %s5920 = scalar_lea.vmem %s9, %s5919
      // Predicated region
      $region57: #{resnet_layer_forward.2} parent=55 // pred_check
        %p5921 = pneg %p232
      $region58: #{resnet_layer_forward.2} parent=55 // pred_check_branch
        %5923 = sbr.rel (%p5921) target = $region60
      $region59: #{resnet_layer_forward.2} parent=55 // pred_region
        _
      $region60: #{resnet_layer_forward.2} parent=55 // pred_fallthru
        _
    $region56: #{resnet_layer_forward.2} parent=5 // pred_fallthru
      _
    %p5924 = scmp.le.s32.totalorder 2, %s15
    // Predicated region
    $region61: #{resnet_layer_forward.2} parent=5 // pred_check
      %p5925 = pneg %p5924
    $region62: #{resnet_layer_forward.2} parent=5 // pred_check_branch
      %5927 = sbr.rel (%p5925) target = $region64
    $region63: #{resnet_layer_forward.2} parent=5 // pred_region
      %s5928 = ssub.s32 %s15, 2
      // Predicated region
      $region65: #{resnet_layer_forward.2} parent=63 // pred_check
        %p5929 = pneg %p238
      $region66: #{resnet_layer_forward.2} parent=63 // pred_check_branch
        %5931 = sbr.rel (%p5929) target = $region68
      $region67: #{resnet_layer_forward.2} parent=63 // pred_region
        %p5932 = scmp.lt.s32.totalorder %s21, 1
        %s5933 = scalar_select %p5932, %s21, 1
        %s5934 = smul.addr %s5933, 32
        %s5935 = smul.addr %s5934, 8
        %s5936 = scalar_lea.vmem %s9, %s5935
      $region68: #{resnet_layer_forward.2} parent=63 // pred_fallthru
        _
    $region64: #{resnet_layer_forward.2} parent=5 // pred_fallthru
      _
  $region6: #{resnet_layer_forward.2} parent=0 // loop_footer
    %s19 = sadd.s32 1, %s15
  $region7: #{resnet_layer_forward.2} parent=0 // loop_footer_branch
    %14 = sbr.rel target = $region3
  $region8: #{resnet_layer_forward.2} parent=0 // loop_exit
    _

</llo_original>
